<compile_context>
chip_gen: v6e
topology: v6e:2x2x1
jax: 0.10.0
libtpu: 0.0.40
codegen_flags: <defaults>
</compile_context>

<pallas_src>
import jax
import jax.numpy as jnp
from jax import lax
from jax.experimental import pallas as pl
from jax.experimental.pallas import tpu as pltpu


def _conv_block_kernel(x_ref, w1_ref, b1_ref, w2_ref, b2_ref, o_ref,
                       xp1_ref, xp2_ref, acc1_ref, acc2_ref):
    # x_ref : (1, H+4, W, Cin)   whole image, H padded by 2 zero rows each side
    # w1_ref: (9, Cin, Cmid)     conv1 weights, tap-major
    # b1_ref: (1, Cmid)          f32
    # w2_ref: (9, Cmid, Cout)    conv2 weights, tap-major
    # b2_ref: (1, Cout)          f32
    # o_ref : (1, ROWS, W, Cout) one output row-stripe (true channel count)
    # xp1_ref : (ROWS+4, W+2, Cin)   VMEM: W-padded input stripe (+2-row halo)
    # xp2_ref : (ROWS+2, W+2, Cmid)  VMEM: W-padded intermediate (+1-row halo)
    # acc1_ref: ((ROWS+2)*W, Cmid)   VMEM: f32 accumulator, stage 1
    # acc2_ref: (ROWS*W, Cout)       VMEM: f32 accumulator, stage 2
    rows = o_ref.shape[1]
    W = o_ref.shape[2]
    cout = o_ref.shape[3]
    cin = x_ref.shape[3]
    cmid = w1_ref.shape[2]
    mid_rows = rows + 2                      # stripe + 1-row halo each side
    cdt = xp1_ref.dtype                      # compute (operand) dtype

    i = pl.program_id(1)
    n_stripes = pl.num_programs(1)

    # ------------- stage 1: Conv2d(ch_in -> ch_out) + ReLU -------------------
    # Only the two zero border columns are rewritten; the interior is fully
    # overwritten every step (no whole-buffer re-zeroing).
    xp1_ref[:, 0:1, :] = jnp.zeros((rows + 4, 1, cin), cdt)
    xp1_ref[:, W + 1:W + 2, :] = jnp.zeros((rows + 4, 1, cin), cdt)
    # Halo'd input stripe: rows [i*ROWS, i*ROWS + ROWS+4) of the H-padded image.
    xp1_ref[:, 1:W + 1, :] = x_ref[0, pl.ds(i * rows, rows + 4), :, :]

    # 3x3 conv as 9 accumulated matmuls (tap accumulation, f32 accumulate).
    acc1_ref[...] = jnp.zeros_like(acc1_ref)
    for kh in range(3):
        for kw in range(3):
            a = xp1_ref[kh:kh + mid_rows, kw:kw + W, :].reshape(mid_rows * W, cin)
            acc1_ref[...] += jnp.dot(a, w1_ref[kh * 3 + kw],
                                     preferred_element_type=jnp.float32)
    mid = jnp.maximum(acc1_ref[...] + b1_ref[...], 0.0)      # f32 (MID*W, Cmid)

    # ------------- stage 2 input: intermediate stripe + 1-row halo -----------
    xp2_ref[:, 0:1, :] = jnp.zeros((mid_rows, 1, cmid), cdt)
    xp2_ref[:, W + 1:W + 2, :] = jnp.zeros((mid_rows, 1, cmid), cdt)
    xp2_ref[:, 1:W + 1, :] = mid.astype(cdt).reshape(mid_rows, W, cmid)

    # Halo rows that fall outside the image are conv-2 zero padding, not
    # conv-1 output: overwrite them with exact zeros at the image borders.
    @pl.when(i == 0)
    def _():
        xp2_ref[0:1, :, :] = jnp.zeros((1, W + 2, cmid), cdt)

    @pl.when(i == n_stripes - 1)
    def _():
        xp2_ref[mid_rows - 1:mid_rows, :, :] = jnp.zeros((1, W + 2, cmid), cdt)

    # ------------- stage 2: Conv2d(ch_out -> ch_out) + ReLU ------------------
    acc2_ref[...] = jnp.zeros_like(acc2_ref)
    for kh in range(3):
        for kw in range(3):
            a = xp2_ref[kh:kh + rows, kw:kw + W, :].reshape(rows * W, cmid)
            acc2_ref[...] += jnp.dot(a, w2_ref[kh * 3 + kw],
                                     preferred_element_type=jnp.float32)
    y = jnp.maximum(acc2_ref[...] + b2_ref[...], 0.0)          # f32 (ROWS*W, Cout)

    # Only the true Cout channels are stored (no channel-pad write amplification).
    o_ref[...] = y.reshape(1, rows, W, cout).astype(o_ref.dtype)


def _pick_stripe_rows(H, W, cin, cmid, cout, elt_bytes, budget=12 * 2 ** 20):
    """Largest divisor of H whose per-stripe scratch fits the VMEM budget."""
    def scratch_bytes(r):
        return ((r + 4) * (W + 2) * cin * elt_bytes        # xp1
                + (r + 2) * (W + 2) * cmid * elt_bytes     # xp2
                + (r + 2) * W * cmid * 4                   # acc1 (f32)
                + r * W * cout * 4)                        # acc2 (f32)
    best = 1
    for r in range(1, H + 1):
        if H % r == 0 and scratch_bytes(r) <= budget:
            best = r
    return best


def conv_block_forward(x_nchw, w1_hwio, b1, w2_hwio, b2, *,
                       compute_dtype=jnp.float32, stripe_rows=None):
    """Forward pass of conv_block.

    x_nchw : (N, Cin, H, W) float32
    w1_hwio: (3, 3, Cin, Cmid) float32   (PyTorch OIHW -> transpose(2,3,1,0))
    b1     : (Cmid,) float32
    w2_hwio: (3, 3, Cmid, Cout) float32
    b2     : (Cout,) float32
    compute_dtype: matmul operand dtype (f32, or bf16 with f32 accumulation
                   for the v6e/v7x MXU fast path).
    stripe_rows  : output rows per grid step (must divide H); auto if None.
    returns: (N, Cout, H, W) float32
    """
    N, Cin, H, W = x_nchw.shape
    Cmid = w1_hwio.shape[-1]
    Cout = w2_hwio.shape[-1]
    assert w1_hwio.shape == (3, 3, Cin, Cmid)
    assert w2_hwio.shape == (3, 3, Cmid, Cout)

    be = jnp.dtype(compute_dtype).itemsize
    if stripe_rows is None:
        stripe_rows = _pick_stripe_rows(H, W, Cin, Cmid, Cout, be)
    rows = int(stripe_rows)
    assert 1 <= rows <= H and H % rows == 0, (rows, H)
    n_stripes = H // rows
    mid_rows = rows + 2

    # ---- glue: NCHW -> NHWC, 2-row zero pad on H (halo slicing w/o branches),
    # ---- tap-major weights, operand-dtype cast (bias stays f32) -------------
    x_nhwc = jnp.transpose(x_nchw, (0, 2, 3, 1))
    x_pad = jnp.pad(x_nhwc, ((0, 0), (2, 2), (0, 0), (0, 0))).astype(compute_dtype)
    w1_t = w1_hwio.reshape(9, Cin, Cmid).astype(compute_dtype)
    w2_t = w2_hwio.reshape(9, Cmid, Cout).astype(compute_dtype)
    b1_2d = b1.reshape(1, Cmid).astype(jnp.float32)
    b2_2d = b2.reshape(1, Cout).astype(jnp.float32)

    # ---- VMEM budget / scheduler hints --------------------------------------
    scratch_bytes = ((rows + 4) * (W + 2) * Cin * be
                     + mid_rows * (W + 2) * Cmid * be
                     + mid_rows * W * Cmid * 4
                     + rows * W * Cout * 4)
    block_bytes = 2 * ((H + 4) * W * Cin * be            # input block (dbl-buf)
                       + 9 * Cin * Cmid * be + 9 * Cmid * Cout * be
                       + (Cmid + Cout) * 4
                       + rows * W * Cout * 4)            # output block
    vmem_limit = int(min(64 * 2 ** 20,
                         max(32 * 2 ** 20, 2 * (scratch_bytes + block_bytes))))

    flops = 2 * N * H * W * 9 * (Cin * Cmid + Cmid * Cout)
    bytes_accessed = (x_pad.size * be + (w1_t.size + w2_t.size) * be
                      + (b1_2d.size + b2_2d.size) * 4 + N * H * W * Cout * 4)

    out_nhwc = pl.pallas_call(
        _conv_block_kernel,
        out_shape=jax.ShapeDtypeStruct((N, H, W, Cout), jnp.float32),
        grid_spec=pltpu.PrefetchScalarGridSpec(
            num_scalar_prefetch=0,
            grid=(N, n_stripes),
            in_specs=[
                # Whole (H-padded) image; same block across the stripe axis so
                # it stays VMEM-resident (no re-fetch per stripe).
                pl.BlockSpec((1, H + 4, W, Cin), lambda n, i: (n, 0, 0, 0)),
                pl.BlockSpec((9, Cin, Cmid), lambda n, i: (0, 0, 0)),
                pl.BlockSpec((1, Cmid), lambda n, i: (0, 0)),
                pl.BlockSpec((9, Cmid, Cout), lambda n, i: (0, 0, 0)),
                pl.BlockSpec((1, Cout), lambda n, i: (0, 0)),
            ],
            out_specs=pl.BlockSpec((1, rows, W, Cout),
                                   lambda n, i: (n, i, 0, 0)),
            scratch_shapes=[
                pltpu.VMEM((rows + 4, W + 2, Cin), compute_dtype),   # xp1
                pltpu.VMEM((mid_rows, W + 2, Cmid), compute_dtype),  # xp2
                pltpu.VMEM((mid_rows * W, Cmid), jnp.float32),       # acc1
                pltpu.VMEM((rows * W, Cout), jnp.float32),           # acc2
            ]),
        compiler_params=pltpu.CompilerParams(
            dimension_semantics=("parallel", "parallel"),
            vmem_limit_bytes=vmem_limit),
        cost_estimate=pl.CostEstimate(
            flops=flops, transcendentals=0, bytes_accessed=bytes_accessed),
    )(x_pad, w1_t, b1_2d, w2_t, b2_2d)

    # glue: back to NCHW (PyTorch convention)
    return jnp.transpose(out_nhwc, (0, 3, 1, 2))


def _reference(x_nchw, w1_hwio, b1, w2_hwio, b2, operand_round=lambda a: a):
    """Pure-JAX reference (conv+relu twice). `operand_round` mimics the
    kernel's operand dtype (identity for f32, bf16 round-trip for bf16)."""
    r = operand_round
    x = r(jnp.transpose(x_nchw, (0, 2, 3, 1)))
    y = lax.conv_general_dilated(
        x, r(w1_hwio), window_strides=(1, 1), padding=((1, 1), (1, 1)),
        dimension_numbers=("NHWC", "HWIO", "NHWC"),
        precision=lax.Precision.HIGHEST)
    y = r(jnp.maximum(y + b1, 0.0))
    y = lax.conv_general_dilated(
        y, r(w2_hwio), window_strides=(1, 1), padding=((1, 1), (1, 1)),
        dimension_numbers=("NHWC", "HWIO", "NHWC"),
        precision=lax.Precision.HIGHEST)
    y = jnp.maximum(y + b2, 0.0)
    return jnp.transpose(y, (0, 3, 1, 2))


if __name__ == "__main__":
    # Small deterministic example: batch=2, ch_in=4, ch_out=8, spatial=16x16.
    key = jax.random.PRNGKey(0)
    kx, kw1, kb1, kw2, kb2 = jax.random.split(key, 5)

    N, Cin, Cout, H, W = 2, 4, 8, 16, 16

    x = jax.random.normal(kx, (N, Cin, H, W), dtype=jnp.float32)

    # PyTorch-style Conv2d init: uniform(-1/sqrt(fan_in), 1/sqrt(fan_in)).
    bound1 = 1.0 / ((Cin * 9) ** 0.5)
    w1 = jax.random.uniform(kw1, (3, 3, Cin, Cout), jnp.float32,
                            minval=-bound1, maxval=bound1)
    b1 = jax.random.uniform(kb1, (Cout,), jnp.float32,
                            minval=-bound1, maxval=bound1)

    bound2 = 1.0 / ((Cout * 9) ** 0.5)
    w2 = jax.random.uniform(kw2, (3, 3, Cout, Cout), jnp.float32,
                            minval=-bound2, maxval=bound2)
    b2 = jax.random.uniform(kb2, (Cout,), jnp.float32,
                            minval=-bound2, maxval=bound2)

    # --- f32 operands, 2 stripes/image (exercises the halo path), tight tol --
    ref_f32 = jax.block_until_ready(_reference(x, w1, b1, w2, b2))
    out_f32 = jax.block_until_ready(
        conv_block_forward(x, w1, b1, w2, b2,
                           compute_dtype=jnp.float32, stripe_rows=8))
    assert out_f32.shape == (N, Cout, H, W), out_f32.shape
    assert jnp.allclose(out_f32, ref_f32, atol=1e-3, rtol=1e-3), \
        float(jnp.max(jnp.abs(out_f32 - ref_f32)))

    # --- bf16 operands / f32 accumulate (v6e/v7x MXU path), auto stripes -----
    _bf16_round = lambda a: a.astype(jnp.bfloat16).astype(jnp.float32)
    ref_bf16 = jax.block_until_ready(
        _reference(x, w1, b1, w2, b2, operand_round=_bf16_round))
    out_bf16 = jax.block_until_ready(
        conv_block_forward(x, w1, b1, w2, b2,
                           compute_dtype=jnp.bfloat16, stripe_rows=None))
    assert out_bf16.shape == (N, Cout, H, W), out_bf16.shape
    assert jnp.allclose(out_bf16, ref_bf16, atol=2e-3, rtol=2e-3), \
        float(jnp.max(jnp.abs(out_bf16 - ref_bf16)))

    print("KERNEL_OK")
</pallas_src>

<mosaic_0001>
module attributes {stable_mosaic.version = 11 : i64} {
  func.func @_conv_block_kernel(%arg0: i32, %arg1: i32, %arg2: memref<1x20x16x4xf32, #tpu.memory_space<vmem>>, %arg3: memref<9x4x8xf32, #tpu.memory_space<vmem>>, %arg4: memref<1x8xf32, #tpu.memory_space<vmem>>, %arg5: memref<9x8x8xf32, #tpu.memory_space<vmem>>, %arg6: memref<1x8xf32, #tpu.memory_space<vmem>>, %arg7: memref<1x8x16x8xf32, #tpu.memory_space<vmem>>, %arg8: memref<12x18x4xf32, #tpu.memory_space<vmem>>, %arg9: memref<10x18x8xf32, #tpu.memory_space<vmem>>, %arg10: memref<160x8xf32, #tpu.memory_space<vmem>>, %arg11: memref<128x8xf32, #tpu.memory_space<vmem>>) attributes {dimension_semantics = [#tpu.dimension_semantics<parallel>, #tpu.dimension_semantics<parallel>], iteration_bounds = array<i64: 2, 2>, scalar_prefetch = 0 : i64, scratch_operands = 4 : i64, tpu.core_type = #tpu.core_type<tc>, window_params = [{transform_indices = @transform_0, window_bounds = array<i64: 1, 20, 16, 4>}, {pipeline_mode = #tpu.pipeline_mode<synchronous>, transform_indices = @transform_1, window_bounds = array<i64: 9, 4, 8>}, {pipeline_mode = #tpu.pipeline_mode<synchronous>, transform_indices = @transform_2, window_bounds = array<i64: 1, 8>}, {pipeline_mode = #tpu.pipeline_mode<synchronous>, transform_indices = @transform_3, window_bounds = array<i64: 9, 8, 8>}, {pipeline_mode = #tpu.pipeline_mode<synchronous>, transform_indices = @transform_4, window_bounds = array<i64: 1, 8>}, {transform_indices = @transform_5, window_bounds = array<i64: 1, 8, 16, 8>}]} {
    %cst = arith.constant 0.000000e+00 : f32
    %0 = vector.broadcast %cst : f32 to vector<12x1x4xf32>
    %c0 = arith.constant 0 : index
    %c0_0 = arith.constant 0 : index
    %c0_1 = arith.constant 0 : index
    %1 = vector.load %arg8[%c0, %c0_0, %c0_1] : memref<12x18x4xf32, #tpu.memory_space<vmem>>, vector<12x1x4xf32>
    tpu.vector_store %arg8[%c0, %c0_0, %c0_1], %0 {strides = array<i32>} : memref<12x18x4xf32, #tpu.memory_space<vmem>>, vector<12x1x4xf32>,
    %cst_2 = arith.constant 0.000000e+00 : f32
    %2 = vector.broadcast %cst_2 : f32 to vector<12x1x4xf32>
    %c0_3 = arith.constant 0 : index
    %c17 = arith.constant 17 : index
    %c0_4 = arith.constant 0 : index
    %3 = vector.load %arg8[%c0_3, %c17, %c0_4] : memref<12x18x4xf32, #tpu.memory_space<vmem>>, vector<12x1x4xf32>
    tpu.vector_store %arg8[%c0_3, %c17, %c0_4], %2 {strides = array<i32>} : memref<12x18x4xf32, #tpu.memory_space<vmem>>, vector<12x1x4xf32>,
    %c8_i32 = arith.constant 8 : i32
    %4 = arith.muli %arg1, %c8_i32 : i32
    %c0_5 = arith.constant 0 : index
    %5 = arith.index_cast %4 : i32 to index
    %c0_6 = arith.constant 0 : index
    %c0_7 = arith.constant 0 : index
    %6 = vector.load %arg2[%c0_5, %5, %c0_6, %c0_7] : memref<1x20x16x4xf32, #tpu.memory_space<vmem>>, vector<1x12x16x4xf32>
    %7 = vector.shape_cast %6 : vector<1x12x16x4xf32> to vector<12x16x4xf32>
    %c0_8 = arith.constant 0 : index
    %c1 = arith.constant 1 : index
    %c0_9 = arith.constant 0 : index
    %8 = vector.load %arg8[%c0_8, %c1, %c0_9] : memref<12x18x4xf32, #tpu.memory_space<vmem>>, vector<12x16x4xf32>
    tpu.vector_store %arg8[%c0_8, %c1, %c0_9], %7 {strides = array<i32>} : memref<12x18x4xf32, #tpu.memory_space<vmem>>, vector<12x16x4xf32>,
    %cst_10 = arith.constant 0.000000e+00 : f32
    %9 = vector.broadcast %cst_10 : f32 to vector<160x8xf32>
    %c0_11 = arith.constant 0 : index
    %c0_12 = arith.constant 0 : index
    %10 = vector.load %arg10[%c0_11, %c0_12] : memref<160x8xf32, #tpu.memory_space<vmem>>, vector<160x8xf32>
    tpu.vector_store %arg10[%c0_11, %c0_12], %9 {strides = array<i32>} : memref<160x8xf32, #tpu.memory_space<vmem>>, vector<160x8xf32>,
    %c0_13 = arith.constant 0 : index
    %c0_14 = arith.constant 0 : index
    %c0_15 = arith.constant 0 : index
    %11 = vector.load %arg8[%c0_13, %c0_14, %c0_15] : memref<12x18x4xf32, #tpu.memory_space<vmem>>, vector<10x16x4xf32>
    %12 = vector.shape_cast %11 : vector<10x16x4xf32> to vector<160x4xf32>
    %c0_16 = arith.constant 0 : index
    %c0_17 = arith.constant 0 : index
    %13 = vector.load %arg10[%c0_16, %c0_17] : memref<160x8xf32, #tpu.memory_space<vmem>>, vector<160x8xf32>
    %c0_18 = arith.constant 0 : index
    %c0_19 = arith.constant 0 : index
    %c0_20 = arith.constant 0 : index
    %14 = vector.load %arg3[%c0_18, %c0_19, %c0_20] : memref<9x4x8xf32, #tpu.memory_space<vmem>>, vector<1x4x8xf32>
    %15 = vector.shape_cast %14 : vector<1x4x8xf32> to vector<4x8xf32>
    %cst_21 = arith.constant dense<0.000000e+00> : vector<160x8xf32>
    %16 = tpu.matmul %12, %15, %cst_21 {dimension_numbers = #tpu.dot_dimension_numbers<[1], [0], [0], [1], [0, 0, 1, 1], [], []>} : vector<160x4xf32>, vector<4x8xf32>, vector<160x8xf32> -> vector<160x8xf32>
    %17 = arith.addf %13, %16 : vector<160x8xf32>
    %c0_22 = arith.constant 0 : index
    %c0_23 = arith.constant 0 : index
    %18 = vector.load %arg10[%c0_22, %c0_23] : memref<160x8xf32, #tpu.memory_space<vmem>>, vector<160x8xf32>
    tpu.vector_store %arg10[%c0_22, %c0_23], %17 {strides = array<i32>} : memref<160x8xf32, #tpu.memory_space<vmem>>, vector<160x8xf32>,
    %c0_24 = arith.constant 0 : index
    %c1_25 = arith.constant 1 : index
    %c0_26 = arith.constant 0 : index
    %19 = vector.load %arg8[%c0_24, %c1_25, %c0_26] : memref<12x18x4xf32, #tpu.memory_space<vmem>>, vector<10x16x4xf32>
    %20 = vector.shape_cast %19 : vector<10x16x4xf32> to vector<160x4xf32>
    %c0_27 = arith.constant 0 : index
    %c0_28 = arith.constant 0 : index
    %21 = vector.load %arg10[%c0_27, %c0_28] : memref<160x8xf32, #tpu.memory_space<vmem>>, vector<160x8xf32>
    %c1_29 = arith.constant 1 : index
    %c0_30 = arith.constant 0 : index
    %c0_31 = arith.constant 0 : index
    %22 = vector.load %arg3[%c1_29, %c0_30, %c0_31] : memref<9x4x8xf32, #tpu.memory_space<vmem>>, vector<1x4x8xf32>
    %23 = vector.shape_cast %22 : vector<1x4x8xf32> to vector<4x8xf32>
    %cst_32 = arith.constant dense<0.000000e+00> : vector<160x8xf32>
    %24 = tpu.matmul %20, %23, %cst_32 {dimension_numbers = #tpu.dot_dimension_numbers<[1], [0], [0], [1], [0, 0, 1, 1], [], []>} : vector<160x4xf32>, vector<4x8xf32>, vector<160x8xf32> -> vector<160x8xf32>
    %25 = arith.addf %21, %24 : vector<160x8xf32>
    %c0_33 = arith.constant 0 : index
    %c0_34 = arith.constant 0 : index
    %26 = vector.load %arg10[%c0_33, %c0_34] : memref<160x8xf32, #tpu.memory_space<vmem>>, vector<160x8xf32>
    tpu.vector_store %arg10[%c0_33, %c0_34], %25 {strides = array<i32>} : memref<160x8xf32, #tpu.memory_space<vmem>>, vector<160x8xf32>,
    %c0_35 = arith.constant 0 : index
    %c2 = arith.constant 2 : index
    %c0_36 = arith.constant 0 : index
    %27 = vector.load %arg8[%c0_35, %c2, %c0_36] : memref<12x18x4xf32, #tpu.memory_space<vmem>>, vector<10x16x4xf32>
    %28 = vector.shape_cast %27 : vector<10x16x4xf32> to vector<160x4xf32>
    %c0_37 = arith.constant 0 : index
    %c0_38 = arith.constant 0 : index
    %29 = vector.load %arg10[%c0_37, %c0_38] : memref<160x8xf32, #tpu.memory_space<vmem>>, vector<160x8xf32>
    %c2_39 = arith.constant 2 : index
    %c0_40 = arith.constant 0 : index
    %c0_41 = arith.constant 0 : index
    %30 = vector.load %arg3[%c2_39, %c0_40, %c0_41] : memref<9x4x8xf32, #tpu.memory_space<vmem>>, vector<1x4x8xf32>
    %31 = vector.shape_cast %30 : vector<1x4x8xf32> to vector<4x8xf32>
    %cst_42 = arith.constant dense<0.000000e+00> : vector<160x8xf32>
    %32 = tpu.matmul %28, %31, %cst_42 {dimension_numbers = #tpu.dot_dimension_numbers<[1], [0], [0], [1], [0, 0, 1, 1], [], []>} : vector<160x4xf32>, vector<4x8xf32>, vector<160x8xf32> -> vector<160x8xf32>
    %33 = arith.addf %29, %32 : vector<160x8xf32>
    %c0_43 = arith.constant 0 : index
    %c0_44 = arith.constant 0 : index
    %34 = vector.load %arg10[%c0_43, %c0_44] : memref<160x8xf32, #tpu.memory_space<vmem>>, vector<160x8xf32>
    tpu.vector_store %arg10[%c0_43, %c0_44], %33 {strides = array<i32>} : memref<160x8xf32, #tpu.memory_space<vmem>>, vector<160x8xf32>,
    %c1_45 = arith.constant 1 : index
    %c0_46 = arith.constant 0 : index
    %c0_47 = arith.constant 0 : index
    %35 = vector.load %arg8[%c1_45, %c0_46, %c0_47] : memref<12x18x4xf32, #tpu.memory_space<vmem>>, vector<10x16x4xf32>
    %36 = vector.shape_cast %35 : vector<10x16x4xf32> to vector<160x4xf32>
    %c0_48 = arith.constant 0 : index
    %c0_49 = arith.constant 0 : index
    %37 = vector.load %arg10[%c0_48, %c0_49] : memref<160x8xf32, #tpu.memory_space<vmem>>, vector<160x8xf32>
    %c3 = arith.constant 3 : index
    %c0_50 = arith.constant 0 : index
    %c0_51 = arith.constant 0 : index
    %38 = vector.load %arg3[%c3, %c0_50, %c0_51] : memref<9x4x8xf32, #tpu.memory_space<vmem>>, vector<1x4x8xf32>
    %39 = vector.shape_cast %38 : vector<1x4x8xf32> to vector<4x8xf32>
    %cst_52 = arith.constant dense<0.000000e+00> : vector<160x8xf32>
    %40 = tpu.matmul %36, %39, %cst_52 {dimension_numbers = #tpu.dot_dimension_numbers<[1], [0], [0], [1], [0, 0, 1, 1], [], []>} : vector<160x4xf32>, vector<4x8xf32>, vector<160x8xf32> -> vector<160x8xf32>
    %41 = arith.addf %37, %40 : vector<160x8xf32>
    %c0_53 = arith.constant 0 : index
    %c0_54 = arith.constant 0 : index
    %42 = vector.load %arg10[%c0_53, %c0_54] : memref<160x8xf32, #tpu.memory_space<vmem>>, vector<160x8xf32>
    tpu.vector_store %arg10[%c0_53, %c0_54], %41 {strides = array<i32>} : memref<160x8xf32, #tpu.memory_space<vmem>>, vector<160x8xf32>,
    %c1_55 = arith.constant 1 : index
    %c1_56 = arith.constant 1 : index
    %c0_57 = arith.constant 0 : index
    %43 = vector.load %arg8[%c1_55, %c1_56, %c0_57] : memref<12x18x4xf32, #tpu.memory_space<vmem>>, vector<10x16x4xf32>
    %44 = vector.shape_cast %43 : vector<10x16x4xf32> to vector<160x4xf32>
    %c0_58 = arith.constant 0 : index
    %c0_59 = arith.constant 0 : index
    %45 = vector.load %arg10[%c0_58, %c0_59] : memref<160x8xf32, #tpu.memory_space<vmem>>, vector<160x8xf32>
    %c4 = arith.constant 4 : index
    %c0_60 = arith.constant 0 : index
    %c0_61 = arith.constant 0 : index
    %46 = vector.load %arg3[%c4, %c0_60, %c0_61] : memref<9x4x8xf32, #tpu.memory_space<vmem>>, vector<1x4x8xf32>
    %47 = vector.shape_cast %46 : vector<1x4x8xf32> to vector<4x8xf32>
    %cst_62 = arith.constant dense<0.000000e+00> : vector<160x8xf32>
    %48 = tpu.matmul %44, %47, %cst_62 {dimension_numbers = #tpu.dot_dimension_numbers<[1], [0], [0], [1], [0, 0, 1, 1], [], []>} : vector<160x4xf32>, vector<4x8xf32>, vector<160x8xf32> -> vector<160x8xf32>
    %49 = arith.addf %45, %48 : vector<160x8xf32>
    %c0_63 = arith.constant 0 : index
    %c0_64 = arith.constant 0 : index
    %50 = vector.load %arg10[%c0_63, %c0_64] : memref<160x8xf32, #tpu.memory_space<vmem>>, vector<160x8xf32>
    tpu.vector_store %arg10[%c0_63, %c0_64], %49 {strides = array<i32>} : memref<160x8xf32, #tpu.memory_space<vmem>>, vector<160x8xf32>,
    %c1_65 = arith.constant 1 : index
    %c2_66 = arith.constant 2 : index
    %c0_67 = arith.constant 0 : index
    %51 = vector.load %arg8[%c1_65, %c2_66, %c0_67] : memref<12x18x4xf32, #tpu.memory_space<vmem>>, vector<10x16x4xf32>
    %52 = vector.shape_cast %51 : vector<10x16x4xf32> to vector<160x4xf32>
    %c0_68 = arith.constant 0 : index
    %c0_69 = arith.constant 0 : index
    %53 = vector.load %arg10[%c0_68, %c0_69] : memref<160x8xf32, #tpu.memory_space<vmem>>, vector<160x8xf32>
    %c5 = arith.constant 5 : index
    %c0_70 = arith.constant 0 : index
    %c0_71 = arith.constant 0 : index
    %54 = vector.load %arg3[%c5, %c0_70, %c0_71] : memref<9x4x8xf32, #tpu.memory_space<vmem>>, vector<1x4x8xf32>
    %55 = vector.shape_cast %54 : vector<1x4x8xf32> to vector<4x8xf32>
    %cst_72 = arith.constant dense<0.000000e+00> : vector<160x8xf32>
    %56 = tpu.matmul %52, %55, %cst_72 {dimension_numbers = #tpu.dot_dimension_numbers<[1], [0], [0], [1], [0, 0, 1, 1], [], []>} : vector<160x4xf32>, vector<4x8xf32>, vector<160x8xf32> -> vector<160x8xf32>
    %57 = arith.addf %53, %56 : vector<160x8xf32>
    %c0_73 = arith.constant 0 : index
    %c0_74 = arith.constant 0 : index
    %58 = vector.load %arg10[%c0_73, %c0_74] : memref<160x8xf32, #tpu.memory_space<vmem>>, vector<160x8xf32>
    tpu.vector_store %arg10[%c0_73, %c0_74], %57 {strides = array<i32>} : memref<160x8xf32, #tpu.memory_space<vmem>>, vector<160x8xf32>,
    %c2_75 = arith.constant 2 : index
    %c0_76 = arith.constant 0 : index
    %c0_77 = arith.constant 0 : index
    %59 = vector.load %arg8[%c2_75, %c0_76, %c0_77] : memref<12x18x4xf32, #tpu.memory_space<vmem>>, vector<10x16x4xf32>
    %60 = vector.shape_cast %59 : vector<10x16x4xf32> to vector<160x4xf32>
    %c0_78 = arith.constant 0 : index
    %c0_79 = arith.constant 0 : index
    %61 = vector.load %arg10[%c0_78, %c0_79] : memref<160x8xf32, #tpu.memory_space<vmem>>, vector<160x8xf32>
    %c6 = arith.constant 6 : index
    %c0_80 = arith.constant 0 : index
    %c0_81 = arith.constant 0 : index
    %62 = vector.load %arg3[%c6, %c0_80, %c0_81] : memref<9x4x8xf32, #tpu.memory_space<vmem>>, vector<1x4x8xf32>
    %63 = vector.shape_cast %62 : vector<1x4x8xf32> to vector<4x8xf32>
    %cst_82 = arith.constant dense<0.000000e+00> : vector<160x8xf32>
    %64 = tpu.matmul %60, %63, %cst_82 {dimension_numbers = #tpu.dot_dimension_numbers<[1], [0], [0], [1], [0, 0, 1, 1], [], []>} : vector<160x4xf32>, vector<4x8xf32>, vector<160x8xf32> -> vector<160x8xf32>
    %65 = arith.addf %61, %64 : vector<160x8xf32>
    %c0_83 = arith.constant 0 : index
    %c0_84 = arith.constant 0 : index
    %66 = vector.load %arg10[%c0_83, %c0_84] : memref<160x8xf32, #tpu.memory_space<vmem>>, vector<160x8xf32>
    tpu.vector_store %arg10[%c0_83, %c0_84], %65 {strides = array<i32>} : memref<160x8xf32, #tpu.memory_space<vmem>>, vector<160x8xf32>,
    %c2_85 = arith.constant 2 : index
    %c1_86 = arith.constant 1 : index
    %c0_87 = arith.constant 0 : index
    %67 = vector.load %arg8[%c2_85, %c1_86, %c0_87] : memref<12x18x4xf32, #tpu.memory_space<vmem>>, vector<10x16x4xf32>
    %68 = vector.shape_cast %67 : vector<10x16x4xf32> to vector<160x4xf32>
    %c0_88 = arith.constant 0 : index
    %c0_89 = arith.constant 0 : index
    %69 = vector.load %arg10[%c0_88, %c0_89] : memref<160x8xf32, #tpu.memory_space<vmem>>, vector<160x8xf32>
    %c7 = arith.constant 7 : index
    %c0_90 = arith.constant 0 : index
    %c0_91 = arith.constant 0 : index
    %70 = vector.load %arg3[%c7, %c0_90, %c0_91] : memref<9x4x8xf32, #tpu.memory_space<vmem>>, vector<1x4x8xf32>
    %71 = vector.shape_cast %70 : vector<1x4x8xf32> to vector<4x8xf32>
    %cst_92 = arith.constant dense<0.000000e+00> : vector<160x8xf32>
    %72 = tpu.matmul %68, %71, %cst_92 {dimension_numbers = #tpu.dot_dimension_numbers<[1], [0], [0], [1], [0, 0, 1, 1], [], []>} : vector<160x4xf32>, vector<4x8xf32>, vector<160x8xf32> -> vector<160x8xf32>
    %73 = arith.addf %69, %72 : vector<160x8xf32>
    %c0_93 = arith.constant 0 : index
    %c0_94 = arith.constant 0 : index
    %74 = vector.load %arg10[%c0_93, %c0_94] : memref<160x8xf32, #tpu.memory_space<vmem>>, vector<160x8xf32>
    tpu.vector_store %arg10[%c0_93, %c0_94], %73 {strides = array<i32>} : memref<160x8xf32, #tpu.memory_space<vmem>>, vector<160x8xf32>,
    %c2_95 = arith.constant 2 : index
    %c2_96 = arith.constant 2 : index
    %c0_97 = arith.constant 0 : index
    %75 = vector.load %arg8[%c2_95, %c2_96, %c0_97] : memref<12x18x4xf32, #tpu.memory_space<vmem>>, vector<10x16x4xf32>
    %76 = vector.shape_cast %75 : vector<10x16x4xf32> to vector<160x4xf32>
    %c0_98 = arith.constant 0 : index
    %c0_99 = arith.constant 0 : index
    %77 = vector.load %arg10[%c0_98, %c0_99] : memref<160x8xf32, #tpu.memory_space<vmem>>, vector<160x8xf32>
    %c8 = arith.constant 8 : index
    %c0_100 = arith.constant 0 : index
    %c0_101 = arith.constant 0 : index
    %78 = vector.load %arg3[%c8, %c0_100, %c0_101] : memref<9x4x8xf32, #tpu.memory_space<vmem>>, vector<1x4x8xf32>
    %79 = vector.shape_cast %78 : vector<1x4x8xf32> to vector<4x8xf32>
    %cst_102 = arith.constant dense<0.000000e+00> : vector<160x8xf32>
    %80 = tpu.matmul %76, %79, %cst_102 {dimension_numbers = #tpu.dot_dimension_numbers<[1], [0], [0], [1], [0, 0, 1, 1], [], []>} : vector<160x4xf32>, vector<4x8xf32>, vector<160x8xf32> -> vector<160x8xf32>
    %81 = arith.addf %77, %80 : vector<160x8xf32>
    %c0_103 = arith.constant 0 : index
    %c0_104 = arith.constant 0 : index
    %82 = vector.load %arg10[%c0_103, %c0_104] : memref<160x8xf32, #tpu.memory_space<vmem>>, vector<160x8xf32>
    tpu.vector_store %arg10[%c0_103, %c0_104], %81 {strides = array<i32>} : memref<160x8xf32, #tpu.memory_space<vmem>>, vector<160x8xf32>,
    %c0_105 = arith.constant 0 : index
    %c0_106 = arith.constant 0 : index
    %83 = vector.load %arg10[%c0_105, %c0_106] : memref<160x8xf32, #tpu.memory_space<vmem>>, vector<160x8xf32>
    %c0_107 = arith.constant 0 : index
    %c0_108 = arith.constant 0 : index
    %84 = vector.load %arg4[%c0_107, %c0_108] : memref<1x8xf32, #tpu.memory_space<vmem>>, vector<1x8xf32>
    %85 = vector.broadcast %84 : vector<1x8xf32> to vector<160x8xf32>
    %86 = arith.addf %83, %85 : vector<160x8xf32>
    %cst_109 = arith.constant 0.000000e+00 : f32
    %87 = vector.broadcast %cst_109 : f32 to vector<160x8xf32>
    %88 = arith.maximumf %86, %87 : vector<160x8xf32>
    %cst_110 = arith.constant 0.000000e+00 : f32
    %89 = vector.broadcast %cst_110 : f32 to vector<10x1x8xf32>
    %c0_111 = arith.constant 0 : index
    %c0_112 = arith.constant 0 : index
    %c0_113 = arith.constant 0 : index
    %90 = vector.load %arg9[%c0_111, %c0_112, %c0_113] : memref<10x18x8xf32, #tpu.memory_space<vmem>>, vector<10x1x8xf32>
    tpu.vector_store %arg9[%c0_111, %c0_112, %c0_113], %89 {strides = array<i32>} : memref<10x18x8xf32, #tpu.memory_space<vmem>>, vector<10x1x8xf32>,
    %cst_114 = arith.constant 0.000000e+00 : f32
    %91 = vector.broadcast %cst_114 : f32 to vector<10x1x8xf32>
    %c0_115 = arith.constant 0 : index
    %c17_116 = arith.constant 17 : index
    %c0_117 = arith.constant 0 : index
    %92 = vector.load %arg9[%c0_115, %c17_116, %c0_117] : memref<10x18x8xf32, #tpu.memory_space<vmem>>, vector<10x1x8xf32>
    tpu.vector_store %arg9[%c0_115, %c17_116, %c0_117], %91 {strides = array<i32>} : memref<10x18x8xf32, #tpu.memory_space<vmem>>, vector<10x1x8xf32>,
    %93 = vector.shape_cast %88 : vector<160x8xf32> to vector<10x16x8xf32>
    %c0_118 = arith.constant 0 : index
    %c1_119 = arith.constant 1 : index
    %c0_120 = arith.constant 0 : index
    %94 = vector.load %arg9[%c0_118, %c1_119, %c0_120] : memref<10x18x8xf32, #tpu.memory_space<vmem>>, vector<10x16x8xf32>
    tpu.vector_store %arg9[%c0_118, %c1_119, %c0_120], %93 {strides = array<i32>} : memref<10x18x8xf32, #tpu.memory_space<vmem>>, vector<10x16x8xf32>,
    %c0_i32 = arith.constant 0 : i32
    %95 = arith.cmpi eq, %arg1, %c0_i32 : i32
    %96 = arith.extui %95 : i1 to i32
    %c0_i32_121 = arith.constant 0 : i32
    %97 = arith.cmpi ne, %96, %c0_i32_121 : i32
    scf.if %97 {
      %cst_234 = arith.constant 0.000000e+00 : f32
      %183 = vector.broadcast %cst_234 : f32 to vector<1x18x8xf32>
      %c0_235 = arith.constant 0 : index
      %c0_236 = arith.constant 0 : index
      %c0_237 = arith.constant 0 : index
      %184 = vector.load %arg9[%c0_235, %c0_236, %c0_237] : memref<10x18x8xf32, #tpu.memory_space<vmem>>, vector<1x18x8xf32>
      tpu.vector_store %arg9[%c0_235, %c0_236, %c0_237], %183 {strides = array<i32>} : memref<10x18x8xf32, #tpu.memory_space<vmem>>, vector<1x18x8xf32>,
    } else {
    }
    %c1_i32 = arith.constant 1 : i32
    %98 = arith.cmpi eq, %arg1, %c1_i32 : i32
    %99 = arith.extui %98 : i1 to i32
    %c0_i32_122 = arith.constant 0 : i32
    %100 = arith.cmpi ne, %99, %c0_i32_122 : i32
    scf.if %100 {
      %cst_234 = arith.constant 0.000000e+00 : f32
      %183 = vector.broadcast %cst_234 : f32 to vector<1x18x8xf32>
      %c9 = arith.constant 9 : index
      %c0_235 = arith.constant 0 : index
      %c0_236 = arith.constant 0 : index
      %184 = vector.load %arg9[%c9, %c0_235, %c0_236] : memref<10x18x8xf32, #tpu.memory_space<vmem>>, vector<1x18x8xf32>
      tpu.vector_store %arg9[%c9, %c0_235, %c0_236], %183 {strides = array<i32>} : memref<10x18x8xf32, #tpu.memory_space<vmem>>, vector<1x18x8xf32>,
    } else {
    }
    %cst_123 = arith.constant 0.000000e+00 : f32
    %101 = vector.broadcast %cst_123 : f32 to vector<128x8xf32>
    %c0_124 = arith.constant 0 : index
    %c0_125 = arith.constant 0 : index
    %102 = vector.load %arg11[%c0_124, %c0_125] : memref<128x8xf32, #tpu.memory_space<vmem>>, vector<128x8xf32>
    tpu.vector_store %arg11[%c0_124, %c0_125], %101 {strides = array<i32>} : memref<128x8xf32, #tpu.memory_space<vmem>>, vector<128x8xf32>,
    %c0_126 = arith.constant 0 : index
    %c0_127 = arith.constant 0 : index
    %c0_128 = arith.constant 0 : index
    %103 = vector.load %arg9[%c0_126, %c0_127, %c0_128] : memref<10x18x8xf32, #tpu.memory_space<vmem>>, vector<8x16x8xf32>
    %104 = vector.shape_cast %103 : vector<8x16x8xf32> to vector<128x8xf32>
    %c0_129 = arith.constant 0 : index
    %c0_130 = arith.constant 0 : index
    %105 = vector.load %arg11[%c0_129, %c0_130] : memref<128x8xf32, #tpu.memory_space<vmem>>, vector<128x8xf32>
    %c0_131 = arith.constant 0 : index
    %c0_132 = arith.constant 0 : index
    %c0_133 = arith.constant 0 : index
    %106 = vector.load %arg5[%c0_131, %c0_132, %c0_133] : memref<9x8x8xf32, #tpu.memory_space<vmem>>, vector<1x8x8xf32>
    %107 = vector.shape_cast %106 : vector<1x8x8xf32> to vector<8x8xf32>
    %cst_134 = arith.constant dense<0.000000e+00> : vector<128x8xf32>
    %108 = tpu.matmul %104, %107, %cst_134 {dimension_numbers = #tpu.dot_dimension_numbers<[1], [0], [0], [1], [0, 0, 1, 1], [], []>} : vector<128x8xf32>, vector<8x8xf32>, vector<128x8xf32> -> vector<128x8xf32>
    %109 = arith.addf %105, %108 : vector<128x8xf32>
    %c0_135 = arith.constant 0 : index
    %c0_136 = arith.constant 0 : index
    %110 = vector.load %arg11[%c0_135, %c0_136] : memref<128x8xf32, #tpu.memory_space<vmem>>, vector<128x8xf32>
    tpu.vector_store %arg11[%c0_135, %c0_136], %109 {strides = array<i32>} : memref<128x8xf32, #tpu.memory_space<vmem>>, vector<128x8xf32>,
    %c0_137 = arith.constant 0 : index
    %c1_138 = arith.constant 1 : index
    %c0_139 = arith.constant 0 : index
    %111 = vector.load %arg9[%c0_137, %c1_138, %c0_139] : memref<10x18x8xf32, #tpu.memory_space<vmem>>, vector<8x16x8xf32>
    %112 = vector.shape_cast %111 : vector<8x16x8xf32> to vector<128x8xf32>
    %c0_140 = arith.constant 0 : index
    %c0_141 = arith.constant 0 : index
    %113 = vector.load %arg11[%c0_140, %c0_141] : memref<128x8xf32, #tpu.memory_space<vmem>>, vector<128x8xf32>
    %c1_142 = arith.constant 1 : index
    %c0_143 = arith.constant 0 : index
    %c0_144 = arith.constant 0 : index
    %114 = vector.load %arg5[%c1_142, %c0_143, %c0_144] : memref<9x8x8xf32, #tpu.memory_space<vmem>>, vector<1x8x8xf32>
    %115 = vector.shape_cast %114 : vector<1x8x8xf32> to vector<8x8xf32>
    %cst_145 = arith.constant dense<0.000000e+00> : vector<128x8xf32>
    %116 = tpu.matmul %112, %115, %cst_145 {dimension_numbers = #tpu.dot_dimension_numbers<[1], [0], [0], [1], [0, 0, 1, 1], [], []>} : vector<128x8xf32>, vector<8x8xf32>, vector<128x8xf32> -> vector<128x8xf32>
    %117 = arith.addf %113, %116 : vector<128x8xf32>
    %c0_146 = arith.constant 0 : index
    %c0_147 = arith.constant 0 : index
    %118 = vector.load %arg11[%c0_146, %c0_147] : memref<128x8xf32, #tpu.memory_space<vmem>>, vector<128x8xf32>
    tpu.vector_store %arg11[%c0_146, %c0_147], %117 {strides = array<i32>} : memref<128x8xf32, #tpu.memory_space<vmem>>, vector<128x8xf32>,
    %c0_148 = arith.constant 0 : index
    %c2_149 = arith.constant 2 : index
    %c0_150 = arith.constant 0 : index
    %119 = vector.load %arg9[%c0_148, %c2_149, %c0_150] : memref<10x18x8xf32, #tpu.memory_space<vmem>>, vector<8x16x8xf32>
    %120 = vector.shape_cast %119 : vector<8x16x8xf32> to vector<128x8xf32>
    %c0_151 = arith.constant 0 : index
    %c0_152 = arith.constant 0 : index
    %121 = vector.load %arg11[%c0_151, %c0_152] : memref<128x8xf32, #tpu.memory_space<vmem>>, vector<128x8xf32>
    %c2_153 = arith.constant 2 : index
    %c0_154 = arith.constant 0 : index
    %c0_155 = arith.constant 0 : index
    %122 = vector.load %arg5[%c2_153, %c0_154, %c0_155] : memref<9x8x8xf32, #tpu.memory_space<vmem>>, vector<1x8x8xf32>
    %123 = vector.shape_cast %122 : vector<1x8x8xf32> to vector<8x8xf32>
    %cst_156 = arith.constant dense<0.000000e+00> : vector<128x8xf32>
    %124 = tpu.matmul %120, %123, %cst_156 {dimension_numbers = #tpu.dot_dimension_numbers<[1], [0], [0], [1], [0, 0, 1, 1], [], []>} : vector<128x8xf32>, vector<8x8xf32>, vector<128x8xf32> -> vector<128x8xf32>
    %125 = arith.addf %121, %124 : vector<128x8xf32>
    %c0_157 = arith.constant 0 : index
    %c0_158 = arith.constant 0 : index
    %126 = vector.load %arg11[%c0_157, %c0_158] : memref<128x8xf32, #tpu.memory_space<vmem>>, vector<128x8xf32>
    tpu.vector_store %arg11[%c0_157, %c0_158], %125 {strides = array<i32>} : memref<128x8xf32, #tpu.memory_space<vmem>>, vector<128x8xf32>,
    %c1_159 = arith.constant 1 : index
    %c0_160 = arith.constant 0 : index
    %c0_161 = arith.constant 0 : index
    %127 = vector.load %arg9[%c1_159, %c0_160, %c0_161] : memref<10x18x8xf32, #tpu.memory_space<vmem>>, vector<8x16x8xf32>
    %128 = vector.shape_cast %127 : vector<8x16x8xf32> to vector<128x8xf32>
    %c0_162 = arith.constant 0 : index
    %c0_163 = arith.constant 0 : index
    %129 = vector.load %arg11[%c0_162, %c0_163] : memref<128x8xf32, #tpu.memory_space<vmem>>, vector<128x8xf32>
    %c3_164 = arith.constant 3 : index
    %c0_165 = arith.constant 0 : index
    %c0_166 = arith.constant 0 : index
    %130 = vector.load %arg5[%c3_164, %c0_165, %c0_166] : memref<9x8x8xf32, #tpu.memory_space<vmem>>, vector<1x8x8xf32>
    %131 = vector.shape_cast %130 : vector<1x8x8xf32> to vector<8x8xf32>
    %cst_167 = arith.constant dense<0.000000e+00> : vector<128x8xf32>
    %132 = tpu.matmul %128, %131, %cst_167 {dimension_numbers = #tpu.dot_dimension_numbers<[1], [0], [0], [1], [0, 0, 1, 1], [], []>} : vector<128x8xf32>, vector<8x8xf32>, vector<128x8xf32> -> vector<128x8xf32>
    %133 = arith.addf %129, %132 : vector<128x8xf32>
    %c0_168 = arith.constant 0 : index
    %c0_169 = arith.constant 0 : index
    %134 = vector.load %arg11[%c0_168, %c0_169] : memref<128x8xf32, #tpu.memory_space<vmem>>, vector<128x8xf32>
    tpu.vector_store %arg11[%c0_168, %c0_169], %133 {strides = array<i32>} : memref<128x8xf32, #tpu.memory_space<vmem>>, vector<128x8xf32>,
    %c1_170 = arith.constant 1 : index
    %c1_171 = arith.constant 1 : index
    %c0_172 = arith.constant 0 : index
    %135 = vector.load %arg9[%c1_170, %c1_171, %c0_172] : memref<10x18x8xf32, #tpu.memory_space<vmem>>, vector<8x16x8xf32>
    %136 = vector.shape_cast %135 : vector<8x16x8xf32> to vector<128x8xf32>
    %c0_173 = arith.constant 0 : index
    %c0_174 = arith.constant 0 : index
    %137 = vector.load %arg11[%c0_173, %c0_174] : memref<128x8xf32, #tpu.memory_space<vmem>>, vector<128x8xf32>
    %c4_175 = arith.constant 4 : index
    %c0_176 = arith.constant 0 : index
    %c0_177 = arith.constant 0 : index
    %138 = vector.load %arg5[%c4_175, %c0_176, %c0_177] : memref<9x8x8xf32, #tpu.memory_space<vmem>>, vector<1x8x8xf32>
    %139 = vector.shape_cast %138 : vector<1x8x8xf32> to vector<8x8xf32>
    %cst_178 = arith.constant dense<0.000000e+00> : vector<128x8xf32>
    %140 = tpu.matmul %136, %139, %cst_178 {dimension_numbers = #tpu.dot_dimension_numbers<[1], [0], [0], [1], [0, 0, 1, 1], [], []>} : vector<128x8xf32>, vector<8x8xf32>, vector<128x8xf32> -> vector<128x8xf32>
    %141 = arith.addf %137, %140 : vector<128x8xf32>
    %c0_179 = arith.constant 0 : index
    %c0_180 = arith.constant 0 : index
    %142 = vector.load %arg11[%c0_179, %c0_180] : memref<128x8xf32, #tpu.memory_space<vmem>>, vector<128x8xf32>
    tpu.vector_store %arg11[%c0_179, %c0_180], %141 {strides = array<i32>} : memref<128x8xf32, #tpu.memory_space<vmem>>, vector<128x8xf32>,
    %c1_181 = arith.constant 1 : index
    %c2_182 = arith.constant 2 : index
    %c0_183 = arith.constant 0 : index
    %143 = vector.load %arg9[%c1_181, %c2_182, %c0_183] : memref<10x18x8xf32, #tpu.memory_space<vmem>>, vector<8x16x8xf32>
    %144 = vector.shape_cast %143 : vector<8x16x8xf32> to vector<128x8xf32>
    %c0_184 = arith.constant 0 : index
    %c0_185 = arith.constant 0 : index
    %145 = vector.load %arg11[%c0_184, %c0_185] : memref<128x8xf32, #tpu.memory_space<vmem>>, vector<128x8xf32>
    %c5_186 = arith.constant 5 : index
    %c0_187 = arith.constant 0 : index
    %c0_188 = arith.constant 0 : index
    %146 = vector.load %arg5[%c5_186, %c0_187, %c0_188] : memref<9x8x8xf32, #tpu.memory_space<vmem>>, vector<1x8x8xf32>
    %147 = vector.shape_cast %146 : vector<1x8x8xf32> to vector<8x8xf32>
    %cst_189 = arith.constant dense<0.000000e+00> : vector<128x8xf32>
    %148 = tpu.matmul %144, %147, %cst_189 {dimension_numbers = #tpu.dot_dimension_numbers<[1], [0], [0], [1], [0, 0, 1, 1], [], []>} : vector<128x8xf32>, vector<8x8xf32>, vector<128x8xf32> -> vector<128x8xf32>
    %149 = arith.addf %145, %148 : vector<128x8xf32>
    %c0_190 = arith.constant 0 : index
    %c0_191 = arith.constant 0 : index
    %150 = vector.load %arg11[%c0_190, %c0_191] : memref<128x8xf32, #tpu.memory_space<vmem>>, vector<128x8xf32>
    tpu.vector_store %arg11[%c0_190, %c0_191], %149 {strides = array<i32>} : memref<128x8xf32, #tpu.memory_space<vmem>>, vector<128x8xf32>,
    %c2_192 = arith.constant 2 : index
    %c0_193 = arith.constant 0 : index
    %c0_194 = arith.constant 0 : index
    %151 = vector.load %arg9[%c2_192, %c0_193, %c0_194] : memref<10x18x8xf32, #tpu.memory_space<vmem>>, vector<8x16x8xf32>
    %152 = vector.shape_cast %151 : vector<8x16x8xf32> to vector<128x8xf32>
    %c0_195 = arith.constant 0 : index
    %c0_196 = arith.constant 0 : index
    %153 = vector.load %arg11[%c0_195, %c0_196] : memref<128x8xf32, #tpu.memory_space<vmem>>, vector<128x8xf32>
    %c6_197 = arith.constant 6 : index
    %c0_198 = arith.constant 0 : index
    %c0_199 = arith.constant 0 : index
    %154 = vector.load %arg5[%c6_197, %c0_198, %c0_199] : memref<9x8x8xf32, #tpu.memory_space<vmem>>, vector<1x8x8xf32>
    %155 = vector.shape_cast %154 : vector<1x8x8xf32> to vector<8x8xf32>
    %cst_200 = arith.constant dense<0.000000e+00> : vector<128x8xf32>
    %156 = tpu.matmul %152, %155, %cst_200 {dimension_numbers = #tpu.dot_dimension_numbers<[1], [0], [0], [1], [0, 0, 1, 1], [], []>} : vector<128x8xf32>, vector<8x8xf32>, vector<128x8xf32> -> vector<128x8xf32>
    %157 = arith.addf %153, %156 : vector<128x8xf32>
    %c0_201 = arith.constant 0 : index
    %c0_202 = arith.constant 0 : index
    %158 = vector.load %arg11[%c0_201, %c0_202] : memref<128x8xf32, #tpu.memory_space<vmem>>, vector<128x8xf32>
    tpu.vector_store %arg11[%c0_201, %c0_202], %157 {strides = array<i32>} : memref<128x8xf32, #tpu.memory_space<vmem>>, vector<128x8xf32>,
    %c2_203 = arith.constant 2 : index
    %c1_204 = arith.constant 1 : index
    %c0_205 = arith.constant 0 : index
    %159 = vector.load %arg9[%c2_203, %c1_204, %c0_205] : memref<10x18x8xf32, #tpu.memory_space<vmem>>, vector<8x16x8xf32>
    %160 = vector.shape_cast %159 : vector<8x16x8xf32> to vector<128x8xf32>
    %c0_206 = arith.constant 0 : index
    %c0_207 = arith.constant 0 : index
    %161 = vector.load %arg11[%c0_206, %c0_207] : memref<128x8xf32, #tpu.memory_space<vmem>>, vector<128x8xf32>
    %c7_208 = arith.constant 7 : index
    %c0_209 = arith.constant 0 : index
    %c0_210 = arith.constant 0 : index
    %162 = vector.load %arg5[%c7_208, %c0_209, %c0_210] : memref<9x8x8xf32, #tpu.memory_space<vmem>>, vector<1x8x8xf32>
    %163 = vector.shape_cast %162 : vector<1x8x8xf32> to vector<8x8xf32>
    %cst_211 = arith.constant dense<0.000000e+00> : vector<128x8xf32>
    %164 = tpu.matmul %160, %163, %cst_211 {dimension_numbers = #tpu.dot_dimension_numbers<[1], [0], [0], [1], [0, 0, 1, 1], [], []>} : vector<128x8xf32>, vector<8x8xf32>, vector<128x8xf32> -> vector<128x8xf32>
    %165 = arith.addf %161, %164 : vector<128x8xf32>
    %c0_212 = arith.constant 0 : index
    %c0_213 = arith.constant 0 : index
    %166 = vector.load %arg11[%c0_212, %c0_213] : memref<128x8xf32, #tpu.memory_space<vmem>>, vector<128x8xf32>
    tpu.vector_store %arg11[%c0_212, %c0_213], %165 {strides = array<i32>} : memref<128x8xf32, #tpu.memory_space<vmem>>, vector<128x8xf32>,
    %c2_214 = arith.constant 2 : index
    %c2_215 = arith.constant 2 : index
    %c0_216 = arith.constant 0 : index
    %167 = vector.load %arg9[%c2_214, %c2_215, %c0_216] : memref<10x18x8xf32, #tpu.memory_space<vmem>>, vector<8x16x8xf32>
    %168 = vector.shape_cast %167 : vector<8x16x8xf32> to vector<128x8xf32>
    %c0_217 = arith.constant 0 : index
    %c0_218 = arith.constant 0 : index
    %169 = vector.load %arg11[%c0_217, %c0_218] : memref<128x8xf32, #tpu.memory_space<vmem>>, vector<128x8xf32>
    %c8_219 = arith.constant 8 : index
    %c0_220 = arith.constant 0 : index
    %c0_221 = arith.constant 0 : index
    %170 = vector.load %arg5[%c8_219, %c0_220, %c0_221] : memref<9x8x8xf32, #tpu.memory_space<vmem>>, vector<1x8x8xf32>
    %171 = vector.shape_cast %170 : vector<1x8x8xf32> to vector<8x8xf32>
    %cst_222 = arith.constant dense<0.000000e+00> : vector<128x8xf32>
    %172 = tpu.matmul %168, %171, %cst_222 {dimension_numbers = #tpu.dot_dimension_numbers<[1], [0], [0], [1], [0, 0, 1, 1], [], []>} : vector<128x8xf32>, vector<8x8xf32>, vector<128x8xf32> -> vector<128x8xf32>
    %173 = arith.addf %169, %172 : vector<128x8xf32>
    %c0_223 = arith.constant 0 : index
    %c0_224 = arith.constant 0 : index
    %174 = vector.load %arg11[%c0_223, %c0_224] : memref<128x8xf32, #tpu.memory_space<vmem>>, vector<128x8xf32>
    tpu.vector_store %arg11[%c0_223, %c0_224], %173 {strides = array<i32>} : memref<128x8xf32, #tpu.memory_space<vmem>>, vector<128x8xf32>,
    %c0_225 = arith.constant 0 : index
    %c0_226 = arith.constant 0 : index
    %175 = vector.load %arg11[%c0_225, %c0_226] : memref<128x8xf32, #tpu.memory_space<vmem>>, vector<128x8xf32>
    %c0_227 = arith.constant 0 : index
    %c0_228 = arith.constant 0 : index
    %176 = vector.load %arg6[%c0_227, %c0_228] : memref<1x8xf32, #tpu.memory_space<vmem>>, vector<1x8xf32>
    %177 = vector.broadcast %176 : vector<1x8xf32> to vector<128x8xf32>
    %178 = arith.addf %175, %177 : vector<128x8xf32>
    %cst_229 = arith.constant 0.000000e+00 : f32
    %179 = vector.broadcast %cst_229 : f32 to vector<128x8xf32>
    %180 = arith.maximumf %178, %179 : vector<128x8xf32>
    %181 = vector.shape_cast %180 : vector<128x8xf32> to vector<1x8x16x8xf32>
    %c0_230 = arith.constant 0 : index
    %c0_231 = arith.constant 0 : index
    %c0_232 = arith.constant 0 : index
    %c0_233 = arith.constant 0 : index
    %182 = vector.load %arg7[%c0_230, %c0_231, %c0_232, %c0_233] : memref<1x8x16x8xf32, #tpu.memory_space<vmem>>, vector<1x8x16x8xf32>
    tpu.vector_store %arg7[%c0_230, %c0_231, %c0_232, %c0_233], %181 {strides = array<i32>} : memref<1x8x16x8xf32, #tpu.memory_space<vmem>>, vector<1x8x16x8xf32>,
    return
  }
  func.func @transform_0(%arg0: i32, %arg1: i32) -> (i32, i32, i32, i32) {
    %c0_i32 = arith.constant 0 : i32
    %c0_i32_0 = arith.constant 0 : i32
    %c0_i32_1 = arith.constant 0 : i32
    %c0_i32_2 = arith.constant 0 : i32
    return %arg0, %c0_i32, %c0_i32_0, %c0_i32_1 : i32, i32, i32, i32
  }
  func.func @transform_1(%arg0: i32, %arg1: i32) -> (i32, i32, i32) {
    %c0_i32 = arith.constant 0 : i32
    %c0_i32_0 = arith.constant 0 : i32
    %c0_i32_1 = arith.constant 0 : i32
    %c0_i32_2 = arith.constant 0 : i32
    return %c0_i32, %c0_i32_0, %c0_i32_1 : i32, i32, i32
  }
  func.func @transform_2(%arg0: i32, %arg1: i32) -> (i32, i32) {
    %c0_i32 = arith.constant 0 : i32
    %c0_i32_0 = arith.constant 0 : i32
    %c0_i32_1 = arith.constant 0 : i32
    return %c0_i32, %c0_i32_0 : i32, i32
  }
  func.func @transform_3(%arg0: i32, %arg1: i32) -> (i32, i32, i32) {
    %c0_i32 = arith.constant 0 : i32
    %c0_i32_0 = arith.constant 0 : i32
    %c0_i32_1 = arith.constant 0 : i32
    %c0_i32_2 = arith.constant 0 : i32
    return %c0_i32, %c0_i32_0, %c0_i32_1 : i32, i32, i32
  }
  func.func @transform_4(%arg0: i32, %arg1: i32) -> (i32, i32) {
    %c0_i32 = arith.constant 0 : i32
    %c0_i32_0 = arith.constant 0 : i32
    %c0_i32_1 = arith.constant 0 : i32
    return %c0_i32, %c0_i32_0 : i32, i32
  }
  func.func @transform_5(%arg0: i32, %arg1: i32) -> (i32, i32, i32, i32) {
    %c0_i32 = arith.constant 0 : i32
    %c0_i32_0 = arith.constant 0 : i32
    %c0_i32_1 = arith.constant 0 : i32
    return %arg0, %arg1, %c0_i32, %c0_i32_0 : i32, i32, i32, i32
  }
}

</mosaic_0001>

<llo_original>
// kernel: tpu_custom_call.1
$region0: #{tpu_custom_call.1}
  #allocation0 [shape = 'u32[]', space=smem, size = 0x4, offset = 0x4, fixed_abs, tag = 'smem constant byte address 0x4 - core index']
  #allocation1 [shape = 'u32[144,128]{1,0:T(1,128)}', space=vmem, size = 0x12000, scoped, tag = 'internal scratch']
  #allocation2 [shape = 'f32[12,18,4]{2,1,0:T(8,128)}', space=vmem, size = 0x24000, scoped, tag = 'scratch operand']
  #allocation3 [shape = 'f32[10,18,8]{2,1,0:T(8,128)}', space=vmem, size = 0x1e000, scoped, tag = 'scratch operand']
  #allocation4 [shape = 'f32[160,8]{1,0:T(8,128)}', space=vmem, size = 0x14000, scoped, tag = 'scratch operand']
  #allocation5 [shape = 'f32[128,8]{1,0:T(8,128)}', space=vmem, size = 0x10000, scoped, tag = 'scratch operand']
  %s0 = inlined_call_operand.vmem [shape: f32[2,20,16,4], index: 0, kind: input, shape index: {}]
  %s1 = inlined_call_operand.vmem [shape: f32[9,4,8], index: 1, kind: input, shape index: {}]
  %s2 = inlined_call_operand.vmem [shape: f32[1,8], index: 2, kind: input, shape index: {}]
  %s3 = inlined_call_operand.vmem [shape: f32[9,8,8], index: 3, kind: input, shape index: {}]
  %s4 = inlined_call_operand.vmem [shape: f32[1,8], index: 4, kind: input, shape index: {}]
  %s5 = inlined_call_operand.vmem [shape: f32[2,16,16,8], index: 5, kind: output, shape index: {}]
  %s6 = sld [smem:[#allocation0]]
  $region61: #{tpu_custom_call.1} parent=0
    _
  %s8 = ssub.s32 1, %s6
  %s9 = scalar_select 0, %s8, %s6
  loop: start=0, step=1, limit=6
  $region2: #{tpu_custom_call.1} parent=0 // loop_pre_header
    _
  $region3: #{tpu_custom_call.1} parent=0 // loop_header
    %s11 = sphi 0, %s15
    %p12 = scmp.ge.s32.totalorder %s11, 6
    %s18 = sphi 0, %s30
    %s19 = sphi 0, %s26
    %s20 = sphi 0, %s18
    %s21 = sphi 0, %s19
    %s22 = sphi 0, %s20
    %s23 = sphi 0, %s21
    %s33 = sphi 0, %s35
    %s36 = sphi 0, %s33
    %s37 = sphi 0, %s36
    %s53 = sphi 0, %s37
    %s57 = sphi 0, %s57
    %s59 = sphi 0, %s57
    %s60 = sphi 0, %s59
    %s74 = sphi 0, %s60
    %s78 = sphi 0, %s78
    %s80 = sphi 0, %s78
    %s81 = sphi 0, %s80
    %s95 = sphi 0, %s81
    %s99 = sphi 0, %s99
    %s101 = sphi 0, %s99
    %s102 = sphi 0, %s101
    %s116 = sphi 0, %s102
    %s120 = sphi 0, %s120
    %s122 = sphi 0, %s120
    %s123 = sphi 0, %s122
    %s137 = sphi 0, %s123
    %s145 = sphi 0, %s147
    %s148 = sphi 0, %s145
    %s149 = sphi 0, %s148
    %s165 = sphi 0, %s149
  $region4: #{tpu_custom_call.1} parent=0 // loop_header_branch
    %14 = sbr.rel (%p12) target = $region8
  $region5: #{tpu_custom_call.1} parent=0 // loop_body
    %s16 = ssub.s32 %s11, 1
    %s17 = ssub.s32 %s11, 2
    %s24 = sadd.s32 1, %s19
    %p25 = scmp.ge.s32.totalorder %s24, 2
    %s26 = scalar_select %p25, 0, %s24
    %s27 = sadd.s32 1, %s18
    %s28 = scalar_select %p25, %s27, %s18
    %p29 = scmp.ge.s32.totalorder %s28, 2
    %s30 = scalar_select %p29, 0, %s28
    %s31 = ssub.s32 %s18, %s30
    %p32 = scmp.eq.s32.totalorder %s31, 0
    %s34 = sadd.s32 %s33, 1
    %s35 = scalar_select %p32, %s33, %s34
    %p38 = pneg %p32
    %p39 = scmp.eq.s32.totalorder %s11, 3
    %p40 = por %p38, %p39
    %p41 = scmp.ne.s32.totalorder %s33, %s36
    %p42 = scmp.eq.s32.totalorder %s11, 0
    %p43 = por %p41, %p42
    %p44 = scmp.ne.s32.totalorder %s33, %s36
    %p45 = scmp.eq.s32.totalorder %s16, 3
    %p46 = por %p44, %p45
    %p47 = scmp.ne.s32.totalorder %s36, %s37
    %p48 = scmp.eq.s32.totalorder %s16, 0
    %p49 = por %p47, %p48
    %p50 = scmp.ne.s32.totalorder %s36, %s37
    %p51 = scmp.eq.s32.totalorder %s17, 3
    %p52 = por %p50, %p51
    %p54 = scmp.ne.s32.totalorder %s37, %s53
    %p55 = scmp.eq.s32.totalorder %s17, 0
    %p56 = por %p54, %p55
    %s58 = sadd.s32 %s57, 1
    %p61 = scmp.eq.s32.totalorder %s11, 3
    %p62 = scmp.ne.s32.totalorder %s57, %s59
    %p63 = scmp.eq.s32.totalorder %s11, 0
    %p64 = por %p62, %p63
    %p65 = scmp.ne.s32.totalorder %s57, %s59
    %p66 = scmp.eq.s32.totalorder %s16, 3
    %p67 = por %p65, %p66
    %p68 = scmp.ne.s32.totalorder %s59, %s60
    %p69 = scmp.eq.s32.totalorder %s16, 0
    %p70 = por %p68, %p69
    %p71 = scmp.ne.s32.totalorder %s59, %s60
    %p72 = scmp.eq.s32.totalorder %s17, 3
    %p73 = por %p71, %p72
    %p75 = scmp.ne.s32.totalorder %s60, %s74
    %p76 = scmp.eq.s32.totalorder %s17, 0
    %p77 = por %p75, %p76
    %s79 = sadd.s32 %s78, 1
    %p82 = scmp.eq.s32.totalorder %s11, 3
    %p83 = scmp.ne.s32.totalorder %s78, %s80
    %p84 = scmp.eq.s32.totalorder %s11, 0
    %p85 = por %p83, %p84
    %p86 = scmp.ne.s32.totalorder %s78, %s80
    %p87 = scmp.eq.s32.totalorder %s16, 3
    %p88 = por %p86, %p87
    %p89 = scmp.ne.s32.totalorder %s80, %s81
    %p90 = scmp.eq.s32.totalorder %s16, 0
    %p91 = por %p89, %p90
    %p92 = scmp.ne.s32.totalorder %s80, %s81
    %p93 = scmp.eq.s32.totalorder %s17, 3
    %p94 = por %p92, %p93
    %p96 = scmp.ne.s32.totalorder %s81, %s95
    %p97 = scmp.eq.s32.totalorder %s17, 0
    %p98 = por %p96, %p97
    %s100 = sadd.s32 %s99, 1
    %p103 = scmp.eq.s32.totalorder %s11, 3
    %p104 = scmp.ne.s32.totalorder %s99, %s101
    %p105 = scmp.eq.s32.totalorder %s11, 0
    %p106 = por %p104, %p105
    %p107 = scmp.ne.s32.totalorder %s99, %s101
    %p108 = scmp.eq.s32.totalorder %s16, 3
    %p109 = por %p107, %p108
    %p110 = scmp.ne.s32.totalorder %s101, %s102
    %p111 = scmp.eq.s32.totalorder %s16, 0
    %p112 = por %p110, %p111
    %p113 = scmp.ne.s32.totalorder %s101, %s102
    %p114 = scmp.eq.s32.totalorder %s17, 3
    %p115 = por %p113, %p114
    %p117 = scmp.ne.s32.totalorder %s102, %s116
    %p118 = scmp.eq.s32.totalorder %s17, 0
    %p119 = por %p117, %p118
    %s121 = sadd.s32 %s120, 1
    %p124 = scmp.eq.s32.totalorder %s11, 3
    %p125 = scmp.ne.s32.totalorder %s120, %s122
    %p126 = scmp.eq.s32.totalorder %s11, 0
    %p127 = por %p125, %p126
    %p128 = scmp.ne.s32.totalorder %s120, %s122
    %p129 = scmp.eq.s32.totalorder %s16, 3
    %p130 = por %p128, %p129
    %p131 = scmp.ne.s32.totalorder %s122, %s123
    %p132 = scmp.eq.s32.totalorder %s16, 0
    %p133 = por %p131, %p132
    %p134 = scmp.ne.s32.totalorder %s122, %s123
    %p135 = scmp.eq.s32.totalorder %s17, 3
    %p136 = por %p134, %p135
    %p138 = scmp.ne.s32.totalorder %s123, %s137
    %p139 = scmp.eq.s32.totalorder %s17, 0
    %p140 = por %p138, %p139
    %s141 = ssub.s32 %s18, %s30
    %s142 = ssub.s32 %s19, %s26
    %s143 = sor.u32 %s141, %s142
    %p144 = scmp.eq.s32.totalorder %s143, 0
    %s146 = sadd.s32 %s145, 1
    %s147 = scalar_select %p144, %s145, %s146
    %p150 = pneg %p144
    %p151 = scmp.eq.s32.totalorder %s11, 3
    %p152 = por %p150, %p151
    %p153 = scmp.ne.s32.totalorder %s145, %s148
    %p154 = scmp.eq.s32.totalorder %s11, 0
    %p155 = por %p153, %p154
    %p156 = scmp.ne.s32.totalorder %s145, %s148
    %p157 = scmp.eq.s32.totalorder %s16, 3
    %p158 = por %p156, %p157
    %p159 = scmp.ne.s32.totalorder %s148, %s149
    %p160 = scmp.eq.s32.totalorder %s16, 0
    %p161 = por %p159, %p160
    %p162 = scmp.ne.s32.totalorder %s148, %s149
    %p163 = scmp.eq.s32.totalorder %s17, 3
    %p164 = por %p162, %p163
    %p166 = scmp.ne.s32.totalorder %s149, %s165
    %p167 = scmp.eq.s32.totalorder %s17, 0
    %p168 = por %p166, %p167
    %p169 = scmp.le.s32.totalorder 1, %s11
    %p170 = scmp.lt.s32.totalorder %s11, 5
    %p171 = pnand %p169, %p170
    %p172 = pneg %p171
    // Predicated region
    $region9: #{tpu_custom_call.1} parent=5 // pred_check
      _
    $region10: #{tpu_custom_call.1} parent=5 // pred_check_branch
      %174 = sbr.rel (%p171) target = $region12
    $region11: #{tpu_custom_call.1} parent=5 // pred_region
      %s175 = ssub.s32 %s11, 1
      // Predicated region
      $region13: #{tpu_custom_call.1} parent=11 // pred_check
        %p176 = pneg %p70
      $region14: #{tpu_custom_call.1} parent=11 // pred_check_branch
        %178 = sbr.rel (%p176) target = $region16
      $region15: #{tpu_custom_call.1} parent=11 // pred_region
        _
      $region16: #{tpu_custom_call.1} parent=11 // pred_fallthru
        _
      // Predicated region
      $region17: #{tpu_custom_call.1} parent=11 // pred_check
        %p179 = pneg %p91
      $region18: #{tpu_custom_call.1} parent=11 // pred_check_branch
        %181 = sbr.rel (%p179) target = $region20
      $region19: #{tpu_custom_call.1} parent=11 // pred_region
        _
      $region20: #{tpu_custom_call.1} parent=11 // pred_fallthru
        _
      // Predicated region
      $region21: #{tpu_custom_call.1} parent=11 // pred_check
        %p182 = pneg %p112
      $region22: #{tpu_custom_call.1} parent=11 // pred_check_branch
        %184 = sbr.rel (%p182) target = $region24
      $region23: #{tpu_custom_call.1} parent=11 // pred_region
        _
      $region24: #{tpu_custom_call.1} parent=11 // pred_fallthru
        _
      // Predicated region
      $region25: #{tpu_custom_call.1} parent=11 // pred_check
        %p185 = pneg %p133
      $region26: #{tpu_custom_call.1} parent=11 // pred_check_branch
        %187 = sbr.rel (%p185) target = $region28
      $region27: #{tpu_custom_call.1} parent=11 // pred_region
        _
      $region28: #{tpu_custom_call.1} parent=11 // pred_fallthru
        _
    $region12: #{tpu_custom_call.1} parent=5 // pred_fallthru
      _
    %p188 = scmp.lt.s32.totalorder %s11, 4
    // Predicated region
    $region29: #{tpu_custom_call.1} parent=5 // pred_check
      %p189 = pneg %p188
    $region30: #{tpu_custom_call.1} parent=5 // pred_check_branch
      %191 = sbr.rel (%p189) target = $region32
    $region31: #{tpu_custom_call.1} parent=5 // pred_region
      // Predicated region
      $region33: #{tpu_custom_call.1} parent=31 // pred_check
        %p192 = pneg %p43
      $region34: #{tpu_custom_call.1} parent=31 // pred_check_branch
        %194 = sbr.rel (%p192) target = $region36
      $region35: #{tpu_custom_call.1} parent=31 // pred_region
        %p195 = scmp.lt.s32.totalorder %s18, 1
        %s196 = scalar_select %p195, %s18, 1
        %s197 = smul.addr %s196, 40
        %s198 = smul.addr %s197, 8
        %s199 = scalar_lea.vmem %s0, %s198
      $region36: #{tpu_custom_call.1} parent=31 // pred_fallthru
        _
    $region32: #{tpu_custom_call.1} parent=5 // pred_fallthru
      _
    %p200 = scmp.le.s32.totalorder 1, %s11
    %p201 = scmp.lt.s32.totalorder %s11, 5
    %p202 = pnand %p200, %p201
    %p203 = pneg %p202
    // Predicated region
    $region37: #{tpu_custom_call.1} parent=5 // pred_check
      _
    $region38: #{tpu_custom_call.1} parent=5 // pred_check_branch
      %205 = sbr.rel (%p202) target = $region40
    $region39: #{tpu_custom_call.1} parent=5 // pred_region
      %s206 = ssub.s32 %s11, 1
      %p207 = scmp.lt.s32.totalorder %s20, 1
      %s208 = scalar_select %p207, %s20, 1
      %s209 = smul.addr %s208, 40
      %s210 = smul.addr %s209, 8
      %s211 = scalar_lea.vmem %s0, %s210
      %p212 = pneg %p49
      %p213 = pneg %p46
      %p214 = pneg %p70
      %p215 = pneg %p67
      %p216 = pneg %p91
      %p217 = pneg %p88
      %p218 = pneg %p112
      %p219 = pneg %p109
      %p220 = pneg %p133
      %p221 = pneg %p130
      %p222 = pneg %p161
      %p223 = pneg %p158
      %s224 = smul.u32 8, %s21
      %p225 = scmp.lt.s32.totalorder %s20, 1
      %s226 = scalar_select %p225, %s20, 1
      %p227 = scmp.lt.s32.totalorder %s224, 15
      %s228 = scalar_select %p227, %s224, 15
      %s229 = smul.addr %s228, 2
      %s230 = smul.addr %s226, 32
      %s231 = sadd.s32 %s229, %s230
      %s232 = smul.addr %s231, 8
      %s233 = scalar_lea.vmem %s5, %s232
      %p234 = scmp.lt.s32.totalorder %s20, 1
      %s235 = scalar_select %p234, %s20, 1
      %s236 = smul.addr %s235, 40
      %s237 = smul.addr %s236, 8
      %s238 = scalar_lea.vmem %s0, %s237
      %s239 = smul.u32 8, %s21
      %p240 = scmp.lt.s32.totalorder %s20, 1
      %s241 = scalar_select %p240, %s20, 1
      %p242 = scmp.lt.s32.totalorder %s239, 15
      %s243 = scalar_select %p242, %s239, 15
      %s244 = smul.addr %s243, 2
      %s245 = smul.addr %s241, 32
      %s246 = sadd.s32 %s244, %s245
      %s247 = smul.addr %s246, 8
      %s248 = scalar_lea.vmem %s5, %s247
      %s249 = smul.u32 8, %s21
      %vm250 = vcmask 24576
      %251 = vst.msk [vmem:[#allocation2] sm:$0x1] %vm250, 0.0
      %252 = vst.msk [vmem:[#allocation2 + $0x18] sm:$0x1] %vm250, 0.0
      %253 = vst.msk [vmem:[#allocation2 + $0x30] sm:$0x1] %vm250, 0.0
      %254 = vst.msk [vmem:[#allocation2 + $0x48] sm:$0x1] %vm250, 0.0
      %255 = vst.msk [vmem:[#allocation2 + $0x60] sm:$0x1] %vm250, 0.0
      %256 = vst.msk [vmem:[#allocation2 + $0x78] sm:$0x1] %vm250, 0.0
      %257 = vst.msk [vmem:[#allocation2 + $0x90] sm:$0x1] %vm250, 0.0
      %258 = vst.msk [vmem:[#allocation2 + $0xa8] sm:$0x1] %vm250, 0.0
      %259 = vst.msk [vmem:[#allocation2 + $0xc0] sm:$0x1] %vm250, 0.0
      %260 = vst.msk [vmem:[#allocation2 + $0xd8] sm:$0x1] %vm250, 0.0
      %261 = vst.msk [vmem:[#allocation2 + $0xf0] sm:$0x1] %vm250, 0.0
      %262 = vst.msk [vmem:[#allocation2 + $0x108] sm:$0x1] %vm250, 0.0
      %263 = vst.msk [vmem:[#allocation2 + $0x11] sm:$0x1] %vm250, 0.0
      %264 = vst.msk [vmem:[#allocation2 + $0x29] sm:$0x1] %vm250, 0.0
      %265 = vst.msk [vmem:[#allocation2 + $0x41] sm:$0x1] %vm250, 0.0
      %266 = vst.msk [vmem:[#allocation2 + $0x59] sm:$0x1] %vm250, 0.0
      %267 = vst.msk [vmem:[#allocation2 + $0x71] sm:$0x1] %vm250, 0.0
      %268 = vst.msk [vmem:[#allocation2 + $0x89] sm:$0x1] %vm250, 0.0
      %269 = vst.msk [vmem:[#allocation2 + $0xa1] sm:$0x1] %vm250, 0.0
      %270 = vst.msk [vmem:[#allocation2 + $0xb9] sm:$0x1] %vm250, 0.0
      %271 = vst.msk [vmem:[#allocation2 + $0xd1] sm:$0x1] %vm250, 0.0
      %272 = vst.msk [vmem:[#allocation2 + $0xe9] sm:$0x1] %vm250, 0.0
      %273 = vst.msk [vmem:[#allocation2 + $0x101] sm:$0x1] %vm250, 0.0
      %274 = vst.msk [vmem:[#allocation2 + $0x119] sm:$0x1] %vm250, 0.0
      %s275 = smul.u32 %s21, 8
      %s276 = smul.u32 %s275, 16
      %s277 = scalar_lea.vmem %s238, %s276
      %v278 = vld [vmem:[%s277] sm:$0xff]
      %v279 = vld [vmem:[%s277 + $0x8] sm:$0xff]
      %v280 = vld [vmem:[%s277 + $0x10] sm:$0xff]
      %v281 = vld [vmem:[%s277 + $0x18] sm:$0xff]
      %v282 = vld [vmem:[%s277 + $0x20] sm:$0xff]
      %v283 = vld [vmem:[%s277 + $0x28] sm:$0xff]
      %v284 = vld [vmem:[%s277 + $0x30] sm:$0xff]
      %v285 = vld [vmem:[%s277 + $0x38] sm:$0xff]
      %v286 = vld [vmem:[%s277 + $0x40] sm:$0xff]
      %v287 = vld [vmem:[%s277 + $0x48] sm:$0xff]
      %v288 = vld [vmem:[%s277 + $0x50] sm:$0xff]
      %v289 = vld [vmem:[%s277 + $0x58] sm:$0xff]
      %v290 = vld [vmem:[%s277 + $0x60] sm:$0xff]
      %v291 = vld [vmem:[%s277 + $0x68] sm:$0xff]
      %v292 = vld [vmem:[%s277 + $0x70] sm:$0xff]
      %v293 = vld [vmem:[%s277 + $0x78] sm:$0xff]
      %v294 = vld [vmem:[%s277 + $0x80] sm:$0xff]
      %v295 = vld [vmem:[%s277 + $0x88] sm:$0xff]
      %v296 = vld [vmem:[%s277 + $0x90] sm:$0xff]
      %v297 = vld [vmem:[%s277 + $0x98] sm:$0xff]
      %v298 = vld [vmem:[%s277 + $0xa0] sm:$0xff]
      %v299 = vld [vmem:[%s277 + $0xa8] sm:$0xff]
      %v300 = vld [vmem:[%s277 + $0xb0] sm:$0xff]
      %v301 = vld [vmem:[%s277 + $0xb8] sm:$0xff]
      %vm302 = vcmask 31744
      %303 = vst.msk [vmem:[#allocation2 + $0x1] sm:$0xff] %vm302, %v278
      %304 = vst.msk [vmem:[#allocation2 + $0x9] sm:$0xff] %vm302, %v279
      %305 = vst.msk [vmem:[#allocation2 + $0x19] sm:$0xff] %vm302, %v280
      %306 = vst.msk [vmem:[#allocation2 + $0x21] sm:$0xff] %vm302, %v281
      %307 = vst.msk [vmem:[#allocation2 + $0x31] sm:$0xff] %vm302, %v282
      %308 = vst.msk [vmem:[#allocation2 + $0x39] sm:$0xff] %vm302, %v283
      %309 = vst.msk [vmem:[#allocation2 + $0x49] sm:$0xff] %vm302, %v284
      %310 = vst.msk [vmem:[#allocation2 + $0x51] sm:$0xff] %vm302, %v285
      %311 = vst.msk [vmem:[#allocation2 + $0x61] sm:$0xff] %vm302, %v286
      %312 = vst.msk [vmem:[#allocation2 + $0x69] sm:$0xff] %vm302, %v287
      %313 = vst.msk [vmem:[#allocation2 + $0x79] sm:$0xff] %vm302, %v288
      %314 = vst.msk [vmem:[#allocation2 + $0x81] sm:$0xff] %vm302, %v289
      %315 = vst.msk [vmem:[#allocation2 + $0x91] sm:$0xff] %vm302, %v290
      %316 = vst.msk [vmem:[#allocation2 + $0x99] sm:$0xff] %vm302, %v291
      %317 = vst.msk [vmem:[#allocation2 + $0xa9] sm:$0xff] %vm302, %v292
      %318 = vst.msk [vmem:[#allocation2 + $0xb1] sm:$0xff] %vm302, %v293
      %319 = vst.msk [vmem:[#allocation2 + $0xc1] sm:$0xff] %vm302, %v294
      %320 = vst.msk [vmem:[#allocation2 + $0xc9] sm:$0xff] %vm302, %v295
      %321 = vst.msk [vmem:[#allocation2 + $0xd9] sm:$0xff] %vm302, %v296
      %322 = vst.msk [vmem:[#allocation2 + $0xe1] sm:$0xff] %vm302, %v297
      %323 = vst.msk [vmem:[#allocation2 + $0xf1] sm:$0xff] %vm302, %v298
      %324 = vst.msk [vmem:[#allocation2 + $0xf9] sm:$0xff] %vm302, %v299
      %325 = vst.msk [vmem:[#allocation2 + $0x109] sm:$0xff] %vm302, %v300
      %326 = vst.msk [vmem:[#allocation2 + $0x111] sm:$0xff] %vm302, %v301
      %vm327 = vcmask 64512
      %328 = vst.msk [vmem:[#allocation4] sm:$0xff] %vm327, 0.0
      %329 = vst.msk [vmem:[#allocation4 + $0x8] sm:$0xff] %vm327, 0.0
      %330 = vst.msk [vmem:[#allocation4 + $0x10] sm:$0xff] %vm327, 0.0
      %331 = vst.msk [vmem:[#allocation4 + $0x18] sm:$0xff] %vm327, 0.0
      %332 = vst.msk [vmem:[#allocation4 + $0x20] sm:$0xff] %vm327, 0.0
      %333 = vst.msk [vmem:[#allocation4 + $0x28] sm:$0xff] %vm327, 0.0
      %334 = vst.msk [vmem:[#allocation4 + $0x30] sm:$0xff] %vm327, 0.0
      %335 = vst.msk [vmem:[#allocation4 + $0x38] sm:$0xff] %vm327, 0.0
      %336 = vst.msk [vmem:[#allocation4 + $0x40] sm:$0xff] %vm327, 0.0
      %337 = vst.msk [vmem:[#allocation4 + $0x48] sm:$0xff] %vm327, 0.0
      %338 = vst.msk [vmem:[#allocation4 + $0x50] sm:$0xff] %vm327, 0.0
      %339 = vst.msk [vmem:[#allocation4 + $0x58] sm:$0xff] %vm327, 0.0
      %340 = vst.msk [vmem:[#allocation4 + $0x60] sm:$0xff] %vm327, 0.0
      %341 = vst.msk [vmem:[#allocation4 + $0x68] sm:$0xff] %vm327, 0.0
      %342 = vst.msk [vmem:[#allocation4 + $0x70] sm:$0xff] %vm327, 0.0
      %343 = vst.msk [vmem:[#allocation4 + $0x78] sm:$0xff] %vm327, 0.0
      %344 = vst.msk [vmem:[#allocation4 + $0x80] sm:$0xff] %vm327, 0.0
      %345 = vst.msk [vmem:[#allocation4 + $0x88] sm:$0xff] %vm327, 0.0
      %346 = vst.msk [vmem:[#allocation4 + $0x90] sm:$0xff] %vm327, 0.0
      %347 = vst.msk [vmem:[#allocation4 + $0x98] sm:$0xff] %vm327, 0.0
      %v348 = vld [vmem:[#allocation2] sm:$0xff]
      %v349 = vld [vmem:[#allocation2 + $0x8] sm:$0xff]
      %v350 = vld [vmem:[#allocation2 + $0x18] sm:$0xff]
      %v351 = vld [vmem:[#allocation2 + $0x20] sm:$0xff]
      %v352 = vld [vmem:[#allocation2 + $0x30] sm:$0xff]
      %v353 = vld [vmem:[#allocation2 + $0x38] sm:$0xff]
      %v354 = vld [vmem:[#allocation2 + $0x48] sm:$0xff]
      %v355 = vld [vmem:[#allocation2 + $0x50] sm:$0xff]
      %v356 = vld [vmem:[#allocation2 + $0x60] sm:$0xff]
      %v357 = vld [vmem:[#allocation2 + $0x68] sm:$0xff]
      %v358 = vld [vmem:[#allocation2 + $0x78] sm:$0xff]
      %v359 = vld [vmem:[#allocation2 + $0x80] sm:$0xff]
      %v360 = vld [vmem:[#allocation2 + $0x90] sm:$0xff]
      %v361 = vld [vmem:[#allocation2 + $0x98] sm:$0xff]
      %v362 = vld [vmem:[#allocation2 + $0xa8] sm:$0xff]
      %v363 = vld [vmem:[#allocation2 + $0xb0] sm:$0xff]
      %v364 = vld [vmem:[#allocation2 + $0xc0] sm:$0xff]
      %v365 = vld [vmem:[#allocation2 + $0xc8] sm:$0xff]
      %v366 = vld [vmem:[#allocation2 + $0xd8] sm:$0xff]
      %v367 = vld [vmem:[#allocation2 + $0xe0] sm:$0xff]
      %v368 = vld [vmem:[#allocation4] sm:$0xff]
      %v369 = vld [vmem:[#allocation4 + $0x8] sm:$0xff]
      %v370 = vld [vmem:[#allocation4 + $0x10] sm:$0xff]
      %v371 = vld [vmem:[#allocation4 + $0x18] sm:$0xff]
      %v372 = vld [vmem:[#allocation4 + $0x20] sm:$0xff]
      %v373 = vld [vmem:[#allocation4 + $0x28] sm:$0xff]
      %v374 = vld [vmem:[#allocation4 + $0x30] sm:$0xff]
      %v375 = vld [vmem:[#allocation4 + $0x38] sm:$0xff]
      %v376 = vld [vmem:[#allocation4 + $0x40] sm:$0xff]
      %v377 = vld [vmem:[#allocation4 + $0x48] sm:$0xff]
      %v378 = vld [vmem:[#allocation4 + $0x50] sm:$0xff]
      %v379 = vld [vmem:[#allocation4 + $0x58] sm:$0xff]
      %v380 = vld [vmem:[#allocation4 + $0x60] sm:$0xff]
      %v381 = vld [vmem:[#allocation4 + $0x68] sm:$0xff]
      %v382 = vld [vmem:[#allocation4 + $0x70] sm:$0xff]
      %v383 = vld [vmem:[#allocation4 + $0x78] sm:$0xff]
      %v384 = vld [vmem:[#allocation4 + $0x80] sm:$0xff]
      %v385 = vld [vmem:[#allocation4 + $0x88] sm:$0xff]
      %v386 = vld [vmem:[#allocation4 + $0x90] sm:$0xff]
      %v387 = vld [vmem:[#allocation4 + $0x98] sm:$0xff]
      %v388 = vld [vmem:[%s1] sm:$0xf]
      %v390 = vsel %vm302, %v348, 0
      %v393 = vsel %vm302, %v349, 0
      %v396 = vsel %vm302, %v350, 0
      %v399 = vsel %vm302, %v351, 0
      %v402 = vsel %vm302, %v352, 0
      %v405 = vsel %vm302, %v353, 0
      %v408 = vsel %vm302, %v354, 0
      %v411 = vsel %vm302, %v355, 0
      %v414 = vsel %vm302, %v356, 0
      %v417 = vsel %vm302, %v357, 0
      %v420 = vsel %vm302, %v358, 0
      %v423 = vsel %vm302, %v359, 0
      %v426 = vsel %vm302, %v360, 0
      %v429 = vsel %vm302, %v361, 0
      %v432 = vsel %vm302, %v362, 0
      %v435 = vsel %vm302, %v363, 0
      %v438 = vsel %vm302, %v364, 0
      %v441 = vsel %vm302, %v365, 0
      %v444 = vsel %vm302, %v366, 0
      %v447 = vsel %vm302, %v367, 0
      %vm449 = vcmask 1043456
      %v451 = vsel %vm449, %v388, 0
      %453 = vmatprep.subr.mxu0 0.0
      %454 = vmatpush1.msra.mxu0 0.0
      %455 = vmatprep.subr.mxu0 0.0
      %456 = vmatpush1.msra.mxu0 0.0
      %457 = vmatprep.subr.mxu0 0.0
      %458 = vmatpush1.msra.mxu0 0.0
      %459 = vmatprep.subr.mxu0 0.0
      %460 = vmatpush1.msra.mxu0 0.0
      %461 = vmatprep.subr.mxu0 0.0
      %462 = vmatpush1.msra.mxu0 0.0
      %463 = vmatprep.subr.mxu0 0.0
      %464 = vmatpush1.msra.mxu0 0.0
      %465 = vmatprep.subr.mxu0 0.0
      %466 = vmatpush1.msra.mxu0 0.0
      %467 = vmatprep.subr.mxu0 0.0
      %468 = vmatpush1.msra.mxu0 0.0
      %469 = vmatprep.subr.mxu0 0.0
      %470 = vmatpush1.msra.mxu0 0.0
      %471 = vmatprep.subr.mxu0 0.0
      %472 = vmatpush1.msra.mxu0 0.0
      %473 = vmatprep.subr.mxu0 0.0
      %474 = vmatpush1.msra.mxu0 0.0
      %475 = vmatprep.subr.mxu0 0.0
      %476 = vmatpush1.msra.mxu0 0.0
      %477 = vmatprep.subr.mxu0 0.0
      %478 = vmatpush1.msra.mxu0 0.0
      %479 = vmatprep.subr.mxu0 0.0
      %480 = vmatpush1.msra.mxu0 0.0
      %481 = vmatprep.subr.mxu0 0.0
      %482 = vmatpush1.msra.mxu0 0.0
      %483 = vmatprep.subr.mxu0 0.0
      %484 = vmatpush1.msra.mxu0 %v451
      %485 = vmatprep.subr.mxu0 0.0
      %486 = vmatpush2.msra.mxu0 0.0
      %487 = vmatprep.subr.mxu0 0.0
      %488 = vmatpush2.msra.mxu0 0.0
      %489 = vmatprep.subr.mxu0 0.0
      %490 = vmatpush2.msra.mxu0 0.0
      %491 = vmatprep.subr.mxu0 0.0
      %492 = vmatpush2.msra.mxu0 0.0
      %493 = vmatprep.subr.mxu0 0.0
      %494 = vmatpush2.msra.mxu0 0.0
      %495 = vmatprep.subr.mxu0 0.0
      %496 = vmatpush2.msra.mxu0 0.0
      %497 = vmatprep.subr.mxu0 0.0
      %498 = vmatpush2.msra.mxu0 0.0
      %499 = vmatprep.subr.mxu0 0.0
      %500 = vmatpush2.msra.mxu0 0.0
      %501 = vmatprep.subr.mxu0 0.0
      %502 = vmatpush2.msra.mxu0 0.0
      %503 = vmatprep.subr.mxu0 0.0
      %504 = vmatpush2.msra.mxu0 0.0
      %505 = vmatprep.subr.mxu0 0.0
      %506 = vmatpush2.msra.mxu0 0.0
      %507 = vmatprep.subr.mxu0 0.0
      %508 = vmatpush2.msra.mxu0 0.0
      %509 = vmatprep.subr.mxu0 0.0
      %510 = vmatpush2.msra.mxu0 0.0
      %511 = vmatprep.subr.mxu0 0.0
      %512 = vmatpush2.msra.mxu0 0.0
      %513 = vmatprep.subr.mxu0 0.0
      %514 = vmatpush2.msra.mxu0 0.0
      %515 = vmatprep.subr.mxu0 0.0
      %516 = vmatpush2.msra.mxu0 0.0
      %517 = vmatprep.mubr.f32.mxu0 0.0
      %518 = vmatmul.mubr.f32.gmra.mxu0 %v390
      %v519 = vpop.f32.mrf.mxu0
      %v520 = vadd.f32 0.0, %v519
      %v521 = vpop.f32.mrf.mxu0
      %522 = vmatprep.mubr.f32.mxu0 0.0
      %523 = vmatmul.mubr.f32.gmra.mxu0 %v393
      %v524 = vpop.f32.mrf.mxu0
      %v525 = vadd.f32 0.0, %v524
      %v526 = vpop.f32.mrf.mxu0
      %527 = vmatprep.mubr.f32.mxu0 0.0
      %528 = vmatmul.mubr.f32.gmra.mxu0 %v396
      %v529 = vpop.f32.mrf.mxu0
      %v530 = vadd.f32 0.0, %v529
      %v531 = vpop.f32.mrf.mxu0
      %532 = vmatprep.mubr.f32.mxu0 0.0
      %533 = vmatmul.mubr.f32.gmra.mxu0 %v399
      %v534 = vpop.f32.mrf.mxu0
      %v535 = vadd.f32 0.0, %v534
      %v536 = vpop.f32.mrf.mxu0
      %537 = vmatprep.mubr.f32.mxu0 0.0
      %538 = vmatmul.mubr.f32.gmra.mxu0 %v402
      %v539 = vpop.f32.mrf.mxu0
      %v540 = vadd.f32 0.0, %v539
      %v541 = vpop.f32.mrf.mxu0
      %542 = vmatprep.mubr.f32.mxu0 0.0
      %543 = vmatmul.mubr.f32.gmra.mxu0 %v405
      %v544 = vpop.f32.mrf.mxu0
      %v545 = vadd.f32 0.0, %v544
      %v546 = vpop.f32.mrf.mxu0
      %547 = vmatprep.mubr.f32.mxu0 0.0
      %548 = vmatmul.mubr.f32.gmra.mxu0 %v408
      %v549 = vpop.f32.mrf.mxu0
      %v550 = vadd.f32 0.0, %v549
      %v551 = vpop.f32.mrf.mxu0
      %552 = vmatprep.mubr.f32.mxu0 0.0
      %553 = vmatmul.mubr.f32.gmra.mxu0 %v411
      %v554 = vpop.f32.mrf.mxu0
      %v555 = vadd.f32 0.0, %v554
      %v556 = vpop.f32.mrf.mxu0
      %557 = vmatprep.mubr.f32.mxu0 0.0
      %558 = vmatmul.mubr.f32.gmra.mxu0 %v414
      %v559 = vpop.f32.mrf.mxu0
      %v560 = vadd.f32 0.0, %v559
      %v561 = vpop.f32.mrf.mxu0
      %562 = vmatprep.mubr.f32.mxu0 0.0
      %563 = vmatmul.mubr.f32.gmra.mxu0 %v417
      %v564 = vpop.f32.mrf.mxu0
      %v565 = vadd.f32 0.0, %v564
      %v566 = vpop.f32.mrf.mxu0
      %567 = vmatprep.mubr.f32.mxu0 0.0
      %568 = vmatmul.mubr.f32.gmra.mxu0 %v420
      %v569 = vpop.f32.mrf.mxu0
      %v570 = vadd.f32 0.0, %v569
      %v571 = vpop.f32.mrf.mxu0
      %572 = vmatprep.mubr.f32.mxu0 0.0
      %573 = vmatmul.mubr.f32.gmra.mxu0 %v423
      %v574 = vpop.f32.mrf.mxu0
      %v575 = vadd.f32 0.0, %v574
      %v576 = vpop.f32.mrf.mxu0
      %577 = vmatprep.mubr.f32.mxu0 0.0
      %578 = vmatmul.mubr.f32.gmra.mxu0 %v426
      %v579 = vpop.f32.mrf.mxu0
      %v580 = vadd.f32 0.0, %v579
      %v581 = vpop.f32.mrf.mxu0
      %582 = vmatprep.mubr.f32.mxu0 0.0
      %583 = vmatmul.mubr.f32.gmra.mxu0 %v429
      %v584 = vpop.f32.mrf.mxu0
      %v585 = vadd.f32 0.0, %v584
      %v586 = vpop.f32.mrf.mxu0
      %587 = vmatprep.mubr.f32.mxu0 0.0
      %588 = vmatmul.mubr.f32.gmra.mxu0 %v432
      %v589 = vpop.f32.mrf.mxu0
      %v590 = vadd.f32 0.0, %v589
      %v591 = vpop.f32.mrf.mxu0
      %592 = vmatprep.mubr.f32.mxu0 0.0
      %593 = vmatmul.mubr.f32.gmra.mxu0 %v435
      %v594 = vpop.f32.mrf.mxu0
      %v595 = vadd.f32 0.0, %v594
      %v596 = vpop.f32.mrf.mxu0
      %597 = vmatprep.mubr.f32.mxu0 0.0
      %598 = vmatmul.mubr.f32.gmra.mxu0 %v438
      %v599 = vpop.f32.mrf.mxu0
      %v600 = vadd.f32 0.0, %v599
      %v601 = vpop.f32.mrf.mxu0
      %602 = vmatprep.mubr.f32.mxu0 0.0
      %603 = vmatmul.mubr.f32.gmra.mxu0 %v441
      %v604 = vpop.f32.mrf.mxu0
      %v605 = vadd.f32 0.0, %v604
      %v606 = vpop.f32.mrf.mxu0
      %607 = vmatprep.mubr.f32.mxu0 0.0
      %608 = vmatmul.mubr.f32.gmra.mxu0 %v444
      %v609 = vpop.f32.mrf.mxu0
      %v610 = vadd.f32 0.0, %v609
      %v611 = vpop.f32.mrf.mxu0
      %612 = vmatprep.mubr.f32.mxu0 0.0
      %613 = vmatmul.mubr.f32.gmra.mxu0 %v447
      %v614 = vpop.f32.mrf.mxu0
      %v615 = vadd.f32 0.0, %v614
      %v616 = vpop.f32.mrf.mxu0
      %617 = vdwg.mxu0
      %v618 = vadd.f32 %v368, %v520
      %v619 = vadd.f32 %v369, %v525
      %v620 = vadd.f32 %v370, %v530
      %v621 = vadd.f32 %v371, %v535
      %v622 = vadd.f32 %v372, %v540
      %v623 = vadd.f32 %v373, %v545
      %v624 = vadd.f32 %v374, %v550
      %v625 = vadd.f32 %v375, %v555
      %v626 = vadd.f32 %v376, %v560
      %v627 = vadd.f32 %v377, %v565
      %v628 = vadd.f32 %v378, %v570
      %v629 = vadd.f32 %v379, %v575
      %v630 = vadd.f32 %v380, %v580
      %v631 = vadd.f32 %v381, %v585
      %v632 = vadd.f32 %v382, %v590
      %v633 = vadd.f32 %v383, %v595
      %v634 = vadd.f32 %v384, %v600
      %v635 = vadd.f32 %v385, %v605
      %v636 = vadd.f32 %v386, %v610
      %v637 = vadd.f32 %v387, %v615
      %638 = vst.msk [vmem:[#allocation4] sm:$0xff] %vm327, %v618
      %639 = vst.msk [vmem:[#allocation4 + $0x8] sm:$0xff] %vm327, %v619
      %640 = vst.msk [vmem:[#allocation4 + $0x10] sm:$0xff] %vm327, %v620
      %641 = vst.msk [vmem:[#allocation4 + $0x18] sm:$0xff] %vm327, %v621
      %642 = vst.msk [vmem:[#allocation4 + $0x20] sm:$0xff] %vm327, %v622
      %643 = vst.msk [vmem:[#allocation4 + $0x28] sm:$0xff] %vm327, %v623
      %644 = vst.msk [vmem:[#allocation4 + $0x30] sm:$0xff] %vm327, %v624
      %645 = vst.msk [vmem:[#allocation4 + $0x38] sm:$0xff] %vm327, %v625
      %646 = vst.msk [vmem:[#allocation4 + $0x40] sm:$0xff] %vm327, %v626
      %647 = vst.msk [vmem:[#allocation4 + $0x48] sm:$0xff] %vm327, %v627
      %648 = vst.msk [vmem:[#allocation4 + $0x50] sm:$0xff] %vm327, %v628
      %649 = vst.msk [vmem:[#allocation4 + $0x58] sm:$0xff] %vm327, %v629
      %650 = vst.msk [vmem:[#allocation4 + $0x60] sm:$0xff] %vm327, %v630
      %651 = vst.msk [vmem:[#allocation4 + $0x68] sm:$0xff] %vm327, %v631
      %652 = vst.msk [vmem:[#allocation4 + $0x70] sm:$0xff] %vm327, %v632
      %653 = vst.msk [vmem:[#allocation4 + $0x78] sm:$0xff] %vm327, %v633
      %654 = vst.msk [vmem:[#allocation4 + $0x80] sm:$0xff] %vm327, %v634
      %655 = vst.msk [vmem:[#allocation4 + $0x88] sm:$0xff] %vm327, %v635
      %656 = vst.msk [vmem:[#allocation4 + $0x90] sm:$0xff] %vm327, %v636
      %657 = vst.msk [vmem:[#allocation4 + $0x98] sm:$0xff] %vm327, %v637
      %v658 = vld [vmem:[#allocation2 + $0x1] sm:$0xff]
      %v659 = vld [vmem:[#allocation2 + $0x9] sm:$0xff]
      %v660 = vld [vmem:[#allocation2 + $0x19] sm:$0xff]
      %v661 = vld [vmem:[#allocation2 + $0x21] sm:$0xff]
      %v662 = vld [vmem:[#allocation2 + $0x31] sm:$0xff]
      %v663 = vld [vmem:[#allocation2 + $0x39] sm:$0xff]
      %v664 = vld [vmem:[#allocation2 + $0x49] sm:$0xff]
      %v665 = vld [vmem:[#allocation2 + $0x51] sm:$0xff]
      %v666 = vld [vmem:[#allocation2 + $0x61] sm:$0xff]
      %v667 = vld [vmem:[#allocation2 + $0x69] sm:$0xff]
      %v668 = vld [vmem:[#allocation2 + $0x79] sm:$0xff]
      %v669 = vld [vmem:[#allocation2 + $0x81] sm:$0xff]
      %v670 = vld [vmem:[#allocation2 + $0x91] sm:$0xff]
      %v671 = vld [vmem:[#allocation2 + $0x99] sm:$0xff]
      %v672 = vld [vmem:[#allocation2 + $0xa9] sm:$0xff]
      %v673 = vld [vmem:[#allocation2 + $0xb1] sm:$0xff]
      %v674 = vld [vmem:[#allocation2 + $0xc1] sm:$0xff]
      %v675 = vld [vmem:[#allocation2 + $0xc9] sm:$0xff]
      %v676 = vld [vmem:[#allocation2 + $0xd9] sm:$0xff]
      %v677 = vld [vmem:[#allocation2 + $0xe1] sm:$0xff]
      %v678 = vld [vmem:[#allocation4] sm:$0xff]
      %v679 = vld [vmem:[#allocation4 + $0x8] sm:$0xff]
      %v680 = vld [vmem:[#allocation4 + $0x10] sm:$0xff]
      %v681 = vld [vmem:[#allocation4 + $0x18] sm:$0xff]
      %v682 = vld [vmem:[#allocation4 + $0x20] sm:$0xff]
      %v683 = vld [vmem:[#allocation4 + $0x28] sm:$0xff]
      %v684 = vld [vmem:[#allocation4 + $0x30] sm:$0xff]
      %v685 = vld [vmem:[#allocation4 + $0x38] sm:$0xff]
      %v686 = vld [vmem:[#allocation4 + $0x40] sm:$0xff]
      %v687 = vld [vmem:[#allocation4 + $0x48] sm:$0xff]
      %v688 = vld [vmem:[#allocation4 + $0x50] sm:$0xff]
      %v689 = vld [vmem:[#allocation4 + $0x58] sm:$0xff]
      %v690 = vld [vmem:[#allocation4 + $0x60] sm:$0xff]
      %v691 = vld [vmem:[#allocation4 + $0x68] sm:$0xff]
      %v692 = vld [vmem:[#allocation4 + $0x70] sm:$0xff]
      %v693 = vld [vmem:[#allocation4 + $0x78] sm:$0xff]
      %v694 = vld [vmem:[#allocation4 + $0x80] sm:$0xff]
      %v695 = vld [vmem:[#allocation4 + $0x88] sm:$0xff]
      %v696 = vld [vmem:[#allocation4 + $0x90] sm:$0xff]
      %v697 = vld [vmem:[#allocation4 + $0x98] sm:$0xff]
      %s698 = scalar_lea.vmem %s1, 4
      %v699 = vld [vmem:[%s698] sm:$0xf]
      %v701 = vsel %vm302, %v658, 0
      %v704 = vsel %vm302, %v659, 0
      %v707 = vsel %vm302, %v660, 0
      %v710 = vsel %vm302, %v661, 0
      %v713 = vsel %vm302, %v662, 0
      %v716 = vsel %vm302, %v663, 0
      %v719 = vsel %vm302, %v664, 0
      %v722 = vsel %vm302, %v665, 0
      %v725 = vsel %vm302, %v666, 0
      %v728 = vsel %vm302, %v667, 0
      %v731 = vsel %vm302, %v668, 0
      %v734 = vsel %vm302, %v669, 0
      %v737 = vsel %vm302, %v670, 0
      %v740 = vsel %vm302, %v671, 0
      %v743 = vsel %vm302, %v672, 0
      %v746 = vsel %vm302, %v673, 0
      %v749 = vsel %vm302, %v674, 0
      %v752 = vsel %vm302, %v675, 0
      %v755 = vsel %vm302, %v676, 0
      %v758 = vsel %vm302, %v677, 0
      %v761 = vsel %vm449, %v699, 0
      %763 = vmatprep.subr.mxu0 0.0
      %764 = vmatpush1.msra.mxu0 0.0
      %765 = vmatprep.subr.mxu0 0.0
      %766 = vmatpush1.msra.mxu0 0.0
      %767 = vmatprep.subr.mxu0 0.0
      %768 = vmatpush1.msra.mxu0 0.0
      %769 = vmatprep.subr.mxu0 0.0
      %770 = vmatpush1.msra.mxu0 0.0
      %771 = vmatprep.subr.mxu0 0.0
      %772 = vmatpush1.msra.mxu0 0.0
      %773 = vmatprep.subr.mxu0 0.0
      %774 = vmatpush1.msra.mxu0 0.0
      %775 = vmatprep.subr.mxu0 0.0
      %776 = vmatpush1.msra.mxu0 0.0
      %777 = vmatprep.subr.mxu0 0.0
      %778 = vmatpush1.msra.mxu0 0.0
      %779 = vmatprep.subr.mxu0 0.0
      %780 = vmatpush1.msra.mxu0 0.0
      %781 = vmatprep.subr.mxu0 0.0
      %782 = vmatpush1.msra.mxu0 0.0
      %783 = vmatprep.subr.mxu0 0.0
      %784 = vmatpush1.msra.mxu0 0.0
      %785 = vmatprep.subr.mxu0 0.0
      %786 = vmatpush1.msra.mxu0 0.0
      %787 = vmatprep.subr.mxu0 0.0
      %788 = vmatpush1.msra.mxu0 0.0
      %789 = vmatprep.subr.mxu0 0.0
      %790 = vmatpush1.msra.mxu0 0.0
      %791 = vmatprep.subr.mxu0 0.0
      %792 = vmatpush1.msra.mxu0 0.0
      %793 = vmatprep.subr.mxu0 0.0
      %794 = vmatpush1.msra.mxu0 %v761
      %795 = vmatprep.subr.mxu0 0.0
      %796 = vmatpush2.msra.mxu0 0.0
      %797 = vmatprep.subr.mxu0 0.0
      %798 = vmatpush2.msra.mxu0 0.0
      %799 = vmatprep.subr.mxu0 0.0
      %800 = vmatpush2.msra.mxu0 0.0
      %801 = vmatprep.subr.mxu0 0.0
      %802 = vmatpush2.msra.mxu0 0.0
      %803 = vmatprep.subr.mxu0 0.0
      %804 = vmatpush2.msra.mxu0 0.0
      %805 = vmatprep.subr.mxu0 0.0
      %806 = vmatpush2.msra.mxu0 0.0
      %807 = vmatprep.subr.mxu0 0.0
      %808 = vmatpush2.msra.mxu0 0.0
      %809 = vmatprep.subr.mxu0 0.0
      %810 = vmatpush2.msra.mxu0 0.0
      %811 = vmatprep.subr.mxu0 0.0
      %812 = vmatpush2.msra.mxu0 0.0
      %813 = vmatprep.subr.mxu0 0.0
      %814 = vmatpush2.msra.mxu0 0.0
      %815 = vmatprep.subr.mxu0 0.0
      %816 = vmatpush2.msra.mxu0 0.0
      %817 = vmatprep.subr.mxu0 0.0
      %818 = vmatpush2.msra.mxu0 0.0
      %819 = vmatprep.subr.mxu0 0.0
      %820 = vmatpush2.msra.mxu0 0.0
      %821 = vmatprep.subr.mxu0 0.0
      %822 = vmatpush2.msra.mxu0 0.0
      %823 = vmatprep.subr.mxu0 0.0
      %824 = vmatpush2.msra.mxu0 0.0
      %825 = vmatprep.subr.mxu0 0.0
      %826 = vmatpush2.msra.mxu0 0.0
      %827 = vmatprep.mubr.f32.mxu0 0.0
      %828 = vmatmul.mubr.f32.gmra.mxu0 %v701
      %v829 = vpop.f32.mrf.mxu0
      %v830 = vadd.f32 0.0, %v829
      %v831 = vpop.f32.mrf.mxu0
      %832 = vmatprep.mubr.f32.mxu0 0.0
      %833 = vmatmul.mubr.f32.gmra.mxu0 %v704
      %v834 = vpop.f32.mrf.mxu0
      %v835 = vadd.f32 0.0, %v834
      %v836 = vpop.f32.mrf.mxu0
      %837 = vmatprep.mubr.f32.mxu0 0.0
      %838 = vmatmul.mubr.f32.gmra.mxu0 %v707
      %v839 = vpop.f32.mrf.mxu0
      %v840 = vadd.f32 0.0, %v839
      %v841 = vpop.f32.mrf.mxu0
      %842 = vmatprep.mubr.f32.mxu0 0.0
      %843 = vmatmul.mubr.f32.gmra.mxu0 %v710
      %v844 = vpop.f32.mrf.mxu0
      %v845 = vadd.f32 0.0, %v844
      %v846 = vpop.f32.mrf.mxu0
      %847 = vmatprep.mubr.f32.mxu0 0.0
      %848 = vmatmul.mubr.f32.gmra.mxu0 %v713
      %v849 = vpop.f32.mrf.mxu0
      %v850 = vadd.f32 0.0, %v849
      %v851 = vpop.f32.mrf.mxu0
      %852 = vmatprep.mubr.f32.mxu0 0.0
      %853 = vmatmul.mubr.f32.gmra.mxu0 %v716
      %v854 = vpop.f32.mrf.mxu0
      %v855 = vadd.f32 0.0, %v854
      %v856 = vpop.f32.mrf.mxu0
      %857 = vmatprep.mubr.f32.mxu0 0.0
      %858 = vmatmul.mubr.f32.gmra.mxu0 %v719
      %v859 = vpop.f32.mrf.mxu0
      %v860 = vadd.f32 0.0, %v859
      %v861 = vpop.f32.mrf.mxu0
      %862 = vmatprep.mubr.f32.mxu0 0.0
      %863 = vmatmul.mubr.f32.gmra.mxu0 %v722
      %v864 = vpop.f32.mrf.mxu0
      %v865 = vadd.f32 0.0, %v864
      %v866 = vpop.f32.mrf.mxu0
      %867 = vmatprep.mubr.f32.mxu0 0.0
      %868 = vmatmul.mubr.f32.gmra.mxu0 %v725
      %v869 = vpop.f32.mrf.mxu0
      %v870 = vadd.f32 0.0, %v869
      %v871 = vpop.f32.mrf.mxu0
      %872 = vmatprep.mubr.f32.mxu0 0.0
      %873 = vmatmul.mubr.f32.gmra.mxu0 %v728
      %v874 = vpop.f32.mrf.mxu0
      %v875 = vadd.f32 0.0, %v874
      %v876 = vpop.f32.mrf.mxu0
      %877 = vmatprep.mubr.f32.mxu0 0.0
      %878 = vmatmul.mubr.f32.gmra.mxu0 %v731
      %v879 = vpop.f32.mrf.mxu0
      %v880 = vadd.f32 0.0, %v879
      %v881 = vpop.f32.mrf.mxu0
      %882 = vmatprep.mubr.f32.mxu0 0.0
      %883 = vmatmul.mubr.f32.gmra.mxu0 %v734
      %v884 = vpop.f32.mrf.mxu0
      %v885 = vadd.f32 0.0, %v884
      %v886 = vpop.f32.mrf.mxu0
      %887 = vmatprep.mubr.f32.mxu0 0.0
      %888 = vmatmul.mubr.f32.gmra.mxu0 %v737
      %v889 = vpop.f32.mrf.mxu0
      %v890 = vadd.f32 0.0, %v889
      %v891 = vpop.f32.mrf.mxu0
      %892 = vmatprep.mubr.f32.mxu0 0.0
      %893 = vmatmul.mubr.f32.gmra.mxu0 %v740
      %v894 = vpop.f32.mrf.mxu0
      %v895 = vadd.f32 0.0, %v894
      %v896 = vpop.f32.mrf.mxu0
      %897 = vmatprep.mubr.f32.mxu0 0.0
      %898 = vmatmul.mubr.f32.gmra.mxu0 %v743
      %v899 = vpop.f32.mrf.mxu0
      %v900 = vadd.f32 0.0, %v899
      %v901 = vpop.f32.mrf.mxu0
      %902 = vmatprep.mubr.f32.mxu0 0.0
      %903 = vmatmul.mubr.f32.gmra.mxu0 %v746
      %v904 = vpop.f32.mrf.mxu0
      %v905 = vadd.f32 0.0, %v904
      %v906 = vpop.f32.mrf.mxu0
      %907 = vmatprep.mubr.f32.mxu0 0.0
      %908 = vmatmul.mubr.f32.gmra.mxu0 %v749
      %v909 = vpop.f32.mrf.mxu0
      %v910 = vadd.f32 0.0, %v909
      %v911 = vpop.f32.mrf.mxu0
      %912 = vmatprep.mubr.f32.mxu0 0.0
      %913 = vmatmul.mubr.f32.gmra.mxu0 %v752
      %v914 = vpop.f32.mrf.mxu0
      %v915 = vadd.f32 0.0, %v914
      %v916 = vpop.f32.mrf.mxu0
      %917 = vmatprep.mubr.f32.mxu0 0.0
      %918 = vmatmul.mubr.f32.gmra.mxu0 %v755
      %v919 = vpop.f32.mrf.mxu0
      %v920 = vadd.f32 0.0, %v919
      %v921 = vpop.f32.mrf.mxu0
      %922 = vmatprep.mubr.f32.mxu0 0.0
      %923 = vmatmul.mubr.f32.gmra.mxu0 %v758
      %v924 = vpop.f32.mrf.mxu0
      %v925 = vadd.f32 0.0, %v924
      %v926 = vpop.f32.mrf.mxu0
      %927 = vdwg.mxu0
      %v928 = vadd.f32 %v678, %v830
      %v929 = vadd.f32 %v679, %v835
      %v930 = vadd.f32 %v680, %v840
      %v931 = vadd.f32 %v681, %v845
      %v932 = vadd.f32 %v682, %v850
      %v933 = vadd.f32 %v683, %v855
      %v934 = vadd.f32 %v684, %v860
      %v935 = vadd.f32 %v685, %v865
      %v936 = vadd.f32 %v686, %v870
      %v937 = vadd.f32 %v687, %v875
      %v938 = vadd.f32 %v688, %v880
      %v939 = vadd.f32 %v689, %v885
      %v940 = vadd.f32 %v690, %v890
      %v941 = vadd.f32 %v691, %v895
      %v942 = vadd.f32 %v692, %v900
      %v943 = vadd.f32 %v693, %v905
      %v944 = vadd.f32 %v694, %v910
      %v945 = vadd.f32 %v695, %v915
      %v946 = vadd.f32 %v696, %v920
      %v947 = vadd.f32 %v697, %v925
      %948 = vst.msk [vmem:[#allocation4] sm:$0xff] %vm327, %v928
      %949 = vst.msk [vmem:[#allocation4 + $0x8] sm:$0xff] %vm327, %v929
      %950 = vst.msk [vmem:[#allocation4 + $0x10] sm:$0xff] %vm327, %v930
      %951 = vst.msk [vmem:[#allocation4 + $0x18] sm:$0xff] %vm327, %v931
      %952 = vst.msk [vmem:[#allocation4 + $0x20] sm:$0xff] %vm327, %v932
      %953 = vst.msk [vmem:[#allocation4 + $0x28] sm:$0xff] %vm327, %v933
      %954 = vst.msk [vmem:[#allocation4 + $0x30] sm:$0xff] %vm327, %v934
      %955 = vst.msk [vmem:[#allocation4 + $0x38] sm:$0xff] %vm327, %v935
      %956 = vst.msk [vmem:[#allocation4 + $0x40] sm:$0xff] %vm327, %v936
      %957 = vst.msk [vmem:[#allocation4 + $0x48] sm:$0xff] %vm327, %v937
      %958 = vst.msk [vmem:[#allocation4 + $0x50] sm:$0xff] %vm327, %v938
      %959 = vst.msk [vmem:[#allocation4 + $0x58] sm:$0xff] %vm327, %v939
      %960 = vst.msk [vmem:[#allocation4 + $0x60] sm:$0xff] %vm327, %v940
      %961 = vst.msk [vmem:[#allocation4 + $0x68] sm:$0xff] %vm327, %v941
      %962 = vst.msk [vmem:[#allocation4 + $0x70] sm:$0xff] %vm327, %v942
      %963 = vst.msk [vmem:[#allocation4 + $0x78] sm:$0xff] %vm327, %v943
      %964 = vst.msk [vmem:[#allocation4 + $0x80] sm:$0xff] %vm327, %v944
      %965 = vst.msk [vmem:[#allocation4 + $0x88] sm:$0xff] %vm327, %v945
      %966 = vst.msk [vmem:[#allocation4 + $0x90] sm:$0xff] %vm327, %v946
      %967 = vst.msk [vmem:[#allocation4 + $0x98] sm:$0xff] %vm327, %v947
      %v968 = vld [vmem:[#allocation2 + $0x2] sm:$0xff]
      %v969 = vld [vmem:[#allocation2 + $0xa] sm:$0xff]
      %v970 = vld [vmem:[#allocation2 + $0x1a] sm:$0xff]
      %v971 = vld [vmem:[#allocation2 + $0x22] sm:$0xff]
      %v972 = vld [vmem:[#allocation2 + $0x32] sm:$0xff]
      %v973 = vld [vmem:[#allocation2 + $0x3a] sm:$0xff]
      %v974 = vld [vmem:[#allocation2 + $0x4a] sm:$0xff]
      %v975 = vld [vmem:[#allocation2 + $0x52] sm:$0xff]
      %v976 = vld [vmem:[#allocation2 + $0x62] sm:$0xff]
      %v977 = vld [vmem:[#allocation2 + $0x6a] sm:$0xff]
      %v978 = vld [vmem:[#allocation2 + $0x7a] sm:$0xff]
      %v979 = vld [vmem:[#allocation2 + $0x82] sm:$0xff]
      %v980 = vld [vmem:[#allocation2 + $0x92] sm:$0xff]
      %v981 = vld [vmem:[#allocation2 + $0x9a] sm:$0xff]
      %v982 = vld [vmem:[#allocation2 + $0xaa] sm:$0xff]
      %v983 = vld [vmem:[#allocation2 + $0xb2] sm:$0xff]
      %v984 = vld [vmem:[#allocation2 + $0xc2] sm:$0xff]
      %v985 = vld [vmem:[#allocation2 + $0xca] sm:$0xff]
      %v986 = vld [vmem:[#allocation2 + $0xda] sm:$0xff]
      %v987 = vld [vmem:[#allocation2 + $0xe2] sm:$0xff]
      %v988 = vld [vmem:[#allocation4] sm:$0xff]
      %v989 = vld [vmem:[#allocation4 + $0x8] sm:$0xff]
      %v990 = vld [vmem:[#allocation4 + $0x10] sm:$0xff]
      %v991 = vld [vmem:[#allocation4 + $0x18] sm:$0xff]
      %v992 = vld [vmem:[#allocation4 + $0x20] sm:$0xff]
      %v993 = vld [vmem:[#allocation4 + $0x28] sm:$0xff]
      %v994 = vld [vmem:[#allocation4 + $0x30] sm:$0xff]
      %v995 = vld [vmem:[#allocation4 + $0x38] sm:$0xff]
      %v996 = vld [vmem:[#allocation4 + $0x40] sm:$0xff]
      %v997 = vld [vmem:[#allocation4 + $0x48] sm:$0xff]
      %v998 = vld [vmem:[#allocation4 + $0x50] sm:$0xff]
      %v999 = vld [vmem:[#allocation4 + $0x58] sm:$0xff]
      %v1000 = vld [vmem:[#allocation4 + $0x60] sm:$0xff]
      %v1001 = vld [vmem:[#allocation4 + $0x68] sm:$0xff]
      %v1002 = vld [vmem:[#allocation4 + $0x70] sm:$0xff]
      %v1003 = vld [vmem:[#allocation4 + $0x78] sm:$0xff]
      %v1004 = vld [vmem:[#allocation4 + $0x80] sm:$0xff]
      %v1005 = vld [vmem:[#allocation4 + $0x88] sm:$0xff]
      %v1006 = vld [vmem:[#allocation4 + $0x90] sm:$0xff]
      %v1007 = vld [vmem:[#allocation4 + $0x98] sm:$0xff]
      %s1008 = scalar_lea.vmem %s1, 8
      %v1009 = vld [vmem:[%s1008] sm:$0xf]
      %v1011 = vsel %vm302, %v968, 0
      %v1014 = vsel %vm302, %v969, 0
      %v1017 = vsel %vm302, %v970, 0
      %v1020 = vsel %vm302, %v971, 0
      %v1023 = vsel %vm302, %v972, 0
      %v1026 = vsel %vm302, %v973, 0
      %v1029 = vsel %vm302, %v974, 0
      %v1032 = vsel %vm302, %v975, 0
      %v1035 = vsel %vm302, %v976, 0
      %v1038 = vsel %vm302, %v977, 0
      %v1041 = vsel %vm302, %v978, 0
      %v1044 = vsel %vm302, %v979, 0
      %v1047 = vsel %vm302, %v980, 0
      %v1050 = vsel %vm302, %v981, 0
      %v1053 = vsel %vm302, %v982, 0
      %v1056 = vsel %vm302, %v983, 0
      %v1059 = vsel %vm302, %v984, 0
      %v1062 = vsel %vm302, %v985, 0
      %v1065 = vsel %vm302, %v986, 0
      %v1068 = vsel %vm302, %v987, 0
      %v1071 = vsel %vm449, %v1009, 0
      %1073 = vmatprep.subr.mxu0 0.0
      %1074 = vmatpush1.msra.mxu0 0.0
      %1075 = vmatprep.subr.mxu0 0.0
      %1076 = vmatpush1.msra.mxu0 0.0
      %1077 = vmatprep.subr.mxu0 0.0
      %1078 = vmatpush1.msra.mxu0 0.0
      %1079 = vmatprep.subr.mxu0 0.0
      %1080 = vmatpush1.msra.mxu0 0.0
      %1081 = vmatprep.subr.mxu0 0.0
      %1082 = vmatpush1.msra.mxu0 0.0
      %1083 = vmatprep.subr.mxu0 0.0
      %1084 = vmatpush1.msra.mxu0 0.0
      %1085 = vmatprep.subr.mxu0 0.0
      %1086 = vmatpush1.msra.mxu0 0.0
      %1087 = vmatprep.subr.mxu0 0.0
      %1088 = vmatpush1.msra.mxu0 0.0
      %1089 = vmatprep.subr.mxu0 0.0
      %1090 = vmatpush1.msra.mxu0 0.0
      %1091 = vmatprep.subr.mxu0 0.0
      %1092 = vmatpush1.msra.mxu0 0.0
      %1093 = vmatprep.subr.mxu0 0.0
      %1094 = vmatpush1.msra.mxu0 0.0
      %1095 = vmatprep.subr.mxu0 0.0
      %1096 = vmatpush1.msra.mxu0 0.0
      %1097 = vmatprep.subr.mxu0 0.0
      %1098 = vmatpush1.msra.mxu0 0.0
      %1099 = vmatprep.subr.mxu0 0.0
      %1100 = vmatpush1.msra.mxu0 0.0
      %1101 = vmatprep.subr.mxu0 0.0
      %1102 = vmatpush1.msra.mxu0 0.0
      %1103 = vmatprep.subr.mxu0 0.0
      %1104 = vmatpush1.msra.mxu0 %v1071
      %1105 = vmatprep.subr.mxu0 0.0
      %1106 = vmatpush2.msra.mxu0 0.0
      %1107 = vmatprep.subr.mxu0 0.0
      %1108 = vmatpush2.msra.mxu0 0.0
      %1109 = vmatprep.subr.mxu0 0.0
      %1110 = vmatpush2.msra.mxu0 0.0
      %1111 = vmatprep.subr.mxu0 0.0
      %1112 = vmatpush2.msra.mxu0 0.0
      %1113 = vmatprep.subr.mxu0 0.0
      %1114 = vmatpush2.msra.mxu0 0.0
      %1115 = vmatprep.subr.mxu0 0.0
      %1116 = vmatpush2.msra.mxu0 0.0
      %1117 = vmatprep.subr.mxu0 0.0
      %1118 = vmatpush2.msra.mxu0 0.0
      %1119 = vmatprep.subr.mxu0 0.0
      %1120 = vmatpush2.msra.mxu0 0.0
      %1121 = vmatprep.subr.mxu0 0.0
      %1122 = vmatpush2.msra.mxu0 0.0
      %1123 = vmatprep.subr.mxu0 0.0
      %1124 = vmatpush2.msra.mxu0 0.0
      %1125 = vmatprep.subr.mxu0 0.0
      %1126 = vmatpush2.msra.mxu0 0.0
      %1127 = vmatprep.subr.mxu0 0.0
      %1128 = vmatpush2.msra.mxu0 0.0
      %1129 = vmatprep.subr.mxu0 0.0
      %1130 = vmatpush2.msra.mxu0 0.0
      %1131 = vmatprep.subr.mxu0 0.0
      %1132 = vmatpush2.msra.mxu0 0.0
      %1133 = vmatprep.subr.mxu0 0.0
      %1134 = vmatpush2.msra.mxu0 0.0
      %1135 = vmatprep.subr.mxu0 0.0
      %1136 = vmatpush2.msra.mxu0 0.0
      %1137 = vmatprep.mubr.f32.mxu0 0.0
      %1138 = vmatmul.mubr.f32.gmra.mxu0 %v1011
      %v1139 = vpop.f32.mrf.mxu0
      %v1140 = vadd.f32 0.0, %v1139
      %v1141 = vpop.f32.mrf.mxu0
      %1142 = vmatprep.mubr.f32.mxu0 0.0
      %1143 = vmatmul.mubr.f32.gmra.mxu0 %v1014
      %v1144 = vpop.f32.mrf.mxu0
      %v1145 = vadd.f32 0.0, %v1144
      %v1146 = vpop.f32.mrf.mxu0
      %1147 = vmatprep.mubr.f32.mxu0 0.0
      %1148 = vmatmul.mubr.f32.gmra.mxu0 %v1017
      %v1149 = vpop.f32.mrf.mxu0
      %v1150 = vadd.f32 0.0, %v1149
      %v1151 = vpop.f32.mrf.mxu0
      %1152 = vmatprep.mubr.f32.mxu0 0.0
      %1153 = vmatmul.mubr.f32.gmra.mxu0 %v1020
      %v1154 = vpop.f32.mrf.mxu0
      %v1155 = vadd.f32 0.0, %v1154
      %v1156 = vpop.f32.mrf.mxu0
      %1157 = vmatprep.mubr.f32.mxu0 0.0
      %1158 = vmatmul.mubr.f32.gmra.mxu0 %v1023
      %v1159 = vpop.f32.mrf.mxu0
      %v1160 = vadd.f32 0.0, %v1159
      %v1161 = vpop.f32.mrf.mxu0
      %1162 = vmatprep.mubr.f32.mxu0 0.0
      %1163 = vmatmul.mubr.f32.gmra.mxu0 %v1026
      %v1164 = vpop.f32.mrf.mxu0
      %v1165 = vadd.f32 0.0, %v1164
      %v1166 = vpop.f32.mrf.mxu0
      %1167 = vmatprep.mubr.f32.mxu0 0.0
      %1168 = vmatmul.mubr.f32.gmra.mxu0 %v1029
      %v1169 = vpop.f32.mrf.mxu0
      %v1170 = vadd.f32 0.0, %v1169
      %v1171 = vpop.f32.mrf.mxu0
      %1172 = vmatprep.mubr.f32.mxu0 0.0
      %1173 = vmatmul.mubr.f32.gmra.mxu0 %v1032
      %v1174 = vpop.f32.mrf.mxu0
      %v1175 = vadd.f32 0.0, %v1174
      %v1176 = vpop.f32.mrf.mxu0
      %1177 = vmatprep.mubr.f32.mxu0 0.0
      %1178 = vmatmul.mubr.f32.gmra.mxu0 %v1035
      %v1179 = vpop.f32.mrf.mxu0
      %v1180 = vadd.f32 0.0, %v1179
      %v1181 = vpop.f32.mrf.mxu0
      %1182 = vmatprep.mubr.f32.mxu0 0.0
      %1183 = vmatmul.mubr.f32.gmra.mxu0 %v1038
      %v1184 = vpop.f32.mrf.mxu0
      %v1185 = vadd.f32 0.0, %v1184
      %v1186 = vpop.f32.mrf.mxu0
      %1187 = vmatprep.mubr.f32.mxu0 0.0
      %1188 = vmatmul.mubr.f32.gmra.mxu0 %v1041
      %v1189 = vpop.f32.mrf.mxu0
      %v1190 = vadd.f32 0.0, %v1189
      %v1191 = vpop.f32.mrf.mxu0
      %1192 = vmatprep.mubr.f32.mxu0 0.0
      %1193 = vmatmul.mubr.f32.gmra.mxu0 %v1044
      %v1194 = vpop.f32.mrf.mxu0
      %v1195 = vadd.f32 0.0, %v1194
      %v1196 = vpop.f32.mrf.mxu0
      %1197 = vmatprep.mubr.f32.mxu0 0.0
      %1198 = vmatmul.mubr.f32.gmra.mxu0 %v1047
      %v1199 = vpop.f32.mrf.mxu0
      %v1200 = vadd.f32 0.0, %v1199
      %v1201 = vpop.f32.mrf.mxu0
      %1202 = vmatprep.mubr.f32.mxu0 0.0
      %1203 = vmatmul.mubr.f32.gmra.mxu0 %v1050
      %v1204 = vpop.f32.mrf.mxu0
      %v1205 = vadd.f32 0.0, %v1204
      %v1206 = vpop.f32.mrf.mxu0
      %1207 = vmatprep.mubr.f32.mxu0 0.0
      %1208 = vmatmul.mubr.f32.gmra.mxu0 %v1053
      %v1209 = vpop.f32.mrf.mxu0
      %v1210 = vadd.f32 0.0, %v1209
      %v1211 = vpop.f32.mrf.mxu0
      %1212 = vmatprep.mubr.f32.mxu0 0.0
      %1213 = vmatmul.mubr.f32.gmra.mxu0 %v1056
      %v1214 = vpop.f32.mrf.mxu0
      %v1215 = vadd.f32 0.0, %v1214
      %v1216 = vpop.f32.mrf.mxu0
      %1217 = vmatprep.mubr.f32.mxu0 0.0
      %1218 = vmatmul.mubr.f32.gmra.mxu0 %v1059
      %v1219 = vpop.f32.mrf.mxu0
      %v1220 = vadd.f32 0.0, %v1219
      %v1221 = vpop.f32.mrf.mxu0
      %1222 = vmatprep.mubr.f32.mxu0 0.0
      %1223 = vmatmul.mubr.f32.gmra.mxu0 %v1062
      %v1224 = vpop.f32.mrf.mxu0
      %v1225 = vadd.f32 0.0, %v1224
      %v1226 = vpop.f32.mrf.mxu0
      %1227 = vmatprep.mubr.f32.mxu0 0.0
      %1228 = vmatmul.mubr.f32.gmra.mxu0 %v1065
      %v1229 = vpop.f32.mrf.mxu0
      %v1230 = vadd.f32 0.0, %v1229
      %v1231 = vpop.f32.mrf.mxu0
      %1232 = vmatprep.mubr.f32.mxu0 0.0
      %1233 = vmatmul.mubr.f32.gmra.mxu0 %v1068
      %v1234 = vpop.f32.mrf.mxu0
      %v1235 = vadd.f32 0.0, %v1234
      %v1236 = vpop.f32.mrf.mxu0
      %1237 = vdwg.mxu0
      %v1238 = vadd.f32 %v988, %v1140
      %v1239 = vadd.f32 %v989, %v1145
      %v1240 = vadd.f32 %v990, %v1150
      %v1241 = vadd.f32 %v991, %v1155
      %v1242 = vadd.f32 %v992, %v1160
      %v1243 = vadd.f32 %v993, %v1165
      %v1244 = vadd.f32 %v994, %v1170
      %v1245 = vadd.f32 %v995, %v1175
      %v1246 = vadd.f32 %v996, %v1180
      %v1247 = vadd.f32 %v997, %v1185
      %v1248 = vadd.f32 %v998, %v1190
      %v1249 = vadd.f32 %v999, %v1195
      %v1250 = vadd.f32 %v1000, %v1200
      %v1251 = vadd.f32 %v1001, %v1205
      %v1252 = vadd.f32 %v1002, %v1210
      %v1253 = vadd.f32 %v1003, %v1215
      %v1254 = vadd.f32 %v1004, %v1220
      %v1255 = vadd.f32 %v1005, %v1225
      %v1256 = vadd.f32 %v1006, %v1230
      %v1257 = vadd.f32 %v1007, %v1235
      %1258 = vst.msk [vmem:[#allocation4] sm:$0xff] %vm327, %v1238
      %1259 = vst.msk [vmem:[#allocation4 + $0x8] sm:$0xff] %vm327, %v1239
      %1260 = vst.msk [vmem:[#allocation4 + $0x10] sm:$0xff] %vm327, %v1240
      %1261 = vst.msk [vmem:[#allocation4 + $0x18] sm:$0xff] %vm327, %v1241
      %1262 = vst.msk [vmem:[#allocation4 + $0x20] sm:$0xff] %vm327, %v1242
      %1263 = vst.msk [vmem:[#allocation4 + $0x28] sm:$0xff] %vm327, %v1243
      %1264 = vst.msk [vmem:[#allocation4 + $0x30] sm:$0xff] %vm327, %v1244
      %1265 = vst.msk [vmem:[#allocation4 + $0x38] sm:$0xff] %vm327, %v1245
      %1266 = vst.msk [vmem:[#allocation4 + $0x40] sm:$0xff] %vm327, %v1246
      %1267 = vst.msk [vmem:[#allocation4 + $0x48] sm:$0xff] %vm327, %v1247
      %1268 = vst.msk [vmem:[#allocation4 + $0x50] sm:$0xff] %vm327, %v1248
      %1269 = vst.msk [vmem:[#allocation4 + $0x58] sm:$0xff] %vm327, %v1249
      %1270 = vst.msk [vmem:[#allocation4 + $0x60] sm:$0xff] %vm327, %v1250
      %1271 = vst.msk [vmem:[#allocation4 + $0x68] sm:$0xff] %vm327, %v1251
      %1272 = vst.msk [vmem:[#allocation4 + $0x70] sm:$0xff] %vm327, %v1252
      %1273 = vst.msk [vmem:[#allocation4 + $0x78] sm:$0xff] %vm327, %v1253
      %1274 = vst.msk [vmem:[#allocation4 + $0x80] sm:$0xff] %vm327, %v1254
      %1275 = vst.msk [vmem:[#allocation4 + $0x88] sm:$0xff] %vm327, %v1255
      %1276 = vst.msk [vmem:[#allocation4 + $0x90] sm:$0xff] %vm327, %v1256
      %1277 = vst.msk [vmem:[#allocation4 + $0x98] sm:$0xff] %vm327, %v1257
      %s1278 = scalar_lea.vmem [#allocation2], 24
      %v1279 = vld [vmem:[%s1278] sm:$0xff]
      %v1280 = vld [vmem:[%s1278 + $0x8] sm:$0xff]
      %v1281 = vld [vmem:[%s1278 + $0x18] sm:$0xff]
      %v1282 = vld [vmem:[%s1278 + $0x20] sm:$0xff]
      %v1283 = vld [vmem:[%s1278 + $0x30] sm:$0xff]
      %v1284 = vld [vmem:[%s1278 + $0x38] sm:$0xff]
      %v1285 = vld [vmem:[%s1278 + $0x48] sm:$0xff]
      %v1286 = vld [vmem:[%s1278 + $0x50] sm:$0xff]
      %v1287 = vld [vmem:[%s1278 + $0x60] sm:$0xff]
      %v1288 = vld [vmem:[%s1278 + $0x68] sm:$0xff]
      %v1289 = vld [vmem:[%s1278 + $0x78] sm:$0xff]
      %v1290 = vld [vmem:[%s1278 + $0x80] sm:$0xff]
      %v1291 = vld [vmem:[%s1278 + $0x90] sm:$0xff]
      %v1292 = vld [vmem:[%s1278 + $0x98] sm:$0xff]
      %v1293 = vld [vmem:[%s1278 + $0xa8] sm:$0xff]
      %v1294 = vld [vmem:[%s1278 + $0xb0] sm:$0xff]
      %v1295 = vld [vmem:[%s1278 + $0xc0] sm:$0xff]
      %v1296 = vld [vmem:[%s1278 + $0xc8] sm:$0xff]
      %v1297 = vld [vmem:[%s1278 + $0xd8] sm:$0xff]
      %v1298 = vld [vmem:[%s1278 + $0xe0] sm:$0xff]
      %v1299 = vld [vmem:[#allocation4] sm:$0xff]
      %v1300 = vld [vmem:[#allocation4 + $0x8] sm:$0xff]
      %v1301 = vld [vmem:[#allocation4 + $0x10] sm:$0xff]
      %v1302 = vld [vmem:[#allocation4 + $0x18] sm:$0xff]
      %v1303 = vld [vmem:[#allocation4 + $0x20] sm:$0xff]
      %v1304 = vld [vmem:[#allocation4 + $0x28] sm:$0xff]
      %v1305 = vld [vmem:[#allocation4 + $0x30] sm:$0xff]
      %v1306 = vld [vmem:[#allocation4 + $0x38] sm:$0xff]
      %v1307 = vld [vmem:[#allocation4 + $0x40] sm:$0xff]
      %v1308 = vld [vmem:[#allocation4 + $0x48] sm:$0xff]
      %v1309 = vld [vmem:[#allocation4 + $0x50] sm:$0xff]
      %v1310 = vld [vmem:[#allocation4 + $0x58] sm:$0xff]
      %v1311 = vld [vmem:[#allocation4 + $0x60] sm:$0xff]
      %v1312 = vld [vmem:[#allocation4 + $0x68] sm:$0xff]
      %v1313 = vld [vmem:[#allocation4 + $0x70] sm:$0xff]
      %v1314 = vld [vmem:[#allocation4 + $0x78] sm:$0xff]
      %v1315 = vld [vmem:[#allocation4 + $0x80] sm:$0xff]
      %v1316 = vld [vmem:[#allocation4 + $0x88] sm:$0xff]
      %v1317 = vld [vmem:[#allocation4 + $0x90] sm:$0xff]
      %v1318 = vld [vmem:[#allocation4 + $0x98] sm:$0xff]
      %s1319 = scalar_lea.vmem %s1, 12
      %v1320 = vld [vmem:[%s1319] sm:$0xf]
      %v1322 = vsel %vm302, %v1279, 0
      %v1325 = vsel %vm302, %v1280, 0
      %v1328 = vsel %vm302, %v1281, 0
      %v1331 = vsel %vm302, %v1282, 0
      %v1334 = vsel %vm302, %v1283, 0
      %v1337 = vsel %vm302, %v1284, 0
      %v1340 = vsel %vm302, %v1285, 0
      %v1343 = vsel %vm302, %v1286, 0
      %v1346 = vsel %vm302, %v1287, 0
      %v1349 = vsel %vm302, %v1288, 0
      %v1352 = vsel %vm302, %v1289, 0
      %v1355 = vsel %vm302, %v1290, 0
      %v1358 = vsel %vm302, %v1291, 0
      %v1361 = vsel %vm302, %v1292, 0
      %v1364 = vsel %vm302, %v1293, 0
      %v1367 = vsel %vm302, %v1294, 0
      %v1370 = vsel %vm302, %v1295, 0
      %v1373 = vsel %vm302, %v1296, 0
      %v1376 = vsel %vm302, %v1297, 0
      %v1379 = vsel %vm302, %v1298, 0
      %v1382 = vsel %vm449, %v1320, 0
      %1384 = vmatprep.subr.mxu0 0.0
      %1385 = vmatpush1.msra.mxu0 0.0
      %1386 = vmatprep.subr.mxu0 0.0
      %1387 = vmatpush1.msra.mxu0 0.0
      %1388 = vmatprep.subr.mxu0 0.0
      %1389 = vmatpush1.msra.mxu0 0.0
      %1390 = vmatprep.subr.mxu0 0.0
      %1391 = vmatpush1.msra.mxu0 0.0
      %1392 = vmatprep.subr.mxu0 0.0
      %1393 = vmatpush1.msra.mxu0 0.0
      %1394 = vmatprep.subr.mxu0 0.0
      %1395 = vmatpush1.msra.mxu0 0.0
      %1396 = vmatprep.subr.mxu0 0.0
      %1397 = vmatpush1.msra.mxu0 0.0
      %1398 = vmatprep.subr.mxu0 0.0
      %1399 = vmatpush1.msra.mxu0 0.0
      %1400 = vmatprep.subr.mxu0 0.0
      %1401 = vmatpush1.msra.mxu0 0.0
      %1402 = vmatprep.subr.mxu0 0.0
      %1403 = vmatpush1.msra.mxu0 0.0
      %1404 = vmatprep.subr.mxu0 0.0
      %1405 = vmatpush1.msra.mxu0 0.0
      %1406 = vmatprep.subr.mxu0 0.0
      %1407 = vmatpush1.msra.mxu0 0.0
      %1408 = vmatprep.subr.mxu0 0.0
      %1409 = vmatpush1.msra.mxu0 0.0
      %1410 = vmatprep.subr.mxu0 0.0
      %1411 = vmatpush1.msra.mxu0 0.0
      %1412 = vmatprep.subr.mxu0 0.0
      %1413 = vmatpush1.msra.mxu0 0.0
      %1414 = vmatprep.subr.mxu0 0.0
      %1415 = vmatpush1.msra.mxu0 %v1382
      %1416 = vmatprep.subr.mxu0 0.0
      %1417 = vmatpush2.msra.mxu0 0.0
      %1418 = vmatprep.subr.mxu0 0.0
      %1419 = vmatpush2.msra.mxu0 0.0
      %1420 = vmatprep.subr.mxu0 0.0
      %1421 = vmatpush2.msra.mxu0 0.0
      %1422 = vmatprep.subr.mxu0 0.0
      %1423 = vmatpush2.msra.mxu0 0.0
      %1424 = vmatprep.subr.mxu0 0.0
      %1425 = vmatpush2.msra.mxu0 0.0
      %1426 = vmatprep.subr.mxu0 0.0
      %1427 = vmatpush2.msra.mxu0 0.0
      %1428 = vmatprep.subr.mxu0 0.0
      %1429 = vmatpush2.msra.mxu0 0.0
      %1430 = vmatprep.subr.mxu0 0.0
      %1431 = vmatpush2.msra.mxu0 0.0
      %1432 = vmatprep.subr.mxu0 0.0
      %1433 = vmatpush2.msra.mxu0 0.0
      %1434 = vmatprep.subr.mxu0 0.0
      %1435 = vmatpush2.msra.mxu0 0.0
      %1436 = vmatprep.subr.mxu0 0.0
      %1437 = vmatpush2.msra.mxu0 0.0
      %1438 = vmatprep.subr.mxu0 0.0
      %1439 = vmatpush2.msra.mxu0 0.0
      %1440 = vmatprep.subr.mxu0 0.0
      %1441 = vmatpush2.msra.mxu0 0.0
      %1442 = vmatprep.subr.mxu0 0.0
      %1443 = vmatpush2.msra.mxu0 0.0
      %1444 = vmatprep.subr.mxu0 0.0
      %1445 = vmatpush2.msra.mxu0 0.0
      %1446 = vmatprep.subr.mxu0 0.0
      %1447 = vmatpush2.msra.mxu0 0.0
      %1448 = vmatprep.mubr.f32.mxu0 0.0
      %1449 = vmatmul.mubr.f32.gmra.mxu0 %v1322
      %v1450 = vpop.f32.mrf.mxu0
      %v1451 = vadd.f32 0.0, %v1450
      %v1452 = vpop.f32.mrf.mxu0
      %1453 = vmatprep.mubr.f32.mxu0 0.0
      %1454 = vmatmul.mubr.f32.gmra.mxu0 %v1325
      %v1455 = vpop.f32.mrf.mxu0
      %v1456 = vadd.f32 0.0, %v1455
      %v1457 = vpop.f32.mrf.mxu0
      %1458 = vmatprep.mubr.f32.mxu0 0.0
      %1459 = vmatmul.mubr.f32.gmra.mxu0 %v1328
      %v1460 = vpop.f32.mrf.mxu0
      %v1461 = vadd.f32 0.0, %v1460
      %v1462 = vpop.f32.mrf.mxu0
      %1463 = vmatprep.mubr.f32.mxu0 0.0
      %1464 = vmatmul.mubr.f32.gmra.mxu0 %v1331
      %v1465 = vpop.f32.mrf.mxu0
      %v1466 = vadd.f32 0.0, %v1465
      %v1467 = vpop.f32.mrf.mxu0
      %1468 = vmatprep.mubr.f32.mxu0 0.0
      %1469 = vmatmul.mubr.f32.gmra.mxu0 %v1334
      %v1470 = vpop.f32.mrf.mxu0
      %v1471 = vadd.f32 0.0, %v1470
      %v1472 = vpop.f32.mrf.mxu0
      %1473 = vmatprep.mubr.f32.mxu0 0.0
      %1474 = vmatmul.mubr.f32.gmra.mxu0 %v1337
      %v1475 = vpop.f32.mrf.mxu0
      %v1476 = vadd.f32 0.0, %v1475
      %v1477 = vpop.f32.mrf.mxu0
      %1478 = vmatprep.mubr.f32.mxu0 0.0
      %1479 = vmatmul.mubr.f32.gmra.mxu0 %v1340
      %v1480 = vpop.f32.mrf.mxu0
      %v1481 = vadd.f32 0.0, %v1480
      %v1482 = vpop.f32.mrf.mxu0
      %1483 = vmatprep.mubr.f32.mxu0 0.0
      %1484 = vmatmul.mubr.f32.gmra.mxu0 %v1343
      %v1485 = vpop.f32.mrf.mxu0
      %v1486 = vadd.f32 0.0, %v1485
      %v1487 = vpop.f32.mrf.mxu0
      %1488 = vmatprep.mubr.f32.mxu0 0.0
      %1489 = vmatmul.mubr.f32.gmra.mxu0 %v1346
      %v1490 = vpop.f32.mrf.mxu0
      %v1491 = vadd.f32 0.0, %v1490
      %v1492 = vpop.f32.mrf.mxu0
      %1493 = vmatprep.mubr.f32.mxu0 0.0
      %1494 = vmatmul.mubr.f32.gmra.mxu0 %v1349
      %v1495 = vpop.f32.mrf.mxu0
      %v1496 = vadd.f32 0.0, %v1495
      %v1497 = vpop.f32.mrf.mxu0
      %1498 = vmatprep.mubr.f32.mxu0 0.0
      %1499 = vmatmul.mubr.f32.gmra.mxu0 %v1352
      %v1500 = vpop.f32.mrf.mxu0
      %v1501 = vadd.f32 0.0, %v1500
      %v1502 = vpop.f32.mrf.mxu0
      %1503 = vmatprep.mubr.f32.mxu0 0.0
      %1504 = vmatmul.mubr.f32.gmra.mxu0 %v1355
      %v1505 = vpop.f32.mrf.mxu0
      %v1506 = vadd.f32 0.0, %v1505
      %v1507 = vpop.f32.mrf.mxu0
      %1508 = vmatprep.mubr.f32.mxu0 0.0
      %1509 = vmatmul.mubr.f32.gmra.mxu0 %v1358
      %v1510 = vpop.f32.mrf.mxu0
      %v1511 = vadd.f32 0.0, %v1510
      %v1512 = vpop.f32.mrf.mxu0
      %1513 = vmatprep.mubr.f32.mxu0 0.0
      %1514 = vmatmul.mubr.f32.gmra.mxu0 %v1361
      %v1515 = vpop.f32.mrf.mxu0
      %v1516 = vadd.f32 0.0, %v1515
      %v1517 = vpop.f32.mrf.mxu0
      %1518 = vmatprep.mubr.f32.mxu0 0.0
      %1519 = vmatmul.mubr.f32.gmra.mxu0 %v1364
      %v1520 = vpop.f32.mrf.mxu0
      %v1521 = vadd.f32 0.0, %v1520
      %v1522 = vpop.f32.mrf.mxu0
      %1523 = vmatprep.mubr.f32.mxu0 0.0
      %1524 = vmatmul.mubr.f32.gmra.mxu0 %v1367
      %v1525 = vpop.f32.mrf.mxu0
      %v1526 = vadd.f32 0.0, %v1525
      %v1527 = vpop.f32.mrf.mxu0
      %1528 = vmatprep.mubr.f32.mxu0 0.0
      %1529 = vmatmul.mubr.f32.gmra.mxu0 %v1370
      %v1530 = vpop.f32.mrf.mxu0
      %v1531 = vadd.f32 0.0, %v1530
      %v1532 = vpop.f32.mrf.mxu0
      %1533 = vmatprep.mubr.f32.mxu0 0.0
      %1534 = vmatmul.mubr.f32.gmra.mxu0 %v1373
      %v1535 = vpop.f32.mrf.mxu0
      %v1536 = vadd.f32 0.0, %v1535
      %v1537 = vpop.f32.mrf.mxu0
      %1538 = vmatprep.mubr.f32.mxu0 0.0
      %1539 = vmatmul.mubr.f32.gmra.mxu0 %v1376
      %v1540 = vpop.f32.mrf.mxu0
      %v1541 = vadd.f32 0.0, %v1540
      %v1542 = vpop.f32.mrf.mxu0
      %1543 = vmatprep.mubr.f32.mxu0 0.0
      %1544 = vmatmul.mubr.f32.gmra.mxu0 %v1379
      %v1545 = vpop.f32.mrf.mxu0
      %v1546 = vadd.f32 0.0, %v1545
      %v1547 = vpop.f32.mrf.mxu0
      %1548 = vdwg.mxu0
      %v1549 = vadd.f32 %v1299, %v1451
      %v1550 = vadd.f32 %v1300, %v1456
      %v1551 = vadd.f32 %v1301, %v1461
      %v1552 = vadd.f32 %v1302, %v1466
      %v1553 = vadd.f32 %v1303, %v1471
      %v1554 = vadd.f32 %v1304, %v1476
      %v1555 = vadd.f32 %v1305, %v1481
      %v1556 = vadd.f32 %v1306, %v1486
      %v1557 = vadd.f32 %v1307, %v1491
      %v1558 = vadd.f32 %v1308, %v1496
      %v1559 = vadd.f32 %v1309, %v1501
      %v1560 = vadd.f32 %v1310, %v1506
      %v1561 = vadd.f32 %v1311, %v1511
      %v1562 = vadd.f32 %v1312, %v1516
      %v1563 = vadd.f32 %v1313, %v1521
      %v1564 = vadd.f32 %v1314, %v1526
      %v1565 = vadd.f32 %v1315, %v1531
      %v1566 = vadd.f32 %v1316, %v1536
      %v1567 = vadd.f32 %v1317, %v1541
      %v1568 = vadd.f32 %v1318, %v1546
      %1569 = vst.msk [vmem:[#allocation4] sm:$0xff] %vm327, %v1549
      %1570 = vst.msk [vmem:[#allocation4 + $0x8] sm:$0xff] %vm327, %v1550
      %1571 = vst.msk [vmem:[#allocation4 + $0x10] sm:$0xff] %vm327, %v1551
      %1572 = vst.msk [vmem:[#allocation4 + $0x18] sm:$0xff] %vm327, %v1552
      %1573 = vst.msk [vmem:[#allocation4 + $0x20] sm:$0xff] %vm327, %v1553
      %1574 = vst.msk [vmem:[#allocation4 + $0x28] sm:$0xff] %vm327, %v1554
      %1575 = vst.msk [vmem:[#allocation4 + $0x30] sm:$0xff] %vm327, %v1555
      %1576 = vst.msk [vmem:[#allocation4 + $0x38] sm:$0xff] %vm327, %v1556
      %1577 = vst.msk [vmem:[#allocation4 + $0x40] sm:$0xff] %vm327, %v1557
      %1578 = vst.msk [vmem:[#allocation4 + $0x48] sm:$0xff] %vm327, %v1558
      %1579 = vst.msk [vmem:[#allocation4 + $0x50] sm:$0xff] %vm327, %v1559
      %1580 = vst.msk [vmem:[#allocation4 + $0x58] sm:$0xff] %vm327, %v1560
      %1581 = vst.msk [vmem:[#allocation4 + $0x60] sm:$0xff] %vm327, %v1561
      %1582 = vst.msk [vmem:[#allocation4 + $0x68] sm:$0xff] %vm327, %v1562
      %1583 = vst.msk [vmem:[#allocation4 + $0x70] sm:$0xff] %vm327, %v1563
      %1584 = vst.msk [vmem:[#allocation4 + $0x78] sm:$0xff] %vm327, %v1564
      %1585 = vst.msk [vmem:[#allocation4 + $0x80] sm:$0xff] %vm327, %v1565
      %1586 = vst.msk [vmem:[#allocation4 + $0x88] sm:$0xff] %vm327, %v1566
      %1587 = vst.msk [vmem:[#allocation4 + $0x90] sm:$0xff] %vm327, %v1567
      %1588 = vst.msk [vmem:[#allocation4 + $0x98] sm:$0xff] %vm327, %v1568
      %v1589 = vld [vmem:[%s1278 + $0x1] sm:$0xff]
      %v1590 = vld [vmem:[%s1278 + $0x9] sm:$0xff]
      %v1591 = vld [vmem:[%s1278 + $0x19] sm:$0xff]
      %v1592 = vld [vmem:[%s1278 + $0x21] sm:$0xff]
      %v1593 = vld [vmem:[%s1278 + $0x31] sm:$0xff]
      %v1594 = vld [vmem:[%s1278 + $0x39] sm:$0xff]
      %v1595 = vld [vmem:[%s1278 + $0x49] sm:$0xff]
      %v1596 = vld [vmem:[%s1278 + $0x51] sm:$0xff]
      %v1597 = vld [vmem:[%s1278 + $0x61] sm:$0xff]
      %v1598 = vld [vmem:[%s1278 + $0x69] sm:$0xff]
      %v1599 = vld [vmem:[%s1278 + $0x79] sm:$0xff]
      %v1600 = vld [vmem:[%s1278 + $0x81] sm:$0xff]
      %v1601 = vld [vmem:[%s1278 + $0x91] sm:$0xff]
      %v1602 = vld [vmem:[%s1278 + $0x99] sm:$0xff]
      %v1603 = vld [vmem:[%s1278 + $0xa9] sm:$0xff]
      %v1604 = vld [vmem:[%s1278 + $0xb1] sm:$0xff]
      %v1605 = vld [vmem:[%s1278 + $0xc1] sm:$0xff]
      %v1606 = vld [vmem:[%s1278 + $0xc9] sm:$0xff]
      %v1607 = vld [vmem:[%s1278 + $0xd9] sm:$0xff]
      %v1608 = vld [vmem:[%s1278 + $0xe1] sm:$0xff]
      %v1609 = vld [vmem:[#allocation4] sm:$0xff]
      %v1610 = vld [vmem:[#allocation4 + $0x8] sm:$0xff]
      %v1611 = vld [vmem:[#allocation4 + $0x10] sm:$0xff]
      %v1612 = vld [vmem:[#allocation4 + $0x18] sm:$0xff]
      %v1613 = vld [vmem:[#allocation4 + $0x20] sm:$0xff]
      %v1614 = vld [vmem:[#allocation4 + $0x28] sm:$0xff]
      %v1615 = vld [vmem:[#allocation4 + $0x30] sm:$0xff]
      %v1616 = vld [vmem:[#allocation4 + $0x38] sm:$0xff]
      %v1617 = vld [vmem:[#allocation4 + $0x40] sm:$0xff]
      %v1618 = vld [vmem:[#allocation4 + $0x48] sm:$0xff]
      %v1619 = vld [vmem:[#allocation4 + $0x50] sm:$0xff]
      %v1620 = vld [vmem:[#allocation4 + $0x58] sm:$0xff]
      %v1621 = vld [vmem:[#allocation4 + $0x60] sm:$0xff]
      %v1622 = vld [vmem:[#allocation4 + $0x68] sm:$0xff]
      %v1623 = vld [vmem:[#allocation4 + $0x70] sm:$0xff]
      %v1624 = vld [vmem:[#allocation4 + $0x78] sm:$0xff]
      %v1625 = vld [vmem:[#allocation4 + $0x80] sm:$0xff]
      %v1626 = vld [vmem:[#allocation4 + $0x88] sm:$0xff]
      %v1627 = vld [vmem:[#allocation4 + $0x90] sm:$0xff]
      %v1628 = vld [vmem:[#allocation4 + $0x98] sm:$0xff]
      %s1629 = scalar_lea.vmem %s1, 16
      %v1630 = vld [vmem:[%s1629] sm:$0xf]
      %v1632 = vsel %vm302, %v1589, 0
      %v1635 = vsel %vm302, %v1590, 0
      %v1638 = vsel %vm302, %v1591, 0
      %v1641 = vsel %vm302, %v1592, 0
      %v1644 = vsel %vm302, %v1593, 0
      %v1647 = vsel %vm302, %v1594, 0
      %v1650 = vsel %vm302, %v1595, 0
      %v1653 = vsel %vm302, %v1596, 0
      %v1656 = vsel %vm302, %v1597, 0
      %v1659 = vsel %vm302, %v1598, 0
      %v1662 = vsel %vm302, %v1599, 0
      %v1665 = vsel %vm302, %v1600, 0
      %v1668 = vsel %vm302, %v1601, 0
      %v1671 = vsel %vm302, %v1602, 0
      %v1674 = vsel %vm302, %v1603, 0
      %v1677 = vsel %vm302, %v1604, 0
      %v1680 = vsel %vm302, %v1605, 0
      %v1683 = vsel %vm302, %v1606, 0
      %v1686 = vsel %vm302, %v1607, 0
      %v1689 = vsel %vm302, %v1608, 0
      %v1692 = vsel %vm449, %v1630, 0
      %1694 = vmatprep.subr.mxu0 0.0
      %1695 = vmatpush1.msra.mxu0 0.0
      %1696 = vmatprep.subr.mxu0 0.0
      %1697 = vmatpush1.msra.mxu0 0.0
      %1698 = vmatprep.subr.mxu0 0.0
      %1699 = vmatpush1.msra.mxu0 0.0
      %1700 = vmatprep.subr.mxu0 0.0
      %1701 = vmatpush1.msra.mxu0 0.0
      %1702 = vmatprep.subr.mxu0 0.0
      %1703 = vmatpush1.msra.mxu0 0.0
      %1704 = vmatprep.subr.mxu0 0.0
      %1705 = vmatpush1.msra.mxu0 0.0
      %1706 = vmatprep.subr.mxu0 0.0
      %1707 = vmatpush1.msra.mxu0 0.0
      %1708 = vmatprep.subr.mxu0 0.0
      %1709 = vmatpush1.msra.mxu0 0.0
      %1710 = vmatprep.subr.mxu0 0.0
      %1711 = vmatpush1.msra.mxu0 0.0
      %1712 = vmatprep.subr.mxu0 0.0
      %1713 = vmatpush1.msra.mxu0 0.0
      %1714 = vmatprep.subr.mxu0 0.0
      %1715 = vmatpush1.msra.mxu0 0.0
      %1716 = vmatprep.subr.mxu0 0.0
      %1717 = vmatpush1.msra.mxu0 0.0
      %1718 = vmatprep.subr.mxu0 0.0
      %1719 = vmatpush1.msra.mxu0 0.0
      %1720 = vmatprep.subr.mxu0 0.0
      %1721 = vmatpush1.msra.mxu0 0.0
      %1722 = vmatprep.subr.mxu0 0.0
      %1723 = vmatpush1.msra.mxu0 0.0
      %1724 = vmatprep.subr.mxu0 0.0
      %1725 = vmatpush1.msra.mxu0 %v1692
      %1726 = vmatprep.subr.mxu0 0.0
      %1727 = vmatpush2.msra.mxu0 0.0
      %1728 = vmatprep.subr.mxu0 0.0
      %1729 = vmatpush2.msra.mxu0 0.0
      %1730 = vmatprep.subr.mxu0 0.0
      %1731 = vmatpush2.msra.mxu0 0.0
      %1732 = vmatprep.subr.mxu0 0.0
      %1733 = vmatpush2.msra.mxu0 0.0
      %1734 = vmatprep.subr.mxu0 0.0
      %1735 = vmatpush2.msra.mxu0 0.0
      %1736 = vmatprep.subr.mxu0 0.0
      %1737 = vmatpush2.msra.mxu0 0.0
      %1738 = vmatprep.subr.mxu0 0.0
      %1739 = vmatpush2.msra.mxu0 0.0
      %1740 = vmatprep.subr.mxu0 0.0
      %1741 = vmatpush2.msra.mxu0 0.0
      %1742 = vmatprep.subr.mxu0 0.0
      %1743 = vmatpush2.msra.mxu0 0.0
      %1744 = vmatprep.subr.mxu0 0.0
      %1745 = vmatpush2.msra.mxu0 0.0
      %1746 = vmatprep.subr.mxu0 0.0
      %1747 = vmatpush2.msra.mxu0 0.0
      %1748 = vmatprep.subr.mxu0 0.0
      %1749 = vmatpush2.msra.mxu0 0.0
      %1750 = vmatprep.subr.mxu0 0.0
      %1751 = vmatpush2.msra.mxu0 0.0
      %1752 = vmatprep.subr.mxu0 0.0
      %1753 = vmatpush2.msra.mxu0 0.0
      %1754 = vmatprep.subr.mxu0 0.0
      %1755 = vmatpush2.msra.mxu0 0.0
      %1756 = vmatprep.subr.mxu0 0.0
      %1757 = vmatpush2.msra.mxu0 0.0
      %1758 = vmatprep.mubr.f32.mxu0 0.0
      %1759 = vmatmul.mubr.f32.gmra.mxu0 %v1632
      %v1760 = vpop.f32.mrf.mxu0
      %v1761 = vadd.f32 0.0, %v1760
      %v1762 = vpop.f32.mrf.mxu0
      %1763 = vmatprep.mubr.f32.mxu0 0.0
      %1764 = vmatmul.mubr.f32.gmra.mxu0 %v1635
      %v1765 = vpop.f32.mrf.mxu0
      %v1766 = vadd.f32 0.0, %v1765
      %v1767 = vpop.f32.mrf.mxu0
      %1768 = vmatprep.mubr.f32.mxu0 0.0
      %1769 = vmatmul.mubr.f32.gmra.mxu0 %v1638
      %v1770 = vpop.f32.mrf.mxu0
      %v1771 = vadd.f32 0.0, %v1770
      %v1772 = vpop.f32.mrf.mxu0
      %1773 = vmatprep.mubr.f32.mxu0 0.0
      %1774 = vmatmul.mubr.f32.gmra.mxu0 %v1641
      %v1775 = vpop.f32.mrf.mxu0
      %v1776 = vadd.f32 0.0, %v1775
      %v1777 = vpop.f32.mrf.mxu0
      %1778 = vmatprep.mubr.f32.mxu0 0.0
      %1779 = vmatmul.mubr.f32.gmra.mxu0 %v1644
      %v1780 = vpop.f32.mrf.mxu0
      %v1781 = vadd.f32 0.0, %v1780
      %v1782 = vpop.f32.mrf.mxu0
      %1783 = vmatprep.mubr.f32.mxu0 0.0
      %1784 = vmatmul.mubr.f32.gmra.mxu0 %v1647
      %v1785 = vpop.f32.mrf.mxu0
      %v1786 = vadd.f32 0.0, %v1785
      %v1787 = vpop.f32.mrf.mxu0
      %1788 = vmatprep.mubr.f32.mxu0 0.0
      %1789 = vmatmul.mubr.f32.gmra.mxu0 %v1650
      %v1790 = vpop.f32.mrf.mxu0
      %v1791 = vadd.f32 0.0, %v1790
      %v1792 = vpop.f32.mrf.mxu0
      %1793 = vmatprep.mubr.f32.mxu0 0.0
      %1794 = vmatmul.mubr.f32.gmra.mxu0 %v1653
      %v1795 = vpop.f32.mrf.mxu0
      %v1796 = vadd.f32 0.0, %v1795
      %v1797 = vpop.f32.mrf.mxu0
      %1798 = vmatprep.mubr.f32.mxu0 0.0
      %1799 = vmatmul.mubr.f32.gmra.mxu0 %v1656
      %v1800 = vpop.f32.mrf.mxu0
      %v1801 = vadd.f32 0.0, %v1800
      %v1802 = vpop.f32.mrf.mxu0
      %1803 = vmatprep.mubr.f32.mxu0 0.0
      %1804 = vmatmul.mubr.f32.gmra.mxu0 %v1659
      %v1805 = vpop.f32.mrf.mxu0
      %v1806 = vadd.f32 0.0, %v1805
      %v1807 = vpop.f32.mrf.mxu0
      %1808 = vmatprep.mubr.f32.mxu0 0.0
      %1809 = vmatmul.mubr.f32.gmra.mxu0 %v1662
      %v1810 = vpop.f32.mrf.mxu0
      %v1811 = vadd.f32 0.0, %v1810
      %v1812 = vpop.f32.mrf.mxu0
      %1813 = vmatprep.mubr.f32.mxu0 0.0
      %1814 = vmatmul.mubr.f32.gmra.mxu0 %v1665
      %v1815 = vpop.f32.mrf.mxu0
      %v1816 = vadd.f32 0.0, %v1815
      %v1817 = vpop.f32.mrf.mxu0
      %1818 = vmatprep.mubr.f32.mxu0 0.0
      %1819 = vmatmul.mubr.f32.gmra.mxu0 %v1668
      %v1820 = vpop.f32.mrf.mxu0
      %v1821 = vadd.f32 0.0, %v1820
      %v1822 = vpop.f32.mrf.mxu0
      %1823 = vmatprep.mubr.f32.mxu0 0.0
      %1824 = vmatmul.mubr.f32.gmra.mxu0 %v1671
      %v1825 = vpop.f32.mrf.mxu0
      %v1826 = vadd.f32 0.0, %v1825
      %v1827 = vpop.f32.mrf.mxu0
      %1828 = vmatprep.mubr.f32.mxu0 0.0
      %1829 = vmatmul.mubr.f32.gmra.mxu0 %v1674
      %v1830 = vpop.f32.mrf.mxu0
      %v1831 = vadd.f32 0.0, %v1830
      %v1832 = vpop.f32.mrf.mxu0
      %1833 = vmatprep.mubr.f32.mxu0 0.0
      %1834 = vmatmul.mubr.f32.gmra.mxu0 %v1677
      %v1835 = vpop.f32.mrf.mxu0
      %v1836 = vadd.f32 0.0, %v1835
      %v1837 = vpop.f32.mrf.mxu0
      %1838 = vmatprep.mubr.f32.mxu0 0.0
      %1839 = vmatmul.mubr.f32.gmra.mxu0 %v1680
      %v1840 = vpop.f32.mrf.mxu0
      %v1841 = vadd.f32 0.0, %v1840
      %v1842 = vpop.f32.mrf.mxu0
      %1843 = vmatprep.mubr.f32.mxu0 0.0
      %1844 = vmatmul.mubr.f32.gmra.mxu0 %v1683
      %v1845 = vpop.f32.mrf.mxu0
      %v1846 = vadd.f32 0.0, %v1845
      %v1847 = vpop.f32.mrf.mxu0
      %1848 = vmatprep.mubr.f32.mxu0 0.0
      %1849 = vmatmul.mubr.f32.gmra.mxu0 %v1686
      %v1850 = vpop.f32.mrf.mxu0
      %v1851 = vadd.f32 0.0, %v1850
      %v1852 = vpop.f32.mrf.mxu0
      %1853 = vmatprep.mubr.f32.mxu0 0.0
      %1854 = vmatmul.mubr.f32.gmra.mxu0 %v1689
      %v1855 = vpop.f32.mrf.mxu0
      %v1856 = vadd.f32 0.0, %v1855
      %v1857 = vpop.f32.mrf.mxu0
      %1858 = vdwg.mxu0
      %v1859 = vadd.f32 %v1609, %v1761
      %v1860 = vadd.f32 %v1610, %v1766
      %v1861 = vadd.f32 %v1611, %v1771
      %v1862 = vadd.f32 %v1612, %v1776
      %v1863 = vadd.f32 %v1613, %v1781
      %v1864 = vadd.f32 %v1614, %v1786
      %v1865 = vadd.f32 %v1615, %v1791
      %v1866 = vadd.f32 %v1616, %v1796
      %v1867 = vadd.f32 %v1617, %v1801
      %v1868 = vadd.f32 %v1618, %v1806
      %v1869 = vadd.f32 %v1619, %v1811
      %v1870 = vadd.f32 %v1620, %v1816
      %v1871 = vadd.f32 %v1621, %v1821
      %v1872 = vadd.f32 %v1622, %v1826
      %v1873 = vadd.f32 %v1623, %v1831
      %v1874 = vadd.f32 %v1624, %v1836
      %v1875 = vadd.f32 %v1625, %v1841
      %v1876 = vadd.f32 %v1626, %v1846
      %v1877 = vadd.f32 %v1627, %v1851
      %v1878 = vadd.f32 %v1628, %v1856
      %1879 = vst.msk [vmem:[#allocation4] sm:$0xff] %vm327, %v1859
      %1880 = vst.msk [vmem:[#allocation4 + $0x8] sm:$0xff] %vm327, %v1860
      %1881 = vst.msk [vmem:[#allocation4 + $0x10] sm:$0xff] %vm327, %v1861
      %1882 = vst.msk [vmem:[#allocation4 + $0x18] sm:$0xff] %vm327, %v1862
      %1883 = vst.msk [vmem:[#allocation4 + $0x20] sm:$0xff] %vm327, %v1863
      %1884 = vst.msk [vmem:[#allocation4 + $0x28] sm:$0xff] %vm327, %v1864
      %1885 = vst.msk [vmem:[#allocation4 + $0x30] sm:$0xff] %vm327, %v1865
      %1886 = vst.msk [vmem:[#allocation4 + $0x38] sm:$0xff] %vm327, %v1866
      %1887 = vst.msk [vmem:[#allocation4 + $0x40] sm:$0xff] %vm327, %v1867
      %1888 = vst.msk [vmem:[#allocation4 + $0x48] sm:$0xff] %vm327, %v1868
      %1889 = vst.msk [vmem:[#allocation4 + $0x50] sm:$0xff] %vm327, %v1869
      %1890 = vst.msk [vmem:[#allocation4 + $0x58] sm:$0xff] %vm327, %v1870
      %1891 = vst.msk [vmem:[#allocation4 + $0x60] sm:$0xff] %vm327, %v1871
      %1892 = vst.msk [vmem:[#allocation4 + $0x68] sm:$0xff] %vm327, %v1872
      %1893 = vst.msk [vmem:[#allocation4 + $0x70] sm:$0xff] %vm327, %v1873
      %1894 = vst.msk [vmem:[#allocation4 + $0x78] sm:$0xff] %vm327, %v1874
      %1895 = vst.msk [vmem:[#allocation4 + $0x80] sm:$0xff] %vm327, %v1875
      %1896 = vst.msk [vmem:[#allocation4 + $0x88] sm:$0xff] %vm327, %v1876
      %1897 = vst.msk [vmem:[#allocation4 + $0x90] sm:$0xff] %vm327, %v1877
      %1898 = vst.msk [vmem:[#allocation4 + $0x98] sm:$0xff] %vm327, %v1878
      %v1899 = vld [vmem:[%s1278 + $0x2] sm:$0xff]
      %v1900 = vld [vmem:[%s1278 + $0xa] sm:$0xff]
      %v1901 = vld [vmem:[%s1278 + $0x1a] sm:$0xff]
      %v1902 = vld [vmem:[%s1278 + $0x22] sm:$0xff]
      %v1903 = vld [vmem:[%s1278 + $0x32] sm:$0xff]
      %v1904 = vld [vmem:[%s1278 + $0x3a] sm:$0xff]
      %v1905 = vld [vmem:[%s1278 + $0x4a] sm:$0xff]
      %v1906 = vld [vmem:[%s1278 + $0x52] sm:$0xff]
      %v1907 = vld [vmem:[%s1278 + $0x62] sm:$0xff]
      %v1908 = vld [vmem:[%s1278 + $0x6a] sm:$0xff]
      %v1909 = vld [vmem:[%s1278 + $0x7a] sm:$0xff]
      %v1910 = vld [vmem:[%s1278 + $0x82] sm:$0xff]
      %v1911 = vld [vmem:[%s1278 + $0x92] sm:$0xff]
      %v1912 = vld [vmem:[%s1278 + $0x9a] sm:$0xff]
      %v1913 = vld [vmem:[%s1278 + $0xaa] sm:$0xff]
      %v1914 = vld [vmem:[%s1278 + $0xb2] sm:$0xff]
      %v1915 = vld [vmem:[%s1278 + $0xc2] sm:$0xff]
      %v1916 = vld [vmem:[%s1278 + $0xca] sm:$0xff]
      %v1917 = vld [vmem:[%s1278 + $0xda] sm:$0xff]
      %v1918 = vld [vmem:[%s1278 + $0xe2] sm:$0xff]
      %v1919 = vld [vmem:[#allocation4] sm:$0xff]
      %v1920 = vld [vmem:[#allocation4 + $0x8] sm:$0xff]
      %v1921 = vld [vmem:[#allocation4 + $0x10] sm:$0xff]
      %v1922 = vld [vmem:[#allocation4 + $0x18] sm:$0xff]
      %v1923 = vld [vmem:[#allocation4 + $0x20] sm:$0xff]
      %v1924 = vld [vmem:[#allocation4 + $0x28] sm:$0xff]
      %v1925 = vld [vmem:[#allocation4 + $0x30] sm:$0xff]
      %v1926 = vld [vmem:[#allocation4 + $0x38] sm:$0xff]
      %v1927 = vld [vmem:[#allocation4 + $0x40] sm:$0xff]
      %v1928 = vld [vmem:[#allocation4 + $0x48] sm:$0xff]
      %v1929 = vld [vmem:[#allocation4 + $0x50] sm:$0xff]
      %v1930 = vld [vmem:[#allocation4 + $0x58] sm:$0xff]
      %v1931 = vld [vmem:[#allocation4 + $0x60] sm:$0xff]
      %v1932 = vld [vmem:[#allocation4 + $0x68] sm:$0xff]
      %v1933 = vld [vmem:[#allocation4 + $0x70] sm:$0xff]
      %v1934 = vld [vmem:[#allocation4 + $0x78] sm:$0xff]
      %v1935 = vld [vmem:[#allocation4 + $0x80] sm:$0xff]
      %v1936 = vld [vmem:[#allocation4 + $0x88] sm:$0xff]
      %v1937 = vld [vmem:[#allocation4 + $0x90] sm:$0xff]
      %v1938 = vld [vmem:[#allocation4 + $0x98] sm:$0xff]
      %s1939 = scalar_lea.vmem %s1, 20
      %v1940 = vld [vmem:[%s1939] sm:$0xf]
      %v1942 = vsel %vm302, %v1899, 0
      %v1945 = vsel %vm302, %v1900, 0
      %v1948 = vsel %vm302, %v1901, 0
      %v1951 = vsel %vm302, %v1902, 0
      %v1954 = vsel %vm302, %v1903, 0
      %v1957 = vsel %vm302, %v1904, 0
      %v1960 = vsel %vm302, %v1905, 0
      %v1963 = vsel %vm302, %v1906, 0
      %v1966 = vsel %vm302, %v1907, 0
      %v1969 = vsel %vm302, %v1908, 0
      %v1972 = vsel %vm302, %v1909, 0
      %v1975 = vsel %vm302, %v1910, 0
      %v1978 = vsel %vm302, %v1911, 0
      %v1981 = vsel %vm302, %v1912, 0
      %v1984 = vsel %vm302, %v1913, 0
      %v1987 = vsel %vm302, %v1914, 0
      %v1990 = vsel %vm302, %v1915, 0
      %v1993 = vsel %vm302, %v1916, 0
      %v1996 = vsel %vm302, %v1917, 0
      %v1999 = vsel %vm302, %v1918, 0
      %v2002 = vsel %vm449, %v1940, 0
      %2004 = vmatprep.subr.mxu0 0.0
      %2005 = vmatpush1.msra.mxu0 0.0
      %2006 = vmatprep.subr.mxu0 0.0
      %2007 = vmatpush1.msra.mxu0 0.0
      %2008 = vmatprep.subr.mxu0 0.0
      %2009 = vmatpush1.msra.mxu0 0.0
      %2010 = vmatprep.subr.mxu0 0.0
      %2011 = vmatpush1.msra.mxu0 0.0
      %2012 = vmatprep.subr.mxu0 0.0
      %2013 = vmatpush1.msra.mxu0 0.0
      %2014 = vmatprep.subr.mxu0 0.0
      %2015 = vmatpush1.msra.mxu0 0.0
      %2016 = vmatprep.subr.mxu0 0.0
      %2017 = vmatpush1.msra.mxu0 0.0
      %2018 = vmatprep.subr.mxu0 0.0
      %2019 = vmatpush1.msra.mxu0 0.0
      %2020 = vmatprep.subr.mxu0 0.0
      %2021 = vmatpush1.msra.mxu0 0.0
      %2022 = vmatprep.subr.mxu0 0.0
      %2023 = vmatpush1.msra.mxu0 0.0
      %2024 = vmatprep.subr.mxu0 0.0
      %2025 = vmatpush1.msra.mxu0 0.0
      %2026 = vmatprep.subr.mxu0 0.0
      %2027 = vmatpush1.msra.mxu0 0.0
      %2028 = vmatprep.subr.mxu0 0.0
      %2029 = vmatpush1.msra.mxu0 0.0
      %2030 = vmatprep.subr.mxu0 0.0
      %2031 = vmatpush1.msra.mxu0 0.0
      %2032 = vmatprep.subr.mxu0 0.0
      %2033 = vmatpush1.msra.mxu0 0.0
      %2034 = vmatprep.subr.mxu0 0.0
      %2035 = vmatpush1.msra.mxu0 %v2002
      %2036 = vmatprep.subr.mxu0 0.0
      %2037 = vmatpush2.msra.mxu0 0.0
      %2038 = vmatprep.subr.mxu0 0.0
      %2039 = vmatpush2.msra.mxu0 0.0
      %2040 = vmatprep.subr.mxu0 0.0
      %2041 = vmatpush2.msra.mxu0 0.0
      %2042 = vmatprep.subr.mxu0 0.0
      %2043 = vmatpush2.msra.mxu0 0.0
      %2044 = vmatprep.subr.mxu0 0.0
      %2045 = vmatpush2.msra.mxu0 0.0
      %2046 = vmatprep.subr.mxu0 0.0
      %2047 = vmatpush2.msra.mxu0 0.0
      %2048 = vmatprep.subr.mxu0 0.0
      %2049 = vmatpush2.msra.mxu0 0.0
      %2050 = vmatprep.subr.mxu0 0.0
      %2051 = vmatpush2.msra.mxu0 0.0
      %2052 = vmatprep.subr.mxu0 0.0
      %2053 = vmatpush2.msra.mxu0 0.0
      %2054 = vmatprep.subr.mxu0 0.0
      %2055 = vmatpush2.msra.mxu0 0.0
      %2056 = vmatprep.subr.mxu0 0.0
      %2057 = vmatpush2.msra.mxu0 0.0
      %2058 = vmatprep.subr.mxu0 0.0
      %2059 = vmatpush2.msra.mxu0 0.0
      %2060 = vmatprep.subr.mxu0 0.0
      %2061 = vmatpush2.msra.mxu0 0.0
      %2062 = vmatprep.subr.mxu0 0.0
      %2063 = vmatpush2.msra.mxu0 0.0
      %2064 = vmatprep.subr.mxu0 0.0
      %2065 = vmatpush2.msra.mxu0 0.0
      %2066 = vmatprep.subr.mxu0 0.0
      %2067 = vmatpush2.msra.mxu0 0.0
      %2068 = vmatprep.mubr.f32.mxu0 0.0
      %2069 = vmatmul.mubr.f32.gmra.mxu0 %v1942
      %v2070 = vpop.f32.mrf.mxu0
      %v2071 = vadd.f32 0.0, %v2070
      %v2072 = vpop.f32.mrf.mxu0
      %2073 = vmatprep.mubr.f32.mxu0 0.0
      %2074 = vmatmul.mubr.f32.gmra.mxu0 %v1945
      %v2075 = vpop.f32.mrf.mxu0
      %v2076 = vadd.f32 0.0, %v2075
      %v2077 = vpop.f32.mrf.mxu0
      %2078 = vmatprep.mubr.f32.mxu0 0.0
      %2079 = vmatmul.mubr.f32.gmra.mxu0 %v1948
      %v2080 = vpop.f32.mrf.mxu0
      %v2081 = vadd.f32 0.0, %v2080
      %v2082 = vpop.f32.mrf.mxu0
      %2083 = vmatprep.mubr.f32.mxu0 0.0
      %2084 = vmatmul.mubr.f32.gmra.mxu0 %v1951
      %v2085 = vpop.f32.mrf.mxu0
      %v2086 = vadd.f32 0.0, %v2085
      %v2087 = vpop.f32.mrf.mxu0
      %2088 = vmatprep.mubr.f32.mxu0 0.0
      %2089 = vmatmul.mubr.f32.gmra.mxu0 %v1954
      %v2090 = vpop.f32.mrf.mxu0
      %v2091 = vadd.f32 0.0, %v2090
      %v2092 = vpop.f32.mrf.mxu0
      %2093 = vmatprep.mubr.f32.mxu0 0.0
      %2094 = vmatmul.mubr.f32.gmra.mxu0 %v1957
      %v2095 = vpop.f32.mrf.mxu0
      %v2096 = vadd.f32 0.0, %v2095
      %v2097 = vpop.f32.mrf.mxu0
      %2098 = vmatprep.mubr.f32.mxu0 0.0
      %2099 = vmatmul.mubr.f32.gmra.mxu0 %v1960
      %v2100 = vpop.f32.mrf.mxu0
      %v2101 = vadd.f32 0.0, %v2100
      %v2102 = vpop.f32.mrf.mxu0
      %2103 = vmatprep.mubr.f32.mxu0 0.0
      %2104 = vmatmul.mubr.f32.gmra.mxu0 %v1963
      %v2105 = vpop.f32.mrf.mxu0
      %v2106 = vadd.f32 0.0, %v2105
      %v2107 = vpop.f32.mrf.mxu0
      %2108 = vmatprep.mubr.f32.mxu0 0.0
      %2109 = vmatmul.mubr.f32.gmra.mxu0 %v1966
      %v2110 = vpop.f32.mrf.mxu0
      %v2111 = vadd.f32 0.0, %v2110
      %v2112 = vpop.f32.mrf.mxu0
      %2113 = vmatprep.mubr.f32.mxu0 0.0
      %2114 = vmatmul.mubr.f32.gmra.mxu0 %v1969
      %v2115 = vpop.f32.mrf.mxu0
      %v2116 = vadd.f32 0.0, %v2115
      %v2117 = vpop.f32.mrf.mxu0
      %2118 = vmatprep.mubr.f32.mxu0 0.0
      %2119 = vmatmul.mubr.f32.gmra.mxu0 %v1972
      %v2120 = vpop.f32.mrf.mxu0
      %v2121 = vadd.f32 0.0, %v2120
      %v2122 = vpop.f32.mrf.mxu0
      %2123 = vmatprep.mubr.f32.mxu0 0.0
      %2124 = vmatmul.mubr.f32.gmra.mxu0 %v1975
      %v2125 = vpop.f32.mrf.mxu0
      %v2126 = vadd.f32 0.0, %v2125
      %v2127 = vpop.f32.mrf.mxu0
      %2128 = vmatprep.mubr.f32.mxu0 0.0
      %2129 = vmatmul.mubr.f32.gmra.mxu0 %v1978
      %v2130 = vpop.f32.mrf.mxu0
      %v2131 = vadd.f32 0.0, %v2130
      %v2132 = vpop.f32.mrf.mxu0
      %2133 = vmatprep.mubr.f32.mxu0 0.0
      %2134 = vmatmul.mubr.f32.gmra.mxu0 %v1981
      %v2135 = vpop.f32.mrf.mxu0
      %v2136 = vadd.f32 0.0, %v2135
      %v2137 = vpop.f32.mrf.mxu0
      %2138 = vmatprep.mubr.f32.mxu0 0.0
      %2139 = vmatmul.mubr.f32.gmra.mxu0 %v1984
      %v2140 = vpop.f32.mrf.mxu0
      %v2141 = vadd.f32 0.0, %v2140
      %v2142 = vpop.f32.mrf.mxu0
      %2143 = vmatprep.mubr.f32.mxu0 0.0
      %2144 = vmatmul.mubr.f32.gmra.mxu0 %v1987
      %v2145 = vpop.f32.mrf.mxu0
      %v2146 = vadd.f32 0.0, %v2145
      %v2147 = vpop.f32.mrf.mxu0
      %2148 = vmatprep.mubr.f32.mxu0 0.0
      %2149 = vmatmul.mubr.f32.gmra.mxu0 %v1990
      %v2150 = vpop.f32.mrf.mxu0
      %v2151 = vadd.f32 0.0, %v2150
      %v2152 = vpop.f32.mrf.mxu0
      %2153 = vmatprep.mubr.f32.mxu0 0.0
      %2154 = vmatmul.mubr.f32.gmra.mxu0 %v1993
      %v2155 = vpop.f32.mrf.mxu0
      %v2156 = vadd.f32 0.0, %v2155
      %v2157 = vpop.f32.mrf.mxu0
      %2158 = vmatprep.mubr.f32.mxu0 0.0
      %2159 = vmatmul.mubr.f32.gmra.mxu0 %v1996
      %v2160 = vpop.f32.mrf.mxu0
      %v2161 = vadd.f32 0.0, %v2160
      %v2162 = vpop.f32.mrf.mxu0
      %2163 = vmatprep.mubr.f32.mxu0 0.0
      %2164 = vmatmul.mubr.f32.gmra.mxu0 %v1999
      %v2165 = vpop.f32.mrf.mxu0
      %v2166 = vadd.f32 0.0, %v2165
      %v2167 = vpop.f32.mrf.mxu0
      %2168 = vdwg.mxu0
      %v2169 = vadd.f32 %v1919, %v2071
      %v2170 = vadd.f32 %v1920, %v2076
      %v2171 = vadd.f32 %v1921, %v2081
      %v2172 = vadd.f32 %v1922, %v2086
      %v2173 = vadd.f32 %v1923, %v2091
      %v2174 = vadd.f32 %v1924, %v2096
      %v2175 = vadd.f32 %v1925, %v2101
      %v2176 = vadd.f32 %v1926, %v2106
      %v2177 = vadd.f32 %v1927, %v2111
      %v2178 = vadd.f32 %v1928, %v2116
      %v2179 = vadd.f32 %v1929, %v2121
      %v2180 = vadd.f32 %v1930, %v2126
      %v2181 = vadd.f32 %v1931, %v2131
      %v2182 = vadd.f32 %v1932, %v2136
      %v2183 = vadd.f32 %v1933, %v2141
      %v2184 = vadd.f32 %v1934, %v2146
      %v2185 = vadd.f32 %v1935, %v2151
      %v2186 = vadd.f32 %v1936, %v2156
      %v2187 = vadd.f32 %v1937, %v2161
      %v2188 = vadd.f32 %v1938, %v2166
      %2189 = vst.msk [vmem:[#allocation4] sm:$0xff] %vm327, %v2169
      %2190 = vst.msk [vmem:[#allocation4 + $0x8] sm:$0xff] %vm327, %v2170
      %2191 = vst.msk [vmem:[#allocation4 + $0x10] sm:$0xff] %vm327, %v2171
      %2192 = vst.msk [vmem:[#allocation4 + $0x18] sm:$0xff] %vm327, %v2172
      %2193 = vst.msk [vmem:[#allocation4 + $0x20] sm:$0xff] %vm327, %v2173
      %2194 = vst.msk [vmem:[#allocation4 + $0x28] sm:$0xff] %vm327, %v2174
      %2195 = vst.msk [vmem:[#allocation4 + $0x30] sm:$0xff] %vm327, %v2175
      %2196 = vst.msk [vmem:[#allocation4 + $0x38] sm:$0xff] %vm327, %v2176
      %2197 = vst.msk [vmem:[#allocation4 + $0x40] sm:$0xff] %vm327, %v2177
      %2198 = vst.msk [vmem:[#allocation4 + $0x48] sm:$0xff] %vm327, %v2178
      %2199 = vst.msk [vmem:[#allocation4 + $0x50] sm:$0xff] %vm327, %v2179
      %2200 = vst.msk [vmem:[#allocation4 + $0x58] sm:$0xff] %vm327, %v2180
      %2201 = vst.msk [vmem:[#allocation4 + $0x60] sm:$0xff] %vm327, %v2181
      %2202 = vst.msk [vmem:[#allocation4 + $0x68] sm:$0xff] %vm327, %v2182
      %2203 = vst.msk [vmem:[#allocation4 + $0x70] sm:$0xff] %vm327, %v2183
      %2204 = vst.msk [vmem:[#allocation4 + $0x78] sm:$0xff] %vm327, %v2184
      %2205 = vst.msk [vmem:[#allocation4 + $0x80] sm:$0xff] %vm327, %v2185
      %2206 = vst.msk [vmem:[#allocation4 + $0x88] sm:$0xff] %vm327, %v2186
      %2207 = vst.msk [vmem:[#allocation4 + $0x90] sm:$0xff] %vm327, %v2187
      %2208 = vst.msk [vmem:[#allocation4 + $0x98] sm:$0xff] %vm327, %v2188
      %s2209 = scalar_lea.vmem [#allocation2], 48
      %v2210 = vld [vmem:[%s2209] sm:$0xff]
      %v2211 = vld [vmem:[%s2209 + $0x8] sm:$0xff]
      %v2212 = vld [vmem:[%s2209 + $0x18] sm:$0xff]
      %v2213 = vld [vmem:[%s2209 + $0x20] sm:$0xff]
      %v2214 = vld [vmem:[%s2209 + $0x30] sm:$0xff]
      %v2215 = vld [vmem:[%s2209 + $0x38] sm:$0xff]
      %v2216 = vld [vmem:[%s2209 + $0x48] sm:$0xff]
      %v2217 = vld [vmem:[%s2209 + $0x50] sm:$0xff]
      %v2218 = vld [vmem:[%s2209 + $0x60] sm:$0xff]
      %v2219 = vld [vmem:[%s2209 + $0x68] sm:$0xff]
      %v2220 = vld [vmem:[%s2209 + $0x78] sm:$0xff]
      %v2221 = vld [vmem:[%s2209 + $0x80] sm:$0xff]
      %v2222 = vld [vmem:[%s2209 + $0x90] sm:$0xff]
      %v2223 = vld [vmem:[%s2209 + $0x98] sm:$0xff]
      %v2224 = vld [vmem:[%s2209 + $0xa8] sm:$0xff]
      %v2225 = vld [vmem:[%s2209 + $0xb0] sm:$0xff]
      %v2226 = vld [vmem:[%s2209 + $0xc0] sm:$0xff]
      %v2227 = vld [vmem:[%s2209 + $0xc8] sm:$0xff]
      %v2228 = vld [vmem:[%s2209 + $0xd8] sm:$0xff]
      %v2229 = vld [vmem:[%s2209 + $0xe0] sm:$0xff]
      %v2230 = vld [vmem:[#allocation4] sm:$0xff]
      %v2231 = vld [vmem:[#allocation4 + $0x8] sm:$0xff]
      %v2232 = vld [vmem:[#allocation4 + $0x10] sm:$0xff]
      %v2233 = vld [vmem:[#allocation4 + $0x18] sm:$0xff]
      %v2234 = vld [vmem:[#allocation4 + $0x20] sm:$0xff]
      %v2235 = vld [vmem:[#allocation4 + $0x28] sm:$0xff]
      %v2236 = vld [vmem:[#allocation4 + $0x30] sm:$0xff]
      %v2237 = vld [vmem:[#allocation4 + $0x38] sm:$0xff]
      %v2238 = vld [vmem:[#allocation4 + $0x40] sm:$0xff]
      %v2239 = vld [vmem:[#allocation4 + $0x48] sm:$0xff]
      %v2240 = vld [vmem:[#allocation4 + $0x50] sm:$0xff]
      %v2241 = vld [vmem:[#allocation4 + $0x58] sm:$0xff]
      %v2242 = vld [vmem:[#allocation4 + $0x60] sm:$0xff]
      %v2243 = vld [vmem:[#allocation4 + $0x68] sm:$0xff]
      %v2244 = vld [vmem:[#allocation4 + $0x70] sm:$0xff]
      %v2245 = vld [vmem:[#allocation4 + $0x78] sm:$0xff]
      %v2246 = vld [vmem:[#allocation4 + $0x80] sm:$0xff]
      %v2247 = vld [vmem:[#allocation4 + $0x88] sm:$0xff]
      %v2248 = vld [vmem:[#allocation4 + $0x90] sm:$0xff]
      %v2249 = vld [vmem:[#allocation4 + $0x98] sm:$0xff]
      %s2250 = scalar_lea.vmem %s1, 24
      %v2251 = vld [vmem:[%s2250] sm:$0xf]
      %v2253 = vsel %vm302, %v2210, 0
      %v2256 = vsel %vm302, %v2211, 0
      %v2259 = vsel %vm302, %v2212, 0
      %v2262 = vsel %vm302, %v2213, 0
      %v2265 = vsel %vm302, %v2214, 0
      %v2268 = vsel %vm302, %v2215, 0
      %v2271 = vsel %vm302, %v2216, 0
      %v2274 = vsel %vm302, %v2217, 0
      %v2277 = vsel %vm302, %v2218, 0
      %v2280 = vsel %vm302, %v2219, 0
      %v2283 = vsel %vm302, %v2220, 0
      %v2286 = vsel %vm302, %v2221, 0
      %v2289 = vsel %vm302, %v2222, 0
      %v2292 = vsel %vm302, %v2223, 0
      %v2295 = vsel %vm302, %v2224, 0
      %v2298 = vsel %vm302, %v2225, 0
      %v2301 = vsel %vm302, %v2226, 0
      %v2304 = vsel %vm302, %v2227, 0
      %v2307 = vsel %vm302, %v2228, 0
      %v2310 = vsel %vm302, %v2229, 0
      %v2313 = vsel %vm449, %v2251, 0
      %2315 = vmatprep.subr.mxu0 0.0
      %2316 = vmatpush1.msra.mxu0 0.0
      %2317 = vmatprep.subr.mxu0 0.0
      %2318 = vmatpush1.msra.mxu0 0.0
      %2319 = vmatprep.subr.mxu0 0.0
      %2320 = vmatpush1.msra.mxu0 0.0
      %2321 = vmatprep.subr.mxu0 0.0
      %2322 = vmatpush1.msra.mxu0 0.0
      %2323 = vmatprep.subr.mxu0 0.0
      %2324 = vmatpush1.msra.mxu0 0.0
      %2325 = vmatprep.subr.mxu0 0.0
      %2326 = vmatpush1.msra.mxu0 0.0
      %2327 = vmatprep.subr.mxu0 0.0
      %2328 = vmatpush1.msra.mxu0 0.0
      %2329 = vmatprep.subr.mxu0 0.0
      %2330 = vmatpush1.msra.mxu0 0.0
      %2331 = vmatprep.subr.mxu0 0.0
      %2332 = vmatpush1.msra.mxu0 0.0
      %2333 = vmatprep.subr.mxu0 0.0
      %2334 = vmatpush1.msra.mxu0 0.0
      %2335 = vmatprep.subr.mxu0 0.0
      %2336 = vmatpush1.msra.mxu0 0.0
      %2337 = vmatprep.subr.mxu0 0.0
      %2338 = vmatpush1.msra.mxu0 0.0
      %2339 = vmatprep.subr.mxu0 0.0
      %2340 = vmatpush1.msra.mxu0 0.0
      %2341 = vmatprep.subr.mxu0 0.0
      %2342 = vmatpush1.msra.mxu0 0.0
      %2343 = vmatprep.subr.mxu0 0.0
      %2344 = vmatpush1.msra.mxu0 0.0
      %2345 = vmatprep.subr.mxu0 0.0
      %2346 = vmatpush1.msra.mxu0 %v2313
      %2347 = vmatprep.subr.mxu0 0.0
      %2348 = vmatpush2.msra.mxu0 0.0
      %2349 = vmatprep.subr.mxu0 0.0
      %2350 = vmatpush2.msra.mxu0 0.0
      %2351 = vmatprep.subr.mxu0 0.0
      %2352 = vmatpush2.msra.mxu0 0.0
      %2353 = vmatprep.subr.mxu0 0.0
      %2354 = vmatpush2.msra.mxu0 0.0
      %2355 = vmatprep.subr.mxu0 0.0
      %2356 = vmatpush2.msra.mxu0 0.0
      %2357 = vmatprep.subr.mxu0 0.0
      %2358 = vmatpush2.msra.mxu0 0.0
      %2359 = vmatprep.subr.mxu0 0.0
      %2360 = vmatpush2.msra.mxu0 0.0
      %2361 = vmatprep.subr.mxu0 0.0
      %2362 = vmatpush2.msra.mxu0 0.0
      %2363 = vmatprep.subr.mxu0 0.0
      %2364 = vmatpush2.msra.mxu0 0.0
      %2365 = vmatprep.subr.mxu0 0.0
      %2366 = vmatpush2.msra.mxu0 0.0
      %2367 = vmatprep.subr.mxu0 0.0
      %2368 = vmatpush2.msra.mxu0 0.0
      %2369 = vmatprep.subr.mxu0 0.0
      %2370 = vmatpush2.msra.mxu0 0.0
      %2371 = vmatprep.subr.mxu0 0.0
      %2372 = vmatpush2.msra.mxu0 0.0
      %2373 = vmatprep.subr.mxu0 0.0
      %2374 = vmatpush2.msra.mxu0 0.0
      %2375 = vmatprep.subr.mxu0 0.0
      %2376 = vmatpush2.msra.mxu0 0.0
      %2377 = vmatprep.subr.mxu0 0.0
      %2378 = vmatpush2.msra.mxu0 0.0
      %2379 = vmatprep.mubr.f32.mxu0 0.0
      %2380 = vmatmul.mubr.f32.gmra.mxu0 %v2253
      %v2381 = vpop.f32.mrf.mxu0
      %v2382 = vadd.f32 0.0, %v2381
      %v2383 = vpop.f32.mrf.mxu0
      %2384 = vmatprep.mubr.f32.mxu0 0.0
      %2385 = vmatmul.mubr.f32.gmra.mxu0 %v2256
      %v2386 = vpop.f32.mrf.mxu0
      %v2387 = vadd.f32 0.0, %v2386
      %v2388 = vpop.f32.mrf.mxu0
      %2389 = vmatprep.mubr.f32.mxu0 0.0
      %2390 = vmatmul.mubr.f32.gmra.mxu0 %v2259
      %v2391 = vpop.f32.mrf.mxu0
      %v2392 = vadd.f32 0.0, %v2391
      %v2393 = vpop.f32.mrf.mxu0
      %2394 = vmatprep.mubr.f32.mxu0 0.0
      %2395 = vmatmul.mubr.f32.gmra.mxu0 %v2262
      %v2396 = vpop.f32.mrf.mxu0
      %v2397 = vadd.f32 0.0, %v2396
      %v2398 = vpop.f32.mrf.mxu0
      %2399 = vmatprep.mubr.f32.mxu0 0.0
      %2400 = vmatmul.mubr.f32.gmra.mxu0 %v2265
      %v2401 = vpop.f32.mrf.mxu0
      %v2402 = vadd.f32 0.0, %v2401
      %v2403 = vpop.f32.mrf.mxu0
      %2404 = vmatprep.mubr.f32.mxu0 0.0
      %2405 = vmatmul.mubr.f32.gmra.mxu0 %v2268
      %v2406 = vpop.f32.mrf.mxu0
      %v2407 = vadd.f32 0.0, %v2406
      %v2408 = vpop.f32.mrf.mxu0
      %2409 = vmatprep.mubr.f32.mxu0 0.0
      %2410 = vmatmul.mubr.f32.gmra.mxu0 %v2271
      %v2411 = vpop.f32.mrf.mxu0
      %v2412 = vadd.f32 0.0, %v2411
      %v2413 = vpop.f32.mrf.mxu0
      %2414 = vmatprep.mubr.f32.mxu0 0.0
      %2415 = vmatmul.mubr.f32.gmra.mxu0 %v2274
      %v2416 = vpop.f32.mrf.mxu0
      %v2417 = vadd.f32 0.0, %v2416
      %v2418 = vpop.f32.mrf.mxu0
      %2419 = vmatprep.mubr.f32.mxu0 0.0
      %2420 = vmatmul.mubr.f32.gmra.mxu0 %v2277
      %v2421 = vpop.f32.mrf.mxu0
      %v2422 = vadd.f32 0.0, %v2421
      %v2423 = vpop.f32.mrf.mxu0
      %2424 = vmatprep.mubr.f32.mxu0 0.0
      %2425 = vmatmul.mubr.f32.gmra.mxu0 %v2280
      %v2426 = vpop.f32.mrf.mxu0
      %v2427 = vadd.f32 0.0, %v2426
      %v2428 = vpop.f32.mrf.mxu0
      %2429 = vmatprep.mubr.f32.mxu0 0.0
      %2430 = vmatmul.mubr.f32.gmra.mxu0 %v2283
      %v2431 = vpop.f32.mrf.mxu0
      %v2432 = vadd.f32 0.0, %v2431
      %v2433 = vpop.f32.mrf.mxu0
      %2434 = vmatprep.mubr.f32.mxu0 0.0
      %2435 = vmatmul.mubr.f32.gmra.mxu0 %v2286
      %v2436 = vpop.f32.mrf.mxu0
      %v2437 = vadd.f32 0.0, %v2436
      %v2438 = vpop.f32.mrf.mxu0
      %2439 = vmatprep.mubr.f32.mxu0 0.0
      %2440 = vmatmul.mubr.f32.gmra.mxu0 %v2289
      %v2441 = vpop.f32.mrf.mxu0
      %v2442 = vadd.f32 0.0, %v2441
      %v2443 = vpop.f32.mrf.mxu0
      %2444 = vmatprep.mubr.f32.mxu0 0.0
      %2445 = vmatmul.mubr.f32.gmra.mxu0 %v2292
      %v2446 = vpop.f32.mrf.mxu0
      %v2447 = vadd.f32 0.0, %v2446
      %v2448 = vpop.f32.mrf.mxu0
      %2449 = vmatprep.mubr.f32.mxu0 0.0
      %2450 = vmatmul.mubr.f32.gmra.mxu0 %v2295
      %v2451 = vpop.f32.mrf.mxu0
      %v2452 = vadd.f32 0.0, %v2451
      %v2453 = vpop.f32.mrf.mxu0
      %2454 = vmatprep.mubr.f32.mxu0 0.0
      %2455 = vmatmul.mubr.f32.gmra.mxu0 %v2298
      %v2456 = vpop.f32.mrf.mxu0
      %v2457 = vadd.f32 0.0, %v2456
      %v2458 = vpop.f32.mrf.mxu0
      %2459 = vmatprep.mubr.f32.mxu0 0.0
      %2460 = vmatmul.mubr.f32.gmra.mxu0 %v2301
      %v2461 = vpop.f32.mrf.mxu0
      %v2462 = vadd.f32 0.0, %v2461
      %v2463 = vpop.f32.mrf.mxu0
      %2464 = vmatprep.mubr.f32.mxu0 0.0
      %2465 = vmatmul.mubr.f32.gmra.mxu0 %v2304
      %v2466 = vpop.f32.mrf.mxu0
      %v2467 = vadd.f32 0.0, %v2466
      %v2468 = vpop.f32.mrf.mxu0
      %2469 = vmatprep.mubr.f32.mxu0 0.0
      %2470 = vmatmul.mubr.f32.gmra.mxu0 %v2307
      %v2471 = vpop.f32.mrf.mxu0
      %v2472 = vadd.f32 0.0, %v2471
      %v2473 = vpop.f32.mrf.mxu0
      %2474 = vmatprep.mubr.f32.mxu0 0.0
      %2475 = vmatmul.mubr.f32.gmra.mxu0 %v2310
      %v2476 = vpop.f32.mrf.mxu0
      %v2477 = vadd.f32 0.0, %v2476
      %v2478 = vpop.f32.mrf.mxu0
      %2479 = vdwg.mxu0
      %v2480 = vadd.f32 %v2230, %v2382
      %v2481 = vadd.f32 %v2231, %v2387
      %v2482 = vadd.f32 %v2232, %v2392
      %v2483 = vadd.f32 %v2233, %v2397
      %v2484 = vadd.f32 %v2234, %v2402
      %v2485 = vadd.f32 %v2235, %v2407
      %v2486 = vadd.f32 %v2236, %v2412
      %v2487 = vadd.f32 %v2237, %v2417
      %v2488 = vadd.f32 %v2238, %v2422
      %v2489 = vadd.f32 %v2239, %v2427
      %v2490 = vadd.f32 %v2240, %v2432
      %v2491 = vadd.f32 %v2241, %v2437
      %v2492 = vadd.f32 %v2242, %v2442
      %v2493 = vadd.f32 %v2243, %v2447
      %v2494 = vadd.f32 %v2244, %v2452
      %v2495 = vadd.f32 %v2245, %v2457
      %v2496 = vadd.f32 %v2246, %v2462
      %v2497 = vadd.f32 %v2247, %v2467
      %v2498 = vadd.f32 %v2248, %v2472
      %v2499 = vadd.f32 %v2249, %v2477
      %2500 = vst.msk [vmem:[#allocation4] sm:$0xff] %vm327, %v2480
      %2501 = vst.msk [vmem:[#allocation4 + $0x8] sm:$0xff] %vm327, %v2481
      %2502 = vst.msk [vmem:[#allocation4 + $0x10] sm:$0xff] %vm327, %v2482
      %2503 = vst.msk [vmem:[#allocation4 + $0x18] sm:$0xff] %vm327, %v2483
      %2504 = vst.msk [vmem:[#allocation4 + $0x20] sm:$0xff] %vm327, %v2484
      %2505 = vst.msk [vmem:[#allocation4 + $0x28] sm:$0xff] %vm327, %v2485
      %2506 = vst.msk [vmem:[#allocation4 + $0x30] sm:$0xff] %vm327, %v2486
      %2507 = vst.msk [vmem:[#allocation4 + $0x38] sm:$0xff] %vm327, %v2487
      %2508 = vst.msk [vmem:[#allocation4 + $0x40] sm:$0xff] %vm327, %v2488
      %2509 = vst.msk [vmem:[#allocation4 + $0x48] sm:$0xff] %vm327, %v2489
      %2510 = vst.msk [vmem:[#allocation4 + $0x50] sm:$0xff] %vm327, %v2490
      %2511 = vst.msk [vmem:[#allocation4 + $0x58] sm:$0xff] %vm327, %v2491
      %2512 = vst.msk [vmem:[#allocation4 + $0x60] sm:$0xff] %vm327, %v2492
      %2513 = vst.msk [vmem:[#allocation4 + $0x68] sm:$0xff] %vm327, %v2493
      %2514 = vst.msk [vmem:[#allocation4 + $0x70] sm:$0xff] %vm327, %v2494
      %2515 = vst.msk [vmem:[#allocation4 + $0x78] sm:$0xff] %vm327, %v2495
      %2516 = vst.msk [vmem:[#allocation4 + $0x80] sm:$0xff] %vm327, %v2496
      %2517 = vst.msk [vmem:[#allocation4 + $0x88] sm:$0xff] %vm327, %v2497
      %2518 = vst.msk [vmem:[#allocation4 + $0x90] sm:$0xff] %vm327, %v2498
      %2519 = vst.msk [vmem:[#allocation4 + $0x98] sm:$0xff] %vm327, %v2499
      %v2520 = vld [vmem:[%s2209 + $0x1] sm:$0xff]
      %v2521 = vld [vmem:[%s2209 + $0x9] sm:$0xff]
      %v2522 = vld [vmem:[%s2209 + $0x19] sm:$0xff]
      %v2523 = vld [vmem:[%s2209 + $0x21] sm:$0xff]
      %v2524 = vld [vmem:[%s2209 + $0x31] sm:$0xff]
      %v2525 = vld [vmem:[%s2209 + $0x39] sm:$0xff]
      %v2526 = vld [vmem:[%s2209 + $0x49] sm:$0xff]
      %v2527 = vld [vmem:[%s2209 + $0x51] sm:$0xff]
      %v2528 = vld [vmem:[%s2209 + $0x61] sm:$0xff]
      %v2529 = vld [vmem:[%s2209 + $0x69] sm:$0xff]
      %v2530 = vld [vmem:[%s2209 + $0x79] sm:$0xff]
      %v2531 = vld [vmem:[%s2209 + $0x81] sm:$0xff]
      %v2532 = vld [vmem:[%s2209 + $0x91] sm:$0xff]
      %v2533 = vld [vmem:[%s2209 + $0x99] sm:$0xff]
      %v2534 = vld [vmem:[%s2209 + $0xa9] sm:$0xff]
      %v2535 = vld [vmem:[%s2209 + $0xb1] sm:$0xff]
      %v2536 = vld [vmem:[%s2209 + $0xc1] sm:$0xff]
      %v2537 = vld [vmem:[%s2209 + $0xc9] sm:$0xff]
      %v2538 = vld [vmem:[%s2209 + $0xd9] sm:$0xff]
      %v2539 = vld [vmem:[%s2209 + $0xe1] sm:$0xff]
      %v2540 = vld [vmem:[#allocation4] sm:$0xff]
      %v2541 = vld [vmem:[#allocation4 + $0x8] sm:$0xff]
      %v2542 = vld [vmem:[#allocation4 + $0x10] sm:$0xff]
      %v2543 = vld [vmem:[#allocation4 + $0x18] sm:$0xff]
      %v2544 = vld [vmem:[#allocation4 + $0x20] sm:$0xff]
      %v2545 = vld [vmem:[#allocation4 + $0x28] sm:$0xff]
      %v2546 = vld [vmem:[#allocation4 + $0x30] sm:$0xff]
      %v2547 = vld [vmem:[#allocation4 + $0x38] sm:$0xff]
      %v2548 = vld [vmem:[#allocation4 + $0x40] sm:$0xff]
      %v2549 = vld [vmem:[#allocation4 + $0x48] sm:$0xff]
      %v2550 = vld [vmem:[#allocation4 + $0x50] sm:$0xff]
      %v2551 = vld [vmem:[#allocation4 + $0x58] sm:$0xff]
      %v2552 = vld [vmem:[#allocation4 + $0x60] sm:$0xff]
      %v2553 = vld [vmem:[#allocation4 + $0x68] sm:$0xff]
      %v2554 = vld [vmem:[#allocation4 + $0x70] sm:$0xff]
      %v2555 = vld [vmem:[#allocation4 + $0x78] sm:$0xff]
      %v2556 = vld [vmem:[#allocation4 + $0x80] sm:$0xff]
      %v2557 = vld [vmem:[#allocation4 + $0x88] sm:$0xff]
      %v2558 = vld [vmem:[#allocation4 + $0x90] sm:$0xff]
      %v2559 = vld [vmem:[#allocation4 + $0x98] sm:$0xff]
      %s2560 = scalar_lea.vmem %s1, 28
      %v2561 = vld [vmem:[%s2560] sm:$0xf]
      %v2563 = vsel %vm302, %v2520, 0
      %v2566 = vsel %vm302, %v2521, 0
      %v2569 = vsel %vm302, %v2522, 0
      %v2572 = vsel %vm302, %v2523, 0
      %v2575 = vsel %vm302, %v2524, 0
      %v2578 = vsel %vm302, %v2525, 0
      %v2581 = vsel %vm302, %v2526, 0
      %v2584 = vsel %vm302, %v2527, 0
      %v2587 = vsel %vm302, %v2528, 0
      %v2590 = vsel %vm302, %v2529, 0
      %v2593 = vsel %vm302, %v2530, 0
      %v2596 = vsel %vm302, %v2531, 0
      %v2599 = vsel %vm302, %v2532, 0
      %v2602 = vsel %vm302, %v2533, 0
      %v2605 = vsel %vm302, %v2534, 0
      %v2608 = vsel %vm302, %v2535, 0
      %v2611 = vsel %vm302, %v2536, 0
      %v2614 = vsel %vm302, %v2537, 0
      %v2617 = vsel %vm302, %v2538, 0
      %v2620 = vsel %vm302, %v2539, 0
      %v2623 = vsel %vm449, %v2561, 0
      %2625 = vmatprep.subr.mxu0 0.0
      %2626 = vmatpush1.msra.mxu0 0.0
      %2627 = vmatprep.subr.mxu0 0.0
      %2628 = vmatpush1.msra.mxu0 0.0
      %2629 = vmatprep.subr.mxu0 0.0
      %2630 = vmatpush1.msra.mxu0 0.0
      %2631 = vmatprep.subr.mxu0 0.0
      %2632 = vmatpush1.msra.mxu0 0.0
      %2633 = vmatprep.subr.mxu0 0.0
      %2634 = vmatpush1.msra.mxu0 0.0
      %2635 = vmatprep.subr.mxu0 0.0
      %2636 = vmatpush1.msra.mxu0 0.0
      %2637 = vmatprep.subr.mxu0 0.0
      %2638 = vmatpush1.msra.mxu0 0.0
      %2639 = vmatprep.subr.mxu0 0.0
      %2640 = vmatpush1.msra.mxu0 0.0
      %2641 = vmatprep.subr.mxu0 0.0
      %2642 = vmatpush1.msra.mxu0 0.0
      %2643 = vmatprep.subr.mxu0 0.0
      %2644 = vmatpush1.msra.mxu0 0.0
      %2645 = vmatprep.subr.mxu0 0.0
      %2646 = vmatpush1.msra.mxu0 0.0
      %2647 = vmatprep.subr.mxu0 0.0
      %2648 = vmatpush1.msra.mxu0 0.0
      %2649 = vmatprep.subr.mxu0 0.0
      %2650 = vmatpush1.msra.mxu0 0.0
      %2651 = vmatprep.subr.mxu0 0.0
      %2652 = vmatpush1.msra.mxu0 0.0
      %2653 = vmatprep.subr.mxu0 0.0
      %2654 = vmatpush1.msra.mxu0 0.0
      %2655 = vmatprep.subr.mxu0 0.0
      %2656 = vmatpush1.msra.mxu0 %v2623
      %2657 = vmatprep.subr.mxu0 0.0
      %2658 = vmatpush2.msra.mxu0 0.0
      %2659 = vmatprep.subr.mxu0 0.0
      %2660 = vmatpush2.msra.mxu0 0.0
      %2661 = vmatprep.subr.mxu0 0.0
      %2662 = vmatpush2.msra.mxu0 0.0
      %2663 = vmatprep.subr.mxu0 0.0
      %2664 = vmatpush2.msra.mxu0 0.0
      %2665 = vmatprep.subr.mxu0 0.0
      %2666 = vmatpush2.msra.mxu0 0.0
      %2667 = vmatprep.subr.mxu0 0.0
      %2668 = vmatpush2.msra.mxu0 0.0
      %2669 = vmatprep.subr.mxu0 0.0
      %2670 = vmatpush2.msra.mxu0 0.0
      %2671 = vmatprep.subr.mxu0 0.0
      %2672 = vmatpush2.msra.mxu0 0.0
      %2673 = vmatprep.subr.mxu0 0.0
      %2674 = vmatpush2.msra.mxu0 0.0
      %2675 = vmatprep.subr.mxu0 0.0
      %2676 = vmatpush2.msra.mxu0 0.0
      %2677 = vmatprep.subr.mxu0 0.0
      %2678 = vmatpush2.msra.mxu0 0.0
      %2679 = vmatprep.subr.mxu0 0.0
      %2680 = vmatpush2.msra.mxu0 0.0
      %2681 = vmatprep.subr.mxu0 0.0
      %2682 = vmatpush2.msra.mxu0 0.0
      %2683 = vmatprep.subr.mxu0 0.0
      %2684 = vmatpush2.msra.mxu0 0.0
      %2685 = vmatprep.subr.mxu0 0.0
      %2686 = vmatpush2.msra.mxu0 0.0
      %2687 = vmatprep.subr.mxu0 0.0
      %2688 = vmatpush2.msra.mxu0 0.0
      %2689 = vmatprep.mubr.f32.mxu0 0.0
      %2690 = vmatmul.mubr.f32.gmra.mxu0 %v2563
      %v2691 = vpop.f32.mrf.mxu0
      %v2692 = vadd.f32 0.0, %v2691
      %v2693 = vpop.f32.mrf.mxu0
      %2694 = vmatprep.mubr.f32.mxu0 0.0
      %2695 = vmatmul.mubr.f32.gmra.mxu0 %v2566
      %v2696 = vpop.f32.mrf.mxu0
      %v2697 = vadd.f32 0.0, %v2696
      %v2698 = vpop.f32.mrf.mxu0
      %2699 = vmatprep.mubr.f32.mxu0 0.0
      %2700 = vmatmul.mubr.f32.gmra.mxu0 %v2569
      %v2701 = vpop.f32.mrf.mxu0
      %v2702 = vadd.f32 0.0, %v2701
      %v2703 = vpop.f32.mrf.mxu0
      %2704 = vmatprep.mubr.f32.mxu0 0.0
      %2705 = vmatmul.mubr.f32.gmra.mxu0 %v2572
      %v2706 = vpop.f32.mrf.mxu0
      %v2707 = vadd.f32 0.0, %v2706
      %v2708 = vpop.f32.mrf.mxu0
      %2709 = vmatprep.mubr.f32.mxu0 0.0
      %2710 = vmatmul.mubr.f32.gmra.mxu0 %v2575
      %v2711 = vpop.f32.mrf.mxu0
      %v2712 = vadd.f32 0.0, %v2711
      %v2713 = vpop.f32.mrf.mxu0
      %2714 = vmatprep.mubr.f32.mxu0 0.0
      %2715 = vmatmul.mubr.f32.gmra.mxu0 %v2578
      %v2716 = vpop.f32.mrf.mxu0
      %v2717 = vadd.f32 0.0, %v2716
      %v2718 = vpop.f32.mrf.mxu0
      %2719 = vmatprep.mubr.f32.mxu0 0.0
      %2720 = vmatmul.mubr.f32.gmra.mxu0 %v2581
      %v2721 = vpop.f32.mrf.mxu0
      %v2722 = vadd.f32 0.0, %v2721
      %v2723 = vpop.f32.mrf.mxu0
      %2724 = vmatprep.mubr.f32.mxu0 0.0
      %2725 = vmatmul.mubr.f32.gmra.mxu0 %v2584
      %v2726 = vpop.f32.mrf.mxu0
      %v2727 = vadd.f32 0.0, %v2726
      %v2728 = vpop.f32.mrf.mxu0
      %2729 = vmatprep.mubr.f32.mxu0 0.0
      %2730 = vmatmul.mubr.f32.gmra.mxu0 %v2587
      %v2731 = vpop.f32.mrf.mxu0
      %v2732 = vadd.f32 0.0, %v2731
      %v2733 = vpop.f32.mrf.mxu0
      %2734 = vmatprep.mubr.f32.mxu0 0.0
      %2735 = vmatmul.mubr.f32.gmra.mxu0 %v2590
      %v2736 = vpop.f32.mrf.mxu0
      %v2737 = vadd.f32 0.0, %v2736
      %v2738 = vpop.f32.mrf.mxu0
      %2739 = vmatprep.mubr.f32.mxu0 0.0
      %2740 = vmatmul.mubr.f32.gmra.mxu0 %v2593
      %v2741 = vpop.f32.mrf.mxu0
      %v2742 = vadd.f32 0.0, %v2741
      %v2743 = vpop.f32.mrf.mxu0
      %2744 = vmatprep.mubr.f32.mxu0 0.0
      %2745 = vmatmul.mubr.f32.gmra.mxu0 %v2596
      %v2746 = vpop.f32.mrf.mxu0
      %v2747 = vadd.f32 0.0, %v2746
      %v2748 = vpop.f32.mrf.mxu0
      %2749 = vmatprep.mubr.f32.mxu0 0.0
      %2750 = vmatmul.mubr.f32.gmra.mxu0 %v2599
      %v2751 = vpop.f32.mrf.mxu0
      %v2752 = vadd.f32 0.0, %v2751
      %v2753 = vpop.f32.mrf.mxu0
      %2754 = vmatprep.mubr.f32.mxu0 0.0
      %2755 = vmatmul.mubr.f32.gmra.mxu0 %v2602
      %v2756 = vpop.f32.mrf.mxu0
      %v2757 = vadd.f32 0.0, %v2756
      %v2758 = vpop.f32.mrf.mxu0
      %2759 = vmatprep.mubr.f32.mxu0 0.0
      %2760 = vmatmul.mubr.f32.gmra.mxu0 %v2605
      %v2761 = vpop.f32.mrf.mxu0
      %v2762 = vadd.f32 0.0, %v2761
      %v2763 = vpop.f32.mrf.mxu0
      %2764 = vmatprep.mubr.f32.mxu0 0.0
      %2765 = vmatmul.mubr.f32.gmra.mxu0 %v2608
      %v2766 = vpop.f32.mrf.mxu0
      %v2767 = vadd.f32 0.0, %v2766
      %v2768 = vpop.f32.mrf.mxu0
      %2769 = vmatprep.mubr.f32.mxu0 0.0
      %2770 = vmatmul.mubr.f32.gmra.mxu0 %v2611
      %v2771 = vpop.f32.mrf.mxu0
      %v2772 = vadd.f32 0.0, %v2771
      %v2773 = vpop.f32.mrf.mxu0
      %2774 = vmatprep.mubr.f32.mxu0 0.0
      %2775 = vmatmul.mubr.f32.gmra.mxu0 %v2614
      %v2776 = vpop.f32.mrf.mxu0
      %v2777 = vadd.f32 0.0, %v2776
      %v2778 = vpop.f32.mrf.mxu0
      %2779 = vmatprep.mubr.f32.mxu0 0.0
      %2780 = vmatmul.mubr.f32.gmra.mxu0 %v2617
      %v2781 = vpop.f32.mrf.mxu0
      %v2782 = vadd.f32 0.0, %v2781
      %v2783 = vpop.f32.mrf.mxu0
      %2784 = vmatprep.mubr.f32.mxu0 0.0
      %2785 = vmatmul.mubr.f32.gmra.mxu0 %v2620
      %v2786 = vpop.f32.mrf.mxu0
      %v2787 = vadd.f32 0.0, %v2786
      %v2788 = vpop.f32.mrf.mxu0
      %2789 = vdwg.mxu0
      %v2790 = vadd.f32 %v2540, %v2692
      %v2791 = vadd.f32 %v2541, %v2697
      %v2792 = vadd.f32 %v2542, %v2702
      %v2793 = vadd.f32 %v2543, %v2707
      %v2794 = vadd.f32 %v2544, %v2712
      %v2795 = vadd.f32 %v2545, %v2717
      %v2796 = vadd.f32 %v2546, %v2722
      %v2797 = vadd.f32 %v2547, %v2727
      %v2798 = vadd.f32 %v2548, %v2732
      %v2799 = vadd.f32 %v2549, %v2737
      %v2800 = vadd.f32 %v2550, %v2742
      %v2801 = vadd.f32 %v2551, %v2747
      %v2802 = vadd.f32 %v2552, %v2752
      %v2803 = vadd.f32 %v2553, %v2757
      %v2804 = vadd.f32 %v2554, %v2762
      %v2805 = vadd.f32 %v2555, %v2767
      %v2806 = vadd.f32 %v2556, %v2772
      %v2807 = vadd.f32 %v2557, %v2777
      %v2808 = vadd.f32 %v2558, %v2782
      %v2809 = vadd.f32 %v2559, %v2787
      %2810 = vst.msk [vmem:[#allocation4] sm:$0xff] %vm327, %v2790
      %2811 = vst.msk [vmem:[#allocation4 + $0x8] sm:$0xff] %vm327, %v2791
      %2812 = vst.msk [vmem:[#allocation4 + $0x10] sm:$0xff] %vm327, %v2792
      %2813 = vst.msk [vmem:[#allocation4 + $0x18] sm:$0xff] %vm327, %v2793
      %2814 = vst.msk [vmem:[#allocation4 + $0x20] sm:$0xff] %vm327, %v2794
      %2815 = vst.msk [vmem:[#allocation4 + $0x28] sm:$0xff] %vm327, %v2795
      %2816 = vst.msk [vmem:[#allocation4 + $0x30] sm:$0xff] %vm327, %v2796
      %2817 = vst.msk [vmem:[#allocation4 + $0x38] sm:$0xff] %vm327, %v2797
      %2818 = vst.msk [vmem:[#allocation4 + $0x40] sm:$0xff] %vm327, %v2798
      %2819 = vst.msk [vmem:[#allocation4 + $0x48] sm:$0xff] %vm327, %v2799
      %2820 = vst.msk [vmem:[#allocation4 + $0x50] sm:$0xff] %vm327, %v2800
      %2821 = vst.msk [vmem:[#allocation4 + $0x58] sm:$0xff] %vm327, %v2801
      %2822 = vst.msk [vmem:[#allocation4 + $0x60] sm:$0xff] %vm327, %v2802
      %2823 = vst.msk [vmem:[#allocation4 + $0x68] sm:$0xff] %vm327, %v2803
      %2824 = vst.msk [vmem:[#allocation4 + $0x70] sm:$0xff] %vm327, %v2804
      %2825 = vst.msk [vmem:[#allocation4 + $0x78] sm:$0xff] %vm327, %v2805
      %2826 = vst.msk [vmem:[#allocation4 + $0x80] sm:$0xff] %vm327, %v2806
      %2827 = vst.msk [vmem:[#allocation4 + $0x88] sm:$0xff] %vm327, %v2807
      %2828 = vst.msk [vmem:[#allocation4 + $0x90] sm:$0xff] %vm327, %v2808
      %2829 = vst.msk [vmem:[#allocation4 + $0x98] sm:$0xff] %vm327, %v2809
      %v2830 = vld [vmem:[%s2209 + $0x2] sm:$0xff]
      %v2831 = vld [vmem:[%s2209 + $0xa] sm:$0xff]
      %v2832 = vld [vmem:[%s2209 + $0x1a] sm:$0xff]
      %v2833 = vld [vmem:[%s2209 + $0x22] sm:$0xff]
      %v2834 = vld [vmem:[%s2209 + $0x32] sm:$0xff]
      %v2835 = vld [vmem:[%s2209 + $0x3a] sm:$0xff]
      %v2836 = vld [vmem:[%s2209 + $0x4a] sm:$0xff]
      %v2837 = vld [vmem:[%s2209 + $0x52] sm:$0xff]
      %v2838 = vld [vmem:[%s2209 + $0x62] sm:$0xff]
      %v2839 = vld [vmem:[%s2209 + $0x6a] sm:$0xff]
      %v2840 = vld [vmem:[%s2209 + $0x7a] sm:$0xff]
      %v2841 = vld [vmem:[%s2209 + $0x82] sm:$0xff]
      %v2842 = vld [vmem:[%s2209 + $0x92] sm:$0xff]
      %v2843 = vld [vmem:[%s2209 + $0x9a] sm:$0xff]
      %v2844 = vld [vmem:[%s2209 + $0xaa] sm:$0xff]
      %v2845 = vld [vmem:[%s2209 + $0xb2] sm:$0xff]
      %v2846 = vld [vmem:[%s2209 + $0xc2] sm:$0xff]
      %v2847 = vld [vmem:[%s2209 + $0xca] sm:$0xff]
      %v2848 = vld [vmem:[%s2209 + $0xda] sm:$0xff]
      %v2849 = vld [vmem:[%s2209 + $0xe2] sm:$0xff]
      %v2850 = vld [vmem:[#allocation4] sm:$0xff]
      %v2851 = vld [vmem:[#allocation4 + $0x8] sm:$0xff]
      %v2852 = vld [vmem:[#allocation4 + $0x10] sm:$0xff]
      %v2853 = vld [vmem:[#allocation4 + $0x18] sm:$0xff]
      %v2854 = vld [vmem:[#allocation4 + $0x20] sm:$0xff]
      %v2855 = vld [vmem:[#allocation4 + $0x28] sm:$0xff]
      %v2856 = vld [vmem:[#allocation4 + $0x30] sm:$0xff]
      %v2857 = vld [vmem:[#allocation4 + $0x38] sm:$0xff]
      %v2858 = vld [vmem:[#allocation4 + $0x40] sm:$0xff]
      %v2859 = vld [vmem:[#allocation4 + $0x48] sm:$0xff]
      %v2860 = vld [vmem:[#allocation4 + $0x50] sm:$0xff]
      %v2861 = vld [vmem:[#allocation4 + $0x58] sm:$0xff]
      %v2862 = vld [vmem:[#allocation4 + $0x60] sm:$0xff]
      %v2863 = vld [vmem:[#allocation4 + $0x68] sm:$0xff]
      %v2864 = vld [vmem:[#allocation4 + $0x70] sm:$0xff]
      %v2865 = vld [vmem:[#allocation4 + $0x78] sm:$0xff]
      %v2866 = vld [vmem:[#allocation4 + $0x80] sm:$0xff]
      %v2867 = vld [vmem:[#allocation4 + $0x88] sm:$0xff]
      %v2868 = vld [vmem:[#allocation4 + $0x90] sm:$0xff]
      %v2869 = vld [vmem:[#allocation4 + $0x98] sm:$0xff]
      %s2870 = scalar_lea.vmem %s1, 32
      %v2871 = vld [vmem:[%s2870] sm:$0xf]
      %v2873 = vsel %vm302, %v2830, 0
      %v2876 = vsel %vm302, %v2831, 0
      %v2879 = vsel %vm302, %v2832, 0
      %v2882 = vsel %vm302, %v2833, 0
      %v2885 = vsel %vm302, %v2834, 0
      %v2888 = vsel %vm302, %v2835, 0
      %v2891 = vsel %vm302, %v2836, 0
      %v2894 = vsel %vm302, %v2837, 0
      %v2897 = vsel %vm302, %v2838, 0
      %v2900 = vsel %vm302, %v2839, 0
      %v2903 = vsel %vm302, %v2840, 0
      %v2906 = vsel %vm302, %v2841, 0
      %v2909 = vsel %vm302, %v2842, 0
      %v2912 = vsel %vm302, %v2843, 0
      %v2915 = vsel %vm302, %v2844, 0
      %v2918 = vsel %vm302, %v2845, 0
      %v2921 = vsel %vm302, %v2846, 0
      %v2924 = vsel %vm302, %v2847, 0
      %v2927 = vsel %vm302, %v2848, 0
      %v2930 = vsel %vm302, %v2849, 0
      %v2933 = vsel %vm449, %v2871, 0
      %2935 = vmatprep.subr.mxu0 0.0
      %2936 = vmatpush1.msra.mxu0 0.0
      %2937 = vmatprep.subr.mxu0 0.0
      %2938 = vmatpush1.msra.mxu0 0.0
      %2939 = vmatprep.subr.mxu0 0.0
      %2940 = vmatpush1.msra.mxu0 0.0
      %2941 = vmatprep.subr.mxu0 0.0
      %2942 = vmatpush1.msra.mxu0 0.0
      %2943 = vmatprep.subr.mxu0 0.0
      %2944 = vmatpush1.msra.mxu0 0.0
      %2945 = vmatprep.subr.mxu0 0.0
      %2946 = vmatpush1.msra.mxu0 0.0
      %2947 = vmatprep.subr.mxu0 0.0
      %2948 = vmatpush1.msra.mxu0 0.0
      %2949 = vmatprep.subr.mxu0 0.0
      %2950 = vmatpush1.msra.mxu0 0.0
      %2951 = vmatprep.subr.mxu0 0.0
      %2952 = vmatpush1.msra.mxu0 0.0
      %2953 = vmatprep.subr.mxu0 0.0
      %2954 = vmatpush1.msra.mxu0 0.0
      %2955 = vmatprep.subr.mxu0 0.0
      %2956 = vmatpush1.msra.mxu0 0.0
      %2957 = vmatprep.subr.mxu0 0.0
      %2958 = vmatpush1.msra.mxu0 0.0
      %2959 = vmatprep.subr.mxu0 0.0
      %2960 = vmatpush1.msra.mxu0 0.0
      %2961 = vmatprep.subr.mxu0 0.0
      %2962 = vmatpush1.msra.mxu0 0.0
      %2963 = vmatprep.subr.mxu0 0.0
      %2964 = vmatpush1.msra.mxu0 0.0
      %2965 = vmatprep.subr.mxu0 0.0
      %2966 = vmatpush1.msra.mxu0 %v2933
      %2967 = vmatprep.subr.mxu0 0.0
      %2968 = vmatpush2.msra.mxu0 0.0
      %2969 = vmatprep.subr.mxu0 0.0
      %2970 = vmatpush2.msra.mxu0 0.0
      %2971 = vmatprep.subr.mxu0 0.0
      %2972 = vmatpush2.msra.mxu0 0.0
      %2973 = vmatprep.subr.mxu0 0.0
      %2974 = vmatpush2.msra.mxu0 0.0
      %2975 = vmatprep.subr.mxu0 0.0
      %2976 = vmatpush2.msra.mxu0 0.0
      %2977 = vmatprep.subr.mxu0 0.0
      %2978 = vmatpush2.msra.mxu0 0.0
      %2979 = vmatprep.subr.mxu0 0.0
      %2980 = vmatpush2.msra.mxu0 0.0
      %2981 = vmatprep.subr.mxu0 0.0
      %2982 = vmatpush2.msra.mxu0 0.0
      %2983 = vmatprep.subr.mxu0 0.0
      %2984 = vmatpush2.msra.mxu0 0.0
      %2985 = vmatprep.subr.mxu0 0.0
      %2986 = vmatpush2.msra.mxu0 0.0
      %2987 = vmatprep.subr.mxu0 0.0
      %2988 = vmatpush2.msra.mxu0 0.0
      %2989 = vmatprep.subr.mxu0 0.0
      %2990 = vmatpush2.msra.mxu0 0.0
      %2991 = vmatprep.subr.mxu0 0.0
      %2992 = vmatpush2.msra.mxu0 0.0
      %2993 = vmatprep.subr.mxu0 0.0
      %2994 = vmatpush2.msra.mxu0 0.0
      %2995 = vmatprep.subr.mxu0 0.0
      %2996 = vmatpush2.msra.mxu0 0.0
      %2997 = vmatprep.subr.mxu0 0.0
      %2998 = vmatpush2.msra.mxu0 0.0
      %2999 = vmatprep.mubr.f32.mxu0 0.0
      %3000 = vmatmul.mubr.f32.gmra.mxu0 %v2873
      %v3001 = vpop.f32.mrf.mxu0
      %v3002 = vadd.f32 0.0, %v3001
      %v3003 = vpop.f32.mrf.mxu0
      %3004 = vmatprep.mubr.f32.mxu0 0.0
      %3005 = vmatmul.mubr.f32.gmra.mxu0 %v2876
      %v3006 = vpop.f32.mrf.mxu0
      %v3007 = vadd.f32 0.0, %v3006
      %v3008 = vpop.f32.mrf.mxu0
      %3009 = vmatprep.mubr.f32.mxu0 0.0
      %3010 = vmatmul.mubr.f32.gmra.mxu0 %v2879
      %v3011 = vpop.f32.mrf.mxu0
      %v3012 = vadd.f32 0.0, %v3011
      %v3013 = vpop.f32.mrf.mxu0
      %3014 = vmatprep.mubr.f32.mxu0 0.0
      %3015 = vmatmul.mubr.f32.gmra.mxu0 %v2882
      %v3016 = vpop.f32.mrf.mxu0
      %v3017 = vadd.f32 0.0, %v3016
      %v3018 = vpop.f32.mrf.mxu0
      %3019 = vmatprep.mubr.f32.mxu0 0.0
      %3020 = vmatmul.mubr.f32.gmra.mxu0 %v2885
      %v3021 = vpop.f32.mrf.mxu0
      %v3022 = vadd.f32 0.0, %v3021
      %v3023 = vpop.f32.mrf.mxu0
      %3024 = vmatprep.mubr.f32.mxu0 0.0
      %3025 = vmatmul.mubr.f32.gmra.mxu0 %v2888
      %v3026 = vpop.f32.mrf.mxu0
      %v3027 = vadd.f32 0.0, %v3026
      %v3028 = vpop.f32.mrf.mxu0
      %3029 = vmatprep.mubr.f32.mxu0 0.0
      %3030 = vmatmul.mubr.f32.gmra.mxu0 %v2891
      %v3031 = vpop.f32.mrf.mxu0
      %v3032 = vadd.f32 0.0, %v3031
      %v3033 = vpop.f32.mrf.mxu0
      %3034 = vmatprep.mubr.f32.mxu0 0.0
      %3035 = vmatmul.mubr.f32.gmra.mxu0 %v2894
      %v3036 = vpop.f32.mrf.mxu0
      %v3037 = vadd.f32 0.0, %v3036
      %v3038 = vpop.f32.mrf.mxu0
      %3039 = vmatprep.mubr.f32.mxu0 0.0
      %3040 = vmatmul.mubr.f32.gmra.mxu0 %v2897
      %v3041 = vpop.f32.mrf.mxu0
      %v3042 = vadd.f32 0.0, %v3041
      %v3043 = vpop.f32.mrf.mxu0
      %3044 = vmatprep.mubr.f32.mxu0 0.0
      %3045 = vmatmul.mubr.f32.gmra.mxu0 %v2900
      %v3046 = vpop.f32.mrf.mxu0
      %v3047 = vadd.f32 0.0, %v3046
      %v3048 = vpop.f32.mrf.mxu0
      %3049 = vmatprep.mubr.f32.mxu0 0.0
      %3050 = vmatmul.mubr.f32.gmra.mxu0 %v2903
      %v3051 = vpop.f32.mrf.mxu0
      %v3052 = vadd.f32 0.0, %v3051
      %v3053 = vpop.f32.mrf.mxu0
      %3054 = vmatprep.mubr.f32.mxu0 0.0
      %3055 = vmatmul.mubr.f32.gmra.mxu0 %v2906
      %v3056 = vpop.f32.mrf.mxu0
      %v3057 = vadd.f32 0.0, %v3056
      %v3058 = vpop.f32.mrf.mxu0
      %3059 = vmatprep.mubr.f32.mxu0 0.0
      %3060 = vmatmul.mubr.f32.gmra.mxu0 %v2909
      %v3061 = vpop.f32.mrf.mxu0
      %v3062 = vadd.f32 0.0, %v3061
      %v3063 = vpop.f32.mrf.mxu0
      %3064 = vmatprep.mubr.f32.mxu0 0.0
      %3065 = vmatmul.mubr.f32.gmra.mxu0 %v2912
      %v3066 = vpop.f32.mrf.mxu0
      %v3067 = vadd.f32 0.0, %v3066
      %v3068 = vpop.f32.mrf.mxu0
      %3069 = vmatprep.mubr.f32.mxu0 0.0
      %3070 = vmatmul.mubr.f32.gmra.mxu0 %v2915
      %v3071 = vpop.f32.mrf.mxu0
      %v3072 = vadd.f32 0.0, %v3071
      %v3073 = vpop.f32.mrf.mxu0
      %3074 = vmatprep.mubr.f32.mxu0 0.0
      %3075 = vmatmul.mubr.f32.gmra.mxu0 %v2918
      %v3076 = vpop.f32.mrf.mxu0
      %v3077 = vadd.f32 0.0, %v3076
      %v3078 = vpop.f32.mrf.mxu0
      %3079 = vmatprep.mubr.f32.mxu0 0.0
      %3080 = vmatmul.mubr.f32.gmra.mxu0 %v2921
      %v3081 = vpop.f32.mrf.mxu0
      %v3082 = vadd.f32 0.0, %v3081
      %v3083 = vpop.f32.mrf.mxu0
      %3084 = vmatprep.mubr.f32.mxu0 0.0
      %3085 = vmatmul.mubr.f32.gmra.mxu0 %v2924
      %v3086 = vpop.f32.mrf.mxu0
      %v3087 = vadd.f32 0.0, %v3086
      %v3088 = vpop.f32.mrf.mxu0
      %3089 = vmatprep.mubr.f32.mxu0 0.0
      %3090 = vmatmul.mubr.f32.gmra.mxu0 %v2927
      %v3091 = vpop.f32.mrf.mxu0
      %v3092 = vadd.f32 0.0, %v3091
      %v3093 = vpop.f32.mrf.mxu0
      %3094 = vmatprep.mubr.f32.mxu0 0.0
      %3095 = vmatmul.mubr.f32.gmra.mxu0 %v2930
      %v3096 = vpop.f32.mrf.mxu0
      %v3097 = vadd.f32 0.0, %v3096
      %v3098 = vpop.f32.mrf.mxu0
      %3099 = vdwg.mxu0
      %v3100 = vadd.f32 %v2850, %v3002
      %v3101 = vadd.f32 %v2851, %v3007
      %v3102 = vadd.f32 %v2852, %v3012
      %v3103 = vadd.f32 %v2853, %v3017
      %v3104 = vadd.f32 %v2854, %v3022
      %v3105 = vadd.f32 %v2855, %v3027
      %v3106 = vadd.f32 %v2856, %v3032
      %v3107 = vadd.f32 %v2857, %v3037
      %v3108 = vadd.f32 %v2858, %v3042
      %v3109 = vadd.f32 %v2859, %v3047
      %v3110 = vadd.f32 %v2860, %v3052
      %v3111 = vadd.f32 %v2861, %v3057
      %v3112 = vadd.f32 %v2862, %v3062
      %v3113 = vadd.f32 %v2863, %v3067
      %v3114 = vadd.f32 %v2864, %v3072
      %v3115 = vadd.f32 %v2865, %v3077
      %v3116 = vadd.f32 %v2866, %v3082
      %v3117 = vadd.f32 %v2867, %v3087
      %v3118 = vadd.f32 %v2868, %v3092
      %v3119 = vadd.f32 %v2869, %v3097
      %3120 = vst.msk [vmem:[#allocation4] sm:$0xff] %vm327, %v3100
      %3121 = vst.msk [vmem:[#allocation4 + $0x8] sm:$0xff] %vm327, %v3101
      %3122 = vst.msk [vmem:[#allocation4 + $0x10] sm:$0xff] %vm327, %v3102
      %3123 = vst.msk [vmem:[#allocation4 + $0x18] sm:$0xff] %vm327, %v3103
      %3124 = vst.msk [vmem:[#allocation4 + $0x20] sm:$0xff] %vm327, %v3104
      %3125 = vst.msk [vmem:[#allocation4 + $0x28] sm:$0xff] %vm327, %v3105
      %3126 = vst.msk [vmem:[#allocation4 + $0x30] sm:$0xff] %vm327, %v3106
      %3127 = vst.msk [vmem:[#allocation4 + $0x38] sm:$0xff] %vm327, %v3107
      %3128 = vst.msk [vmem:[#allocation4 + $0x40] sm:$0xff] %vm327, %v3108
      %3129 = vst.msk [vmem:[#allocation4 + $0x48] sm:$0xff] %vm327, %v3109
      %3130 = vst.msk [vmem:[#allocation4 + $0x50] sm:$0xff] %vm327, %v3110
      %3131 = vst.msk [vmem:[#allocation4 + $0x58] sm:$0xff] %vm327, %v3111
      %3132 = vst.msk [vmem:[#allocation4 + $0x60] sm:$0xff] %vm327, %v3112
      %3133 = vst.msk [vmem:[#allocation4 + $0x68] sm:$0xff] %vm327, %v3113
      %3134 = vst.msk [vmem:[#allocation4 + $0x70] sm:$0xff] %vm327, %v3114
      %3135 = vst.msk [vmem:[#allocation4 + $0x78] sm:$0xff] %vm327, %v3115
      %3136 = vst.msk [vmem:[#allocation4 + $0x80] sm:$0xff] %vm327, %v3116
      %3137 = vst.msk [vmem:[#allocation4 + $0x88] sm:$0xff] %vm327, %v3117
      %3138 = vst.msk [vmem:[#allocation4 + $0x90] sm:$0xff] %vm327, %v3118
      %3139 = vst.msk [vmem:[#allocation4 + $0x98] sm:$0xff] %vm327, %v3119
      %v3140 = vld [vmem:[#allocation4] sm:$0xff]
      %v3141 = vld [vmem:[#allocation4 + $0x8] sm:$0xff]
      %v3142 = vld [vmem:[#allocation4 + $0x10] sm:$0xff]
      %v3143 = vld [vmem:[#allocation4 + $0x18] sm:$0xff]
      %v3144 = vld [vmem:[#allocation4 + $0x20] sm:$0xff]
      %v3145 = vld [vmem:[#allocation4 + $0x28] sm:$0xff]
      %v3146 = vld [vmem:[#allocation4 + $0x30] sm:$0xff]
      %v3147 = vld [vmem:[#allocation4 + $0x38] sm:$0xff]
      %v3148 = vld [vmem:[#allocation4 + $0x40] sm:$0xff]
      %v3149 = vld [vmem:[#allocation4 + $0x48] sm:$0xff]
      %v3150 = vld [vmem:[#allocation4 + $0x50] sm:$0xff]
      %v3151 = vld [vmem:[#allocation4 + $0x58] sm:$0xff]
      %v3152 = vld [vmem:[#allocation4 + $0x60] sm:$0xff]
      %v3153 = vld [vmem:[#allocation4 + $0x68] sm:$0xff]
      %v3154 = vld [vmem:[#allocation4 + $0x70] sm:$0xff]
      %v3155 = vld [vmem:[#allocation4 + $0x78] sm:$0xff]
      %v3156 = vld [vmem:[#allocation4 + $0x80] sm:$0xff]
      %v3157 = vld [vmem:[#allocation4 + $0x88] sm:$0xff]
      %v3158 = vld [vmem:[#allocation4 + $0x90] sm:$0xff]
      %v3159 = vld [vmem:[#allocation4 + $0x98] sm:$0xff]
      %v3160 = vld [vmem:[%s2] sm:$0x1]
      %v3162 = vlaneseq
      %v3163 = vshrl.u32 %v3162, 7
      %v3164 = vsub.s32 0, %v3163
      %v3165 = vrot.slane %v3160, %v3164
      %v3167 = vadd.f32 %v3140, %v3165
      %v3168 = vadd.f32 %v3141, %v3165
      %v3169 = vadd.f32 %v3142, %v3165
      %v3170 = vadd.f32 %v3143, %v3165
      %v3171 = vadd.f32 %v3144, %v3165
      %v3172 = vadd.f32 %v3145, %v3165
      %v3173 = vadd.f32 %v3146, %v3165
      %v3174 = vadd.f32 %v3147, %v3165
      %v3175 = vadd.f32 %v3148, %v3165
      %v3176 = vadd.f32 %v3149, %v3165
      %v3177 = vadd.f32 %v3150, %v3165
      %v3178 = vadd.f32 %v3151, %v3165
      %v3179 = vadd.f32 %v3152, %v3165
      %v3180 = vadd.f32 %v3153, %v3165
      %v3181 = vadd.f32 %v3154, %v3165
      %v3182 = vadd.f32 %v3155, %v3165
      %v3183 = vadd.f32 %v3156, %v3165
      %v3184 = vadd.f32 %v3157, %v3165
      %v3185 = vadd.f32 %v3158, %v3165
      %v3186 = vadd.f32 %v3159, %v3165
      %v3187 = vmax.f32 %v3167, 0.0
      %v3188 = vmax.f32 %v3168, 0.0
      %v3189 = vmax.f32 %v3169, 0.0
      %v3190 = vmax.f32 %v3170, 0.0
      %v3191 = vmax.f32 %v3171, 0.0
      %v3192 = vmax.f32 %v3172, 0.0
      %v3193 = vmax.f32 %v3173, 0.0
      %v3194 = vmax.f32 %v3174, 0.0
      %v3195 = vmax.f32 %v3175, 0.0
      %v3196 = vmax.f32 %v3176, 0.0
      %v3197 = vmax.f32 %v3177, 0.0
      %v3198 = vmax.f32 %v3178, 0.0
      %v3199 = vmax.f32 %v3179, 0.0
      %v3200 = vmax.f32 %v3180, 0.0
      %v3201 = vmax.f32 %v3181, 0.0
      %v3202 = vmax.f32 %v3182, 0.0
      %v3203 = vmax.f32 %v3183, 0.0
      %v3204 = vmax.f32 %v3184, 0.0
      %v3205 = vmax.f32 %v3185, 0.0
      %v3206 = vmax.f32 %v3186, 0.0
      %vm3207 = vcmask 57344
      %3208 = vst.msk [vmem:[#allocation3] sm:$0x1] %vm3207, 0.0
      %3209 = vst.msk [vmem:[#allocation3 + $0x18] sm:$0x1] %vm3207, 0.0
      %3210 = vst.msk [vmem:[#allocation3 + $0x30] sm:$0x1] %vm3207, 0.0
      %3211 = vst.msk [vmem:[#allocation3 + $0x48] sm:$0x1] %vm3207, 0.0
      %3212 = vst.msk [vmem:[#allocation3 + $0x60] sm:$0x1] %vm3207, 0.0
      %3213 = vst.msk [vmem:[#allocation3 + $0x78] sm:$0x1] %vm3207, 0.0
      %3214 = vst.msk [vmem:[#allocation3 + $0x90] sm:$0x1] %vm3207, 0.0
      %3215 = vst.msk [vmem:[#allocation3 + $0xa8] sm:$0x1] %vm3207, 0.0
      %3216 = vst.msk [vmem:[#allocation3 + $0xc0] sm:$0x1] %vm3207, 0.0
      %3217 = vst.msk [vmem:[#allocation3 + $0xd8] sm:$0x1] %vm3207, 0.0
      %3218 = vst.msk [vmem:[#allocation3 + $0x11] sm:$0x1] %vm3207, 0.0
      %3219 = vst.msk [vmem:[#allocation3 + $0x29] sm:$0x1] %vm3207, 0.0
      %3220 = vst.msk [vmem:[#allocation3 + $0x41] sm:$0x1] %vm3207, 0.0
      %3221 = vst.msk [vmem:[#allocation3 + $0x59] sm:$0x1] %vm3207, 0.0
      %3222 = vst.msk [vmem:[#allocation3 + $0x71] sm:$0x1] %vm3207, 0.0
      %3223 = vst.msk [vmem:[#allocation3 + $0x89] sm:$0x1] %vm3207, 0.0
      %3224 = vst.msk [vmem:[#allocation3 + $0xa1] sm:$0x1] %vm3207, 0.0
      %3225 = vst.msk [vmem:[#allocation3 + $0xb9] sm:$0x1] %vm3207, 0.0
      %3226 = vst.msk [vmem:[#allocation3 + $0xd1] sm:$0x1] %vm3207, 0.0
      %3227 = vst.msk [vmem:[#allocation3 + $0xe9] sm:$0x1] %vm3207, 0.0
      %3228 = vst.msk [vmem:[#allocation3 + $0x1] sm:$0xff] %vm327, %v3187
      %3229 = vst.msk [vmem:[#allocation3 + $0x9] sm:$0xff] %vm327, %v3188
      %3230 = vst.msk [vmem:[#allocation3 + $0x19] sm:$0xff] %vm327, %v3189
      %3231 = vst.msk [vmem:[#allocation3 + $0x21] sm:$0xff] %vm327, %v3190
      %3232 = vst.msk [vmem:[#allocation3 + $0x31] sm:$0xff] %vm327, %v3191
      %3233 = vst.msk [vmem:[#allocation3 + $0x39] sm:$0xff] %vm327, %v3192
      %3234 = vst.msk [vmem:[#allocation3 + $0x49] sm:$0xff] %vm327, %v3193
      %3235 = vst.msk [vmem:[#allocation3 + $0x51] sm:$0xff] %vm327, %v3194
      %3236 = vst.msk [vmem:[#allocation3 + $0x61] sm:$0xff] %vm327, %v3195
      %3237 = vst.msk [vmem:[#allocation3 + $0x69] sm:$0xff] %vm327, %v3196
      %3238 = vst.msk [vmem:[#allocation3 + $0x79] sm:$0xff] %vm327, %v3197
      %3239 = vst.msk [vmem:[#allocation3 + $0x81] sm:$0xff] %vm327, %v3198
      %3240 = vst.msk [vmem:[#allocation3 + $0x91] sm:$0xff] %vm327, %v3199
      %3241 = vst.msk [vmem:[#allocation3 + $0x99] sm:$0xff] %vm327, %v3200
      %3242 = vst.msk [vmem:[#allocation3 + $0xa9] sm:$0xff] %vm327, %v3201
      %3243 = vst.msk [vmem:[#allocation3 + $0xb1] sm:$0xff] %vm327, %v3202
      %3244 = vst.msk [vmem:[#allocation3 + $0xc1] sm:$0xff] %vm327, %v3203
      %3245 = vst.msk [vmem:[#allocation3 + $0xc9] sm:$0xff] %vm327, %v3204
      %3246 = vst.msk [vmem:[#allocation3 + $0xd9] sm:$0xff] %vm327, %v3205
      %3247 = vst.msk [vmem:[#allocation3 + $0xe1] sm:$0xff] %vm327, %v3206
      %p3248 = scmp.eq.s32.totalorder %s21, 0
      // Predicated region
      $region41: #{tpu_custom_call.1} parent=39 // pred_check
        %p3249 = pneg %p3248
      $region42: #{tpu_custom_call.1} parent=39 // pred_check_branch
        %3251 = sbr.rel (%p3249) target = $region44
      $region43: #{tpu_custom_call.1} parent=39 // pred_region
        %3252 = vst.msk [vmem:[#allocation3] sm:$0xff] %vm327, 0.0
        %3253 = vst.msk [vmem:[#allocation3 + $0x8] sm:$0xff] %vm327, 0.0
        %vm3254 = vcmask 58368
        %3255 = vst.msk [vmem:[#allocation3 + $0x10] sm:$0x3] %vm3254, 0.0
      $region44: #{tpu_custom_call.1} parent=39 // pred_fallthru
        _
      %p3256 = scmp.eq.s32.totalorder %s21, 1
      // Predicated region
      $region45: #{tpu_custom_call.1} parent=39 // pred_check
        %p3257 = pneg %p3256
      $region46: #{tpu_custom_call.1} parent=39 // pred_check_branch
        %3259 = sbr.rel (%p3257) target = $region48
      $region47: #{tpu_custom_call.1} parent=39 // pred_region
        %s3260 = scalar_lea.vmem [#allocation3], 216
        %3261 = vst.msk [vmem:[%s3260] sm:$0xff] %vm327, 0.0
        %3262 = vst.msk [vmem:[%s3260 + $0x8] sm:$0xff] %vm327, 0.0
        %vm3263 = vcmask 58368
        %3264 = vst.msk [vmem:[%s3260 + $0x10] sm:$0x3] %vm3263, 0.0
      $region48: #{tpu_custom_call.1} parent=39 // pred_fallthru
        _
      %3265 = vst.msk [vmem:[#allocation5] sm:$0xff] %vm327, 0.0
      %3266 = vst.msk [vmem:[#allocation5 + $0x8] sm:$0xff] %vm327, 0.0
      %3267 = vst.msk [vmem:[#allocation5 + $0x10] sm:$0xff] %vm327, 0.0
      %3268 = vst.msk [vmem:[#allocation5 + $0x18] sm:$0xff] %vm327, 0.0
      %3269 = vst.msk [vmem:[#allocation5 + $0x20] sm:$0xff] %vm327, 0.0
      %3270 = vst.msk [vmem:[#allocation5 + $0x28] sm:$0xff] %vm327, 0.0
      %3271 = vst.msk [vmem:[#allocation5 + $0x30] sm:$0xff] %vm327, 0.0
      %3272 = vst.msk [vmem:[#allocation5 + $0x38] sm:$0xff] %vm327, 0.0
      %3273 = vst.msk [vmem:[#allocation5 + $0x40] sm:$0xff] %vm327, 0.0
      %3274 = vst.msk [vmem:[#allocation5 + $0x48] sm:$0xff] %vm327, 0.0
      %3275 = vst.msk [vmem:[#allocation5 + $0x50] sm:$0xff] %vm327, 0.0
      %3276 = vst.msk [vmem:[#allocation5 + $0x58] sm:$0xff] %vm327, 0.0
      %3277 = vst.msk [vmem:[#allocation5 + $0x60] sm:$0xff] %vm327, 0.0
      %3278 = vst.msk [vmem:[#allocation5 + $0x68] sm:$0xff] %vm327, 0.0
      %3279 = vst.msk [vmem:[#allocation5 + $0x70] sm:$0xff] %vm327, 0.0
      %3280 = vst.msk [vmem:[#allocation5 + $0x78] sm:$0xff] %vm327, 0.0
      %v3281 = vld [vmem:[#allocation3] sm:$0xff]
      %v3282 = vld [vmem:[#allocation3 + $0x8] sm:$0xff]
      %v3283 = vld [vmem:[#allocation3 + $0x18] sm:$0xff]
      %v3284 = vld [vmem:[#allocation3 + $0x20] sm:$0xff]
      %v3285 = vld [vmem:[#allocation3 + $0x30] sm:$0xff]
      %v3286 = vld [vmem:[#allocation3 + $0x38] sm:$0xff]
      %v3287 = vld [vmem:[#allocation3 + $0x48] sm:$0xff]
      %v3288 = vld [vmem:[#allocation3 + $0x50] sm:$0xff]
      %v3289 = vld [vmem:[#allocation3 + $0x60] sm:$0xff]
      %v3290 = vld [vmem:[#allocation3 + $0x68] sm:$0xff]
      %v3291 = vld [vmem:[#allocation3 + $0x78] sm:$0xff]
      %v3292 = vld [vmem:[#allocation3 + $0x80] sm:$0xff]
      %v3293 = vld [vmem:[#allocation3 + $0x90] sm:$0xff]
      %v3294 = vld [vmem:[#allocation3 + $0x98] sm:$0xff]
      %v3295 = vld [vmem:[#allocation3 + $0xa8] sm:$0xff]
      %v3296 = vld [vmem:[#allocation3 + $0xb0] sm:$0xff]
      %v3297 = vld [vmem:[#allocation5] sm:$0xff]
      %v3298 = vld [vmem:[#allocation5 + $0x8] sm:$0xff]
      %v3299 = vld [vmem:[#allocation5 + $0x10] sm:$0xff]
      %v3300 = vld [vmem:[#allocation5 + $0x18] sm:$0xff]
      %v3301 = vld [vmem:[#allocation5 + $0x20] sm:$0xff]
      %v3302 = vld [vmem:[#allocation5 + $0x28] sm:$0xff]
      %v3303 = vld [vmem:[#allocation5 + $0x30] sm:$0xff]
      %v3304 = vld [vmem:[#allocation5 + $0x38] sm:$0xff]
      %v3305 = vld [vmem:[#allocation5 + $0x40] sm:$0xff]
      %v3306 = vld [vmem:[#allocation5 + $0x48] sm:$0xff]
      %v3307 = vld [vmem:[#allocation5 + $0x50] sm:$0xff]
      %v3308 = vld [vmem:[#allocation5 + $0x58] sm:$0xff]
      %v3309 = vld [vmem:[#allocation5 + $0x60] sm:$0xff]
      %v3310 = vld [vmem:[#allocation5 + $0x68] sm:$0xff]
      %v3311 = vld [vmem:[#allocation5 + $0x70] sm:$0xff]
      %v3312 = vld [vmem:[#allocation5 + $0x78] sm:$0xff]
      %v3313 = vld [vmem:[%s3] sm:$0xff]
      %v3315 = vsel %vm327, %v3281, 0
      %v3318 = vsel %vm327, %v3282, 0
      %v3321 = vsel %vm327, %v3283, 0
      %v3324 = vsel %vm327, %v3284, 0
      %v3327 = vsel %vm327, %v3285, 0
      %v3330 = vsel %vm327, %v3286, 0
      %v3333 = vsel %vm327, %v3287, 0
      %v3336 = vsel %vm327, %v3288, 0
      %v3339 = vsel %vm327, %v3289, 0
      %v3342 = vsel %vm327, %v3290, 0
      %v3345 = vsel %vm327, %v3291, 0
      %v3348 = vsel %vm327, %v3292, 0
      %v3351 = vsel %vm327, %v3293, 0
      %v3354 = vsel %vm327, %v3294, 0
      %v3357 = vsel %vm327, %v3295, 0
      %v3360 = vsel %vm327, %v3296, 0
      %3362 = vmatprep.subr.mxu0 0.0
      %3363 = vmatpush1.msra.mxu0 0.0
      %3364 = vmatprep.subr.mxu0 0.0
      %3365 = vmatpush1.msra.mxu0 0.0
      %3366 = vmatprep.subr.mxu0 0.0
      %3367 = vmatpush1.msra.mxu0 0.0
      %3368 = vmatprep.subr.mxu0 0.0
      %3369 = vmatpush1.msra.mxu0 0.0
      %3370 = vmatprep.subr.mxu0 0.0
      %3371 = vmatpush1.msra.mxu0 0.0
      %3372 = vmatprep.subr.mxu0 0.0
      %3373 = vmatpush1.msra.mxu0 0.0
      %3374 = vmatprep.subr.mxu0 0.0
      %3375 = vmatpush1.msra.mxu0 0.0
      %3376 = vmatprep.subr.mxu0 0.0
      %3377 = vmatpush1.msra.mxu0 0.0
      %3378 = vmatprep.subr.mxu0 0.0
      %3379 = vmatpush1.msra.mxu0 0.0
      %3380 = vmatprep.subr.mxu0 0.0
      %3381 = vmatpush1.msra.mxu0 0.0
      %3382 = vmatprep.subr.mxu0 0.0
      %3383 = vmatpush1.msra.mxu0 0.0
      %3384 = vmatprep.subr.mxu0 0.0
      %3385 = vmatpush1.msra.mxu0 0.0
      %3386 = vmatprep.subr.mxu0 0.0
      %3387 = vmatpush1.msra.mxu0 0.0
      %3388 = vmatprep.subr.mxu0 0.0
      %3389 = vmatpush1.msra.mxu0 0.0
      %3390 = vmatprep.subr.mxu0 0.0
      %3391 = vmatpush1.msra.mxu0 0.0
      %3392 = vmatprep.subr.mxu0 0.0
      %3393 = vmatpush1.msra.mxu0 %v3313
      %3394 = vmatprep.subr.mxu0 0.0
      %3395 = vmatpush2.msra.mxu0 0.0
      %3396 = vmatprep.subr.mxu0 0.0
      %3397 = vmatpush2.msra.mxu0 0.0
      %3398 = vmatprep.subr.mxu0 0.0
      %3399 = vmatpush2.msra.mxu0 0.0
      %3400 = vmatprep.subr.mxu0 0.0
      %3401 = vmatpush2.msra.mxu0 0.0
      %3402 = vmatprep.subr.mxu0 0.0
      %3403 = vmatpush2.msra.mxu0 0.0
      %3404 = vmatprep.subr.mxu0 0.0
      %3405 = vmatpush2.msra.mxu0 0.0
      %3406 = vmatprep.subr.mxu0 0.0
      %3407 = vmatpush2.msra.mxu0 0.0
      %3408 = vmatprep.subr.mxu0 0.0
      %3409 = vmatpush2.msra.mxu0 0.0
      %3410 = vmatprep.subr.mxu0 0.0
      %3411 = vmatpush2.msra.mxu0 0.0
      %3412 = vmatprep.subr.mxu0 0.0
      %3413 = vmatpush2.msra.mxu0 0.0
      %3414 = vmatprep.subr.mxu0 0.0
      %3415 = vmatpush2.msra.mxu0 0.0
      %3416 = vmatprep.subr.mxu0 0.0
      %3417 = vmatpush2.msra.mxu0 0.0
      %3418 = vmatprep.subr.mxu0 0.0
      %3419 = vmatpush2.msra.mxu0 0.0
      %3420 = vmatprep.subr.mxu0 0.0
      %3421 = vmatpush2.msra.mxu0 0.0
      %3422 = vmatprep.subr.mxu0 0.0
      %3423 = vmatpush2.msra.mxu0 0.0
      %3424 = vmatprep.subr.mxu0 0.0
      %3425 = vmatpush2.msra.mxu0 0.0
      %3426 = vmatprep.mubr.f32.mxu0 0.0
      %3427 = vmatmul.mubr.f32.gmra.mxu0 %v3315
      %v3428 = vpop.f32.mrf.mxu0
      %v3429 = vadd.f32 0.0, %v3428
      %v3430 = vpop.f32.mrf.mxu0
      %3431 = vmatprep.mubr.f32.mxu0 0.0
      %3432 = vmatmul.mubr.f32.gmra.mxu0 %v3318
      %v3433 = vpop.f32.mrf.mxu0
      %v3434 = vadd.f32 0.0, %v3433
      %v3435 = vpop.f32.mrf.mxu0
      %3436 = vmatprep.mubr.f32.mxu0 0.0
      %3437 = vmatmul.mubr.f32.gmra.mxu0 %v3321
      %v3438 = vpop.f32.mrf.mxu0
      %v3439 = vadd.f32 0.0, %v3438
      %v3440 = vpop.f32.mrf.mxu0
      %3441 = vmatprep.mubr.f32.mxu0 0.0
      %3442 = vmatmul.mubr.f32.gmra.mxu0 %v3324
      %v3443 = vpop.f32.mrf.mxu0
      %v3444 = vadd.f32 0.0, %v3443
      %v3445 = vpop.f32.mrf.mxu0
      %3446 = vmatprep.mubr.f32.mxu0 0.0
      %3447 = vmatmul.mubr.f32.gmra.mxu0 %v3327
      %v3448 = vpop.f32.mrf.mxu0
      %v3449 = vadd.f32 0.0, %v3448
      %v3450 = vpop.f32.mrf.mxu0
      %3451 = vmatprep.mubr.f32.mxu0 0.0
      %3452 = vmatmul.mubr.f32.gmra.mxu0 %v3330
      %v3453 = vpop.f32.mrf.mxu0
      %v3454 = vadd.f32 0.0, %v3453
      %v3455 = vpop.f32.mrf.mxu0
      %3456 = vmatprep.mubr.f32.mxu0 0.0
      %3457 = vmatmul.mubr.f32.gmra.mxu0 %v3333
      %v3458 = vpop.f32.mrf.mxu0
      %v3459 = vadd.f32 0.0, %v3458
      %v3460 = vpop.f32.mrf.mxu0
      %3461 = vmatprep.mubr.f32.mxu0 0.0
      %3462 = vmatmul.mubr.f32.gmra.mxu0 %v3336
      %v3463 = vpop.f32.mrf.mxu0
      %v3464 = vadd.f32 0.0, %v3463
      %v3465 = vpop.f32.mrf.mxu0
      %3466 = vmatprep.mubr.f32.mxu0 0.0
      %3467 = vmatmul.mubr.f32.gmra.mxu0 %v3339
      %v3468 = vpop.f32.mrf.mxu0
      %v3469 = vadd.f32 0.0, %v3468
      %v3470 = vpop.f32.mrf.mxu0
      %3471 = vmatprep.mubr.f32.mxu0 0.0
      %3472 = vmatmul.mubr.f32.gmra.mxu0 %v3342
      %v3473 = vpop.f32.mrf.mxu0
      %v3474 = vadd.f32 0.0, %v3473
      %v3475 = vpop.f32.mrf.mxu0
      %3476 = vmatprep.mubr.f32.mxu0 0.0
      %3477 = vmatmul.mubr.f32.gmra.mxu0 %v3345
      %v3478 = vpop.f32.mrf.mxu0
      %v3479 = vadd.f32 0.0, %v3478
      %v3480 = vpop.f32.mrf.mxu0
      %3481 = vmatprep.mubr.f32.mxu0 0.0
      %3482 = vmatmul.mubr.f32.gmra.mxu0 %v3348
      %v3483 = vpop.f32.mrf.mxu0
      %v3484 = vadd.f32 0.0, %v3483
      %v3485 = vpop.f32.mrf.mxu0
      %3486 = vmatprep.mubr.f32.mxu0 0.0
      %3487 = vmatmul.mubr.f32.gmra.mxu0 %v3351
      %v3488 = vpop.f32.mrf.mxu0
      %v3489 = vadd.f32 0.0, %v3488
      %v3490 = vpop.f32.mrf.mxu0
      %3491 = vmatprep.mubr.f32.mxu0 0.0
      %3492 = vmatmul.mubr.f32.gmra.mxu0 %v3354
      %v3493 = vpop.f32.mrf.mxu0
      %v3494 = vadd.f32 0.0, %v3493
      %v3495 = vpop.f32.mrf.mxu0
      %3496 = vmatprep.mubr.f32.mxu0 0.0
      %3497 = vmatmul.mubr.f32.gmra.mxu0 %v3357
      %v3498 = vpop.f32.mrf.mxu0
      %v3499 = vadd.f32 0.0, %v3498
      %v3500 = vpop.f32.mrf.mxu0
      %3501 = vmatprep.mubr.f32.mxu0 0.0
      %3502 = vmatmul.mubr.f32.gmra.mxu0 %v3360
      %v3503 = vpop.f32.mrf.mxu0
      %v3504 = vadd.f32 0.0, %v3503
      %v3505 = vpop.f32.mrf.mxu0
      %3506 = vdwg.mxu0
      %v3507 = vadd.f32 %v3297, %v3429
      %v3508 = vadd.f32 %v3298, %v3434
      %v3509 = vadd.f32 %v3299, %v3439
      %v3510 = vadd.f32 %v3300, %v3444
      %v3511 = vadd.f32 %v3301, %v3449
      %v3512 = vadd.f32 %v3302, %v3454
      %v3513 = vadd.f32 %v3303, %v3459
      %v3514 = vadd.f32 %v3304, %v3464
      %v3515 = vadd.f32 %v3305, %v3469
      %v3516 = vadd.f32 %v3306, %v3474
      %v3517 = vadd.f32 %v3307, %v3479
      %v3518 = vadd.f32 %v3308, %v3484
      %v3519 = vadd.f32 %v3309, %v3489
      %v3520 = vadd.f32 %v3310, %v3494
      %v3521 = vadd.f32 %v3311, %v3499
      %v3522 = vadd.f32 %v3312, %v3504
      %3523 = vst.msk [vmem:[#allocation5] sm:$0xff] %vm327, %v3507
      %3524 = vst.msk [vmem:[#allocation5 + $0x8] sm:$0xff] %vm327, %v3508
      %3525 = vst.msk [vmem:[#allocation5 + $0x10] sm:$0xff] %vm327, %v3509
      %3526 = vst.msk [vmem:[#allocation5 + $0x18] sm:$0xff] %vm327, %v3510
      %3527 = vst.msk [vmem:[#allocation5 + $0x20] sm:$0xff] %vm327, %v3511
      %3528 = vst.msk [vmem:[#allocation5 + $0x28] sm:$0xff] %vm327, %v3512
      %3529 = vst.msk [vmem:[#allocation5 + $0x30] sm:$0xff] %vm327, %v3513
      %3530 = vst.msk [vmem:[#allocation5 + $0x38] sm:$0xff] %vm327, %v3514
      %3531 = vst.msk [vmem:[#allocation5 + $0x40] sm:$0xff] %vm327, %v3515
      %3532 = vst.msk [vmem:[#allocation5 + $0x48] sm:$0xff] %vm327, %v3516
      %3533 = vst.msk [vmem:[#allocation5 + $0x50] sm:$0xff] %vm327, %v3517
      %3534 = vst.msk [vmem:[#allocation5 + $0x58] sm:$0xff] %vm327, %v3518
      %3535 = vst.msk [vmem:[#allocation5 + $0x60] sm:$0xff] %vm327, %v3519
      %3536 = vst.msk [vmem:[#allocation5 + $0x68] sm:$0xff] %vm327, %v3520
      %3537 = vst.msk [vmem:[#allocation5 + $0x70] sm:$0xff] %vm327, %v3521
      %3538 = vst.msk [vmem:[#allocation5 + $0x78] sm:$0xff] %vm327, %v3522
      %v3539 = vld [vmem:[#allocation3 + $0x1] sm:$0xff]
      %v3540 = vld [vmem:[#allocation3 + $0x9] sm:$0xff]
      %v3541 = vld [vmem:[#allocation3 + $0x19] sm:$0xff]
      %v3542 = vld [vmem:[#allocation3 + $0x21] sm:$0xff]
      %v3543 = vld [vmem:[#allocation3 + $0x31] sm:$0xff]
      %v3544 = vld [vmem:[#allocation3 + $0x39] sm:$0xff]
      %v3545 = vld [vmem:[#allocation3 + $0x49] sm:$0xff]
      %v3546 = vld [vmem:[#allocation3 + $0x51] sm:$0xff]
      %v3547 = vld [vmem:[#allocation3 + $0x61] sm:$0xff]
      %v3548 = vld [vmem:[#allocation3 + $0x69] sm:$0xff]
      %v3549 = vld [vmem:[#allocation3 + $0x79] sm:$0xff]
      %v3550 = vld [vmem:[#allocation3 + $0x81] sm:$0xff]
      %v3551 = vld [vmem:[#allocation3 + $0x91] sm:$0xff]
      %v3552 = vld [vmem:[#allocation3 + $0x99] sm:$0xff]
      %v3553 = vld [vmem:[#allocation3 + $0xa9] sm:$0xff]
      %v3554 = vld [vmem:[#allocation3 + $0xb1] sm:$0xff]
      %v3555 = vld [vmem:[#allocation5] sm:$0xff]
      %v3556 = vld [vmem:[#allocation5 + $0x8] sm:$0xff]
      %v3557 = vld [vmem:[#allocation5 + $0x10] sm:$0xff]
      %v3558 = vld [vmem:[#allocation5 + $0x18] sm:$0xff]
      %v3559 = vld [vmem:[#allocation5 + $0x20] sm:$0xff]
      %v3560 = vld [vmem:[#allocation5 + $0x28] sm:$0xff]
      %v3561 = vld [vmem:[#allocation5 + $0x30] sm:$0xff]
      %v3562 = vld [vmem:[#allocation5 + $0x38] sm:$0xff]
      %v3563 = vld [vmem:[#allocation5 + $0x40] sm:$0xff]
      %v3564 = vld [vmem:[#allocation5 + $0x48] sm:$0xff]
      %v3565 = vld [vmem:[#allocation5 + $0x50] sm:$0xff]
      %v3566 = vld [vmem:[#allocation5 + $0x58] sm:$0xff]
      %v3567 = vld [vmem:[#allocation5 + $0x60] sm:$0xff]
      %v3568 = vld [vmem:[#allocation5 + $0x68] sm:$0xff]
      %v3569 = vld [vmem:[#allocation5 + $0x70] sm:$0xff]
      %v3570 = vld [vmem:[#allocation5 + $0x78] sm:$0xff]
      %s3571 = scalar_lea.vmem %s3, 8
      %v3572 = vld [vmem:[%s3571] sm:$0xff]
      %v3574 = vsel %vm327, %v3539, 0
      %v3577 = vsel %vm327, %v3540, 0
      %v3580 = vsel %vm327, %v3541, 0
      %v3583 = vsel %vm327, %v3542, 0
      %v3586 = vsel %vm327, %v3543, 0
      %v3589 = vsel %vm327, %v3544, 0
      %v3592 = vsel %vm327, %v3545, 0
      %v3595 = vsel %vm327, %v3546, 0
      %v3598 = vsel %vm327, %v3547, 0
      %v3601 = vsel %vm327, %v3548, 0
      %v3604 = vsel %vm327, %v3549, 0
      %v3607 = vsel %vm327, %v3550, 0
      %v3610 = vsel %vm327, %v3551, 0
      %v3613 = vsel %vm327, %v3552, 0
      %v3616 = vsel %vm327, %v3553, 0
      %v3619 = vsel %vm327, %v3554, 0
      %3621 = vmatprep.subr.mxu0 0.0
      %3622 = vmatpush1.msra.mxu0 0.0
      %3623 = vmatprep.subr.mxu0 0.0
      %3624 = vmatpush1.msra.mxu0 0.0
      %3625 = vmatprep.subr.mxu0 0.0
      %3626 = vmatpush1.msra.mxu0 0.0
      %3627 = vmatprep.subr.mxu0 0.0
      %3628 = vmatpush1.msra.mxu0 0.0
      %3629 = vmatprep.subr.mxu0 0.0
      %3630 = vmatpush1.msra.mxu0 0.0
      %3631 = vmatprep.subr.mxu0 0.0
      %3632 = vmatpush1.msra.mxu0 0.0
      %3633 = vmatprep.subr.mxu0 0.0
      %3634 = vmatpush1.msra.mxu0 0.0
      %3635 = vmatprep.subr.mxu0 0.0
      %3636 = vmatpush1.msra.mxu0 0.0
      %3637 = vmatprep.subr.mxu0 0.0
      %3638 = vmatpush1.msra.mxu0 0.0
      %3639 = vmatprep.subr.mxu0 0.0
      %3640 = vmatpush1.msra.mxu0 0.0
      %3641 = vmatprep.subr.mxu0 0.0
      %3642 = vmatpush1.msra.mxu0 0.0
      %3643 = vmatprep.subr.mxu0 0.0
      %3644 = vmatpush1.msra.mxu0 0.0
      %3645 = vmatprep.subr.mxu0 0.0
      %3646 = vmatpush1.msra.mxu0 0.0
      %3647 = vmatprep.subr.mxu0 0.0
      %3648 = vmatpush1.msra.mxu0 0.0
      %3649 = vmatprep.subr.mxu0 0.0
      %3650 = vmatpush1.msra.mxu0 0.0
      %3651 = vmatprep.subr.mxu0 0.0
      %3652 = vmatpush1.msra.mxu0 %v3572
      %3653 = vmatprep.subr.mxu0 0.0
      %3654 = vmatpush2.msra.mxu0 0.0
      %3655 = vmatprep.subr.mxu0 0.0
      %3656 = vmatpush2.msra.mxu0 0.0
      %3657 = vmatprep.subr.mxu0 0.0
      %3658 = vmatpush2.msra.mxu0 0.0
      %3659 = vmatprep.subr.mxu0 0.0
      %3660 = vmatpush2.msra.mxu0 0.0
      %3661 = vmatprep.subr.mxu0 0.0
      %3662 = vmatpush2.msra.mxu0 0.0
      %3663 = vmatprep.subr.mxu0 0.0
      %3664 = vmatpush2.msra.mxu0 0.0
      %3665 = vmatprep.subr.mxu0 0.0
      %3666 = vmatpush2.msra.mxu0 0.0
      %3667 = vmatprep.subr.mxu0 0.0
      %3668 = vmatpush2.msra.mxu0 0.0
      %3669 = vmatprep.subr.mxu0 0.0
      %3670 = vmatpush2.msra.mxu0 0.0
      %3671 = vmatprep.subr.mxu0 0.0
      %3672 = vmatpush2.msra.mxu0 0.0
      %3673 = vmatprep.subr.mxu0 0.0
      %3674 = vmatpush2.msra.mxu0 0.0
      %3675 = vmatprep.subr.mxu0 0.0
      %3676 = vmatpush2.msra.mxu0 0.0
      %3677 = vmatprep.subr.mxu0 0.0
      %3678 = vmatpush2.msra.mxu0 0.0
      %3679 = vmatprep.subr.mxu0 0.0
      %3680 = vmatpush2.msra.mxu0 0.0
      %3681 = vmatprep.subr.mxu0 0.0
      %3682 = vmatpush2.msra.mxu0 0.0
      %3683 = vmatprep.subr.mxu0 0.0
      %3684 = vmatpush2.msra.mxu0 0.0
      %3685 = vmatprep.mubr.f32.mxu0 0.0
      %3686 = vmatmul.mubr.f32.gmra.mxu0 %v3574
      %v3687 = vpop.f32.mrf.mxu0
      %v3688 = vadd.f32 0.0, %v3687
      %v3689 = vpop.f32.mrf.mxu0
      %3690 = vmatprep.mubr.f32.mxu0 0.0
      %3691 = vmatmul.mubr.f32.gmra.mxu0 %v3577
      %v3692 = vpop.f32.mrf.mxu0
      %v3693 = vadd.f32 0.0, %v3692
      %v3694 = vpop.f32.mrf.mxu0
      %3695 = vmatprep.mubr.f32.mxu0 0.0
      %3696 = vmatmul.mubr.f32.gmra.mxu0 %v3580
      %v3697 = vpop.f32.mrf.mxu0
      %v3698 = vadd.f32 0.0, %v3697
      %v3699 = vpop.f32.mrf.mxu0
      %3700 = vmatprep.mubr.f32.mxu0 0.0
      %3701 = vmatmul.mubr.f32.gmra.mxu0 %v3583
      %v3702 = vpop.f32.mrf.mxu0
      %v3703 = vadd.f32 0.0, %v3702
      %v3704 = vpop.f32.mrf.mxu0
      %3705 = vmatprep.mubr.f32.mxu0 0.0
      %3706 = vmatmul.mubr.f32.gmra.mxu0 %v3586
      %v3707 = vpop.f32.mrf.mxu0
      %v3708 = vadd.f32 0.0, %v3707
      %v3709 = vpop.f32.mrf.mxu0
      %3710 = vmatprep.mubr.f32.mxu0 0.0
      %3711 = vmatmul.mubr.f32.gmra.mxu0 %v3589
      %v3712 = vpop.f32.mrf.mxu0
      %v3713 = vadd.f32 0.0, %v3712
      %v3714 = vpop.f32.mrf.mxu0
      %3715 = vmatprep.mubr.f32.mxu0 0.0
      %3716 = vmatmul.mubr.f32.gmra.mxu0 %v3592
      %v3717 = vpop.f32.mrf.mxu0
      %v3718 = vadd.f32 0.0, %v3717
      %v3719 = vpop.f32.mrf.mxu0
      %3720 = vmatprep.mubr.f32.mxu0 0.0
      %3721 = vmatmul.mubr.f32.gmra.mxu0 %v3595
      %v3722 = vpop.f32.mrf.mxu0
      %v3723 = vadd.f32 0.0, %v3722
      %v3724 = vpop.f32.mrf.mxu0
      %3725 = vmatprep.mubr.f32.mxu0 0.0
      %3726 = vmatmul.mubr.f32.gmra.mxu0 %v3598
      %v3727 = vpop.f32.mrf.mxu0
      %v3728 = vadd.f32 0.0, %v3727
      %v3729 = vpop.f32.mrf.mxu0
      %3730 = vmatprep.mubr.f32.mxu0 0.0
      %3731 = vmatmul.mubr.f32.gmra.mxu0 %v3601
      %v3732 = vpop.f32.mrf.mxu0
      %v3733 = vadd.f32 0.0, %v3732
      %v3734 = vpop.f32.mrf.mxu0
      %3735 = vmatprep.mubr.f32.mxu0 0.0
      %3736 = vmatmul.mubr.f32.gmra.mxu0 %v3604
      %v3737 = vpop.f32.mrf.mxu0
      %v3738 = vadd.f32 0.0, %v3737
      %v3739 = vpop.f32.mrf.mxu0
      %3740 = vmatprep.mubr.f32.mxu0 0.0
      %3741 = vmatmul.mubr.f32.gmra.mxu0 %v3607
      %v3742 = vpop.f32.mrf.mxu0
      %v3743 = vadd.f32 0.0, %v3742
      %v3744 = vpop.f32.mrf.mxu0
      %3745 = vmatprep.mubr.f32.mxu0 0.0
      %3746 = vmatmul.mubr.f32.gmra.mxu0 %v3610
      %v3747 = vpop.f32.mrf.mxu0
      %v3748 = vadd.f32 0.0, %v3747
      %v3749 = vpop.f32.mrf.mxu0
      %3750 = vmatprep.mubr.f32.mxu0 0.0
      %3751 = vmatmul.mubr.f32.gmra.mxu0 %v3613
      %v3752 = vpop.f32.mrf.mxu0
      %v3753 = vadd.f32 0.0, %v3752
      %v3754 = vpop.f32.mrf.mxu0
      %3755 = vmatprep.mubr.f32.mxu0 0.0
      %3756 = vmatmul.mubr.f32.gmra.mxu0 %v3616
      %v3757 = vpop.f32.mrf.mxu0
      %v3758 = vadd.f32 0.0, %v3757
      %v3759 = vpop.f32.mrf.mxu0
      %3760 = vmatprep.mubr.f32.mxu0 0.0
      %3761 = vmatmul.mubr.f32.gmra.mxu0 %v3619
      %v3762 = vpop.f32.mrf.mxu0
      %v3763 = vadd.f32 0.0, %v3762
      %v3764 = vpop.f32.mrf.mxu0
      %3765 = vdwg.mxu0
      %v3766 = vadd.f32 %v3555, %v3688
      %v3767 = vadd.f32 %v3556, %v3693
      %v3768 = vadd.f32 %v3557, %v3698
      %v3769 = vadd.f32 %v3558, %v3703
      %v3770 = vadd.f32 %v3559, %v3708
      %v3771 = vadd.f32 %v3560, %v3713
      %v3772 = vadd.f32 %v3561, %v3718
      %v3773 = vadd.f32 %v3562, %v3723
      %v3774 = vadd.f32 %v3563, %v3728
      %v3775 = vadd.f32 %v3564, %v3733
      %v3776 = vadd.f32 %v3565, %v3738
      %v3777 = vadd.f32 %v3566, %v3743
      %v3778 = vadd.f32 %v3567, %v3748
      %v3779 = vadd.f32 %v3568, %v3753
      %v3780 = vadd.f32 %v3569, %v3758
      %v3781 = vadd.f32 %v3570, %v3763
      %3782 = vst.msk [vmem:[#allocation5] sm:$0xff] %vm327, %v3766
      %3783 = vst.msk [vmem:[#allocation5 + $0x8] sm:$0xff] %vm327, %v3767
      %3784 = vst.msk [vmem:[#allocation5 + $0x10] sm:$0xff] %vm327, %v3768
      %3785 = vst.msk [vmem:[#allocation5 + $0x18] sm:$0xff] %vm327, %v3769
      %3786 = vst.msk [vmem:[#allocation5 + $0x20] sm:$0xff] %vm327, %v3770
      %3787 = vst.msk [vmem:[#allocation5 + $0x28] sm:$0xff] %vm327, %v3771
      %3788 = vst.msk [vmem:[#allocation5 + $0x30] sm:$0xff] %vm327, %v3772
      %3789 = vst.msk [vmem:[#allocation5 + $0x38] sm:$0xff] %vm327, %v3773
      %3790 = vst.msk [vmem:[#allocation5 + $0x40] sm:$0xff] %vm327, %v3774
      %3791 = vst.msk [vmem:[#allocation5 + $0x48] sm:$0xff] %vm327, %v3775
      %3792 = vst.msk [vmem:[#allocation5 + $0x50] sm:$0xff] %vm327, %v3776
      %3793 = vst.msk [vmem:[#allocation5 + $0x58] sm:$0xff] %vm327, %v3777
      %3794 = vst.msk [vmem:[#allocation5 + $0x60] sm:$0xff] %vm327, %v3778
      %3795 = vst.msk [vmem:[#allocation5 + $0x68] sm:$0xff] %vm327, %v3779
      %3796 = vst.msk [vmem:[#allocation5 + $0x70] sm:$0xff] %vm327, %v3780
      %3797 = vst.msk [vmem:[#allocation5 + $0x78] sm:$0xff] %vm327, %v3781
      %v3798 = vld [vmem:[#allocation3 + $0x2] sm:$0xff]
      %v3799 = vld [vmem:[#allocation3 + $0xa] sm:$0xff]
      %v3800 = vld [vmem:[#allocation3 + $0x1a] sm:$0xff]
      %v3801 = vld [vmem:[#allocation3 + $0x22] sm:$0xff]
      %v3802 = vld [vmem:[#allocation3 + $0x32] sm:$0xff]
      %v3803 = vld [vmem:[#allocation3 + $0x3a] sm:$0xff]
      %v3804 = vld [vmem:[#allocation3 + $0x4a] sm:$0xff]
      %v3805 = vld [vmem:[#allocation3 + $0x52] sm:$0xff]
      %v3806 = vld [vmem:[#allocation3 + $0x62] sm:$0xff]
      %v3807 = vld [vmem:[#allocation3 + $0x6a] sm:$0xff]
      %v3808 = vld [vmem:[#allocation3 + $0x7a] sm:$0xff]
      %v3809 = vld [vmem:[#allocation3 + $0x82] sm:$0xff]
      %v3810 = vld [vmem:[#allocation3 + $0x92] sm:$0xff]
      %v3811 = vld [vmem:[#allocation3 + $0x9a] sm:$0xff]
      %v3812 = vld [vmem:[#allocation3 + $0xaa] sm:$0xff]
      %v3813 = vld [vmem:[#allocation3 + $0xb2] sm:$0xff]
      %v3814 = vld [vmem:[#allocation5] sm:$0xff]
      %v3815 = vld [vmem:[#allocation5 + $0x8] sm:$0xff]
      %v3816 = vld [vmem:[#allocation5 + $0x10] sm:$0xff]
      %v3817 = vld [vmem:[#allocation5 + $0x18] sm:$0xff]
      %v3818 = vld [vmem:[#allocation5 + $0x20] sm:$0xff]
      %v3819 = vld [vmem:[#allocation5 + $0x28] sm:$0xff]
      %v3820 = vld [vmem:[#allocation5 + $0x30] sm:$0xff]
      %v3821 = vld [vmem:[#allocation5 + $0x38] sm:$0xff]
      %v3822 = vld [vmem:[#allocation5 + $0x40] sm:$0xff]
      %v3823 = vld [vmem:[#allocation5 + $0x48] sm:$0xff]
      %v3824 = vld [vmem:[#allocation5 + $0x50] sm:$0xff]
      %v3825 = vld [vmem:[#allocation5 + $0x58] sm:$0xff]
      %v3826 = vld [vmem:[#allocation5 + $0x60] sm:$0xff]
      %v3827 = vld [vmem:[#allocation5 + $0x68] sm:$0xff]
      %v3828 = vld [vmem:[#allocation5 + $0x70] sm:$0xff]
      %v3829 = vld [vmem:[#allocation5 + $0x78] sm:$0xff]
      %s3830 = scalar_lea.vmem %s3, 16
      %v3831 = vld [vmem:[%s3830] sm:$0xff]
      %v3833 = vsel %vm327, %v3798, 0
      %v3836 = vsel %vm327, %v3799, 0
      %v3839 = vsel %vm327, %v3800, 0
      %v3842 = vsel %vm327, %v3801, 0
      %v3845 = vsel %vm327, %v3802, 0
      %v3848 = vsel %vm327, %v3803, 0
      %v3851 = vsel %vm327, %v3804, 0
      %v3854 = vsel %vm327, %v3805, 0
      %v3857 = vsel %vm327, %v3806, 0
      %v3860 = vsel %vm327, %v3807, 0
      %v3863 = vsel %vm327, %v3808, 0
      %v3866 = vsel %vm327, %v3809, 0
      %v3869 = vsel %vm327, %v3810, 0
      %v3872 = vsel %vm327, %v3811, 0
      %v3875 = vsel %vm327, %v3812, 0
      %v3878 = vsel %vm327, %v3813, 0
      %3880 = vmatprep.subr.mxu0 0.0
      %3881 = vmatpush1.msra.mxu0 0.0
      %3882 = vmatprep.subr.mxu0 0.0
      %3883 = vmatpush1.msra.mxu0 0.0
      %3884 = vmatprep.subr.mxu0 0.0
      %3885 = vmatpush1.msra.mxu0 0.0
      %3886 = vmatprep.subr.mxu0 0.0
      %3887 = vmatpush1.msra.mxu0 0.0
      %3888 = vmatprep.subr.mxu0 0.0
      %3889 = vmatpush1.msra.mxu0 0.0
      %3890 = vmatprep.subr.mxu0 0.0
      %3891 = vmatpush1.msra.mxu0 0.0
      %3892 = vmatprep.subr.mxu0 0.0
      %3893 = vmatpush1.msra.mxu0 0.0
      %3894 = vmatprep.subr.mxu0 0.0
      %3895 = vmatpush1.msra.mxu0 0.0
      %3896 = vmatprep.subr.mxu0 0.0
      %3897 = vmatpush1.msra.mxu0 0.0
      %3898 = vmatprep.subr.mxu0 0.0
      %3899 = vmatpush1.msra.mxu0 0.0
      %3900 = vmatprep.subr.mxu0 0.0
      %3901 = vmatpush1.msra.mxu0 0.0
      %3902 = vmatprep.subr.mxu0 0.0
      %3903 = vmatpush1.msra.mxu0 0.0
      %3904 = vmatprep.subr.mxu0 0.0
      %3905 = vmatpush1.msra.mxu0 0.0
      %3906 = vmatprep.subr.mxu0 0.0
      %3907 = vmatpush1.msra.mxu0 0.0
      %3908 = vmatprep.subr.mxu0 0.0
      %3909 = vmatpush1.msra.mxu0 0.0
      %3910 = vmatprep.subr.mxu0 0.0
      %3911 = vmatpush1.msra.mxu0 %v3831
      %3912 = vmatprep.subr.mxu0 0.0
      %3913 = vmatpush2.msra.mxu0 0.0
      %3914 = vmatprep.subr.mxu0 0.0
      %3915 = vmatpush2.msra.mxu0 0.0
      %3916 = vmatprep.subr.mxu0 0.0
      %3917 = vmatpush2.msra.mxu0 0.0
      %3918 = vmatprep.subr.mxu0 0.0
      %3919 = vmatpush2.msra.mxu0 0.0
      %3920 = vmatprep.subr.mxu0 0.0
      %3921 = vmatpush2.msra.mxu0 0.0
      %3922 = vmatprep.subr.mxu0 0.0
      %3923 = vmatpush2.msra.mxu0 0.0
      %3924 = vmatprep.subr.mxu0 0.0
      %3925 = vmatpush2.msra.mxu0 0.0
      %3926 = vmatprep.subr.mxu0 0.0
      %3927 = vmatpush2.msra.mxu0 0.0
      %3928 = vmatprep.subr.mxu0 0.0
      %3929 = vmatpush2.msra.mxu0 0.0
      %3930 = vmatprep.subr.mxu0 0.0
      %3931 = vmatpush2.msra.mxu0 0.0
      %3932 = vmatprep.subr.mxu0 0.0
      %3933 = vmatpush2.msra.mxu0 0.0
      %3934 = vmatprep.subr.mxu0 0.0
      %3935 = vmatpush2.msra.mxu0 0.0
      %3936 = vmatprep.subr.mxu0 0.0
      %3937 = vmatpush2.msra.mxu0 0.0
      %3938 = vmatprep.subr.mxu0 0.0
      %3939 = vmatpush2.msra.mxu0 0.0
      %3940 = vmatprep.subr.mxu0 0.0
      %3941 = vmatpush2.msra.mxu0 0.0
      %3942 = vmatprep.subr.mxu0 0.0
      %3943 = vmatpush2.msra.mxu0 0.0
      %3944 = vmatprep.mubr.f32.mxu0 0.0
      %3945 = vmatmul.mubr.f32.gmra.mxu0 %v3833
      %v3946 = vpop.f32.mrf.mxu0
      %v3947 = vadd.f32 0.0, %v3946
      %v3948 = vpop.f32.mrf.mxu0
      %3949 = vmatprep.mubr.f32.mxu0 0.0
      %3950 = vmatmul.mubr.f32.gmra.mxu0 %v3836
      %v3951 = vpop.f32.mrf.mxu0
      %v3952 = vadd.f32 0.0, %v3951
      %v3953 = vpop.f32.mrf.mxu0
      %3954 = vmatprep.mubr.f32.mxu0 0.0
      %3955 = vmatmul.mubr.f32.gmra.mxu0 %v3839
      %v3956 = vpop.f32.mrf.mxu0
      %v3957 = vadd.f32 0.0, %v3956
      %v3958 = vpop.f32.mrf.mxu0
      %3959 = vmatprep.mubr.f32.mxu0 0.0
      %3960 = vmatmul.mubr.f32.gmra.mxu0 %v3842
      %v3961 = vpop.f32.mrf.mxu0
      %v3962 = vadd.f32 0.0, %v3961
      %v3963 = vpop.f32.mrf.mxu0
      %3964 = vmatprep.mubr.f32.mxu0 0.0
      %3965 = vmatmul.mubr.f32.gmra.mxu0 %v3845
      %v3966 = vpop.f32.mrf.mxu0
      %v3967 = vadd.f32 0.0, %v3966
      %v3968 = vpop.f32.mrf.mxu0
      %3969 = vmatprep.mubr.f32.mxu0 0.0
      %3970 = vmatmul.mubr.f32.gmra.mxu0 %v3848
      %v3971 = vpop.f32.mrf.mxu0
      %v3972 = vadd.f32 0.0, %v3971
      %v3973 = vpop.f32.mrf.mxu0
      %3974 = vmatprep.mubr.f32.mxu0 0.0
      %3975 = vmatmul.mubr.f32.gmra.mxu0 %v3851
      %v3976 = vpop.f32.mrf.mxu0
      %v3977 = vadd.f32 0.0, %v3976
      %v3978 = vpop.f32.mrf.mxu0
      %3979 = vmatprep.mubr.f32.mxu0 0.0
      %3980 = vmatmul.mubr.f32.gmra.mxu0 %v3854
      %v3981 = vpop.f32.mrf.mxu0
      %v3982 = vadd.f32 0.0, %v3981
      %v3983 = vpop.f32.mrf.mxu0
      %3984 = vmatprep.mubr.f32.mxu0 0.0
      %3985 = vmatmul.mubr.f32.gmra.mxu0 %v3857
      %v3986 = vpop.f32.mrf.mxu0
      %v3987 = vadd.f32 0.0, %v3986
      %v3988 = vpop.f32.mrf.mxu0
      %3989 = vmatprep.mubr.f32.mxu0 0.0
      %3990 = vmatmul.mubr.f32.gmra.mxu0 %v3860
      %v3991 = vpop.f32.mrf.mxu0
      %v3992 = vadd.f32 0.0, %v3991
      %v3993 = vpop.f32.mrf.mxu0
      %3994 = vmatprep.mubr.f32.mxu0 0.0
      %3995 = vmatmul.mubr.f32.gmra.mxu0 %v3863
      %v3996 = vpop.f32.mrf.mxu0
      %v3997 = vadd.f32 0.0, %v3996
      %v3998 = vpop.f32.mrf.mxu0
      %3999 = vmatprep.mubr.f32.mxu0 0.0
      %4000 = vmatmul.mubr.f32.gmra.mxu0 %v3866
      %v4001 = vpop.f32.mrf.mxu0
      %v4002 = vadd.f32 0.0, %v4001
      %v4003 = vpop.f32.mrf.mxu0
      %4004 = vmatprep.mubr.f32.mxu0 0.0
      %4005 = vmatmul.mubr.f32.gmra.mxu0 %v3869
      %v4006 = vpop.f32.mrf.mxu0
      %v4007 = vadd.f32 0.0, %v4006
      %v4008 = vpop.f32.mrf.mxu0
      %4009 = vmatprep.mubr.f32.mxu0 0.0
      %4010 = vmatmul.mubr.f32.gmra.mxu0 %v3872
      %v4011 = vpop.f32.mrf.mxu0
      %v4012 = vadd.f32 0.0, %v4011
      %v4013 = vpop.f32.mrf.mxu0
      %4014 = vmatprep.mubr.f32.mxu0 0.0
      %4015 = vmatmul.mubr.f32.gmra.mxu0 %v3875
      %v4016 = vpop.f32.mrf.mxu0
      %v4017 = vadd.f32 0.0, %v4016
      %v4018 = vpop.f32.mrf.mxu0
      %4019 = vmatprep.mubr.f32.mxu0 0.0
      %4020 = vmatmul.mubr.f32.gmra.mxu0 %v3878
      %v4021 = vpop.f32.mrf.mxu0
      %v4022 = vadd.f32 0.0, %v4021
      %v4023 = vpop.f32.mrf.mxu0
      %4024 = vdwg.mxu0
      %v4025 = vadd.f32 %v3814, %v3947
      %v4026 = vadd.f32 %v3815, %v3952
      %v4027 = vadd.f32 %v3816, %v3957
      %v4028 = vadd.f32 %v3817, %v3962
      %v4029 = vadd.f32 %v3818, %v3967
      %v4030 = vadd.f32 %v3819, %v3972
      %v4031 = vadd.f32 %v3820, %v3977
      %v4032 = vadd.f32 %v3821, %v3982
      %v4033 = vadd.f32 %v3822, %v3987
      %v4034 = vadd.f32 %v3823, %v3992
      %v4035 = vadd.f32 %v3824, %v3997
      %v4036 = vadd.f32 %v3825, %v4002
      %v4037 = vadd.f32 %v3826, %v4007
      %v4038 = vadd.f32 %v3827, %v4012
      %v4039 = vadd.f32 %v3828, %v4017
      %v4040 = vadd.f32 %v3829, %v4022
      %4041 = vst.msk [vmem:[#allocation5] sm:$0xff] %vm327, %v4025
      %4042 = vst.msk [vmem:[#allocation5 + $0x8] sm:$0xff] %vm327, %v4026
      %4043 = vst.msk [vmem:[#allocation5 + $0x10] sm:$0xff] %vm327, %v4027
      %4044 = vst.msk [vmem:[#allocation5 + $0x18] sm:$0xff] %vm327, %v4028
      %4045 = vst.msk [vmem:[#allocation5 + $0x20] sm:$0xff] %vm327, %v4029
      %4046 = vst.msk [vmem:[#allocation5 + $0x28] sm:$0xff] %vm327, %v4030
      %4047 = vst.msk [vmem:[#allocation5 + $0x30] sm:$0xff] %vm327, %v4031
      %4048 = vst.msk [vmem:[#allocation5 + $0x38] sm:$0xff] %vm327, %v4032
      %4049 = vst.msk [vmem:[#allocation5 + $0x40] sm:$0xff] %vm327, %v4033
      %4050 = vst.msk [vmem:[#allocation5 + $0x48] sm:$0xff] %vm327, %v4034
      %4051 = vst.msk [vmem:[#allocation5 + $0x50] sm:$0xff] %vm327, %v4035
      %4052 = vst.msk [vmem:[#allocation5 + $0x58] sm:$0xff] %vm327, %v4036
      %4053 = vst.msk [vmem:[#allocation5 + $0x60] sm:$0xff] %vm327, %v4037
      %4054 = vst.msk [vmem:[#allocation5 + $0x68] sm:$0xff] %vm327, %v4038
      %4055 = vst.msk [vmem:[#allocation5 + $0x70] sm:$0xff] %vm327, %v4039
      %4056 = vst.msk [vmem:[#allocation5 + $0x78] sm:$0xff] %vm327, %v4040
      %s4057 = scalar_lea.vmem [#allocation3], 24
      %v4058 = vld [vmem:[%s4057] sm:$0xff]
      %v4059 = vld [vmem:[%s4057 + $0x8] sm:$0xff]
      %v4060 = vld [vmem:[%s4057 + $0x18] sm:$0xff]
      %v4061 = vld [vmem:[%s4057 + $0x20] sm:$0xff]
      %v4062 = vld [vmem:[%s4057 + $0x30] sm:$0xff]
      %v4063 = vld [vmem:[%s4057 + $0x38] sm:$0xff]
      %v4064 = vld [vmem:[%s4057 + $0x48] sm:$0xff]
      %v4065 = vld [vmem:[%s4057 + $0x50] sm:$0xff]
      %v4066 = vld [vmem:[%s4057 + $0x60] sm:$0xff]
      %v4067 = vld [vmem:[%s4057 + $0x68] sm:$0xff]
      %v4068 = vld [vmem:[%s4057 + $0x78] sm:$0xff]
      %v4069 = vld [vmem:[%s4057 + $0x80] sm:$0xff]
      %v4070 = vld [vmem:[%s4057 + $0x90] sm:$0xff]
      %v4071 = vld [vmem:[%s4057 + $0x98] sm:$0xff]
      %v4072 = vld [vmem:[%s4057 + $0xa8] sm:$0xff]
      %v4073 = vld [vmem:[%s4057 + $0xb0] sm:$0xff]
      %v4074 = vld [vmem:[#allocation5] sm:$0xff]
      %v4075 = vld [vmem:[#allocation5 + $0x8] sm:$0xff]
      %v4076 = vld [vmem:[#allocation5 + $0x10] sm:$0xff]
      %v4077 = vld [vmem:[#allocation5 + $0x18] sm:$0xff]
      %v4078 = vld [vmem:[#allocation5 + $0x20] sm:$0xff]
      %v4079 = vld [vmem:[#allocation5 + $0x28] sm:$0xff]
      %v4080 = vld [vmem:[#allocation5 + $0x30] sm:$0xff]
      %v4081 = vld [vmem:[#allocation5 + $0x38] sm:$0xff]
      %v4082 = vld [vmem:[#allocation5 + $0x40] sm:$0xff]
      %v4083 = vld [vmem:[#allocation5 + $0x48] sm:$0xff]
      %v4084 = vld [vmem:[#allocation5 + $0x50] sm:$0xff]
      %v4085 = vld [vmem:[#allocation5 + $0x58] sm:$0xff]
      %v4086 = vld [vmem:[#allocation5 + $0x60] sm:$0xff]
      %v4087 = vld [vmem:[#allocation5 + $0x68] sm:$0xff]
      %v4088 = vld [vmem:[#allocation5 + $0x70] sm:$0xff]
      %v4089 = vld [vmem:[#allocation5 + $0x78] sm:$0xff]
      %s4090 = scalar_lea.vmem %s3, 24
      %v4091 = vld [vmem:[%s4090] sm:$0xff]
      %v4093 = vsel %vm327, %v4058, 0
      %v4096 = vsel %vm327, %v4059, 0
      %v4099 = vsel %vm327, %v4060, 0
      %v4102 = vsel %vm327, %v4061, 0
      %v4105 = vsel %vm327, %v4062, 0
      %v4108 = vsel %vm327, %v4063, 0
      %v4111 = vsel %vm327, %v4064, 0
      %v4114 = vsel %vm327, %v4065, 0
      %v4117 = vsel %vm327, %v4066, 0
      %v4120 = vsel %vm327, %v4067, 0
      %v4123 = vsel %vm327, %v4068, 0
      %v4126 = vsel %vm327, %v4069, 0
      %v4129 = vsel %vm327, %v4070, 0
      %v4132 = vsel %vm327, %v4071, 0
      %v4135 = vsel %vm327, %v4072, 0
      %v4138 = vsel %vm327, %v4073, 0
      %4140 = vmatprep.subr.mxu0 0.0
      %4141 = vmatpush1.msra.mxu0 0.0
      %4142 = vmatprep.subr.mxu0 0.0
      %4143 = vmatpush1.msra.mxu0 0.0
      %4144 = vmatprep.subr.mxu0 0.0
      %4145 = vmatpush1.msra.mxu0 0.0
      %4146 = vmatprep.subr.mxu0 0.0
      %4147 = vmatpush1.msra.mxu0 0.0
      %4148 = vmatprep.subr.mxu0 0.0
      %4149 = vmatpush1.msra.mxu0 0.0
      %4150 = vmatprep.subr.mxu0 0.0
      %4151 = vmatpush1.msra.mxu0 0.0
      %4152 = vmatprep.subr.mxu0 0.0
      %4153 = vmatpush1.msra.mxu0 0.0
      %4154 = vmatprep.subr.mxu0 0.0
      %4155 = vmatpush1.msra.mxu0 0.0
      %4156 = vmatprep.subr.mxu0 0.0
      %4157 = vmatpush1.msra.mxu0 0.0
      %4158 = vmatprep.subr.mxu0 0.0
      %4159 = vmatpush1.msra.mxu0 0.0
      %4160 = vmatprep.subr.mxu0 0.0
      %4161 = vmatpush1.msra.mxu0 0.0
      %4162 = vmatprep.subr.mxu0 0.0
      %4163 = vmatpush1.msra.mxu0 0.0
      %4164 = vmatprep.subr.mxu0 0.0
      %4165 = vmatpush1.msra.mxu0 0.0
      %4166 = vmatprep.subr.mxu0 0.0
      %4167 = vmatpush1.msra.mxu0 0.0
      %4168 = vmatprep.subr.mxu0 0.0
      %4169 = vmatpush1.msra.mxu0 0.0
      %4170 = vmatprep.subr.mxu0 0.0
      %4171 = vmatpush1.msra.mxu0 %v4091
      %4172 = vmatprep.subr.mxu0 0.0
      %4173 = vmatpush2.msra.mxu0 0.0
      %4174 = vmatprep.subr.mxu0 0.0
      %4175 = vmatpush2.msra.mxu0 0.0
      %4176 = vmatprep.subr.mxu0 0.0
      %4177 = vmatpush2.msra.mxu0 0.0
      %4178 = vmatprep.subr.mxu0 0.0
      %4179 = vmatpush2.msra.mxu0 0.0
      %4180 = vmatprep.subr.mxu0 0.0
      %4181 = vmatpush2.msra.mxu0 0.0
      %4182 = vmatprep.subr.mxu0 0.0
      %4183 = vmatpush2.msra.mxu0 0.0
      %4184 = vmatprep.subr.mxu0 0.0
      %4185 = vmatpush2.msra.mxu0 0.0
      %4186 = vmatprep.subr.mxu0 0.0
      %4187 = vmatpush2.msra.mxu0 0.0
      %4188 = vmatprep.subr.mxu0 0.0
      %4189 = vmatpush2.msra.mxu0 0.0
      %4190 = vmatprep.subr.mxu0 0.0
      %4191 = vmatpush2.msra.mxu0 0.0
      %4192 = vmatprep.subr.mxu0 0.0
      %4193 = vmatpush2.msra.mxu0 0.0
      %4194 = vmatprep.subr.mxu0 0.0
      %4195 = vmatpush2.msra.mxu0 0.0
      %4196 = vmatprep.subr.mxu0 0.0
      %4197 = vmatpush2.msra.mxu0 0.0
      %4198 = vmatprep.subr.mxu0 0.0
      %4199 = vmatpush2.msra.mxu0 0.0
      %4200 = vmatprep.subr.mxu0 0.0
      %4201 = vmatpush2.msra.mxu0 0.0
      %4202 = vmatprep.subr.mxu0 0.0
      %4203 = vmatpush2.msra.mxu0 0.0
      %4204 = vmatprep.mubr.f32.mxu0 0.0
      %4205 = vmatmul.mubr.f32.gmra.mxu0 %v4093
      %v4206 = vpop.f32.mrf.mxu0
      %v4207 = vadd.f32 0.0, %v4206
      %v4208 = vpop.f32.mrf.mxu0
      %4209 = vmatprep.mubr.f32.mxu0 0.0
      %4210 = vmatmul.mubr.f32.gmra.mxu0 %v4096
      %v4211 = vpop.f32.mrf.mxu0
      %v4212 = vadd.f32 0.0, %v4211
      %v4213 = vpop.f32.mrf.mxu0
      %4214 = vmatprep.mubr.f32.mxu0 0.0
      %4215 = vmatmul.mubr.f32.gmra.mxu0 %v4099
      %v4216 = vpop.f32.mrf.mxu0
      %v4217 = vadd.f32 0.0, %v4216
      %v4218 = vpop.f32.mrf.mxu0
      %4219 = vmatprep.mubr.f32.mxu0 0.0
      %4220 = vmatmul.mubr.f32.gmra.mxu0 %v4102
      %v4221 = vpop.f32.mrf.mxu0
      %v4222 = vadd.f32 0.0, %v4221
      %v4223 = vpop.f32.mrf.mxu0
      %4224 = vmatprep.mubr.f32.mxu0 0.0
      %4225 = vmatmul.mubr.f32.gmra.mxu0 %v4105
      %v4226 = vpop.f32.mrf.mxu0
      %v4227 = vadd.f32 0.0, %v4226
      %v4228 = vpop.f32.mrf.mxu0
      %4229 = vmatprep.mubr.f32.mxu0 0.0
      %4230 = vmatmul.mubr.f32.gmra.mxu0 %v4108
      %v4231 = vpop.f32.mrf.mxu0
      %v4232 = vadd.f32 0.0, %v4231
      %v4233 = vpop.f32.mrf.mxu0
      %4234 = vmatprep.mubr.f32.mxu0 0.0
      %4235 = vmatmul.mubr.f32.gmra.mxu0 %v4111
      %v4236 = vpop.f32.mrf.mxu0
      %v4237 = vadd.f32 0.0, %v4236
      %v4238 = vpop.f32.mrf.mxu0
      %4239 = vmatprep.mubr.f32.mxu0 0.0
      %4240 = vmatmul.mubr.f32.gmra.mxu0 %v4114
      %v4241 = vpop.f32.mrf.mxu0
      %v4242 = vadd.f32 0.0, %v4241
      %v4243 = vpop.f32.mrf.mxu0
      %4244 = vmatprep.mubr.f32.mxu0 0.0
      %4245 = vmatmul.mubr.f32.gmra.mxu0 %v4117
      %v4246 = vpop.f32.mrf.mxu0
      %v4247 = vadd.f32 0.0, %v4246
      %v4248 = vpop.f32.mrf.mxu0
      %4249 = vmatprep.mubr.f32.mxu0 0.0
      %4250 = vmatmul.mubr.f32.gmra.mxu0 %v4120
      %v4251 = vpop.f32.mrf.mxu0
      %v4252 = vadd.f32 0.0, %v4251
      %v4253 = vpop.f32.mrf.mxu0
      %4254 = vmatprep.mubr.f32.mxu0 0.0
      %4255 = vmatmul.mubr.f32.gmra.mxu0 %v4123
      %v4256 = vpop.f32.mrf.mxu0
      %v4257 = vadd.f32 0.0, %v4256
      %v4258 = vpop.f32.mrf.mxu0
      %4259 = vmatprep.mubr.f32.mxu0 0.0
      %4260 = vmatmul.mubr.f32.gmra.mxu0 %v4126
      %v4261 = vpop.f32.mrf.mxu0
      %v4262 = vadd.f32 0.0, %v4261
      %v4263 = vpop.f32.mrf.mxu0
      %4264 = vmatprep.mubr.f32.mxu0 0.0
      %4265 = vmatmul.mubr.f32.gmra.mxu0 %v4129
      %v4266 = vpop.f32.mrf.mxu0
      %v4267 = vadd.f32 0.0, %v4266
      %v4268 = vpop.f32.mrf.mxu0
      %4269 = vmatprep.mubr.f32.mxu0 0.0
      %4270 = vmatmul.mubr.f32.gmra.mxu0 %v4132
      %v4271 = vpop.f32.mrf.mxu0
      %v4272 = vadd.f32 0.0, %v4271
      %v4273 = vpop.f32.mrf.mxu0
      %4274 = vmatprep.mubr.f32.mxu0 0.0
      %4275 = vmatmul.mubr.f32.gmra.mxu0 %v4135
      %v4276 = vpop.f32.mrf.mxu0
      %v4277 = vadd.f32 0.0, %v4276
      %v4278 = vpop.f32.mrf.mxu0
      %4279 = vmatprep.mubr.f32.mxu0 0.0
      %4280 = vmatmul.mubr.f32.gmra.mxu0 %v4138
      %v4281 = vpop.f32.mrf.mxu0
      %v4282 = vadd.f32 0.0, %v4281
      %v4283 = vpop.f32.mrf.mxu0
      %4284 = vdwg.mxu0
      %v4285 = vadd.f32 %v4074, %v4207
      %v4286 = vadd.f32 %v4075, %v4212
      %v4287 = vadd.f32 %v4076, %v4217
      %v4288 = vadd.f32 %v4077, %v4222
      %v4289 = vadd.f32 %v4078, %v4227
      %v4290 = vadd.f32 %v4079, %v4232
      %v4291 = vadd.f32 %v4080, %v4237
      %v4292 = vadd.f32 %v4081, %v4242
      %v4293 = vadd.f32 %v4082, %v4247
      %v4294 = vadd.f32 %v4083, %v4252
      %v4295 = vadd.f32 %v4084, %v4257
      %v4296 = vadd.f32 %v4085, %v4262
      %v4297 = vadd.f32 %v4086, %v4267
      %v4298 = vadd.f32 %v4087, %v4272
      %v4299 = vadd.f32 %v4088, %v4277
      %v4300 = vadd.f32 %v4089, %v4282
      %4301 = vst.msk [vmem:[#allocation5] sm:$0xff] %vm327, %v4285
      %4302 = vst.msk [vmem:[#allocation5 + $0x8] sm:$0xff] %vm327, %v4286
      %4303 = vst.msk [vmem:[#allocation5 + $0x10] sm:$0xff] %vm327, %v4287
      %4304 = vst.msk [vmem:[#allocation5 + $0x18] sm:$0xff] %vm327, %v4288
      %4305 = vst.msk [vmem:[#allocation5 + $0x20] sm:$0xff] %vm327, %v4289
      %4306 = vst.msk [vmem:[#allocation5 + $0x28] sm:$0xff] %vm327, %v4290
      %4307 = vst.msk [vmem:[#allocation5 + $0x30] sm:$0xff] %vm327, %v4291
      %4308 = vst.msk [vmem:[#allocation5 + $0x38] sm:$0xff] %vm327, %v4292
      %4309 = vst.msk [vmem:[#allocation5 + $0x40] sm:$0xff] %vm327, %v4293
      %4310 = vst.msk [vmem:[#allocation5 + $0x48] sm:$0xff] %vm327, %v4294
      %4311 = vst.msk [vmem:[#allocation5 + $0x50] sm:$0xff] %vm327, %v4295
      %4312 = vst.msk [vmem:[#allocation5 + $0x58] sm:$0xff] %vm327, %v4296
      %4313 = vst.msk [vmem:[#allocation5 + $0x60] sm:$0xff] %vm327, %v4297
      %4314 = vst.msk [vmem:[#allocation5 + $0x68] sm:$0xff] %vm327, %v4298
      %4315 = vst.msk [vmem:[#allocation5 + $0x70] sm:$0xff] %vm327, %v4299
      %4316 = vst.msk [vmem:[#allocation5 + $0x78] sm:$0xff] %vm327, %v4300
      %v4317 = vld [vmem:[%s4057 + $0x1] sm:$0xff]
      %v4318 = vld [vmem:[%s4057 + $0x9] sm:$0xff]
      %v4319 = vld [vmem:[%s4057 + $0x19] sm:$0xff]
      %v4320 = vld [vmem:[%s4057 + $0x21] sm:$0xff]
      %v4321 = vld [vmem:[%s4057 + $0x31] sm:$0xff]
      %v4322 = vld [vmem:[%s4057 + $0x39] sm:$0xff]
      %v4323 = vld [vmem:[%s4057 + $0x49] sm:$0xff]
      %v4324 = vld [vmem:[%s4057 + $0x51] sm:$0xff]
      %v4325 = vld [vmem:[%s4057 + $0x61] sm:$0xff]
      %v4326 = vld [vmem:[%s4057 + $0x69] sm:$0xff]
      %v4327 = vld [vmem:[%s4057 + $0x79] sm:$0xff]
      %v4328 = vld [vmem:[%s4057 + $0x81] sm:$0xff]
      %v4329 = vld [vmem:[%s4057 + $0x91] sm:$0xff]
      %v4330 = vld [vmem:[%s4057 + $0x99] sm:$0xff]
      %v4331 = vld [vmem:[%s4057 + $0xa9] sm:$0xff]
      %v4332 = vld [vmem:[%s4057 + $0xb1] sm:$0xff]
      %v4333 = vld [vmem:[#allocation5] sm:$0xff]
      %v4334 = vld [vmem:[#allocation5 + $0x8] sm:$0xff]
      %v4335 = vld [vmem:[#allocation5 + $0x10] sm:$0xff]
      %v4336 = vld [vmem:[#allocation5 + $0x18] sm:$0xff]
      %v4337 = vld [vmem:[#allocation5 + $0x20] sm:$0xff]
      %v4338 = vld [vmem:[#allocation5 + $0x28] sm:$0xff]
      %v4339 = vld [vmem:[#allocation5 + $0x30] sm:$0xff]
      %v4340 = vld [vmem:[#allocation5 + $0x38] sm:$0xff]
      %v4341 = vld [vmem:[#allocation5 + $0x40] sm:$0xff]
      %v4342 = vld [vmem:[#allocation5 + $0x48] sm:$0xff]
      %v4343 = vld [vmem:[#allocation5 + $0x50] sm:$0xff]
      %v4344 = vld [vmem:[#allocation5 + $0x58] sm:$0xff]
      %v4345 = vld [vmem:[#allocation5 + $0x60] sm:$0xff]
      %v4346 = vld [vmem:[#allocation5 + $0x68] sm:$0xff]
      %v4347 = vld [vmem:[#allocation5 + $0x70] sm:$0xff]
      %v4348 = vld [vmem:[#allocation5 + $0x78] sm:$0xff]
      %s4349 = scalar_lea.vmem %s3, 32
      %v4350 = vld [vmem:[%s4349] sm:$0xff]
      %v4352 = vsel %vm327, %v4317, 0
      %v4355 = vsel %vm327, %v4318, 0
      %v4358 = vsel %vm327, %v4319, 0
      %v4361 = vsel %vm327, %v4320, 0
      %v4364 = vsel %vm327, %v4321, 0
      %v4367 = vsel %vm327, %v4322, 0
      %v4370 = vsel %vm327, %v4323, 0
      %v4373 = vsel %vm327, %v4324, 0
      %v4376 = vsel %vm327, %v4325, 0
      %v4379 = vsel %vm327, %v4326, 0
      %v4382 = vsel %vm327, %v4327, 0
      %v4385 = vsel %vm327, %v4328, 0
      %v4388 = vsel %vm327, %v4329, 0
      %v4391 = vsel %vm327, %v4330, 0
      %v4394 = vsel %vm327, %v4331, 0
      %v4397 = vsel %vm327, %v4332, 0
      %4399 = vmatprep.subr.mxu0 0.0
      %4400 = vmatpush1.msra.mxu0 0.0
      %4401 = vmatprep.subr.mxu0 0.0
      %4402 = vmatpush1.msra.mxu0 0.0
      %4403 = vmatprep.subr.mxu0 0.0
      %4404 = vmatpush1.msra.mxu0 0.0
      %4405 = vmatprep.subr.mxu0 0.0
      %4406 = vmatpush1.msra.mxu0 0.0
      %4407 = vmatprep.subr.mxu0 0.0
      %4408 = vmatpush1.msra.mxu0 0.0
      %4409 = vmatprep.subr.mxu0 0.0
      %4410 = vmatpush1.msra.mxu0 0.0
      %4411 = vmatprep.subr.mxu0 0.0
      %4412 = vmatpush1.msra.mxu0 0.0
      %4413 = vmatprep.subr.mxu0 0.0
      %4414 = vmatpush1.msra.mxu0 0.0
      %4415 = vmatprep.subr.mxu0 0.0
      %4416 = vmatpush1.msra.mxu0 0.0
      %4417 = vmatprep.subr.mxu0 0.0
      %4418 = vmatpush1.msra.mxu0 0.0
      %4419 = vmatprep.subr.mxu0 0.0
      %4420 = vmatpush1.msra.mxu0 0.0
      %4421 = vmatprep.subr.mxu0 0.0
      %4422 = vmatpush1.msra.mxu0 0.0
      %4423 = vmatprep.subr.mxu0 0.0
      %4424 = vmatpush1.msra.mxu0 0.0
      %4425 = vmatprep.subr.mxu0 0.0
      %4426 = vmatpush1.msra.mxu0 0.0
      %4427 = vmatprep.subr.mxu0 0.0
      %4428 = vmatpush1.msra.mxu0 0.0
      %4429 = vmatprep.subr.mxu0 0.0
      %4430 = vmatpush1.msra.mxu0 %v4350
      %4431 = vmatprep.subr.mxu0 0.0
      %4432 = vmatpush2.msra.mxu0 0.0
      %4433 = vmatprep.subr.mxu0 0.0
      %4434 = vmatpush2.msra.mxu0 0.0
      %4435 = vmatprep.subr.mxu0 0.0
      %4436 = vmatpush2.msra.mxu0 0.0
      %4437 = vmatprep.subr.mxu0 0.0
      %4438 = vmatpush2.msra.mxu0 0.0
      %4439 = vmatprep.subr.mxu0 0.0
      %4440 = vmatpush2.msra.mxu0 0.0
      %4441 = vmatprep.subr.mxu0 0.0
      %4442 = vmatpush2.msra.mxu0 0.0
      %4443 = vmatprep.subr.mxu0 0.0
      %4444 = vmatpush2.msra.mxu0 0.0
      %4445 = vmatprep.subr.mxu0 0.0
      %4446 = vmatpush2.msra.mxu0 0.0
      %4447 = vmatprep.subr.mxu0 0.0
      %4448 = vmatpush2.msra.mxu0 0.0
      %4449 = vmatprep.subr.mxu0 0.0
      %4450 = vmatpush2.msra.mxu0 0.0
      %4451 = vmatprep.subr.mxu0 0.0
      %4452 = vmatpush2.msra.mxu0 0.0
      %4453 = vmatprep.subr.mxu0 0.0
      %4454 = vmatpush2.msra.mxu0 0.0
      %4455 = vmatprep.subr.mxu0 0.0
      %4456 = vmatpush2.msra.mxu0 0.0
      %4457 = vmatprep.subr.mxu0 0.0
      %4458 = vmatpush2.msra.mxu0 0.0
      %4459 = vmatprep.subr.mxu0 0.0
      %4460 = vmatpush2.msra.mxu0 0.0
      %4461 = vmatprep.subr.mxu0 0.0
      %4462 = vmatpush2.msra.mxu0 0.0
      %4463 = vmatprep.mubr.f32.mxu0 0.0
      %4464 = vmatmul.mubr.f32.gmra.mxu0 %v4352
      %v4465 = vpop.f32.mrf.mxu0
      %v4466 = vadd.f32 0.0, %v4465
      %v4467 = vpop.f32.mrf.mxu0
      %4468 = vmatprep.mubr.f32.mxu0 0.0
      %4469 = vmatmul.mubr.f32.gmra.mxu0 %v4355
      %v4470 = vpop.f32.mrf.mxu0
      %v4471 = vadd.f32 0.0, %v4470
      %v4472 = vpop.f32.mrf.mxu0
      %4473 = vmatprep.mubr.f32.mxu0 0.0
      %4474 = vmatmul.mubr.f32.gmra.mxu0 %v4358
      %v4475 = vpop.f32.mrf.mxu0
      %v4476 = vadd.f32 0.0, %v4475
      %v4477 = vpop.f32.mrf.mxu0
      %4478 = vmatprep.mubr.f32.mxu0 0.0
      %4479 = vmatmul.mubr.f32.gmra.mxu0 %v4361
      %v4480 = vpop.f32.mrf.mxu0
      %v4481 = vadd.f32 0.0, %v4480
      %v4482 = vpop.f32.mrf.mxu0
      %4483 = vmatprep.mubr.f32.mxu0 0.0
      %4484 = vmatmul.mubr.f32.gmra.mxu0 %v4364
      %v4485 = vpop.f32.mrf.mxu0
      %v4486 = vadd.f32 0.0, %v4485
      %v4487 = vpop.f32.mrf.mxu0
      %4488 = vmatprep.mubr.f32.mxu0 0.0
      %4489 = vmatmul.mubr.f32.gmra.mxu0 %v4367
      %v4490 = vpop.f32.mrf.mxu0
      %v4491 = vadd.f32 0.0, %v4490
      %v4492 = vpop.f32.mrf.mxu0
      %4493 = vmatprep.mubr.f32.mxu0 0.0
      %4494 = vmatmul.mubr.f32.gmra.mxu0 %v4370
      %v4495 = vpop.f32.mrf.mxu0
      %v4496 = vadd.f32 0.0, %v4495
      %v4497 = vpop.f32.mrf.mxu0
      %4498 = vmatprep.mubr.f32.mxu0 0.0
      %4499 = vmatmul.mubr.f32.gmra.mxu0 %v4373
      %v4500 = vpop.f32.mrf.mxu0
      %v4501 = vadd.f32 0.0, %v4500
      %v4502 = vpop.f32.mrf.mxu0
      %4503 = vmatprep.mubr.f32.mxu0 0.0
      %4504 = vmatmul.mubr.f32.gmra.mxu0 %v4376
      %v4505 = vpop.f32.mrf.mxu0
      %v4506 = vadd.f32 0.0, %v4505
      %v4507 = vpop.f32.mrf.mxu0
      %4508 = vmatprep.mubr.f32.mxu0 0.0
      %4509 = vmatmul.mubr.f32.gmra.mxu0 %v4379
      %v4510 = vpop.f32.mrf.mxu0
      %v4511 = vadd.f32 0.0, %v4510
      %v4512 = vpop.f32.mrf.mxu0
      %4513 = vmatprep.mubr.f32.mxu0 0.0
      %4514 = vmatmul.mubr.f32.gmra.mxu0 %v4382
      %v4515 = vpop.f32.mrf.mxu0
      %v4516 = vadd.f32 0.0, %v4515
      %v4517 = vpop.f32.mrf.mxu0
      %4518 = vmatprep.mubr.f32.mxu0 0.0
      %4519 = vmatmul.mubr.f32.gmra.mxu0 %v4385
      %v4520 = vpop.f32.mrf.mxu0
      %v4521 = vadd.f32 0.0, %v4520
      %v4522 = vpop.f32.mrf.mxu0
      %4523 = vmatprep.mubr.f32.mxu0 0.0
      %4524 = vmatmul.mubr.f32.gmra.mxu0 %v4388
      %v4525 = vpop.f32.mrf.mxu0
      %v4526 = vadd.f32 0.0, %v4525
      %v4527 = vpop.f32.mrf.mxu0
      %4528 = vmatprep.mubr.f32.mxu0 0.0
      %4529 = vmatmul.mubr.f32.gmra.mxu0 %v4391
      %v4530 = vpop.f32.mrf.mxu0
      %v4531 = vadd.f32 0.0, %v4530
      %v4532 = vpop.f32.mrf.mxu0
      %4533 = vmatprep.mubr.f32.mxu0 0.0
      %4534 = vmatmul.mubr.f32.gmra.mxu0 %v4394
      %v4535 = vpop.f32.mrf.mxu0
      %v4536 = vadd.f32 0.0, %v4535
      %v4537 = vpop.f32.mrf.mxu0
      %4538 = vmatprep.mubr.f32.mxu0 0.0
      %4539 = vmatmul.mubr.f32.gmra.mxu0 %v4397
      %v4540 = vpop.f32.mrf.mxu0
      %v4541 = vadd.f32 0.0, %v4540
      %v4542 = vpop.f32.mrf.mxu0
      %4543 = vdwg.mxu0
      %v4544 = vadd.f32 %v4333, %v4466
      %v4545 = vadd.f32 %v4334, %v4471
      %v4546 = vadd.f32 %v4335, %v4476
      %v4547 = vadd.f32 %v4336, %v4481
      %v4548 = vadd.f32 %v4337, %v4486
      %v4549 = vadd.f32 %v4338, %v4491
      %v4550 = vadd.f32 %v4339, %v4496
      %v4551 = vadd.f32 %v4340, %v4501
      %v4552 = vadd.f32 %v4341, %v4506
      %v4553 = vadd.f32 %v4342, %v4511
      %v4554 = vadd.f32 %v4343, %v4516
      %v4555 = vadd.f32 %v4344, %v4521
      %v4556 = vadd.f32 %v4345, %v4526
      %v4557 = vadd.f32 %v4346, %v4531
      %v4558 = vadd.f32 %v4347, %v4536
      %v4559 = vadd.f32 %v4348, %v4541
      %4560 = vst.msk [vmem:[#allocation5] sm:$0xff] %vm327, %v4544
      %4561 = vst.msk [vmem:[#allocation5 + $0x8] sm:$0xff] %vm327, %v4545
      %4562 = vst.msk [vmem:[#allocation5 + $0x10] sm:$0xff] %vm327, %v4546
      %4563 = vst.msk [vmem:[#allocation5 + $0x18] sm:$0xff] %vm327, %v4547
      %4564 = vst.msk [vmem:[#allocation5 + $0x20] sm:$0xff] %vm327, %v4548
      %4565 = vst.msk [vmem:[#allocation5 + $0x28] sm:$0xff] %vm327, %v4549
      %4566 = vst.msk [vmem:[#allocation5 + $0x30] sm:$0xff] %vm327, %v4550
      %4567 = vst.msk [vmem:[#allocation5 + $0x38] sm:$0xff] %vm327, %v4551
      %4568 = vst.msk [vmem:[#allocation5 + $0x40] sm:$0xff] %vm327, %v4552
      %4569 = vst.msk [vmem:[#allocation5 + $0x48] sm:$0xff] %vm327, %v4553
      %4570 = vst.msk [vmem:[#allocation5 + $0x50] sm:$0xff] %vm327, %v4554
      %4571 = vst.msk [vmem:[#allocation5 + $0x58] sm:$0xff] %vm327, %v4555
      %4572 = vst.msk [vmem:[#allocation5 + $0x60] sm:$0xff] %vm327, %v4556
      %4573 = vst.msk [vmem:[#allocation5 + $0x68] sm:$0xff] %vm327, %v4557
      %4574 = vst.msk [vmem:[#allocation5 + $0x70] sm:$0xff] %vm327, %v4558
      %4575 = vst.msk [vmem:[#allocation5 + $0x78] sm:$0xff] %vm327, %v4559
      %v4576 = vld [vmem:[%s4057 + $0x2] sm:$0xff]
      %v4577 = vld [vmem:[%s4057 + $0xa] sm:$0xff]
      %v4578 = vld [vmem:[%s4057 + $0x1a] sm:$0xff]
      %v4579 = vld [vmem:[%s4057 + $0x22] sm:$0xff]
      %v4580 = vld [vmem:[%s4057 + $0x32] sm:$0xff]
      %v4581 = vld [vmem:[%s4057 + $0x3a] sm:$0xff]
      %v4582 = vld [vmem:[%s4057 + $0x4a] sm:$0xff]
      %v4583 = vld [vmem:[%s4057 + $0x52] sm:$0xff]
      %v4584 = vld [vmem:[%s4057 + $0x62] sm:$0xff]
      %v4585 = vld [vmem:[%s4057 + $0x6a] sm:$0xff]
      %v4586 = vld [vmem:[%s4057 + $0x7a] sm:$0xff]
      %v4587 = vld [vmem:[%s4057 + $0x82] sm:$0xff]
      %v4588 = vld [vmem:[%s4057 + $0x92] sm:$0xff]
      %v4589 = vld [vmem:[%s4057 + $0x9a] sm:$0xff]
      %v4590 = vld [vmem:[%s4057 + $0xaa] sm:$0xff]
      %v4591 = vld [vmem:[%s4057 + $0xb2] sm:$0xff]
      %v4592 = vld [vmem:[#allocation5] sm:$0xff]
      %v4593 = vld [vmem:[#allocation5 + $0x8] sm:$0xff]
      %v4594 = vld [vmem:[#allocation5 + $0x10] sm:$0xff]
      %v4595 = vld [vmem:[#allocation5 + $0x18] sm:$0xff]
      %v4596 = vld [vmem:[#allocation5 + $0x20] sm:$0xff]
      %v4597 = vld [vmem:[#allocation5 + $0x28] sm:$0xff]
      %v4598 = vld [vmem:[#allocation5 + $0x30] sm:$0xff]
      %v4599 = vld [vmem:[#allocation5 + $0x38] sm:$0xff]
      %v4600 = vld [vmem:[#allocation5 + $0x40] sm:$0xff]
      %v4601 = vld [vmem:[#allocation5 + $0x48] sm:$0xff]
      %v4602 = vld [vmem:[#allocation5 + $0x50] sm:$0xff]
      %v4603 = vld [vmem:[#allocation5 + $0x58] sm:$0xff]
      %v4604 = vld [vmem:[#allocation5 + $0x60] sm:$0xff]
      %v4605 = vld [vmem:[#allocation5 + $0x68] sm:$0xff]
      %v4606 = vld [vmem:[#allocation5 + $0x70] sm:$0xff]
      %v4607 = vld [vmem:[#allocation5 + $0x78] sm:$0xff]
      %s4608 = scalar_lea.vmem %s3, 40
      %v4609 = vld [vmem:[%s4608] sm:$0xff]
      %v4611 = vsel %vm327, %v4576, 0
      %v4614 = vsel %vm327, %v4577, 0
      %v4617 = vsel %vm327, %v4578, 0
      %v4620 = vsel %vm327, %v4579, 0
      %v4623 = vsel %vm327, %v4580, 0
      %v4626 = vsel %vm327, %v4581, 0
      %v4629 = vsel %vm327, %v4582, 0
      %v4632 = vsel %vm327, %v4583, 0
      %v4635 = vsel %vm327, %v4584, 0
      %v4638 = vsel %vm327, %v4585, 0
      %v4641 = vsel %vm327, %v4586, 0
      %v4644 = vsel %vm327, %v4587, 0
      %v4647 = vsel %vm327, %v4588, 0
      %v4650 = vsel %vm327, %v4589, 0
      %v4653 = vsel %vm327, %v4590, 0
      %v4656 = vsel %vm327, %v4591, 0
      %4658 = vmatprep.subr.mxu0 0.0
      %4659 = vmatpush1.msra.mxu0 0.0
      %4660 = vmatprep.subr.mxu0 0.0
      %4661 = vmatpush1.msra.mxu0 0.0
      %4662 = vmatprep.subr.mxu0 0.0
      %4663 = vmatpush1.msra.mxu0 0.0
      %4664 = vmatprep.subr.mxu0 0.0
      %4665 = vmatpush1.msra.mxu0 0.0
      %4666 = vmatprep.subr.mxu0 0.0
      %4667 = vmatpush1.msra.mxu0 0.0
      %4668 = vmatprep.subr.mxu0 0.0
      %4669 = vmatpush1.msra.mxu0 0.0
      %4670 = vmatprep.subr.mxu0 0.0
      %4671 = vmatpush1.msra.mxu0 0.0
      %4672 = vmatprep.subr.mxu0 0.0
      %4673 = vmatpush1.msra.mxu0 0.0
      %4674 = vmatprep.subr.mxu0 0.0
      %4675 = vmatpush1.msra.mxu0 0.0
      %4676 = vmatprep.subr.mxu0 0.0
      %4677 = vmatpush1.msra.mxu0 0.0
      %4678 = vmatprep.subr.mxu0 0.0
      %4679 = vmatpush1.msra.mxu0 0.0
      %4680 = vmatprep.subr.mxu0 0.0
      %4681 = vmatpush1.msra.mxu0 0.0
      %4682 = vmatprep.subr.mxu0 0.0
      %4683 = vmatpush1.msra.mxu0 0.0
      %4684 = vmatprep.subr.mxu0 0.0
      %4685 = vmatpush1.msra.mxu0 0.0
      %4686 = vmatprep.subr.mxu0 0.0
      %4687 = vmatpush1.msra.mxu0 0.0
      %4688 = vmatprep.subr.mxu0 0.0
      %4689 = vmatpush1.msra.mxu0 %v4609
      %4690 = vmatprep.subr.mxu0 0.0
      %4691 = vmatpush2.msra.mxu0 0.0
      %4692 = vmatprep.subr.mxu0 0.0
      %4693 = vmatpush2.msra.mxu0 0.0
      %4694 = vmatprep.subr.mxu0 0.0
      %4695 = vmatpush2.msra.mxu0 0.0
      %4696 = vmatprep.subr.mxu0 0.0
      %4697 = vmatpush2.msra.mxu0 0.0
      %4698 = vmatprep.subr.mxu0 0.0
      %4699 = vmatpush2.msra.mxu0 0.0
      %4700 = vmatprep.subr.mxu0 0.0
      %4701 = vmatpush2.msra.mxu0 0.0
      %4702 = vmatprep.subr.mxu0 0.0
      %4703 = vmatpush2.msra.mxu0 0.0
      %4704 = vmatprep.subr.mxu0 0.0
      %4705 = vmatpush2.msra.mxu0 0.0
      %4706 = vmatprep.subr.mxu0 0.0
      %4707 = vmatpush2.msra.mxu0 0.0
      %4708 = vmatprep.subr.mxu0 0.0
      %4709 = vmatpush2.msra.mxu0 0.0
      %4710 = vmatprep.subr.mxu0 0.0
      %4711 = vmatpush2.msra.mxu0 0.0
      %4712 = vmatprep.subr.mxu0 0.0
      %4713 = vmatpush2.msra.mxu0 0.0
      %4714 = vmatprep.subr.mxu0 0.0
      %4715 = vmatpush2.msra.mxu0 0.0
      %4716 = vmatprep.subr.mxu0 0.0
      %4717 = vmatpush2.msra.mxu0 0.0
      %4718 = vmatprep.subr.mxu0 0.0
      %4719 = vmatpush2.msra.mxu0 0.0
      %4720 = vmatprep.subr.mxu0 0.0
      %4721 = vmatpush2.msra.mxu0 0.0
      %4722 = vmatprep.mubr.f32.mxu0 0.0
      %4723 = vmatmul.mubr.f32.gmra.mxu0 %v4611
      %v4724 = vpop.f32.mrf.mxu0
      %v4725 = vadd.f32 0.0, %v4724
      %v4726 = vpop.f32.mrf.mxu0
      %4727 = vmatprep.mubr.f32.mxu0 0.0
      %4728 = vmatmul.mubr.f32.gmra.mxu0 %v4614
      %v4729 = vpop.f32.mrf.mxu0
      %v4730 = vadd.f32 0.0, %v4729
      %v4731 = vpop.f32.mrf.mxu0
      %4732 = vmatprep.mubr.f32.mxu0 0.0
      %4733 = vmatmul.mubr.f32.gmra.mxu0 %v4617
      %v4734 = vpop.f32.mrf.mxu0
      %v4735 = vadd.f32 0.0, %v4734
      %v4736 = vpop.f32.mrf.mxu0
      %4737 = vmatprep.mubr.f32.mxu0 0.0
      %4738 = vmatmul.mubr.f32.gmra.mxu0 %v4620
      %v4739 = vpop.f32.mrf.mxu0
      %v4740 = vadd.f32 0.0, %v4739
      %v4741 = vpop.f32.mrf.mxu0
      %4742 = vmatprep.mubr.f32.mxu0 0.0
      %4743 = vmatmul.mubr.f32.gmra.mxu0 %v4623
      %v4744 = vpop.f32.mrf.mxu0
      %v4745 = vadd.f32 0.0, %v4744
      %v4746 = vpop.f32.mrf.mxu0
      %4747 = vmatprep.mubr.f32.mxu0 0.0
      %4748 = vmatmul.mubr.f32.gmra.mxu0 %v4626
      %v4749 = vpop.f32.mrf.mxu0
      %v4750 = vadd.f32 0.0, %v4749
      %v4751 = vpop.f32.mrf.mxu0
      %4752 = vmatprep.mubr.f32.mxu0 0.0
      %4753 = vmatmul.mubr.f32.gmra.mxu0 %v4629
      %v4754 = vpop.f32.mrf.mxu0
      %v4755 = vadd.f32 0.0, %v4754
      %v4756 = vpop.f32.mrf.mxu0
      %4757 = vmatprep.mubr.f32.mxu0 0.0
      %4758 = vmatmul.mubr.f32.gmra.mxu0 %v4632
      %v4759 = vpop.f32.mrf.mxu0
      %v4760 = vadd.f32 0.0, %v4759
      %v4761 = vpop.f32.mrf.mxu0
      %4762 = vmatprep.mubr.f32.mxu0 0.0
      %4763 = vmatmul.mubr.f32.gmra.mxu0 %v4635
      %v4764 = vpop.f32.mrf.mxu0
      %v4765 = vadd.f32 0.0, %v4764
      %v4766 = vpop.f32.mrf.mxu0
      %4767 = vmatprep.mubr.f32.mxu0 0.0
      %4768 = vmatmul.mubr.f32.gmra.mxu0 %v4638
      %v4769 = vpop.f32.mrf.mxu0
      %v4770 = vadd.f32 0.0, %v4769
      %v4771 = vpop.f32.mrf.mxu0
      %4772 = vmatprep.mubr.f32.mxu0 0.0
      %4773 = vmatmul.mubr.f32.gmra.mxu0 %v4641
      %v4774 = vpop.f32.mrf.mxu0
      %v4775 = vadd.f32 0.0, %v4774
      %v4776 = vpop.f32.mrf.mxu0
      %4777 = vmatprep.mubr.f32.mxu0 0.0
      %4778 = vmatmul.mubr.f32.gmra.mxu0 %v4644
      %v4779 = vpop.f32.mrf.mxu0
      %v4780 = vadd.f32 0.0, %v4779
      %v4781 = vpop.f32.mrf.mxu0
      %4782 = vmatprep.mubr.f32.mxu0 0.0
      %4783 = vmatmul.mubr.f32.gmra.mxu0 %v4647
      %v4784 = vpop.f32.mrf.mxu0
      %v4785 = vadd.f32 0.0, %v4784
      %v4786 = vpop.f32.mrf.mxu0
      %4787 = vmatprep.mubr.f32.mxu0 0.0
      %4788 = vmatmul.mubr.f32.gmra.mxu0 %v4650
      %v4789 = vpop.f32.mrf.mxu0
      %v4790 = vadd.f32 0.0, %v4789
      %v4791 = vpop.f32.mrf.mxu0
      %4792 = vmatprep.mubr.f32.mxu0 0.0
      %4793 = vmatmul.mubr.f32.gmra.mxu0 %v4653
      %v4794 = vpop.f32.mrf.mxu0
      %v4795 = vadd.f32 0.0, %v4794
      %v4796 = vpop.f32.mrf.mxu0
      %4797 = vmatprep.mubr.f32.mxu0 0.0
      %4798 = vmatmul.mubr.f32.gmra.mxu0 %v4656
      %v4799 = vpop.f32.mrf.mxu0
      %v4800 = vadd.f32 0.0, %v4799
      %v4801 = vpop.f32.mrf.mxu0
      %4802 = vdwg.mxu0
      %v4803 = vadd.f32 %v4592, %v4725
      %v4804 = vadd.f32 %v4593, %v4730
      %v4805 = vadd.f32 %v4594, %v4735
      %v4806 = vadd.f32 %v4595, %v4740
      %v4807 = vadd.f32 %v4596, %v4745
      %v4808 = vadd.f32 %v4597, %v4750
      %v4809 = vadd.f32 %v4598, %v4755
      %v4810 = vadd.f32 %v4599, %v4760
      %v4811 = vadd.f32 %v4600, %v4765
      %v4812 = vadd.f32 %v4601, %v4770
      %v4813 = vadd.f32 %v4602, %v4775
      %v4814 = vadd.f32 %v4603, %v4780
      %v4815 = vadd.f32 %v4604, %v4785
      %v4816 = vadd.f32 %v4605, %v4790
      %v4817 = vadd.f32 %v4606, %v4795
      %v4818 = vadd.f32 %v4607, %v4800
      %4819 = vst.msk [vmem:[#allocation5] sm:$0xff] %vm327, %v4803
      %4820 = vst.msk [vmem:[#allocation5 + $0x8] sm:$0xff] %vm327, %v4804
      %4821 = vst.msk [vmem:[#allocation5 + $0x10] sm:$0xff] %vm327, %v4805
      %4822 = vst.msk [vmem:[#allocation5 + $0x18] sm:$0xff] %vm327, %v4806
      %4823 = vst.msk [vmem:[#allocation5 + $0x20] sm:$0xff] %vm327, %v4807
      %4824 = vst.msk [vmem:[#allocation5 + $0x28] sm:$0xff] %vm327, %v4808
      %4825 = vst.msk [vmem:[#allocation5 + $0x30] sm:$0xff] %vm327, %v4809
      %4826 = vst.msk [vmem:[#allocation5 + $0x38] sm:$0xff] %vm327, %v4810
      %4827 = vst.msk [vmem:[#allocation5 + $0x40] sm:$0xff] %vm327, %v4811
      %4828 = vst.msk [vmem:[#allocation5 + $0x48] sm:$0xff] %vm327, %v4812
      %4829 = vst.msk [vmem:[#allocation5 + $0x50] sm:$0xff] %vm327, %v4813
      %4830 = vst.msk [vmem:[#allocation5 + $0x58] sm:$0xff] %vm327, %v4814
      %4831 = vst.msk [vmem:[#allocation5 + $0x60] sm:$0xff] %vm327, %v4815
      %4832 = vst.msk [vmem:[#allocation5 + $0x68] sm:$0xff] %vm327, %v4816
      %4833 = vst.msk [vmem:[#allocation5 + $0x70] sm:$0xff] %vm327, %v4817
      %4834 = vst.msk [vmem:[#allocation5 + $0x78] sm:$0xff] %vm327, %v4818
      %s4835 = scalar_lea.vmem [#allocation3], 48
      %v4836 = vld [vmem:[%s4835] sm:$0xff]
      %v4837 = vld [vmem:[%s4835 + $0x8] sm:$0xff]
      %v4838 = vld [vmem:[%s4835 + $0x18] sm:$0xff]
      %v4839 = vld [vmem:[%s4835 + $0x20] sm:$0xff]
      %v4840 = vld [vmem:[%s4835 + $0x30] sm:$0xff]
      %v4841 = vld [vmem:[%s4835 + $0x38] sm:$0xff]
      %v4842 = vld [vmem:[%s4835 + $0x48] sm:$0xff]
      %v4843 = vld [vmem:[%s4835 + $0x50] sm:$0xff]
      %v4844 = vld [vmem:[%s4835 + $0x60] sm:$0xff]
      %v4845 = vld [vmem:[%s4835 + $0x68] sm:$0xff]
      %v4846 = vld [vmem:[%s4835 + $0x78] sm:$0xff]
      %v4847 = vld [vmem:[%s4835 + $0x80] sm:$0xff]
      %v4848 = vld [vmem:[%s4835 + $0x90] sm:$0xff]
      %v4849 = vld [vmem:[%s4835 + $0x98] sm:$0xff]
      %v4850 = vld [vmem:[%s4835 + $0xa8] sm:$0xff]
      %v4851 = vld [vmem:[%s4835 + $0xb0] sm:$0xff]
      %v4852 = vld [vmem:[#allocation5] sm:$0xff]
      %v4853 = vld [vmem:[#allocation5 + $0x8] sm:$0xff]
      %v4854 = vld [vmem:[#allocation5 + $0x10] sm:$0xff]
      %v4855 = vld [vmem:[#allocation5 + $0x18] sm:$0xff]
      %v4856 = vld [vmem:[#allocation5 + $0x20] sm:$0xff]
      %v4857 = vld [vmem:[#allocation5 + $0x28] sm:$0xff]
      %v4858 = vld [vmem:[#allocation5 + $0x30] sm:$0xff]
      %v4859 = vld [vmem:[#allocation5 + $0x38] sm:$0xff]
      %v4860 = vld [vmem:[#allocation5 + $0x40] sm:$0xff]
      %v4861 = vld [vmem:[#allocation5 + $0x48] sm:$0xff]
      %v4862 = vld [vmem:[#allocation5 + $0x50] sm:$0xff]
      %v4863 = vld [vmem:[#allocation5 + $0x58] sm:$0xff]
      %v4864 = vld [vmem:[#allocation5 + $0x60] sm:$0xff]
      %v4865 = vld [vmem:[#allocation5 + $0x68] sm:$0xff]
      %v4866 = vld [vmem:[#allocation5 + $0x70] sm:$0xff]
      %v4867 = vld [vmem:[#allocation5 + $0x78] sm:$0xff]
      %s4868 = scalar_lea.vmem %s3, 48
      %v4869 = vld [vmem:[%s4868] sm:$0xff]
      %v4871 = vsel %vm327, %v4836, 0
      %v4874 = vsel %vm327, %v4837, 0
      %v4877 = vsel %vm327, %v4838, 0
      %v4880 = vsel %vm327, %v4839, 0
      %v4883 = vsel %vm327, %v4840, 0
      %v4886 = vsel %vm327, %v4841, 0
      %v4889 = vsel %vm327, %v4842, 0
      %v4892 = vsel %vm327, %v4843, 0
      %v4895 = vsel %vm327, %v4844, 0
      %v4898 = vsel %vm327, %v4845, 0
      %v4901 = vsel %vm327, %v4846, 0
      %v4904 = vsel %vm327, %v4847, 0
      %v4907 = vsel %vm327, %v4848, 0
      %v4910 = vsel %vm327, %v4849, 0
      %v4913 = vsel %vm327, %v4850, 0
      %v4916 = vsel %vm327, %v4851, 0
      %4918 = vmatprep.subr.mxu0 0.0
      %4919 = vmatpush1.msra.mxu0 0.0
      %4920 = vmatprep.subr.mxu0 0.0
      %4921 = vmatpush1.msra.mxu0 0.0
      %4922 = vmatprep.subr.mxu0 0.0
      %4923 = vmatpush1.msra.mxu0 0.0
      %4924 = vmatprep.subr.mxu0 0.0
      %4925 = vmatpush1.msra.mxu0 0.0
      %4926 = vmatprep.subr.mxu0 0.0
      %4927 = vmatpush1.msra.mxu0 0.0
      %4928 = vmatprep.subr.mxu0 0.0
      %4929 = vmatpush1.msra.mxu0 0.0
      %4930 = vmatprep.subr.mxu0 0.0
      %4931 = vmatpush1.msra.mxu0 0.0
      %4932 = vmatprep.subr.mxu0 0.0
      %4933 = vmatpush1.msra.mxu0 0.0
      %4934 = vmatprep.subr.mxu0 0.0
      %4935 = vmatpush1.msra.mxu0 0.0
      %4936 = vmatprep.subr.mxu0 0.0
      %4937 = vmatpush1.msra.mxu0 0.0
      %4938 = vmatprep.subr.mxu0 0.0
      %4939 = vmatpush1.msra.mxu0 0.0
      %4940 = vmatprep.subr.mxu0 0.0
      %4941 = vmatpush1.msra.mxu0 0.0
      %4942 = vmatprep.subr.mxu0 0.0
      %4943 = vmatpush1.msra.mxu0 0.0
      %4944 = vmatprep.subr.mxu0 0.0
      %4945 = vmatpush1.msra.mxu0 0.0
      %4946 = vmatprep.subr.mxu0 0.0
      %4947 = vmatpush1.msra.mxu0 0.0
      %4948 = vmatprep.subr.mxu0 0.0
      %4949 = vmatpush1.msra.mxu0 %v4869
      %4950 = vmatprep.subr.mxu0 0.0
      %4951 = vmatpush2.msra.mxu0 0.0
      %4952 = vmatprep.subr.mxu0 0.0
      %4953 = vmatpush2.msra.mxu0 0.0
      %4954 = vmatprep.subr.mxu0 0.0
      %4955 = vmatpush2.msra.mxu0 0.0
      %4956 = vmatprep.subr.mxu0 0.0
      %4957 = vmatpush2.msra.mxu0 0.0
      %4958 = vmatprep.subr.mxu0 0.0
      %4959 = vmatpush2.msra.mxu0 0.0
      %4960 = vmatprep.subr.mxu0 0.0
      %4961 = vmatpush2.msra.mxu0 0.0
      %4962 = vmatprep.subr.mxu0 0.0
      %4963 = vmatpush2.msra.mxu0 0.0
      %4964 = vmatprep.subr.mxu0 0.0
      %4965 = vmatpush2.msra.mxu0 0.0
      %4966 = vmatprep.subr.mxu0 0.0
      %4967 = vmatpush2.msra.mxu0 0.0
      %4968 = vmatprep.subr.mxu0 0.0
      %4969 = vmatpush2.msra.mxu0 0.0
      %4970 = vmatprep.subr.mxu0 0.0
      %4971 = vmatpush2.msra.mxu0 0.0
      %4972 = vmatprep.subr.mxu0 0.0
      %4973 = vmatpush2.msra.mxu0 0.0
      %4974 = vmatprep.subr.mxu0 0.0
      %4975 = vmatpush2.msra.mxu0 0.0
      %4976 = vmatprep.subr.mxu0 0.0
      %4977 = vmatpush2.msra.mxu0 0.0
      %4978 = vmatprep.subr.mxu0 0.0
      %4979 = vmatpush2.msra.mxu0 0.0
      %4980 = vmatprep.subr.mxu0 0.0
      %4981 = vmatpush2.msra.mxu0 0.0
      %4982 = vmatprep.mubr.f32.mxu0 0.0
      %4983 = vmatmul.mubr.f32.gmra.mxu0 %v4871
      %v4984 = vpop.f32.mrf.mxu0
      %v4985 = vadd.f32 0.0, %v4984
      %v4986 = vpop.f32.mrf.mxu0
      %4987 = vmatprep.mubr.f32.mxu0 0.0
      %4988 = vmatmul.mubr.f32.gmra.mxu0 %v4874
      %v4989 = vpop.f32.mrf.mxu0
      %v4990 = vadd.f32 0.0, %v4989
      %v4991 = vpop.f32.mrf.mxu0
      %4992 = vmatprep.mubr.f32.mxu0 0.0
      %4993 = vmatmul.mubr.f32.gmra.mxu0 %v4877
      %v4994 = vpop.f32.mrf.mxu0
      %v4995 = vadd.f32 0.0, %v4994
      %v4996 = vpop.f32.mrf.mxu0
      %4997 = vmatprep.mubr.f32.mxu0 0.0
      %4998 = vmatmul.mubr.f32.gmra.mxu0 %v4880
      %v4999 = vpop.f32.mrf.mxu0
      %v5000 = vadd.f32 0.0, %v4999
      %v5001 = vpop.f32.mrf.mxu0
      %5002 = vmatprep.mubr.f32.mxu0 0.0
      %5003 = vmatmul.mubr.f32.gmra.mxu0 %v4883
      %v5004 = vpop.f32.mrf.mxu0
      %v5005 = vadd.f32 0.0, %v5004
      %v5006 = vpop.f32.mrf.mxu0
      %5007 = vmatprep.mubr.f32.mxu0 0.0
      %5008 = vmatmul.mubr.f32.gmra.mxu0 %v4886
      %v5009 = vpop.f32.mrf.mxu0
      %v5010 = vadd.f32 0.0, %v5009
      %v5011 = vpop.f32.mrf.mxu0
      %5012 = vmatprep.mubr.f32.mxu0 0.0
      %5013 = vmatmul.mubr.f32.gmra.mxu0 %v4889
      %v5014 = vpop.f32.mrf.mxu0
      %v5015 = vadd.f32 0.0, %v5014
      %v5016 = vpop.f32.mrf.mxu0
      %5017 = vmatprep.mubr.f32.mxu0 0.0
      %5018 = vmatmul.mubr.f32.gmra.mxu0 %v4892
      %v5019 = vpop.f32.mrf.mxu0
      %v5020 = vadd.f32 0.0, %v5019
      %v5021 = vpop.f32.mrf.mxu0
      %5022 = vmatprep.mubr.f32.mxu0 0.0
      %5023 = vmatmul.mubr.f32.gmra.mxu0 %v4895
      %v5024 = vpop.f32.mrf.mxu0
      %v5025 = vadd.f32 0.0, %v5024
      %v5026 = vpop.f32.mrf.mxu0
      %5027 = vmatprep.mubr.f32.mxu0 0.0
      %5028 = vmatmul.mubr.f32.gmra.mxu0 %v4898
      %v5029 = vpop.f32.mrf.mxu0
      %v5030 = vadd.f32 0.0, %v5029
      %v5031 = vpop.f32.mrf.mxu0
      %5032 = vmatprep.mubr.f32.mxu0 0.0
      %5033 = vmatmul.mubr.f32.gmra.mxu0 %v4901
      %v5034 = vpop.f32.mrf.mxu0
      %v5035 = vadd.f32 0.0, %v5034
      %v5036 = vpop.f32.mrf.mxu0
      %5037 = vmatprep.mubr.f32.mxu0 0.0
      %5038 = vmatmul.mubr.f32.gmra.mxu0 %v4904
      %v5039 = vpop.f32.mrf.mxu0
      %v5040 = vadd.f32 0.0, %v5039
      %v5041 = vpop.f32.mrf.mxu0
      %5042 = vmatprep.mubr.f32.mxu0 0.0
      %5043 = vmatmul.mubr.f32.gmra.mxu0 %v4907
      %v5044 = vpop.f32.mrf.mxu0
      %v5045 = vadd.f32 0.0, %v5044
      %v5046 = vpop.f32.mrf.mxu0
      %5047 = vmatprep.mubr.f32.mxu0 0.0
      %5048 = vmatmul.mubr.f32.gmra.mxu0 %v4910
      %v5049 = vpop.f32.mrf.mxu0
      %v5050 = vadd.f32 0.0, %v5049
      %v5051 = vpop.f32.mrf.mxu0
      %5052 = vmatprep.mubr.f32.mxu0 0.0
      %5053 = vmatmul.mubr.f32.gmra.mxu0 %v4913
      %v5054 = vpop.f32.mrf.mxu0
      %v5055 = vadd.f32 0.0, %v5054
      %v5056 = vpop.f32.mrf.mxu0
      %5057 = vmatprep.mubr.f32.mxu0 0.0
      %5058 = vmatmul.mubr.f32.gmra.mxu0 %v4916
      %v5059 = vpop.f32.mrf.mxu0
      %v5060 = vadd.f32 0.0, %v5059
      %v5061 = vpop.f32.mrf.mxu0
      %5062 = vdwg.mxu0
      %v5063 = vadd.f32 %v4852, %v4985
      %v5064 = vadd.f32 %v4853, %v4990
      %v5065 = vadd.f32 %v4854, %v4995
      %v5066 = vadd.f32 %v4855, %v5000
      %v5067 = vadd.f32 %v4856, %v5005
      %v5068 = vadd.f32 %v4857, %v5010
      %v5069 = vadd.f32 %v4858, %v5015
      %v5070 = vadd.f32 %v4859, %v5020
      %v5071 = vadd.f32 %v4860, %v5025
      %v5072 = vadd.f32 %v4861, %v5030
      %v5073 = vadd.f32 %v4862, %v5035
      %v5074 = vadd.f32 %v4863, %v5040
      %v5075 = vadd.f32 %v4864, %v5045
      %v5076 = vadd.f32 %v4865, %v5050
      %v5077 = vadd.f32 %v4866, %v5055
      %v5078 = vadd.f32 %v4867, %v5060
      %5079 = vst.msk [vmem:[#allocation5] sm:$0xff] %vm327, %v5063
      %5080 = vst.msk [vmem:[#allocation5 + $0x8] sm:$0xff] %vm327, %v5064
      %5081 = vst.msk [vmem:[#allocation5 + $0x10] sm:$0xff] %vm327, %v5065
      %5082 = vst.msk [vmem:[#allocation5 + $0x18] sm:$0xff] %vm327, %v5066
      %5083 = vst.msk [vmem:[#allocation5 + $0x20] sm:$0xff] %vm327, %v5067
      %5084 = vst.msk [vmem:[#allocation5 + $0x28] sm:$0xff] %vm327, %v5068
      %5085 = vst.msk [vmem:[#allocation5 + $0x30] sm:$0xff] %vm327, %v5069
      %5086 = vst.msk [vmem:[#allocation5 + $0x38] sm:$0xff] %vm327, %v5070
      %5087 = vst.msk [vmem:[#allocation5 + $0x40] sm:$0xff] %vm327, %v5071
      %5088 = vst.msk [vmem:[#allocation5 + $0x48] sm:$0xff] %vm327, %v5072
      %5089 = vst.msk [vmem:[#allocation5 + $0x50] sm:$0xff] %vm327, %v5073
      %5090 = vst.msk [vmem:[#allocation5 + $0x58] sm:$0xff] %vm327, %v5074
      %5091 = vst.msk [vmem:[#allocation5 + $0x60] sm:$0xff] %vm327, %v5075
      %5092 = vst.msk [vmem:[#allocation5 + $0x68] sm:$0xff] %vm327, %v5076
      %5093 = vst.msk [vmem:[#allocation5 + $0x70] sm:$0xff] %vm327, %v5077
      %5094 = vst.msk [vmem:[#allocation5 + $0x78] sm:$0xff] %vm327, %v5078
      %v5095 = vld [vmem:[%s4835 + $0x1] sm:$0xff]
      %v5096 = vld [vmem:[%s4835 + $0x9] sm:$0xff]
      %v5097 = vld [vmem:[%s4835 + $0x19] sm:$0xff]
      %v5098 = vld [vmem:[%s4835 + $0x21] sm:$0xff]
      %v5099 = vld [vmem:[%s4835 + $0x31] sm:$0xff]
      %v5100 = vld [vmem:[%s4835 + $0x39] sm:$0xff]
      %v5101 = vld [vmem:[%s4835 + $0x49] sm:$0xff]
      %v5102 = vld [vmem:[%s4835 + $0x51] sm:$0xff]
      %v5103 = vld [vmem:[%s4835 + $0x61] sm:$0xff]
      %v5104 = vld [vmem:[%s4835 + $0x69] sm:$0xff]
      %v5105 = vld [vmem:[%s4835 + $0x79] sm:$0xff]
      %v5106 = vld [vmem:[%s4835 + $0x81] sm:$0xff]
      %v5107 = vld [vmem:[%s4835 + $0x91] sm:$0xff]
      %v5108 = vld [vmem:[%s4835 + $0x99] sm:$0xff]
      %v5109 = vld [vmem:[%s4835 + $0xa9] sm:$0xff]
      %v5110 = vld [vmem:[%s4835 + $0xb1] sm:$0xff]
      %v5111 = vld [vmem:[#allocation5] sm:$0xff]
      %v5112 = vld [vmem:[#allocation5 + $0x8] sm:$0xff]
      %v5113 = vld [vmem:[#allocation5 + $0x10] sm:$0xff]
      %v5114 = vld [vmem:[#allocation5 + $0x18] sm:$0xff]
      %v5115 = vld [vmem:[#allocation5 + $0x20] sm:$0xff]
      %v5116 = vld [vmem:[#allocation5 + $0x28] sm:$0xff]
      %v5117 = vld [vmem:[#allocation5 + $0x30] sm:$0xff]
      %v5118 = vld [vmem:[#allocation5 + $0x38] sm:$0xff]
      %v5119 = vld [vmem:[#allocation5 + $0x40] sm:$0xff]
      %v5120 = vld [vmem:[#allocation5 + $0x48] sm:$0xff]
      %v5121 = vld [vmem:[#allocation5 + $0x50] sm:$0xff]
      %v5122 = vld [vmem:[#allocation5 + $0x58] sm:$0xff]
      %v5123 = vld [vmem:[#allocation5 + $0x60] sm:$0xff]
      %v5124 = vld [vmem:[#allocation5 + $0x68] sm:$0xff]
      %v5125 = vld [vmem:[#allocation5 + $0x70] sm:$0xff]
      %v5126 = vld [vmem:[#allocation5 + $0x78] sm:$0xff]
      %s5127 = scalar_lea.vmem %s3, 56
      %v5128 = vld [vmem:[%s5127] sm:$0xff]
      %v5130 = vsel %vm327, %v5095, 0
      %v5133 = vsel %vm327, %v5096, 0
      %v5136 = vsel %vm327, %v5097, 0
      %v5139 = vsel %vm327, %v5098, 0
      %v5142 = vsel %vm327, %v5099, 0
      %v5145 = vsel %vm327, %v5100, 0
      %v5148 = vsel %vm327, %v5101, 0
      %v5151 = vsel %vm327, %v5102, 0
      %v5154 = vsel %vm327, %v5103, 0
      %v5157 = vsel %vm327, %v5104, 0
      %v5160 = vsel %vm327, %v5105, 0
      %v5163 = vsel %vm327, %v5106, 0
      %v5166 = vsel %vm327, %v5107, 0
      %v5169 = vsel %vm327, %v5108, 0
      %v5172 = vsel %vm327, %v5109, 0
      %v5175 = vsel %vm327, %v5110, 0
      %5177 = vmatprep.subr.mxu0 0.0
      %5178 = vmatpush1.msra.mxu0 0.0
      %5179 = vmatprep.subr.mxu0 0.0
      %5180 = vmatpush1.msra.mxu0 0.0
      %5181 = vmatprep.subr.mxu0 0.0
      %5182 = vmatpush1.msra.mxu0 0.0
      %5183 = vmatprep.subr.mxu0 0.0
      %5184 = vmatpush1.msra.mxu0 0.0
      %5185 = vmatprep.subr.mxu0 0.0
      %5186 = vmatpush1.msra.mxu0 0.0
      %5187 = vmatprep.subr.mxu0 0.0
      %5188 = vmatpush1.msra.mxu0 0.0
      %5189 = vmatprep.subr.mxu0 0.0
      %5190 = vmatpush1.msra.mxu0 0.0
      %5191 = vmatprep.subr.mxu0 0.0
      %5192 = vmatpush1.msra.mxu0 0.0
      %5193 = vmatprep.subr.mxu0 0.0
      %5194 = vmatpush1.msra.mxu0 0.0
      %5195 = vmatprep.subr.mxu0 0.0
      %5196 = vmatpush1.msra.mxu0 0.0
      %5197 = vmatprep.subr.mxu0 0.0
      %5198 = vmatpush1.msra.mxu0 0.0
      %5199 = vmatprep.subr.mxu0 0.0
      %5200 = vmatpush1.msra.mxu0 0.0
      %5201 = vmatprep.subr.mxu0 0.0
      %5202 = vmatpush1.msra.mxu0 0.0
      %5203 = vmatprep.subr.mxu0 0.0
      %5204 = vmatpush1.msra.mxu0 0.0
      %5205 = vmatprep.subr.mxu0 0.0
      %5206 = vmatpush1.msra.mxu0 0.0
      %5207 = vmatprep.subr.mxu0 0.0
      %5208 = vmatpush1.msra.mxu0 %v5128
      %5209 = vmatprep.subr.mxu0 0.0
      %5210 = vmatpush2.msra.mxu0 0.0
      %5211 = vmatprep.subr.mxu0 0.0
      %5212 = vmatpush2.msra.mxu0 0.0
      %5213 = vmatprep.subr.mxu0 0.0
      %5214 = vmatpush2.msra.mxu0 0.0
      %5215 = vmatprep.subr.mxu0 0.0
      %5216 = vmatpush2.msra.mxu0 0.0
      %5217 = vmatprep.subr.mxu0 0.0
      %5218 = vmatpush2.msra.mxu0 0.0
      %5219 = vmatprep.subr.mxu0 0.0
      %5220 = vmatpush2.msra.mxu0 0.0
      %5221 = vmatprep.subr.mxu0 0.0
      %5222 = vmatpush2.msra.mxu0 0.0
      %5223 = vmatprep.subr.mxu0 0.0
      %5224 = vmatpush2.msra.mxu0 0.0
      %5225 = vmatprep.subr.mxu0 0.0
      %5226 = vmatpush2.msra.mxu0 0.0
      %5227 = vmatprep.subr.mxu0 0.0
      %5228 = vmatpush2.msra.mxu0 0.0
      %5229 = vmatprep.subr.mxu0 0.0
      %5230 = vmatpush2.msra.mxu0 0.0
      %5231 = vmatprep.subr.mxu0 0.0
      %5232 = vmatpush2.msra.mxu0 0.0
      %5233 = vmatprep.subr.mxu0 0.0
      %5234 = vmatpush2.msra.mxu0 0.0
      %5235 = vmatprep.subr.mxu0 0.0
      %5236 = vmatpush2.msra.mxu0 0.0
      %5237 = vmatprep.subr.mxu0 0.0
      %5238 = vmatpush2.msra.mxu0 0.0
      %5239 = vmatprep.subr.mxu0 0.0
      %5240 = vmatpush2.msra.mxu0 0.0
      %5241 = vmatprep.mubr.f32.mxu0 0.0
      %5242 = vmatmul.mubr.f32.gmra.mxu0 %v5130
      %v5243 = vpop.f32.mrf.mxu0
      %v5244 = vadd.f32 0.0, %v5243
      %v5245 = vpop.f32.mrf.mxu0
      %5246 = vmatprep.mubr.f32.mxu0 0.0
      %5247 = vmatmul.mubr.f32.gmra.mxu0 %v5133
      %v5248 = vpop.f32.mrf.mxu0
      %v5249 = vadd.f32 0.0, %v5248
      %v5250 = vpop.f32.mrf.mxu0
      %5251 = vmatprep.mubr.f32.mxu0 0.0
      %5252 = vmatmul.mubr.f32.gmra.mxu0 %v5136
      %v5253 = vpop.f32.mrf.mxu0
      %v5254 = vadd.f32 0.0, %v5253
      %v5255 = vpop.f32.mrf.mxu0
      %5256 = vmatprep.mubr.f32.mxu0 0.0
      %5257 = vmatmul.mubr.f32.gmra.mxu0 %v5139
      %v5258 = vpop.f32.mrf.mxu0
      %v5259 = vadd.f32 0.0, %v5258
      %v5260 = vpop.f32.mrf.mxu0
      %5261 = vmatprep.mubr.f32.mxu0 0.0
      %5262 = vmatmul.mubr.f32.gmra.mxu0 %v5142
      %v5263 = vpop.f32.mrf.mxu0
      %v5264 = vadd.f32 0.0, %v5263
      %v5265 = vpop.f32.mrf.mxu0
      %5266 = vmatprep.mubr.f32.mxu0 0.0
      %5267 = vmatmul.mubr.f32.gmra.mxu0 %v5145
      %v5268 = vpop.f32.mrf.mxu0
      %v5269 = vadd.f32 0.0, %v5268
      %v5270 = vpop.f32.mrf.mxu0
      %5271 = vmatprep.mubr.f32.mxu0 0.0
      %5272 = vmatmul.mubr.f32.gmra.mxu0 %v5148
      %v5273 = vpop.f32.mrf.mxu0
      %v5274 = vadd.f32 0.0, %v5273
      %v5275 = vpop.f32.mrf.mxu0
      %5276 = vmatprep.mubr.f32.mxu0 0.0
      %5277 = vmatmul.mubr.f32.gmra.mxu0 %v5151
      %v5278 = vpop.f32.mrf.mxu0
      %v5279 = vadd.f32 0.0, %v5278
      %v5280 = vpop.f32.mrf.mxu0
      %5281 = vmatprep.mubr.f32.mxu0 0.0
      %5282 = vmatmul.mubr.f32.gmra.mxu0 %v5154
      %v5283 = vpop.f32.mrf.mxu0
      %v5284 = vadd.f32 0.0, %v5283
      %v5285 = vpop.f32.mrf.mxu0
      %5286 = vmatprep.mubr.f32.mxu0 0.0
      %5287 = vmatmul.mubr.f32.gmra.mxu0 %v5157
      %v5288 = vpop.f32.mrf.mxu0
      %v5289 = vadd.f32 0.0, %v5288
      %v5290 = vpop.f32.mrf.mxu0
      %5291 = vmatprep.mubr.f32.mxu0 0.0
      %5292 = vmatmul.mubr.f32.gmra.mxu0 %v5160
      %v5293 = vpop.f32.mrf.mxu0
      %v5294 = vadd.f32 0.0, %v5293
      %v5295 = vpop.f32.mrf.mxu0
      %5296 = vmatprep.mubr.f32.mxu0 0.0
      %5297 = vmatmul.mubr.f32.gmra.mxu0 %v5163
      %v5298 = vpop.f32.mrf.mxu0
      %v5299 = vadd.f32 0.0, %v5298
      %v5300 = vpop.f32.mrf.mxu0
      %5301 = vmatprep.mubr.f32.mxu0 0.0
      %5302 = vmatmul.mubr.f32.gmra.mxu0 %v5166
      %v5303 = vpop.f32.mrf.mxu0
      %v5304 = vadd.f32 0.0, %v5303
      %v5305 = vpop.f32.mrf.mxu0
      %5306 = vmatprep.mubr.f32.mxu0 0.0
      %5307 = vmatmul.mubr.f32.gmra.mxu0 %v5169
      %v5308 = vpop.f32.mrf.mxu0
      %v5309 = vadd.f32 0.0, %v5308
      %v5310 = vpop.f32.mrf.mxu0
      %5311 = vmatprep.mubr.f32.mxu0 0.0
      %5312 = vmatmul.mubr.f32.gmra.mxu0 %v5172
      %v5313 = vpop.f32.mrf.mxu0
      %v5314 = vadd.f32 0.0, %v5313
      %v5315 = vpop.f32.mrf.mxu0
      %5316 = vmatprep.mubr.f32.mxu0 0.0
      %5317 = vmatmul.mubr.f32.gmra.mxu0 %v5175
      %v5318 = vpop.f32.mrf.mxu0
      %v5319 = vadd.f32 0.0, %v5318
      %v5320 = vpop.f32.mrf.mxu0
      %5321 = vdwg.mxu0
      %v5322 = vadd.f32 %v5111, %v5244
      %v5323 = vadd.f32 %v5112, %v5249
      %v5324 = vadd.f32 %v5113, %v5254
      %v5325 = vadd.f32 %v5114, %v5259
      %v5326 = vadd.f32 %v5115, %v5264
      %v5327 = vadd.f32 %v5116, %v5269
      %v5328 = vadd.f32 %v5117, %v5274
      %v5329 = vadd.f32 %v5118, %v5279
      %v5330 = vadd.f32 %v5119, %v5284
      %v5331 = vadd.f32 %v5120, %v5289
      %v5332 = vadd.f32 %v5121, %v5294
      %v5333 = vadd.f32 %v5122, %v5299
      %v5334 = vadd.f32 %v5123, %v5304
      %v5335 = vadd.f32 %v5124, %v5309
      %v5336 = vadd.f32 %v5125, %v5314
      %v5337 = vadd.f32 %v5126, %v5319
      %5338 = vst.msk [vmem:[#allocation5] sm:$0xff] %vm327, %v5322
      %5339 = vst.msk [vmem:[#allocation5 + $0x8] sm:$0xff] %vm327, %v5323
      %5340 = vst.msk [vmem:[#allocation5 + $0x10] sm:$0xff] %vm327, %v5324
      %5341 = vst.msk [vmem:[#allocation5 + $0x18] sm:$0xff] %vm327, %v5325
      %5342 = vst.msk [vmem:[#allocation5 + $0x20] sm:$0xff] %vm327, %v5326
      %5343 = vst.msk [vmem:[#allocation5 + $0x28] sm:$0xff] %vm327, %v5327
      %5344 = vst.msk [vmem:[#allocation5 + $0x30] sm:$0xff] %vm327, %v5328
      %5345 = vst.msk [vmem:[#allocation5 + $0x38] sm:$0xff] %vm327, %v5329
      %5346 = vst.msk [vmem:[#allocation5 + $0x40] sm:$0xff] %vm327, %v5330
      %5347 = vst.msk [vmem:[#allocation5 + $0x48] sm:$0xff] %vm327, %v5331
      %5348 = vst.msk [vmem:[#allocation5 + $0x50] sm:$0xff] %vm327, %v5332
      %5349 = vst.msk [vmem:[#allocation5 + $0x58] sm:$0xff] %vm327, %v5333
      %5350 = vst.msk [vmem:[#allocation5 + $0x60] sm:$0xff] %vm327, %v5334
      %5351 = vst.msk [vmem:[#allocation5 + $0x68] sm:$0xff] %vm327, %v5335
      %5352 = vst.msk [vmem:[#allocation5 + $0x70] sm:$0xff] %vm327, %v5336
      %5353 = vst.msk [vmem:[#allocation5 + $0x78] sm:$0xff] %vm327, %v5337
      %v5354 = vld [vmem:[%s4835 + $0x2] sm:$0xff]
      %v5355 = vld [vmem:[%s4835 + $0xa] sm:$0xff]
      %v5356 = vld [vmem:[%s4835 + $0x1a] sm:$0xff]
      %v5357 = vld [vmem:[%s4835 + $0x22] sm:$0xff]
      %v5358 = vld [vmem:[%s4835 + $0x32] sm:$0xff]
      %v5359 = vld [vmem:[%s4835 + $0x3a] sm:$0xff]
      %v5360 = vld [vmem:[%s4835 + $0x4a] sm:$0xff]
      %v5361 = vld [vmem:[%s4835 + $0x52] sm:$0xff]
      %v5362 = vld [vmem:[%s4835 + $0x62] sm:$0xff]
      %v5363 = vld [vmem:[%s4835 + $0x6a] sm:$0xff]
      %v5364 = vld [vmem:[%s4835 + $0x7a] sm:$0xff]
      %v5365 = vld [vmem:[%s4835 + $0x82] sm:$0xff]
      %v5366 = vld [vmem:[%s4835 + $0x92] sm:$0xff]
      %v5367 = vld [vmem:[%s4835 + $0x9a] sm:$0xff]
      %v5368 = vld [vmem:[%s4835 + $0xaa] sm:$0xff]
      %v5369 = vld [vmem:[%s4835 + $0xb2] sm:$0xff]
      %v5370 = vld [vmem:[#allocation5] sm:$0xff]
      %v5371 = vld [vmem:[#allocation5 + $0x8] sm:$0xff]
      %v5372 = vld [vmem:[#allocation5 + $0x10] sm:$0xff]
      %v5373 = vld [vmem:[#allocation5 + $0x18] sm:$0xff]
      %v5374 = vld [vmem:[#allocation5 + $0x20] sm:$0xff]
      %v5375 = vld [vmem:[#allocation5 + $0x28] sm:$0xff]
      %v5376 = vld [vmem:[#allocation5 + $0x30] sm:$0xff]
      %v5377 = vld [vmem:[#allocation5 + $0x38] sm:$0xff]
      %v5378 = vld [vmem:[#allocation5 + $0x40] sm:$0xff]
      %v5379 = vld [vmem:[#allocation5 + $0x48] sm:$0xff]
      %v5380 = vld [vmem:[#allocation5 + $0x50] sm:$0xff]
      %v5381 = vld [vmem:[#allocation5 + $0x58] sm:$0xff]
      %v5382 = vld [vmem:[#allocation5 + $0x60] sm:$0xff]
      %v5383 = vld [vmem:[#allocation5 + $0x68] sm:$0xff]
      %v5384 = vld [vmem:[#allocation5 + $0x70] sm:$0xff]
      %v5385 = vld [vmem:[#allocation5 + $0x78] sm:$0xff]
      %s5386 = scalar_lea.vmem %s3, 64
      %v5387 = vld [vmem:[%s5386] sm:$0xff]
      %v5389 = vsel %vm327, %v5354, 0
      %v5392 = vsel %vm327, %v5355, 0
      %v5395 = vsel %vm327, %v5356, 0
      %v5398 = vsel %vm327, %v5357, 0
      %v5401 = vsel %vm327, %v5358, 0
      %v5404 = vsel %vm327, %v5359, 0
      %v5407 = vsel %vm327, %v5360, 0
      %v5410 = vsel %vm327, %v5361, 0
      %v5413 = vsel %vm327, %v5362, 0
      %v5416 = vsel %vm327, %v5363, 0
      %v5419 = vsel %vm327, %v5364, 0
      %v5422 = vsel %vm327, %v5365, 0
      %v5425 = vsel %vm327, %v5366, 0
      %v5428 = vsel %vm327, %v5367, 0
      %v5431 = vsel %vm327, %v5368, 0
      %v5434 = vsel %vm327, %v5369, 0
      %5436 = vmatprep.subr.mxu0 0.0
      %5437 = vmatpush1.msra.mxu0 0.0
      %5438 = vmatprep.subr.mxu0 0.0
      %5439 = vmatpush1.msra.mxu0 0.0
      %5440 = vmatprep.subr.mxu0 0.0
      %5441 = vmatpush1.msra.mxu0 0.0
      %5442 = vmatprep.subr.mxu0 0.0
      %5443 = vmatpush1.msra.mxu0 0.0
      %5444 = vmatprep.subr.mxu0 0.0
      %5445 = vmatpush1.msra.mxu0 0.0
      %5446 = vmatprep.subr.mxu0 0.0
      %5447 = vmatpush1.msra.mxu0 0.0
      %5448 = vmatprep.subr.mxu0 0.0
      %5449 = vmatpush1.msra.mxu0 0.0
      %5450 = vmatprep.subr.mxu0 0.0
      %5451 = vmatpush1.msra.mxu0 0.0
      %5452 = vmatprep.subr.mxu0 0.0
      %5453 = vmatpush1.msra.mxu0 0.0
      %5454 = vmatprep.subr.mxu0 0.0
      %5455 = vmatpush1.msra.mxu0 0.0
      %5456 = vmatprep.subr.mxu0 0.0
      %5457 = vmatpush1.msra.mxu0 0.0
      %5458 = vmatprep.subr.mxu0 0.0
      %5459 = vmatpush1.msra.mxu0 0.0
      %5460 = vmatprep.subr.mxu0 0.0
      %5461 = vmatpush1.msra.mxu0 0.0
      %5462 = vmatprep.subr.mxu0 0.0
      %5463 = vmatpush1.msra.mxu0 0.0
      %5464 = vmatprep.subr.mxu0 0.0
      %5465 = vmatpush1.msra.mxu0 0.0
      %5466 = vmatprep.subr.mxu0 0.0
      %5467 = vmatpush1.msra.mxu0 %v5387
      %5468 = vmatprep.subr.mxu0 0.0
      %5469 = vmatpush2.msra.mxu0 0.0
      %5470 = vmatprep.subr.mxu0 0.0
      %5471 = vmatpush2.msra.mxu0 0.0
      %5472 = vmatprep.subr.mxu0 0.0
      %5473 = vmatpush2.msra.mxu0 0.0
      %5474 = vmatprep.subr.mxu0 0.0
      %5475 = vmatpush2.msra.mxu0 0.0
      %5476 = vmatprep.subr.mxu0 0.0
      %5477 = vmatpush2.msra.mxu0 0.0
      %5478 = vmatprep.subr.mxu0 0.0
      %5479 = vmatpush2.msra.mxu0 0.0
      %5480 = vmatprep.subr.mxu0 0.0
      %5481 = vmatpush2.msra.mxu0 0.0
      %5482 = vmatprep.subr.mxu0 0.0
      %5483 = vmatpush2.msra.mxu0 0.0
      %5484 = vmatprep.subr.mxu0 0.0
      %5485 = vmatpush2.msra.mxu0 0.0
      %5486 = vmatprep.subr.mxu0 0.0
      %5487 = vmatpush2.msra.mxu0 0.0
      %5488 = vmatprep.subr.mxu0 0.0
      %5489 = vmatpush2.msra.mxu0 0.0
      %5490 = vmatprep.subr.mxu0 0.0
      %5491 = vmatpush2.msra.mxu0 0.0
      %5492 = vmatprep.subr.mxu0 0.0
      %5493 = vmatpush2.msra.mxu0 0.0
      %5494 = vmatprep.subr.mxu0 0.0
      %5495 = vmatpush2.msra.mxu0 0.0
      %5496 = vmatprep.subr.mxu0 0.0
      %5497 = vmatpush2.msra.mxu0 0.0
      %5498 = vmatprep.subr.mxu0 0.0
      %5499 = vmatpush2.msra.mxu0 0.0
      %5500 = vmatprep.mubr.f32.mxu0 0.0
      %5501 = vmatmul.mubr.f32.gmra.mxu0 %v5389
      %v5502 = vpop.f32.mrf.mxu0
      %v5503 = vadd.f32 0.0, %v5502
      %v5504 = vpop.f32.mrf.mxu0
      %5505 = vmatprep.mubr.f32.mxu0 0.0
      %5506 = vmatmul.mubr.f32.gmra.mxu0 %v5392
      %v5507 = vpop.f32.mrf.mxu0
      %v5508 = vadd.f32 0.0, %v5507
      %v5509 = vpop.f32.mrf.mxu0
      %5510 = vmatprep.mubr.f32.mxu0 0.0
      %5511 = vmatmul.mubr.f32.gmra.mxu0 %v5395
      %v5512 = vpop.f32.mrf.mxu0
      %v5513 = vadd.f32 0.0, %v5512
      %v5514 = vpop.f32.mrf.mxu0
      %5515 = vmatprep.mubr.f32.mxu0 0.0
      %5516 = vmatmul.mubr.f32.gmra.mxu0 %v5398
      %v5517 = vpop.f32.mrf.mxu0
      %v5518 = vadd.f32 0.0, %v5517
      %v5519 = vpop.f32.mrf.mxu0
      %5520 = vmatprep.mubr.f32.mxu0 0.0
      %5521 = vmatmul.mubr.f32.gmra.mxu0 %v5401
      %v5522 = vpop.f32.mrf.mxu0
      %v5523 = vadd.f32 0.0, %v5522
      %v5524 = vpop.f32.mrf.mxu0
      %5525 = vmatprep.mubr.f32.mxu0 0.0
      %5526 = vmatmul.mubr.f32.gmra.mxu0 %v5404
      %v5527 = vpop.f32.mrf.mxu0
      %v5528 = vadd.f32 0.0, %v5527
      %v5529 = vpop.f32.mrf.mxu0
      %5530 = vmatprep.mubr.f32.mxu0 0.0
      %5531 = vmatmul.mubr.f32.gmra.mxu0 %v5407
      %v5532 = vpop.f32.mrf.mxu0
      %v5533 = vadd.f32 0.0, %v5532
      %v5534 = vpop.f32.mrf.mxu0
      %5535 = vmatprep.mubr.f32.mxu0 0.0
      %5536 = vmatmul.mubr.f32.gmra.mxu0 %v5410
      %v5537 = vpop.f32.mrf.mxu0
      %v5538 = vadd.f32 0.0, %v5537
      %v5539 = vpop.f32.mrf.mxu0
      %5540 = vmatprep.mubr.f32.mxu0 0.0
      %5541 = vmatmul.mubr.f32.gmra.mxu0 %v5413
      %v5542 = vpop.f32.mrf.mxu0
      %v5543 = vadd.f32 0.0, %v5542
      %v5544 = vpop.f32.mrf.mxu0
      %5545 = vmatprep.mubr.f32.mxu0 0.0
      %5546 = vmatmul.mubr.f32.gmra.mxu0 %v5416
      %v5547 = vpop.f32.mrf.mxu0
      %v5548 = vadd.f32 0.0, %v5547
      %v5549 = vpop.f32.mrf.mxu0
      %5550 = vmatprep.mubr.f32.mxu0 0.0
      %5551 = vmatmul.mubr.f32.gmra.mxu0 %v5419
      %v5552 = vpop.f32.mrf.mxu0
      %v5553 = vadd.f32 0.0, %v5552
      %v5554 = vpop.f32.mrf.mxu0
      %5555 = vmatprep.mubr.f32.mxu0 0.0
      %5556 = vmatmul.mubr.f32.gmra.mxu0 %v5422
      %v5557 = vpop.f32.mrf.mxu0
      %v5558 = vadd.f32 0.0, %v5557
      %v5559 = vpop.f32.mrf.mxu0
      %5560 = vmatprep.mubr.f32.mxu0 0.0
      %5561 = vmatmul.mubr.f32.gmra.mxu0 %v5425
      %v5562 = vpop.f32.mrf.mxu0
      %v5563 = vadd.f32 0.0, %v5562
      %v5564 = vpop.f32.mrf.mxu0
      %5565 = vmatprep.mubr.f32.mxu0 0.0
      %5566 = vmatmul.mubr.f32.gmra.mxu0 %v5428
      %v5567 = vpop.f32.mrf.mxu0
      %v5568 = vadd.f32 0.0, %v5567
      %v5569 = vpop.f32.mrf.mxu0
      %5570 = vmatprep.mubr.f32.mxu0 0.0
      %5571 = vmatmul.mubr.f32.gmra.mxu0 %v5431
      %v5572 = vpop.f32.mrf.mxu0
      %v5573 = vadd.f32 0.0, %v5572
      %v5574 = vpop.f32.mrf.mxu0
      %5575 = vmatprep.mubr.f32.mxu0 0.0
      %5576 = vmatmul.mubr.f32.gmra.mxu0 %v5434
      %v5577 = vpop.f32.mrf.mxu0
      %v5578 = vadd.f32 0.0, %v5577
      %v5579 = vpop.f32.mrf.mxu0
      %5580 = vdwg.mxu0
      %v5581 = vadd.f32 %v5370, %v5503
      %v5582 = vadd.f32 %v5371, %v5508
      %v5583 = vadd.f32 %v5372, %v5513
      %v5584 = vadd.f32 %v5373, %v5518
      %v5585 = vadd.f32 %v5374, %v5523
      %v5586 = vadd.f32 %v5375, %v5528
      %v5587 = vadd.f32 %v5376, %v5533
      %v5588 = vadd.f32 %v5377, %v5538
      %v5589 = vadd.f32 %v5378, %v5543
      %v5590 = vadd.f32 %v5379, %v5548
      %v5591 = vadd.f32 %v5380, %v5553
      %v5592 = vadd.f32 %v5381, %v5558
      %v5593 = vadd.f32 %v5382, %v5563
      %v5594 = vadd.f32 %v5383, %v5568
      %v5595 = vadd.f32 %v5384, %v5573
      %v5596 = vadd.f32 %v5385, %v5578
      %5597 = vst.msk [vmem:[#allocation5] sm:$0xff] %vm327, %v5581
      %5598 = vst.msk [vmem:[#allocation5 + $0x8] sm:$0xff] %vm327, %v5582
      %5599 = vst.msk [vmem:[#allocation5 + $0x10] sm:$0xff] %vm327, %v5583
      %5600 = vst.msk [vmem:[#allocation5 + $0x18] sm:$0xff] %vm327, %v5584
      %5601 = vst.msk [vmem:[#allocation5 + $0x20] sm:$0xff] %vm327, %v5585
      %5602 = vst.msk [vmem:[#allocation5 + $0x28] sm:$0xff] %vm327, %v5586
      %5603 = vst.msk [vmem:[#allocation5 + $0x30] sm:$0xff] %vm327, %v5587
      %5604 = vst.msk [vmem:[#allocation5 + $0x38] sm:$0xff] %vm327, %v5588
      %5605 = vst.msk [vmem:[#allocation5 + $0x40] sm:$0xff] %vm327, %v5589
      %5606 = vst.msk [vmem:[#allocation5 + $0x48] sm:$0xff] %vm327, %v5590
      %5607 = vst.msk [vmem:[#allocation5 + $0x50] sm:$0xff] %vm327, %v5591
      %5608 = vst.msk [vmem:[#allocation5 + $0x58] sm:$0xff] %vm327, %v5592
      %5609 = vst.msk [vmem:[#allocation5 + $0x60] sm:$0xff] %vm327, %v5593
      %5610 = vst.msk [vmem:[#allocation5 + $0x68] sm:$0xff] %vm327, %v5594
      %5611 = vst.msk [vmem:[#allocation5 + $0x70] sm:$0xff] %vm327, %v5595
      %5612 = vst.msk [vmem:[#allocation5 + $0x78] sm:$0xff] %vm327, %v5596
      %v5613 = vld [vmem:[#allocation5] sm:$0xff]
      %v5614 = vld [vmem:[#allocation5 + $0x8] sm:$0xff]
      %v5615 = vld [vmem:[#allocation5 + $0x10] sm:$0xff]
      %v5616 = vld [vmem:[#allocation5 + $0x18] sm:$0xff]
      %v5617 = vld [vmem:[#allocation5 + $0x20] sm:$0xff]
      %v5618 = vld [vmem:[#allocation5 + $0x28] sm:$0xff]
      %v5619 = vld [vmem:[#allocation5 + $0x30] sm:$0xff]
      %v5620 = vld [vmem:[#allocation5 + $0x38] sm:$0xff]
      %v5621 = vld [vmem:[#allocation5 + $0x40] sm:$0xff]
      %v5622 = vld [vmem:[#allocation5 + $0x48] sm:$0xff]
      %v5623 = vld [vmem:[#allocation5 + $0x50] sm:$0xff]
      %v5624 = vld [vmem:[#allocation5 + $0x58] sm:$0xff]
      %v5625 = vld [vmem:[#allocation5 + $0x60] sm:$0xff]
      %v5626 = vld [vmem:[#allocation5 + $0x68] sm:$0xff]
      %v5627 = vld [vmem:[#allocation5 + $0x70] sm:$0xff]
      %v5628 = vld [vmem:[#allocation5 + $0x78] sm:$0xff]
      %v5629 = vld [vmem:[%s4] sm:$0x1]
      %v5631 = vlaneseq
      %v5632 = vshrl.u32 %v5631, 7
      %v5633 = vsub.s32 0, %v5632
      %v5634 = vrot.slane %v5629, %v5633
      %v5636 = vadd.f32 %v5613, %v5634
      %v5637 = vadd.f32 %v5614, %v5634
      %v5638 = vadd.f32 %v5615, %v5634
      %v5639 = vadd.f32 %v5616, %v5634
      %v5640 = vadd.f32 %v5617, %v5634
      %v5641 = vadd.f32 %v5618, %v5634
      %v5642 = vadd.f32 %v5619, %v5634
      %v5643 = vadd.f32 %v5620, %v5634
      %v5644 = vadd.f32 %v5621, %v5634
      %v5645 = vadd.f32 %v5622, %v5634
      %v5646 = vadd.f32 %v5623, %v5634
      %v5647 = vadd.f32 %v5624, %v5634
      %v5648 = vadd.f32 %v5625, %v5634
      %v5649 = vadd.f32 %v5626, %v5634
      %v5650 = vadd.f32 %v5627, %v5634
      %v5651 = vadd.f32 %v5628, %v5634
      %v5652 = vmax.f32 %v5636, 0.0
      %v5653 = vmax.f32 %v5637, 0.0
      %v5654 = vmax.f32 %v5638, 0.0
      %v5655 = vmax.f32 %v5639, 0.0
      %v5656 = vmax.f32 %v5640, 0.0
      %v5657 = vmax.f32 %v5641, 0.0
      %v5658 = vmax.f32 %v5642, 0.0
      %v5659 = vmax.f32 %v5643, 0.0
      %v5660 = vmax.f32 %v5644, 0.0
      %v5661 = vmax.f32 %v5645, 0.0
      %v5662 = vmax.f32 %v5646, 0.0
      %v5663 = vmax.f32 %v5647, 0.0
      %v5664 = vmax.f32 %v5648, 0.0
      %v5665 = vmax.f32 %v5649, 0.0
      %v5666 = vmax.f32 %v5650, 0.0
      %v5667 = vmax.f32 %v5651, 0.0
      %5668 = vst.msk [vmem:[%s248] sm:$0xff] %vm327, %v5652
      %5669 = vst.msk [vmem:[%s248 + $0x8] sm:$0xff] %vm327, %v5653
      %5670 = vst.msk [vmem:[%s248 + $0x10] sm:$0xff] %vm327, %v5654
      %5671 = vst.msk [vmem:[%s248 + $0x18] sm:$0xff] %vm327, %v5655
      %5672 = vst.msk [vmem:[%s248 + $0x20] sm:$0xff] %vm327, %v5656
      %5673 = vst.msk [vmem:[%s248 + $0x28] sm:$0xff] %vm327, %v5657
      %5674 = vst.msk [vmem:[%s248 + $0x30] sm:$0xff] %vm327, %v5658
      %5675 = vst.msk [vmem:[%s248 + $0x38] sm:$0xff] %vm327, %v5659
      %5676 = vst.msk [vmem:[%s248 + $0x40] sm:$0xff] %vm327, %v5660
      %5677 = vst.msk [vmem:[%s248 + $0x48] sm:$0xff] %vm327, %v5661
      %5678 = vst.msk [vmem:[%s248 + $0x50] sm:$0xff] %vm327, %v5662
      %5679 = vst.msk [vmem:[%s248 + $0x58] sm:$0xff] %vm327, %v5663
      %5680 = vst.msk [vmem:[%s248 + $0x60] sm:$0xff] %vm327, %v5664
      %5681 = vst.msk [vmem:[%s248 + $0x68] sm:$0xff] %vm327, %v5665
      %5682 = vst.msk [vmem:[%s248 + $0x70] sm:$0xff] %vm327, %v5666
      %5683 = vst.msk [vmem:[%s248 + $0x78] sm:$0xff] %vm327, %v5667
      %s5684 = smul.u32 8, %s21
      %p5685 = scmp.lt.s32.totalorder %s20, 1
      %s5686 = scalar_select %p5685, %s20, 1
      %p5687 = scmp.lt.s32.totalorder %s5684, 15
      %s5688 = scalar_select %p5687, %s5684, 15
      %s5689 = smul.addr %s5688, 2
      %s5690 = smul.addr %s5686, 32
      %s5691 = sadd.s32 %s5689, %s5690
      %s5692 = smul.addr %s5691, 8
      %s5693 = scalar_lea.vmem %s5, %s5692
      // Predicated region
      $region49: #{tpu_custom_call.1} parent=39 // pred_check
        %p5694 = pneg %p158
      $region50: #{tpu_custom_call.1} parent=39 // pred_check_branch
        %5696 = sbr.rel (%p5694) target = $region52
      $region51: #{tpu_custom_call.1} parent=39 // pred_region
        %s5697 = smul.u32 8, %s21
      $region52: #{tpu_custom_call.1} parent=39 // pred_fallthru
        _
    $region40: #{tpu_custom_call.1} parent=5 // pred_fallthru
      _
    %p5698 = scmp.le.s32.totalorder 2, %s11
    // Predicated region
    $region53: #{tpu_custom_call.1} parent=5 // pred_check
      %p5699 = pneg %p5698
    $region54: #{tpu_custom_call.1} parent=5 // pred_check_branch
      %5701 = sbr.rel (%p5699) target = $region56
    $region55: #{tpu_custom_call.1} parent=5 // pred_region
      %s5702 = ssub.s32 %s11, 2
      // Predicated region
      $region57: #{tpu_custom_call.1} parent=55 // pred_check
        %p5703 = pneg %p164
      $region58: #{tpu_custom_call.1} parent=55 // pred_check_branch
        %5705 = sbr.rel (%p5703) target = $region60
      $region59: #{tpu_custom_call.1} parent=55 // pred_region
        %s5706 = smul.u32 8, %s23
        %p5707 = scmp.lt.s32.totalorder %s22, 1
        %s5708 = scalar_select %p5707, %s22, 1
        %p5709 = scmp.lt.s32.totalorder %s5706, 15
        %s5710 = scalar_select %p5709, %s5706, 15
        %s5711 = smul.addr %s5710, 2
        %s5712 = smul.addr %s5708, 32
        %s5713 = sadd.s32 %s5711, %s5712
        %s5714 = smul.addr %s5713, 8
        %s5715 = scalar_lea.vmem %s5, %s5714
      $region60: #{tpu_custom_call.1} parent=55 // pred_fallthru
        _
    $region56: #{tpu_custom_call.1} parent=5 // pred_fallthru
      _
  $region6: #{tpu_custom_call.1} parent=0 // loop_footer
    %s15 = sadd.s32 1, %s11
  $region7: #{tpu_custom_call.1} parent=0 // loop_footer_branch
    %10 = sbr.rel target = $region3
  $region8: #{tpu_custom_call.1} parent=0 // loop_exit
    _

</llo_original>
